<compile_context>
chip_gen: v7x
topology: tpu7x:2x2x1
jax: 0.10.0
libtpu: 0.0.40
codegen_flags: <defaults>
</compile_context>

<pallas_src>
import functools

import jax
import jax.numpy as jnp
from jax import lax
from jax.experimental import pallas as pl
from jax.experimental.pallas import tpu as pltpu


# ----------------------------------------------------------------------------- kernel ---
def _upsample_conv_kernel(x_ref, w_ref, b_ref, o_ref, pad_ref):
    """Grid: (N, H // Ht); one batch element x one H-row tile per step.

    x_ref   : (1, Cin, H, W)        full original-resolution image (resident across h)
    w_ref   : (4, Cout, 4*Cin)      per-phase folded weights, phase = 2*py + px,
                                    K ordered (da, db, cin) over the phase's 2x2 window
    b_ref   : (Cout, 1)             f32 bias
    o_ref   : (1, Cout, Ht, 4*W)    output tile; lanes [0,2W) = rows 2i, [2W,4W) = rows 2i+1
    pad_ref : VMEM (Cin, Ht+2, W+2) halo scratch (1-px zero border)
    """
    Cin, W = x_ref.shape[1], x_ref.shape[3]
    Cout, Ht = o_ref.shape[1], o_ref.shape[2]
    cdt = pad_ref.dtype

    h = pl.program_id(1)
    nh = pl.num_programs(1)
    row0 = pl.multiple_of(h * Ht, Ht)

    # ---- build the 1-px halo in VMEM (border-only zeroing; no full-pad memset) ----
    pad_ref[:, :, 0:1] = jnp.zeros((Cin, Ht + 2, 1), cdt)            # left border col
    pad_ref[:, :, W + 1:W + 2] = jnp.zeros((Cin, Ht + 2, 1), cdt)    # right border col
    pad_ref[:, 1:Ht + 1, 1:W + 1] = x_ref[0, :, pl.ds(row0, Ht), :]  # core rows

    @pl.when(h > 0)                                                  # top halo row
    def _():
        pad_ref[:, 0:1, 1:W + 1] = x_ref[0, :, pl.ds(row0 - 1, 1), :]

    @pl.when(h == 0)
    def _():
        pad_ref[:, 0:1, 1:W + 1] = jnp.zeros((Cin, 1, W), cdt)

    @pl.when(h < nh - 1)                                             # bottom halo row
    def _():
        pad_ref[:, Ht + 1:Ht + 2, 1:W + 1] = x_ref[0, :, pl.ds(row0 + Ht, 1), :]

    @pl.when(h == nh - 1)
    def _():
        pad_ref[:, Ht + 1:Ht + 2, 1:W + 1] = jnp.zeros((Cin, 1, W), cdt)

    # ---- per-phase MXU matmuls (each phase only needs a 2x2 window of the halo) ----
    HW = Ht * W

    def tap(a, b):  # (Cin, HW) view of the halo window at offset (a, b)
        return pad_ref[:, a:a + Ht, b:b + W].reshape(Cin, HW)

    def phase(py, px):  # -> (Cout, HW) in output dtype (f32 accumulate + f32 bias add)
        lhs = jnp.concatenate(
            [tap(py, px), tap(py, px + 1), tap(py + 1, px), tap(py + 1, px + 1)], axis=0)
        res = jnp.dot(w_ref[2 * py + px], lhs, preferred_element_type=jnp.float32)
        return (res + b_ref[...]).astype(o_ref.dtype)

    # Parity mask hoisted once and shared by both row-parities' column interleaves.
    even = lax.broadcasted_iota(jnp.int32, (1, 2 * HW), 1) % 2 == 0
    # TODO(synk): for bf16 outputs replace the select-interleave with a 2x16-bit -> u32
    # pack (pltpu.bitcast) once the pair ordering is verified on hardware.

    def interleave(a, b):  # out[:, 2k] = a[:, k]; out[:, 2k+1] = b[:, k]
        a2 = jnp.broadcast_to(a[:, :, None], (Cout, HW, 2)).reshape(Cout, 2 * HW)
        b2 = jnp.broadcast_to(b[:, :, None], (Cout, HW, 2)).reshape(Cout, 2 * HW)
        return jnp.where(even, a2, b2)

    # Even output rows (2i) = phases (0,0)/(0,1); stored before the odd-row pair is
    # computed so the first pair's temporaries are dead before the second pair is live.
    top = interleave(phase(0, 0), phase(0, 1)).reshape(Cout, Ht, 2 * W)
    o_ref[0, :, :, 0:2 * W] = top
    bot = interleave(phase(1, 0), phase(1, 1)).reshape(Cout, Ht, 2 * W)
    o_ref[0, :, :, 2 * W:4 * W] = bot


# ---------------------------------------------------------------------- wrapper helpers ---
def _fold_upsample_into_weights(weight):
    """(Cout, Cin, 3, 3) conv weight -> (4, Cout, 4*Cin) per-phase folded weights (f32).

    Phase (py, px) produces output pixel (2i+py, 2j+px); conv tap (dy, dx) on the nearest-2x
    upsampled image reads original pixel (i + (py+dy-1)//2, j + (px+dx-1)//2), i.e. only a
    2x2 window per phase.  K is ordered (da, db, cin), da/db in {0,1}.
    """
    Cout, Cin = weight.shape[0], weight.shape[1]
    w = weight.astype(jnp.float32)
    wph = jnp.zeros((2, 2, Cout, 2, 2, Cin), jnp.float32)
    for py in range(2):
        for px in range(2):
            for dy in range(3):
                da = (py + dy - 1) // 2 + 1 - py
                for dx in range(3):
                    db = (px + dx - 1) // 2 + 1 - px
                    wph = wph.at[py, px, :, da, db, :].add(w[:, :, dy, dx])
    return wph.reshape(4, Cout, 4 * Cin)


def _vmem_capacity_bytes():
    try:
        return int(pltpu.get_tpu_info().vmem_capacity_bytes)
    except Exception:
        return 64 * 1024 * 1024   # conservative fallback (v7x per-core VMEM)


def _footprint_bytes(ht, H, W, Cin, Cout, itemsize):
    """Rough per-grid-step VMEM working-set estimate (buffers + large temporaries)."""
    x_res = 2 * Cin * H * W * itemsize            # resident input image (+ next-batch buffer)
    w_res = 4 * Cout * 4 * Cin * itemsize         # folded weights (resident)
    out_db = 2 * Cout * ht * 4 * W * itemsize     # double-buffered output tile
    pad = Cin * (ht + 2) * (W + 2) * itemsize     # halo scratch
    lhs = 2 * 4 * Cin * ht * W * itemsize         # per-phase im2col + tap temporaries
    acc = 2 * Cout * ht * W * 4                   # f32 matmul results
    inter = 3 * Cout * 2 * ht * W * itemsize      # interleave temporaries
    return x_res + w_res + out_db + pad + lhs + acc + inter + Cout * 4


def _choose_h_tile(N, H, W, Cin, Cout, itemsize, budget):
    # Ht must divide H and be sublane-aligned (multiple of 8) or equal to H.
    cands = sorted({d for d in range(8, H + 1, 8) if H % d == 0} | {H})
    best = cands[0]
    for ht in cands:                              # largest candidate within the VMEM budget
        if _footprint_bytes(ht, H, W, Cin, Cout, itemsize) <= budget:
            best = ht
    while N * (H // best) < 2:                    # keep >=2 grid steps for megacore sharding
        smaller = [c for c in cands if c < best]
        if not smaller:
            break
        best = smaller[-1]
    return best


# -------------------------------------------------------------------------- entry point ---
@functools.partial(jax.jit, static_argnames=("h_tile", "mxu_dtype"))
def pare_upsample2d(x_nchw, weight, bias, *, h_tile=None, mxu_dtype=None):
    """Forward of PareUpsample2D(channels, use_conv=True, interpolate=True), NCHW.

    x_nchw : (N, Cin, H, W);  weight : (Cout, Cin, 3, 3);  bias : (Cout,)
    returns (N, Cout, 2H, 2W) in x's dtype.

    mxu_dtype: optional matmul dtype (e.g. jnp.bfloat16) for f32 callers; accumulation
    stays f32.  Nearest-neighbour upsampling is bit-exact in any dtype, so the module's
    bf16 -> f32 -> bf16 round trip around F.interpolate has no numerical effect.
    """
    N, Cin, H, W = x_nchw.shape
    Cout = weight.shape[0]
    out_dt = x_nchw.dtype
    cdt = jnp.dtype(mxu_dtype) if mxu_dtype is not None else jnp.dtype(out_dt)
    itemsize = cdt.itemsize

    cap = _vmem_capacity_bytes()
    budget = int(min(cap, 128 * 1024 * 1024) * 0.45)
    if h_tile is None:
        Ht = _choose_h_tile(N, H, W, Cin, Cout, itemsize, budget)
    else:
        Ht = int(h_tile)
        if H % Ht != 0:
            raise ValueError(f"h_tile={Ht} must divide H={H}")
    n_h = H // Ht

    vmem_limit = int(min(max(32 * 1024 * 1024,
                             1.5 * _footprint_bytes(Ht, H, W, Cin, Cout, itemsize)),
                         0.85 * cap, 110 * 1024 * 1024))

    x_in = x_nchw.astype(cdt)
    wmat = _fold_upsample_into_weights(weight).astype(cdt)        # (4, Cout, 4*Cin)
    bias_col = bias.astype(jnp.float32).reshape(Cout, 1)

    out = pl.pallas_call(
        _upsample_conv_kernel,
        # (N, Cout, H, 4W) is byte-identical to (N, Cout, 2H, 2W) in row-major HBM:
        # source row i holds output rows (2i, 2i+1) side by side on the lane axis.
        out_shape=jax.ShapeDtypeStruct((N, Cout, H, 4 * W), out_dt),
        grid_spec=pltpu.PrefetchScalarGridSpec(
            num_scalar_prefetch=0,
            grid=(N, n_h),
            in_specs=[
                # Full image per batch element; constant along h -> stays resident in VMEM.
                pl.BlockSpec((1, Cin, H, W), lambda n, h: (n, 0, 0, 0)),
                pl.BlockSpec((4, Cout, 4 * Cin), lambda n, h: (0, 0, 0)),   # resident
                pl.BlockSpec((Cout, 1), lambda n, h: (0, 0)),               # resident
            ],
            out_specs=pl.BlockSpec((1, Cout, Ht, 4 * W), lambda n, h: (n, 0, h, 0)),
            scratch_shapes=[pltpu.VMEM((Cin, Ht + 2, W + 2), cdt)],
        ),
        compiler_params=pltpu.CompilerParams(
            dimension_semantics=("parallel", "parallel"),
            vmem_limit_bytes=vmem_limit,
        ),
    )(x_in, wmat, bias_col)

    # TODO(synk): for very large Cin*H*W (input no longer VMEM-resident) switch x to
    # memory_space=pl.ANY + manual halo-window DMA, and add a Cout grid tile when the
    # folded weights alone exceed ~16 MiB.
    return out.reshape(N, Cout, 2 * H, 2 * W)   # metadata-only reshape


# ---------------------------------------------------------------------------- reference ---
def _reference(x_nchw, weight, bias):
    """Pure-JAX reference: nearest 2x upsample + conv2d(pad=1) + bias, f32."""
    up = jnp.repeat(jnp.repeat(x_nchw.astype(jnp.float32), 2, axis=2), 2, axis=3)
    out = lax.conv_general_dilated(
        up, weight.astype(jnp.float32), window_strides=(1, 1),
        padding=((1, 1), (1, 1)), dimension_numbers=("NCHW", "OIHW", "NCHW"),
        precision=lax.Precision.HIGHEST)
    return out + bias.astype(jnp.float32).reshape(1, -1, 1, 1)


if __name__ == "__main__":
    key = jax.random.PRNGKey(0)
    k_x, k_w, k_b = jax.random.split(key, 3)

    N, C, H, W = 2, 4, 16, 16
    Cout = C                       # out_channels defaults to channels

    x = jax.random.normal(k_x, (N, C, H, W), dtype=jnp.float32)
    fan_in = C * 3 * 3             # Conv2d(kernel_size=3, padding=1, bias=True) init bound
    bound = 1.0 / (fan_in ** 0.5)
    weight = jax.random.uniform(k_w, (Cout, C, 3, 3), jnp.float32, -bound, bound)
    bias = jax.random.uniform(k_b, (Cout,), jnp.float32, -bound, bound)

    ref = _reference(x, weight, bias)

    # f32, multi-tile path (h_tile=8 -> grid (2, 2); exercises interior + boundary halos).
    out = jax.block_until_ready(pare_upsample2d(x, weight, bias, h_tile=8))
    assert out.shape == (N, Cout, 2 * H, 2 * W), out.shape
    assert jnp.allclose(out, ref, atol=5e-3, rtol=5e-3), \
        float(jnp.max(jnp.abs(out - ref)))

    # bf16, auto-tiled path (single H tile): checks dtype handling + phase/pair ordering.
    out_bf = jax.block_until_ready(pare_upsample2d(x.astype(jnp.bfloat16), weight, bias))
    err = float(jnp.max(jnp.abs(out_bf.astype(jnp.float32) - ref)))
    assert out_bf.dtype == jnp.bfloat16 and err < 0.15, err

    print("KERNEL_OK")
</pallas_src>

<mosaic_0001>
module attributes {stable_mosaic.version = 11 : i64} {
  func.func @_upsample_conv_kernel(%arg0: i32, %arg1: i32, %arg2: memref<1x4x16x16xf32, #tpu.memory_space<vmem>>, %arg3: memref<4x4x16xf32, #tpu.memory_space<vmem>>, %arg4: memref<4x1xf32, #tpu.memory_space<vmem>>, %arg5: memref<1x4x8x64xf32, #tpu.memory_space<vmem>>, %arg6: memref<4x10x18xf32, #tpu.memory_space<vmem>>) attributes {dimension_semantics = [#tpu.dimension_semantics<parallel>, #tpu.dimension_semantics<parallel>], iteration_bounds = array<i64: 2, 2>, scalar_prefetch = 0 : i64, scratch_operands = 1 : i64, tpu.core_type = #tpu.core_type<tc>, window_params = [{transform_indices = @transform_0, window_bounds = array<i64: 1, 4, 16, 16>}, {pipeline_mode = #tpu.pipeline_mode<synchronous>, transform_indices = @transform_1, window_bounds = array<i64: 4, 4, 16>}, {pipeline_mode = #tpu.pipeline_mode<synchronous>, transform_indices = @transform_2, window_bounds = array<i64: 4, 1>}, {transform_indices = @transform_3, window_bounds = array<i64: 1, 4, 8, 64>}]} {
    %c8_i32 = arith.constant 8 : i32
    %0 = arith.muli %arg1, %c8_i32 : i32
    %1 = tpu.assume_multiple %0, 8 : i32
    %cst = arith.constant 0.000000e+00 : f32
    %2 = vector.broadcast %cst : f32 to vector<4x10x1xf32>
    %c0 = arith.constant 0 : index
    %c0_0 = arith.constant 0 : index
    %c0_1 = arith.constant 0 : index
    %3 = vector.load %arg6[%c0, %c0_0, %c0_1] : memref<4x10x18xf32, #tpu.memory_space<vmem>>, vector<4x10x1xf32>
    tpu.vector_store %arg6[%c0, %c0_0, %c0_1], %2 {strides = array<i32>} : memref<4x10x18xf32, #tpu.memory_space<vmem>>, vector<4x10x1xf32>,
    %cst_2 = arith.constant 0.000000e+00 : f32
    %4 = vector.broadcast %cst_2 : f32 to vector<4x10x1xf32>
    %c0_3 = arith.constant 0 : index
    %c0_4 = arith.constant 0 : index
    %c17 = arith.constant 17 : index
    %5 = vector.load %arg6[%c0_3, %c0_4, %c17] : memref<4x10x18xf32, #tpu.memory_space<vmem>>, vector<4x10x1xf32>
    tpu.vector_store %arg6[%c0_3, %c0_4, %c17], %4 {strides = array<i32>} : memref<4x10x18xf32, #tpu.memory_space<vmem>>, vector<4x10x1xf32>,
    %c0_5 = arith.constant 0 : index
    %c0_6 = arith.constant 0 : index
    %6 = arith.index_cast %1 : i32 to index
    %c0_7 = arith.constant 0 : index
    %7 = vector.load %arg2[%c0_5, %c0_6, %6, %c0_7] : memref<1x4x16x16xf32, #tpu.memory_space<vmem>>, vector<1x4x8x16xf32>
    %8 = vector.shape_cast %7 : vector<1x4x8x16xf32> to vector<4x8x16xf32>
    %c0_8 = arith.constant 0 : index
    %c1 = arith.constant 1 : index
    %c1_9 = arith.constant 1 : index
    %9 = vector.load %arg6[%c0_8, %c1, %c1_9] : memref<4x10x18xf32, #tpu.memory_space<vmem>>, vector<4x8x16xf32>
    tpu.vector_store %arg6[%c0_8, %c1, %c1_9], %8 {strides = array<i32>} : memref<4x10x18xf32, #tpu.memory_space<vmem>>, vector<4x8x16xf32>,
    %c0_i32 = arith.constant 0 : i32
    %10 = arith.cmpi sgt, %arg1, %c0_i32 : i32
    %11 = arith.extui %10 : i1 to i32
    %c0_i32_10 = arith.constant 0 : i32
    %12 = arith.cmpi ne, %11, %c0_i32_10 : i32
    scf.if %12 {
      %c1_i32_99 = arith.constant 1 : i32
      %131 = arith.subi %1, %c1_i32_99 : i32
      %c0_100 = arith.constant 0 : index
      %c0_101 = arith.constant 0 : index
      %132 = arith.index_cast %131 : i32 to index
      %c0_102 = arith.constant 0 : index
      %133 = vector.load %arg2[%c0_100, %c0_101, %132, %c0_102] : memref<1x4x16x16xf32, #tpu.memory_space<vmem>>, vector<1x4x1x16xf32>
      %134 = vector.shape_cast %133 : vector<1x4x1x16xf32> to vector<4x1x16xf32>
      %c0_103 = arith.constant 0 : index
      %c0_104 = arith.constant 0 : index
      %c1_105 = arith.constant 1 : index
      %135 = vector.load %arg6[%c0_103, %c0_104, %c1_105] : memref<4x10x18xf32, #tpu.memory_space<vmem>>, vector<4x1x16xf32>
      tpu.vector_store %arg6[%c0_103, %c0_104, %c1_105], %134 {strides = array<i32>} : memref<4x10x18xf32, #tpu.memory_space<vmem>>, vector<4x1x16xf32>,
    } else {
    }
    %c0_i32_11 = arith.constant 0 : i32
    %13 = arith.cmpi eq, %arg1, %c0_i32_11 : i32
    %14 = arith.extui %13 : i1 to i32
    %c0_i32_12 = arith.constant 0 : i32
    %15 = arith.cmpi ne, %14, %c0_i32_12 : i32
    scf.if %15 {
      %cst_99 = arith.constant 0.000000e+00 : f32
      %131 = vector.broadcast %cst_99 : f32 to vector<4x1x16xf32>
      %c0_100 = arith.constant 0 : index
      %c0_101 = arith.constant 0 : index
      %c1_102 = arith.constant 1 : index
      %132 = vector.load %arg6[%c0_100, %c0_101, %c1_102] : memref<4x10x18xf32, #tpu.memory_space<vmem>>, vector<4x1x16xf32>
      tpu.vector_store %arg6[%c0_100, %c0_101, %c1_102], %131 {strides = array<i32>} : memref<4x10x18xf32, #tpu.memory_space<vmem>>, vector<4x1x16xf32>,
    } else {
    }
    %c1_i32 = arith.constant 1 : i32
    %16 = arith.cmpi slt, %arg1, %c1_i32 : i32
    %17 = arith.extui %16 : i1 to i32
    %c0_i32_13 = arith.constant 0 : i32
    %18 = arith.cmpi ne, %17, %c0_i32_13 : i32
    scf.if %18 {
      %c8_i32_99 = arith.constant 8 : i32
      %131 = arith.addi %1, %c8_i32_99 : i32
      %c0_100 = arith.constant 0 : index
      %c0_101 = arith.constant 0 : index
      %132 = arith.index_cast %131 : i32 to index
      %c0_102 = arith.constant 0 : index
      %133 = vector.load %arg2[%c0_100, %c0_101, %132, %c0_102] : memref<1x4x16x16xf32, #tpu.memory_space<vmem>>, vector<1x4x1x16xf32>
      %134 = vector.shape_cast %133 : vector<1x4x1x16xf32> to vector<4x1x16xf32>
      %c0_103 = arith.constant 0 : index
      %c9 = arith.constant 9 : index
      %c1_104 = arith.constant 1 : index
      %135 = vector.load %arg6[%c0_103, %c9, %c1_104] : memref<4x10x18xf32, #tpu.memory_space<vmem>>, vector<4x1x16xf32>
      tpu.vector_store %arg6[%c0_103, %c9, %c1_104], %134 {strides = array<i32>} : memref<4x10x18xf32, #tpu.memory_space<vmem>>, vector<4x1x16xf32>,
    } else {
    }
    %c1_i32_14 = arith.constant 1 : i32
    %19 = arith.cmpi eq, %arg1, %c1_i32_14 : i32
    %20 = arith.extui %19 : i1 to i32
    %c0_i32_15 = arith.constant 0 : i32
    %21 = arith.cmpi ne, %20, %c0_i32_15 : i32
    scf.if %21 {
      %cst_99 = arith.constant 0.000000e+00 : f32
      %131 = vector.broadcast %cst_99 : f32 to vector<4x1x16xf32>
      %c0_100 = arith.constant 0 : index
      %c9 = arith.constant 9 : index
      %c1_101 = arith.constant 1 : index
      %132 = vector.load %arg6[%c0_100, %c9, %c1_101] : memref<4x10x18xf32, #tpu.memory_space<vmem>>, vector<4x1x16xf32>
      tpu.vector_store %arg6[%c0_100, %c9, %c1_101], %131 {strides = array<i32>} : memref<4x10x18xf32, #tpu.memory_space<vmem>>, vector<4x1x16xf32>,
    } else {
    }
    %22 = tpu.iota {dimensions = array<i32: 1>} : vector<1x256xi32>
    %c2_i32 = arith.constant 2 : i32
    %c0_i32_16 = arith.constant 0 : i32
    %23 = arith.cmpi eq, %c2_i32, %c0_i32_16 : i32
    %c1_i32_17 = arith.constant 1 : i32
    %24 = arith.select %23, %c1_i32_17, %c2_i32 : i32
    %25 = vector.broadcast %24 : i32 to vector<1x256xi32>
    %26 = arith.remsi %22, %25 : vector<1x256xi32>
    %c0_i32_18 = arith.constant 0 : i32
    %27 = vector.broadcast %c0_i32_18 : i32 to vector<1x256xi32>
    %28 = arith.cmpi ne, %26, %27 : vector<1x256xi32>
    %c0_i32_19 = arith.constant 0 : i32
    %29 = vector.broadcast %c0_i32_19 : i32 to vector<1x256xi32>
    %30 = arith.cmpi slt, %26, %29 : vector<1x256xi32>
    %c0_i32_20 = arith.constant 0 : i32
    %31 = arith.cmpi slt, %24, %c0_i32_20 : i32
    %32 = vector.broadcast %31 : i1 to vector<1x256xi1>
    %33 = vector.broadcast %32 : vector<1x256xi1> to vector<1x256xi1>
    %34 = arith.xori %30, %33 : vector<1x256xi1>
    %35 = arith.andi %34, %28 : vector<1x256xi1>
    %36 = vector.broadcast %24 : i32 to vector<1x256xi32>
    %37 = arith.addi %26, %36 : vector<1x256xi32>
    %38 = arith.select %35, %37, %26 : vector<1x256xi1>, vector<1x256xi32>
    %c0_i32_21 = arith.constant 0 : i32
    %39 = vector.broadcast %c0_i32_21 : i32 to vector<1x256xi32>
    %40 = arith.cmpi eq, %38, %39 : vector<1x256xi32>
    %c0_22 = arith.constant 0 : index
    %c0_23 = arith.constant 0 : index
    %c0_24 = arith.constant 0 : index
    %41 = vector.load %arg6[%c0_22, %c0_23, %c0_24] : memref<4x10x18xf32, #tpu.memory_space<vmem>>, vector<4x8x16xf32>
    %42 = vector.shape_cast %41 : vector<4x8x16xf32> to vector<4x128xf32>
    %c0_25 = arith.constant 0 : index
    %c0_26 = arith.constant 0 : index
    %c1_27 = arith.constant 1 : index
    %43 = vector.load %arg6[%c0_25, %c0_26, %c1_27] : memref<4x10x18xf32, #tpu.memory_space<vmem>>, vector<4x8x16xf32>
    %44 = vector.shape_cast %43 : vector<4x8x16xf32> to vector<4x128xf32>
    %c0_28 = arith.constant 0 : index
    %c1_29 = arith.constant 1 : index
    %c0_30 = arith.constant 0 : index
    %45 = vector.load %arg6[%c0_28, %c1_29, %c0_30] : memref<4x10x18xf32, #tpu.memory_space<vmem>>, vector<4x8x16xf32>
    %46 = vector.shape_cast %45 : vector<4x8x16xf32> to vector<4x128xf32>
    %c0_31 = arith.constant 0 : index
    %c1_32 = arith.constant 1 : index
    %c1_33 = arith.constant 1 : index
    %47 = vector.load %arg6[%c0_31, %c1_32, %c1_33] : memref<4x10x18xf32, #tpu.memory_space<vmem>>, vector<4x8x16xf32>
    %48 = vector.shape_cast %47 : vector<4x8x16xf32> to vector<4x128xf32>
    %49 = tpu.concatenate %42, %44, %46, %48 in 0 : vector<4x128xf32>, vector<4x128xf32>, vector<4x128xf32>, vector<4x128xf32> -> vector<16x128xf32>
    %c0_34 = arith.constant 0 : index
    %c0_35 = arith.constant 0 : index
    %c0_36 = arith.constant 0 : index
    %50 = vector.load %arg3[%c0_34, %c0_35, %c0_36] : memref<4x4x16xf32, #tpu.memory_space<vmem>>, vector<1x4x16xf32>
    %51 = vector.shape_cast %50 : vector<1x4x16xf32> to vector<4x16xf32>
    %cst_37 = arith.constant dense<0.000000e+00> : vector<4x128xf32>
    %52 = tpu.matmul %51, %49, %cst_37 {dimension_numbers = #tpu.dot_dimension_numbers<[1], [0], [0], [1], [0, 0, 1, 1], [], []>} : vector<4x16xf32>, vector<16x128xf32>, vector<4x128xf32> -> vector<4x128xf32>
    %c0_38 = arith.constant 0 : index
    %c0_39 = arith.constant 0 : index
    %53 = vector.load %arg4[%c0_38, %c0_39] : memref<4x1xf32, #tpu.memory_space<vmem>>, vector<4x1xf32>
    %54 = vector.broadcast %53 : vector<4x1xf32> to vector<4x128xf32>
    %55 = arith.addf %52, %54 : vector<4x128xf32>
    %c0_40 = arith.constant 0 : index
    %c0_41 = arith.constant 0 : index
    %c1_42 = arith.constant 1 : index
    %56 = vector.load %arg6[%c0_40, %c0_41, %c1_42] : memref<4x10x18xf32, #tpu.memory_space<vmem>>, vector<4x8x16xf32>
    %57 = vector.shape_cast %56 : vector<4x8x16xf32> to vector<4x128xf32>
    %c0_43 = arith.constant 0 : index
    %c0_44 = arith.constant 0 : index
    %c2 = arith.constant 2 : index
    %58 = vector.load %arg6[%c0_43, %c0_44, %c2] : memref<4x10x18xf32, #tpu.memory_space<vmem>>, vector<4x8x16xf32>
    %59 = vector.shape_cast %58 : vector<4x8x16xf32> to vector<4x128xf32>
    %c0_45 = arith.constant 0 : index
    %c1_46 = arith.constant 1 : index
    %c1_47 = arith.constant 1 : index
    %60 = vector.load %arg6[%c0_45, %c1_46, %c1_47] : memref<4x10x18xf32, #tpu.memory_space<vmem>>, vector<4x8x16xf32>
    %61 = vector.shape_cast %60 : vector<4x8x16xf32> to vector<4x128xf32>
    %c0_48 = arith.constant 0 : index
    %c1_49 = arith.constant 1 : index
    %c2_50 = arith.constant 2 : index
    %62 = vector.load %arg6[%c0_48, %c1_49, %c2_50] : memref<4x10x18xf32, #tpu.memory_space<vmem>>, vector<4x8x16xf32>
    %63 = vector.shape_cast %62 : vector<4x8x16xf32> to vector<4x128xf32>
    %64 = tpu.concatenate %57, %59, %61, %63 in 0 : vector<4x128xf32>, vector<4x128xf32>, vector<4x128xf32>, vector<4x128xf32> -> vector<16x128xf32>
    %c1_51 = arith.constant 1 : index
    %c0_52 = arith.constant 0 : index
    %c0_53 = arith.constant 0 : index
    %65 = vector.load %arg3[%c1_51, %c0_52, %c0_53] : memref<4x4x16xf32, #tpu.memory_space<vmem>>, vector<1x4x16xf32>
    %66 = vector.shape_cast %65 : vector<1x4x16xf32> to vector<4x16xf32>
    %cst_54 = arith.constant dense<0.000000e+00> : vector<4x128xf32>
    %67 = tpu.matmul %66, %64, %cst_54 {dimension_numbers = #tpu.dot_dimension_numbers<[1], [0], [0], [1], [0, 0, 1, 1], [], []>} : vector<4x16xf32>, vector<16x128xf32>, vector<4x128xf32> -> vector<4x128xf32>
    %c0_55 = arith.constant 0 : index
    %c0_56 = arith.constant 0 : index
    %68 = vector.load %arg4[%c0_55, %c0_56] : memref<4x1xf32, #tpu.memory_space<vmem>>, vector<4x1xf32>
    %69 = vector.broadcast %68 : vector<4x1xf32> to vector<4x128xf32>
    %70 = arith.addf %67, %69 : vector<4x128xf32>
    %71 = vector.shape_cast %55 : vector<4x128xf32> to vector<4x128x1xf32>
    %72 = vector.shape_cast %71 : vector<4x128x1xf32> to vector<4x128x1xf32>
    %73 = vector.broadcast %72 : vector<4x128x1xf32> to vector<4x128x2xf32>
    %74 = vector.shape_cast %73 : vector<4x128x2xf32> to vector<4x256xf32>
    %75 = vector.shape_cast %70 : vector<4x128xf32> to vector<4x128x1xf32>
    %76 = vector.shape_cast %75 : vector<4x128x1xf32> to vector<4x128x1xf32>
    %77 = vector.broadcast %76 : vector<4x128x1xf32> to vector<4x128x2xf32>
    %78 = vector.shape_cast %77 : vector<4x128x2xf32> to vector<4x256xf32>
    %79 = vector.shape_cast %40 : vector<1x256xi1> to vector<1x256xi1>
    %80 = vector.broadcast %79 : vector<1x256xi1> to vector<4x256xi1>
    %81 = arith.select %80, %74, %78 : vector<4x256xi1>, vector<4x256xf32>
    %82 = vector.shape_cast %81 : vector<4x256xf32> to vector<4x8x32xf32>
    %c0_57 = arith.constant 0 : index
    %c0_58 = arith.constant 0 : index
    %c0_59 = arith.constant 0 : index
    %c0_60 = arith.constant 0 : index
    %83 = vector.load %arg5[%c0_57, %c0_58, %c0_59, %c0_60] : memref<1x4x8x64xf32, #tpu.memory_space<vmem>>, vector<1x4x8x32xf32>
    %84 = vector.shape_cast %83 : vector<1x4x8x32xf32> to vector<4x8x32xf32>
    %85 = vector.shape_cast %82 : vector<4x8x32xf32> to vector<1x4x8x32xf32>
    tpu.vector_store %arg5[%c0_57, %c0_58, %c0_59, %c0_60], %85 {strides = array<i32>} : memref<1x4x8x64xf32, #tpu.memory_space<vmem>>, vector<1x4x8x32xf32>,
    %c0_61 = arith.constant 0 : index
    %c1_62 = arith.constant 1 : index
    %c0_63 = arith.constant 0 : index
    %86 = vector.load %arg6[%c0_61, %c1_62, %c0_63] : memref<4x10x18xf32, #tpu.memory_space<vmem>>, vector<4x8x16xf32>
    %87 = vector.shape_cast %86 : vector<4x8x16xf32> to vector<4x128xf32>
    %c0_64 = arith.constant 0 : index
    %c1_65 = arith.constant 1 : index
    %c1_66 = arith.constant 1 : index
    %88 = vector.load %arg6[%c0_64, %c1_65, %c1_66] : memref<4x10x18xf32, #tpu.memory_space<vmem>>, vector<4x8x16xf32>
    %89 = vector.shape_cast %88 : vector<4x8x16xf32> to vector<4x128xf32>
    %c0_67 = arith.constant 0 : index
    %c2_68 = arith.constant 2 : index
    %c0_69 = arith.constant 0 : index
    %90 = vector.load %arg6[%c0_67, %c2_68, %c0_69] : memref<4x10x18xf32, #tpu.memory_space<vmem>>, vector<4x8x16xf32>
    %91 = vector.shape_cast %90 : vector<4x8x16xf32> to vector<4x128xf32>
    %c0_70 = arith.constant 0 : index
    %c2_71 = arith.constant 2 : index
    %c1_72 = arith.constant 1 : index
    %92 = vector.load %arg6[%c0_70, %c2_71, %c1_72] : memref<4x10x18xf32, #tpu.memory_space<vmem>>, vector<4x8x16xf32>
    %93 = vector.shape_cast %92 : vector<4x8x16xf32> to vector<4x128xf32>
    %94 = tpu.concatenate %87, %89, %91, %93 in 0 : vector<4x128xf32>, vector<4x128xf32>, vector<4x128xf32>, vector<4x128xf32> -> vector<16x128xf32>
    %c2_73 = arith.constant 2 : index
    %c0_74 = arith.constant 0 : index
    %c0_75 = arith.constant 0 : index
    %95 = vector.load %arg3[%c2_73, %c0_74, %c0_75] : memref<4x4x16xf32, #tpu.memory_space<vmem>>, vector<1x4x16xf32>
    %96 = vector.shape_cast %95 : vector<1x4x16xf32> to vector<4x16xf32>
    %cst_76 = arith.constant dense<0.000000e+00> : vector<4x128xf32>
    %97 = tpu.matmul %96, %94, %cst_76 {dimension_numbers = #tpu.dot_dimension_numbers<[1], [0], [0], [1], [0, 0, 1, 1], [], []>} : vector<4x16xf32>, vector<16x128xf32>, vector<4x128xf32> -> vector<4x128xf32>
    %c0_77 = arith.constant 0 : index
    %c0_78 = arith.constant 0 : index
    %98 = vector.load %arg4[%c0_77, %c0_78] : memref<4x1xf32, #tpu.memory_space<vmem>>, vector<4x1xf32>
    %99 = vector.broadcast %98 : vector<4x1xf32> to vector<4x128xf32>
    %100 = arith.addf %97, %99 : vector<4x128xf32>
    %c0_79 = arith.constant 0 : index
    %c1_80 = arith.constant 1 : index
    %c1_81 = arith.constant 1 : index
    %101 = vector.load %arg6[%c0_79, %c1_80, %c1_81] : memref<4x10x18xf32, #tpu.memory_space<vmem>>, vector<4x8x16xf32>
    %102 = vector.shape_cast %101 : vector<4x8x16xf32> to vector<4x128xf32>
    %c0_82 = arith.constant 0 : index
    %c1_83 = arith.constant 1 : index
    %c2_84 = arith.constant 2 : index
    %103 = vector.load %arg6[%c0_82, %c1_83, %c2_84] : memref<4x10x18xf32, #tpu.memory_space<vmem>>, vector<4x8x16xf32>
    %104 = vector.shape_cast %103 : vector<4x8x16xf32> to vector<4x128xf32>
    %c0_85 = arith.constant 0 : index
    %c2_86 = arith.constant 2 : index
    %c1_87 = arith.constant 1 : index
    %105 = vector.load %arg6[%c0_85, %c2_86, %c1_87] : memref<4x10x18xf32, #tpu.memory_space<vmem>>, vector<4x8x16xf32>
    %106 = vector.shape_cast %105 : vector<4x8x16xf32> to vector<4x128xf32>
    %c0_88 = arith.constant 0 : index
    %c2_89 = arith.constant 2 : index
    %c2_90 = arith.constant 2 : index
    %107 = vector.load %arg6[%c0_88, %c2_89, %c2_90] : memref<4x10x18xf32, #tpu.memory_space<vmem>>, vector<4x8x16xf32>
    %108 = vector.shape_cast %107 : vector<4x8x16xf32> to vector<4x128xf32>
    %109 = tpu.concatenate %102, %104, %106, %108 in 0 : vector<4x128xf32>, vector<4x128xf32>, vector<4x128xf32>, vector<4x128xf32> -> vector<16x128xf32>
    %c3 = arith.constant 3 : index
    %c0_91 = arith.constant 0 : index
    %c0_92 = arith.constant 0 : index
    %110 = vector.load %arg3[%c3, %c0_91, %c0_92] : memref<4x4x16xf32, #tpu.memory_space<vmem>>, vector<1x4x16xf32>
    %111 = vector.shape_cast %110 : vector<1x4x16xf32> to vector<4x16xf32>
    %cst_93 = arith.constant dense<0.000000e+00> : vector<4x128xf32>
    %112 = tpu.matmul %111, %109, %cst_93 {dimension_numbers = #tpu.dot_dimension_numbers<[1], [0], [0], [1], [0, 0, 1, 1], [], []>} : vector<4x16xf32>, vector<16x128xf32>, vector<4x128xf32> -> vector<4x128xf32>
    %c0_94 = arith.constant 0 : index
    %c0_95 = arith.constant 0 : index
    %113 = vector.load %arg4[%c0_94, %c0_95] : memref<4x1xf32, #tpu.memory_space<vmem>>, vector<4x1xf32>
    %114 = vector.broadcast %113 : vector<4x1xf32> to vector<4x128xf32>
    %115 = arith.addf %112, %114 : vector<4x128xf32>
    %116 = vector.shape_cast %100 : vector<4x128xf32> to vector<4x128x1xf32>
    %117 = vector.shape_cast %116 : vector<4x128x1xf32> to vector<4x128x1xf32>
    %118 = vector.broadcast %117 : vector<4x128x1xf32> to vector<4x128x2xf32>
    %119 = vector.shape_cast %118 : vector<4x128x2xf32> to vector<4x256xf32>
    %120 = vector.shape_cast %115 : vector<4x128xf32> to vector<4x128x1xf32>
    %121 = vector.shape_cast %120 : vector<4x128x1xf32> to vector<4x128x1xf32>
    %122 = vector.broadcast %121 : vector<4x128x1xf32> to vector<4x128x2xf32>
    %123 = vector.shape_cast %122 : vector<4x128x2xf32> to vector<4x256xf32>
    %124 = vector.shape_cast %40 : vector<1x256xi1> to vector<1x256xi1>
    %125 = vector.broadcast %124 : vector<1x256xi1> to vector<4x256xi1>
    %126 = arith.select %125, %119, %123 : vector<4x256xi1>, vector<4x256xf32>
    %127 = vector.shape_cast %126 : vector<4x256xf32> to vector<4x8x32xf32>
    %c0_96 = arith.constant 0 : index
    %c0_97 = arith.constant 0 : index
    %c0_98 = arith.constant 0 : index
    %c32 = arith.constant 32 : index
    %128 = vector.load %arg5[%c0_96, %c0_97, %c0_98, %c32] : memref<1x4x8x64xf32, #tpu.memory_space<vmem>>, vector<1x4x8x32xf32>
    %129 = vector.shape_cast %128 : vector<1x4x8x32xf32> to vector<4x8x32xf32>
    %130 = vector.shape_cast %127 : vector<4x8x32xf32> to vector<1x4x8x32xf32>
    tpu.vector_store %arg5[%c0_96, %c0_97, %c0_98, %c32], %130 {strides = array<i32>} : memref<1x4x8x64xf32, #tpu.memory_space<vmem>>, vector<1x4x8x32xf32>,
    return
  }
  func.func @transform_0(%arg0: i32, %arg1: i32) -> (i32, i32, i32, i32) {
    %c0_i32 = arith.constant 0 : i32
    %c0_i32_0 = arith.constant 0 : i32
    %c0_i32_1 = arith.constant 0 : i32
    %c0_i32_2 = arith.constant 0 : i32
    return %arg0, %c0_i32, %c0_i32_0, %c0_i32_1 : i32, i32, i32, i32
  }
  func.func @transform_1(%arg0: i32, %arg1: i32) -> (i32, i32, i32) {
    %c0_i32 = arith.constant 0 : i32
    %c0_i32_0 = arith.constant 0 : i32
    %c0_i32_1 = arith.constant 0 : i32
    %c0_i32_2 = arith.constant 0 : i32
    return %c0_i32, %c0_i32_0, %c0_i32_1 : i32, i32, i32
  }
  func.func @transform_2(%arg0: i32, %arg1: i32) -> (i32, i32) {
    %c0_i32 = arith.constant 0 : i32
    %c0_i32_0 = arith.constant 0 : i32
    %c0_i32_1 = arith.constant 0 : i32
    return %c0_i32, %c0_i32_0 : i32, i32
  }
  func.func @transform_3(%arg0: i32, %arg1: i32) -> (i32, i32, i32, i32) {
    %c0_i32 = arith.constant 0 : i32
    %c0_i32_0 = arith.constant 0 : i32
    %c0_i32_1 = arith.constant 0 : i32
    return %arg0, %c0_i32, %arg1, %c0_i32_0 : i32, i32, i32, i32
  }
}

</mosaic_0001>

<llo_original>
// kernel: pare_upsample2d.1
$region0: #{pare_upsample2d.1}
  #allocation0 [shape = 'u32[]', space=smem, size = 0x4, offset = 0x4, fixed_abs, tag = 'smem constant byte address 0x4 - core index']
  #allocation1 [shape = 'u32[144,128]{1,0:T(1,128)}', space=vmem, size = 0x12000, scoped, tag = 'internal scratch']
  #allocation2 [shape = 'f32[4,10,18]{2,1,0:T(8,128)}', space=vmem, size = 0x8000, scoped, tag = 'scratch operand']
  %s0 = inlined_call_operand.vmem [shape: f32[2,4,16,16], index: 0, kind: input, shape index: {}]
  %s1 = inlined_call_operand.vmem [shape: f32[4,4,16], index: 1, kind: input, shape index: {}]
  %s2 = inlined_call_operand.vmem [shape: f32[4,1], index: 2, kind: input, shape index: {}]
  %s3 = inlined_call_operand.vmem [shape: f32[2,4,16,64], index: 3, kind: output, shape index: {}]
  %s4 = sld [smem:[#allocation0]]
  $region95: #{pare_upsample2d.1} parent=0
    _
  %s6 = ssub.s32 1, %s4
  %s7 = scalar_select 0, %s6, %s4
  $region1: #{pare_upsample2d.1} parent=0
    #allocation3 [shape = 'u8[32768]{0}', space=vmem, size = 0x8000, scoped, tag = 'output window, operand 0']
    loop: start=0, step=1, limit=6
    $region2: #{pare_upsample2d.1} parent=1 // loop_pre_header
      _
    $region3: #{pare_upsample2d.1} parent=1 // loop_header
      %s9 = sphi 0, %s13
      %p10 = scmp.ge.s32.totalorder %s9, 6
      %s16 = sphi 0, %s28
      %s17 = sphi 0, %s24
      %s18 = sphi 0, %s16
      %s19 = sphi 0, %s17
      %s20 = sphi 0, %s18
      %s21 = sphi 0, %s19
      %s31 = sphi 0, %s33
      %s34 = sphi 0, %s31
      %s35 = sphi 0, %s34
      %s51 = sphi 0, %s35
      %s55 = sphi 0, %s55
      %s57 = sphi 0, %s55
      %s58 = sphi 0, %s57
      %s72 = sphi 0, %s58
      %s76 = sphi 0, %s76
      %s78 = sphi 0, %s76
      %s79 = sphi 0, %s78
      %s93 = sphi 0, %s79
      %s101 = sphi 0, %s103
      %s104 = sphi 0, %s101
      %s105 = sphi 0, %s104
      %s121 = sphi 0, %s105
    $region4: #{pare_upsample2d.1} parent=1 // loop_header_branch
      %12 = sbr.rel (%p10) target = $region8
    $region5: #{pare_upsample2d.1} parent=1 // loop_body
      %s14 = ssub.s32 %s9, 1
      %s15 = ssub.s32 %s9, 2
      %s22 = sadd.s32 1, %s17
      %p23 = scmp.ge.s32.totalorder %s22, 2
      %s24 = scalar_select %p23, 0, %s22
      %s25 = sadd.s32 1, %s16
      %s26 = scalar_select %p23, %s25, %s16
      %p27 = scmp.ge.s32.totalorder %s26, 2
      %s28 = scalar_select %p27, 0, %s26
      %s29 = ssub.s32 %s16, %s28
      %p30 = scmp.eq.s32.totalorder %s29, 0
      %s32 = sadd.s32 %s31, 1
      %s33 = scalar_select %p30, %s31, %s32
      %p36 = pneg %p30
      %p37 = scmp.eq.s32.totalorder %s9, 3
      %p38 = por %p36, %p37
      %p39 = scmp.ne.s32.totalorder %s31, %s34
      %p40 = scmp.eq.s32.totalorder %s9, 0
      %p41 = por %p39, %p40
      %p42 = scmp.ne.s32.totalorder %s31, %s34
      %p43 = scmp.eq.s32.totalorder %s14, 3
      %p44 = por %p42, %p43
      %p45 = scmp.ne.s32.totalorder %s34, %s35
      %p46 = scmp.eq.s32.totalorder %s14, 0
      %p47 = por %p45, %p46
      %p48 = scmp.ne.s32.totalorder %s34, %s35
      %p49 = scmp.eq.s32.totalorder %s15, 3
      %p50 = por %p48, %p49
      %p52 = scmp.ne.s32.totalorder %s35, %s51
      %p53 = scmp.eq.s32.totalorder %s15, 0
      %p54 = por %p52, %p53
      %s56 = sadd.s32 %s55, 1
      %p59 = scmp.eq.s32.totalorder %s9, 3
      %p60 = scmp.ne.s32.totalorder %s55, %s57
      %p61 = scmp.eq.s32.totalorder %s9, 0
      %p62 = por %p60, %p61
      %p63 = scmp.ne.s32.totalorder %s55, %s57
      %p64 = scmp.eq.s32.totalorder %s14, 3
      %p65 = por %p63, %p64
      %p66 = scmp.ne.s32.totalorder %s57, %s58
      %p67 = scmp.eq.s32.totalorder %s14, 0
      %p68 = por %p66, %p67
      %p69 = scmp.ne.s32.totalorder %s57, %s58
      %p70 = scmp.eq.s32.totalorder %s15, 3
      %p71 = por %p69, %p70
      %p73 = scmp.ne.s32.totalorder %s58, %s72
      %p74 = scmp.eq.s32.totalorder %s15, 0
      %p75 = por %p73, %p74
      %s77 = sadd.s32 %s76, 1
      %p80 = scmp.eq.s32.totalorder %s9, 3
      %p81 = scmp.ne.s32.totalorder %s76, %s78
      %p82 = scmp.eq.s32.totalorder %s9, 0
      %p83 = por %p81, %p82
      %p84 = scmp.ne.s32.totalorder %s76, %s78
      %p85 = scmp.eq.s32.totalorder %s14, 3
      %p86 = por %p84, %p85
      %p87 = scmp.ne.s32.totalorder %s78, %s79
      %p88 = scmp.eq.s32.totalorder %s14, 0
      %p89 = por %p87, %p88
      %p90 = scmp.ne.s32.totalorder %s78, %s79
      %p91 = scmp.eq.s32.totalorder %s15, 3
      %p92 = por %p90, %p91
      %p94 = scmp.ne.s32.totalorder %s79, %s93
      %p95 = scmp.eq.s32.totalorder %s15, 0
      %p96 = por %p94, %p95
      %s97 = ssub.s32 %s16, %s28
      %s98 = ssub.s32 %s17, %s24
      %s99 = sor.u32 %s97, %s98
      %p100 = scmp.eq.s32.totalorder %s99, 0
      %s102 = sadd.s32 %s101, 1
      %s103 = scalar_select %p100, %s101, %s102
      %p106 = pneg %p100
      %p107 = scmp.eq.s32.totalorder %s9, 3
      %p108 = por %p106, %p107
      %p109 = scmp.ne.s32.totalorder %s101, %s104
      %p110 = scmp.eq.s32.totalorder %s9, 0
      %p111 = por %p109, %p110
      %p112 = scmp.ne.s32.totalorder %s101, %s104
      %p113 = scmp.eq.s32.totalorder %s14, 3
      %p114 = por %p112, %p113
      %p115 = scmp.ne.s32.totalorder %s104, %s105
      %p116 = scmp.eq.s32.totalorder %s14, 0
      %p117 = por %p115, %p116
      %p118 = scmp.ne.s32.totalorder %s104, %s105
      %p119 = scmp.eq.s32.totalorder %s15, 3
      %p120 = por %p118, %p119
      %p122 = scmp.ne.s32.totalorder %s105, %s121
      %p123 = scmp.eq.s32.totalorder %s15, 0
      %p124 = por %p122, %p123
      %p125 = scmp.le.s32.totalorder 1, %s9
      %p126 = scmp.lt.s32.totalorder %s9, 5
      %p127 = pnand %p125, %p126
      %p128 = pneg %p127
      // Predicated region
      $region9: #{pare_upsample2d.1} parent=5 // pred_check
        _
      $region10: #{pare_upsample2d.1} parent=5 // pred_check_branch
        %130 = sbr.rel (%p127) target = $region12
      $region11: #{pare_upsample2d.1} parent=5 // pred_region
        %s131 = ssub.s32 %s9, 1
        // Predicated region
        $region13: #{pare_upsample2d.1} parent=11 // pred_check
          %p132 = pneg %p68
        $region14: #{pare_upsample2d.1} parent=11 // pred_check_branch
          %134 = sbr.rel (%p132) target = $region16
        $region15: #{pare_upsample2d.1} parent=11 // pred_region
          _
        $region16: #{pare_upsample2d.1} parent=11 // pred_fallthru
          _
        // Predicated region
        $region17: #{pare_upsample2d.1} parent=11 // pred_check
          %p135 = pneg %p89
        $region18: #{pare_upsample2d.1} parent=11 // pred_check_branch
          %137 = sbr.rel (%p135) target = $region20
        $region19: #{pare_upsample2d.1} parent=11 // pred_region
          _
        $region20: #{pare_upsample2d.1} parent=11 // pred_fallthru
          _
      $region12: #{pare_upsample2d.1} parent=5 // pred_fallthru
        _
      %p138 = scmp.lt.s32.totalorder %s9, 4
      // Predicated region
      $region21: #{pare_upsample2d.1} parent=5 // pred_check
        %p139 = pneg %p138
      $region22: #{pare_upsample2d.1} parent=5 // pred_check_branch
        %141 = sbr.rel (%p139) target = $region24
      $region23: #{pare_upsample2d.1} parent=5 // pred_region
        // Predicated region
        $region25: #{pare_upsample2d.1} parent=23 // pred_check
          %p142 = pneg %p41
        $region26: #{pare_upsample2d.1} parent=23 // pred_check_branch
          %144 = sbr.rel (%p142) target = $region28
        $region27: #{pare_upsample2d.1} parent=23 // pred_region
          %p145 = scmp.lt.s32.totalorder %s16, 1
          %s146 = scalar_select %p145, %s16, 1
          %s147 = smul.addr %s146, 8
          %s148 = smul.addr %s147, 8
          %s149 = scalar_lea.vmem %s0, %s148
        $region28: #{pare_upsample2d.1} parent=23 // pred_fallthru
          _
      $region24: #{pare_upsample2d.1} parent=5 // pred_fallthru
        _
      %p150 = scmp.le.s32.totalorder 1, %s9
      %p151 = scmp.lt.s32.totalorder %s9, 5
      %p152 = pnand %p150, %p151
      %p153 = pneg %p152
      // Predicated region
      $region29: #{pare_upsample2d.1} parent=5 // pred_check
        _
      $region30: #{pare_upsample2d.1} parent=5 // pred_check_branch
        %155 = sbr.rel (%p152) target = $region32
      $region31: #{pare_upsample2d.1} parent=5 // pred_region
        %s156 = ssub.s32 %s9, 1
        %p157 = scmp.lt.s32.totalorder %s18, 1
        %s158 = scalar_select %p157, %s18, 1
        %s159 = smul.addr %s158, 8
        %s160 = smul.addr %s159, 8
        %s161 = scalar_lea.vmem %s0, %s160
        %p162 = pneg %p47
        %p163 = pneg %p44
        %p164 = pneg %p68
        %p165 = pneg %p65
        %p166 = pneg %p89
        %p167 = pneg %p86
        %p168 = pneg %p117
        %p169 = pneg %p114
        %s170 = sand.u32 %s104, 1
        %s171 = sand.u32 %s104, 1
        %s172 = smul.addr %s171, 32
        %s173 = scalar_lea.vmem [#allocation3], %s172
        %p174 = scmp.lt.s32.totalorder %s18, 1
        %s175 = scalar_select %p174, %s18, 1
        %s176 = smul.addr %s175, 8
        %s177 = smul.addr %s176, 8
        %s178 = scalar_lea.vmem %s0, %s177
        %s179 = smul.u32 %s19, 8
        %vm180 = vcmask 7168
        %181 = vst.msk [vmem:[#allocation2] sm:$0xff] %vm180, 0.0
        %vm182 = vcmask 1024
        %183 = vst.msk [vmem:[#allocation2 + $0x8] sm:$0x3] %vm182, 0.0
        %184 = vst.msk [vmem:[#allocation2 + $0x10] sm:$0xff] %vm180, 0.0
        %185 = vst.msk [vmem:[#allocation2 + $0x18] sm:$0x3] %vm182, 0.0
        %186 = vst.msk [vmem:[#allocation2 + $0x20] sm:$0xff] %vm180, 0.0
        %187 = vst.msk [vmem:[#allocation2 + $0x28] sm:$0x3] %vm182, 0.0
        %188 = vst.msk [vmem:[#allocation2 + $0x30] sm:$0xff] %vm180, 0.0
        %189 = vst.msk [vmem:[#allocation2 + $0x38] sm:$0x3] %vm182, 0.0
        %vm190 = vcmask 146568
        %191 = vst.msk [vmem:[#allocation2] sm:$0xff] %vm190, 0.0
        %vm192 = vcmask 140424
        %193 = vst.msk [vmem:[#allocation2 + $0x8] sm:$0x3] %vm192, 0.0
        %194 = vst.msk [vmem:[#allocation2 + $0x10] sm:$0xff] %vm190, 0.0
        %195 = vst.msk [vmem:[#allocation2 + $0x18] sm:$0x3] %vm192, 0.0
        %196 = vst.msk [vmem:[#allocation2 + $0x20] sm:$0xff] %vm190, 0.0
        %197 = vst.msk [vmem:[#allocation2 + $0x28] sm:$0x3] %vm192, 0.0
        %198 = vst.msk [vmem:[#allocation2 + $0x30] sm:$0xff] %vm190, 0.0
        %199 = vst.msk [vmem:[#allocation2 + $0x38] sm:$0x3] %vm192, 0.0
        %s200 = scalar_lea.vmem %s178, %s179
        %v201 = vld [vmem:[%s200] sm:$0xff]
        %v202 = vld [vmem:[%s200 + $0x10] sm:$0xff]
        %v203 = vld [vmem:[%s200 + $0x20] sm:$0xff]
        %v204 = vld [vmem:[%s200 + $0x30] sm:$0xff]
        %209 = vrot.lane.b32.xlu0 %v201, 1
        %v210 = vpop.permute.xlu0 %209
        %211 = vrot.lane.b32.xlu0 %v202, 1
        %v212 = vpop.permute.xlu0 %211
        %213 = vrot.lane.b32.xlu0 %v203, 1
        %v214 = vpop.permute.xlu0 %213
        %215 = vrot.lane.b32.xlu0 %v204, 1
        %v216 = vpop.permute.xlu0 %215
        %vm221 = vcmask 138248
        %222 = vst.msk [vmem:[#allocation2 + $0x1] sm:$0xff] %vm221, %v210
        %223 = vst.msk [vmem:[#allocation2 + $0x11] sm:$0xff] %vm221, %v212
        %224 = vst.msk [vmem:[#allocation2 + $0x21] sm:$0xff] %vm221, %v214
        %225 = vst.msk [vmem:[#allocation2 + $0x31] sm:$0xff] %vm221, %v216
        %p226 = scmp.gt.s32.totalorder %s19, 0
        // Predicated region
        $region33: #{pare_upsample2d.1} parent=31 // pred_check
          %p227 = pneg %p226
        $region34: #{pare_upsample2d.1} parent=31 // pred_check_branch
          %229 = sbr.rel (%p227) target = $region36
        $region35: #{pare_upsample2d.1} parent=31 // pred_region
          %s230 = ssub.s32 %s179, 1
          %s231 = scalar_lea.vmem %s178, %s230
          %v232 = vld [vmem:[%s231] sm:$0x1]
          %v233 = vld [vmem:[%s231 + $0x10] sm:$0x1]
          %v234 = vld [vmem:[%s231 + $0x20] sm:$0x1]
          %v235 = vld [vmem:[%s231 + $0x30] sm:$0x1]
          %240 = vrot.lane.b32.xlu0 %v232, 1
          %v241 = vpop.permute.xlu0 %240
          %242 = vrot.lane.b32.xlu0 %v233, 1
          %v243 = vpop.permute.xlu0 %242
          %244 = vrot.lane.b32.xlu0 %v234, 1
          %v245 = vpop.permute.xlu0 %244
          %246 = vrot.lane.b32.xlu0 %v235, 1
          %v247 = vpop.permute.xlu0 %246
          %vm252 = vcmask 131080
          %253 = vst.msk [vmem:[#allocation2] sm:$0x1] %vm252, %v241
          %254 = vst.msk [vmem:[#allocation2 + $0x10] sm:$0x1] %vm252, %v243
          %255 = vst.msk [vmem:[#allocation2 + $0x20] sm:$0x1] %vm252, %v245
          %256 = vst.msk [vmem:[#allocation2 + $0x30] sm:$0x1] %vm252, %v247
        $region36: #{pare_upsample2d.1} parent=31 // pred_fallthru
          _
        %p257 = scmp.eq.s32.totalorder %s19, 0
        // Predicated region
        $region37: #{pare_upsample2d.1} parent=31 // pred_check
          %p258 = pneg %p257
        $region38: #{pare_upsample2d.1} parent=31 // pred_check_branch
          %260 = sbr.rel (%p258) target = $region40
        $region39: #{pare_upsample2d.1} parent=31 // pred_region
          %vm261 = vcmask 131080
          %262 = vst.msk [vmem:[#allocation2] sm:$0x1] %vm261, 0.0
          %263 = vst.msk [vmem:[#allocation2 + $0x10] sm:$0x1] %vm261, 0.0
          %264 = vst.msk [vmem:[#allocation2 + $0x20] sm:$0x1] %vm261, 0.0
          %265 = vst.msk [vmem:[#allocation2 + $0x30] sm:$0x1] %vm261, 0.0
        $region40: #{pare_upsample2d.1} parent=31 // pred_fallthru
          _
        %p266 = scmp.lt.s32.totalorder %s19, 1
        // Predicated region
        $region41: #{pare_upsample2d.1} parent=31 // pred_check
          %p267 = pneg %p266
        $region42: #{pare_upsample2d.1} parent=31 // pred_check_branch
          %269 = sbr.rel (%p267) target = $region44
        $region43: #{pare_upsample2d.1} parent=31 // pred_region
          %s270 = sadd.s32 %s179, 8
          %s271 = scalar_lea.vmem %s178, %s270
          %v272 = vld [vmem:[%s271] sm:$0x1]
          %v273 = vld [vmem:[%s271 + $0x10] sm:$0x1]
          %v274 = vld [vmem:[%s271 + $0x20] sm:$0x1]
          %v275 = vld [vmem:[%s271 + $0x30] sm:$0x1]
          %280 = vrot.lane.b32.xlu0 %v272, 1
          %v281 = vpop.permute.xlu0 %280
          %282 = vrot.lane.b32.xlu0 %v273, 1
          %v283 = vpop.permute.xlu0 %282
          %284 = vrot.lane.b32.xlu0 %v274, 1
          %v285 = vpop.permute.xlu0 %284
          %286 = vrot.lane.b32.xlu0 %v275, 1
          %v287 = vpop.permute.xlu0 %286
          %vm292 = vcmask 131080
          %293 = vst.msk [vmem:[#allocation2 + $0x9] sm:$0x1] %vm292, %v281
          %294 = vst.msk [vmem:[#allocation2 + $0x19] sm:$0x1] %vm292, %v283
          %295 = vst.msk [vmem:[#allocation2 + $0x29] sm:$0x1] %vm292, %v285
          %296 = vst.msk [vmem:[#allocation2 + $0x39] sm:$0x1] %vm292, %v287
        $region44: #{pare_upsample2d.1} parent=31 // pred_fallthru
          _
        %p297 = scmp.eq.s32.totalorder %s19, 1
        // Predicated region
        $region45: #{pare_upsample2d.1} parent=31 // pred_check
          %p298 = pneg %p297
        $region46: #{pare_upsample2d.1} parent=31 // pred_check_branch
          %300 = sbr.rel (%p298) target = $region48
        $region47: #{pare_upsample2d.1} parent=31 // pred_region
          %vm301 = vcmask 131080
          %302 = vst.msk [vmem:[#allocation2 + $0x9] sm:$0x1] %vm301, 0.0
          %303 = vst.msk [vmem:[#allocation2 + $0x19] sm:$0x1] %vm301, 0.0
          %304 = vst.msk [vmem:[#allocation2 + $0x29] sm:$0x1] %vm301, 0.0
          %305 = vst.msk [vmem:[#allocation2 + $0x39] sm:$0x1] %vm301, 0.0
        $region48: #{pare_upsample2d.1} parent=31 // pred_fallthru
          _
        %v306 = vlaneseq
        %v307 = vand.u32 %v306, 127
        %v308 = vadd.s32 %v307, 128
        %vm309 = vcmp.lt.s32.totalorder %v307, 0
        %v310 = vsub.s32 0, %v307
        %v311 = vsel %vm309, %v310, %v307
        %v312 = vshrl.u32 %v311, 1
        %v313 = vand.u32 %v311, 1
        %v314 = vsub.s32 0, %v313
        %v315 = vsel %vm309, %v314, %v313
        %vm316 = vcmp.lt.s32.totalorder %v308, 0
        %v317 = vsub.s32 0, %v308
        %v318 = vsel %vm316, %v317, %v308
        %v319 = vshrl.u32 %v318, 1
        %v320 = vand.u32 %v318, 1
        %v321 = vsub.s32 0, %v320
        %v322 = vsel %vm316, %v321, %v320
        %vm323 = vcmp.ne.s32.totalorder %v315, 0
        %vm324 = vcmp.ne.s32.totalorder %v322, 0
        %vm325 = vcmp.lt.s32.totalorder %v315, 0
        %vm326 = vcmp.lt.s32.totalorder %v322, 0
        %vm327 = vmand %vm325, %vm323
        %vm328 = vmand %vm326, %vm324
        %v329 = vadd.s32 %v315, 2
        %v330 = vadd.s32 %v322, 2
        %v331 = vsel %vm327, %v329, %v315
        %v332 = vsel %vm328, %v330, %v322
        %vm333 = vcmp.eq.s32.totalorder %v331, 0
        %vm334 = vcmp.eq.s32.totalorder %v332, 0
        %v335 = vld [vmem:[#allocation2] sm:$0xff]
        %v336 = vld [vmem:[#allocation2 + $0x10] sm:$0xff]
        %v337 = vld [vmem:[#allocation2 + $0x20] sm:$0xff]
        %v338 = vld [vmem:[#allocation2 + $0x30] sm:$0xff]
        %v339 = vcombine.low %v335, %v337
        %v340 = vcombine.high %v335, %v337
        %v342 = vunpack.c.l.s4 1983009808
        %v343 = vunpack.c.0.s8 %v342
        %v344 = vlaneseq
        %v345 = vshrl.u32 %v344, 7
        %v346 = vsub.s32 %v343, %v345
        %v347 = vrot.slane %v339, %v346
        %v349 = vunpack.c.l.s4 1983009808
        %v350 = vunpack.c.0.s8 %v349
        %v351 = vlaneseq
        %v352 = vshrl.u32 %v351, 7
        %v353 = vsub.s32 %v350, %v352
        %v354 = vrot.slane %v340, %v353
        %v355 = vcombine.low %v336, %v338
        %v356 = vcombine.high %v336, %v338
        %v358 = vunpack.c.l.s4 1983009808
        %v359 = vunpack.c.0.s8 %v358
        %v360 = vlaneseq
        %v361 = vshrl.u32 %v360, 7
        %v362 = vsub.s32 %v359, %v361
        %v363 = vrot.slane %v355, %v362
        %v365 = vunpack.c.l.s4 1983009808
        %v366 = vunpack.c.0.s8 %v365
        %v367 = vlaneseq
        %v368 = vshrl.u32 %v367, 7
        %v369 = vsub.s32 %v366, %v368
        %v370 = vrot.slane %v356, %v369
        %v371 = vcombine.low %v347, %v363
        %v372 = vcombine.high %v347, %v363
        %v374 = vunpack.c.l.s4 1934713408
        %v375 = vunpack.c.0.s8 %v374
        %v376 = vlaneseq
        %v377 = vshrl.u32 %v376, 7
        %v378 = vsub.s32 %v375, %v377
        %v379 = vrot.slane %v371, %v378
        %v381 = vunpack.c.l.s4 1934713408
        %v382 = vunpack.c.0.s8 %v381
        %v383 = vlaneseq
        %v384 = vshrl.u32 %v383, 7
        %v385 = vsub.s32 %v382, %v384
        %v386 = vrot.slane %v372, %v385
        %v387 = vcombine.low %v354, %v370
        %v388 = vcombine.high %v354, %v370
        %v390 = vunpack.c.l.s4 1934713408
        %v391 = vunpack.c.0.s8 %v390
        %v392 = vlaneseq
        %v393 = vshrl.u32 %v392, 7
        %v394 = vsub.s32 %v391, %v393
        %v395 = vrot.slane %v387, %v394
        %v397 = vunpack.c.l.s4 1934713408
        %v398 = vunpack.c.0.s8 %v397
        %v399 = vlaneseq
        %v400 = vshrl.u32 %v399, 7
        %v401 = vsub.s32 %v398, %v400
        %v402 = vrot.slane %v388, %v401
        %v403 = vcombine.high %v379, 0.0
        %v404 = vcombine.high %v386, 0.0
        %v405 = vcombine.high %v395, 0.0
        %v406 = vcombine.high %v402, 0.0
        %408 = vrot.lane.b32.xlu0 %v403, 16
        %v409 = vpop.permute.xlu0 %408
        %412 = vrot.lane.b32.xlu0 %v386, 32
        %v413 = vpop.permute.xlu0 %412
        %416 = vrot.lane.b32.xlu0 %v404, 48
        %v417 = vpop.permute.xlu0 %416
        %420 = vrot.lane.b32.xlu0 %v395, 64
        %v421 = vpop.permute.xlu0 %420
        %424 = vrot.lane.b32.xlu0 %v405, 80
        %v425 = vpop.permute.xlu0 %424
        %428 = vrot.lane.b32.xlu0 %v402, 96
        %v429 = vpop.permute.xlu0 %428
        %432 = vrot.lane.b32.xlu0 %v406, 112
        %v433 = vpop.permute.xlu0 %432
        %vm435 = vcmask 130048
        %v436 = vsel %vm435, %v379, %v409
        %vm437 = vcmask 261120
        %v438 = vsel %vm437, %v436, %v413
        %vm439 = vcmask 392192
        %v440 = vsel %vm439, %v438, %v417
        %vm441 = vcmask 523264
        %v442 = vsel %vm441, %v440, %v421
        %vm443 = vcmask 654336
        %v444 = vsel %vm443, %v442, %v425
        %vm445 = vcmask 785408
        %v446 = vsel %vm445, %v444, %v429
        %vm447 = vcmask 916480
        %v448 = vsel %vm447, %v446, %v433
        %453 = vrot.lane.b32.xlu0 %v335, 127
        %v454 = vpop.permute.xlu0 %453
        %455 = vrot.lane.b32.xlu0 %v336, 127
        %v456 = vpop.permute.xlu0 %455
        %457 = vrot.lane.b32.xlu0 %v337, 127
        %v458 = vpop.permute.xlu0 %457
        %459 = vrot.lane.b32.xlu0 %v338, 127
        %v460 = vpop.permute.xlu0 %459
        %v465 = vcombine.low %v454, %v458
        %v466 = vcombine.high %v454, %v458
        %v468 = vunpack.c.l.s4 1983009808
        %v469 = vunpack.c.0.s8 %v468
        %v470 = vlaneseq
        %v471 = vshrl.u32 %v470, 7
        %v472 = vsub.s32 %v469, %v471
        %v473 = vrot.slane %v465, %v472
        %v475 = vunpack.c.l.s4 1983009808
        %v476 = vunpack.c.0.s8 %v475
        %v477 = vlaneseq
        %v478 = vshrl.u32 %v477, 7
        %v479 = vsub.s32 %v476, %v478
        %v480 = vrot.slane %v466, %v479
        %v481 = vcombine.low %v456, %v460
        %v482 = vcombine.high %v456, %v460
        %v484 = vunpack.c.l.s4 1983009808
        %v485 = vunpack.c.0.s8 %v484
        %v486 = vlaneseq
        %v487 = vshrl.u32 %v486, 7
        %v488 = vsub.s32 %v485, %v487
        %v489 = vrot.slane %v481, %v488
        %v491 = vunpack.c.l.s4 1983009808
        %v492 = vunpack.c.0.s8 %v491
        %v493 = vlaneseq
        %v494 = vshrl.u32 %v493, 7
        %v495 = vsub.s32 %v492, %v494
        %v496 = vrot.slane %v482, %v495
        %v497 = vcombine.low %v473, %v489
        %v498 = vcombine.high %v473, %v489
        %v500 = vunpack.c.l.s4 1934713408
        %v501 = vunpack.c.0.s8 %v500
        %v502 = vlaneseq
        %v503 = vshrl.u32 %v502, 7
        %v504 = vsub.s32 %v501, %v503
        %v505 = vrot.slane %v497, %v504
        %v507 = vunpack.c.l.s4 1934713408
        %v508 = vunpack.c.0.s8 %v507
        %v509 = vlaneseq
        %v510 = vshrl.u32 %v509, 7
        %v511 = vsub.s32 %v508, %v510
        %v512 = vrot.slane %v498, %v511
        %v513 = vcombine.low %v480, %v496
        %v514 = vcombine.high %v480, %v496
        %v516 = vunpack.c.l.s4 1934713408
        %v517 = vunpack.c.0.s8 %v516
        %v518 = vlaneseq
        %v519 = vshrl.u32 %v518, 7
        %v520 = vsub.s32 %v517, %v519
        %v521 = vrot.slane %v513, %v520
        %v523 = vunpack.c.l.s4 1934713408
        %v524 = vunpack.c.0.s8 %v523
        %v525 = vlaneseq
        %v526 = vshrl.u32 %v525, 7
        %v527 = vsub.s32 %v524, %v526
        %v528 = vrot.slane %v514, %v527
        %v529 = vcombine.high %v505, 0.0
        %v530 = vcombine.high %v512, 0.0
        %v531 = vcombine.high %v521, 0.0
        %v532 = vcombine.high %v528, 0.0
        %534 = vrot.lane.b32.xlu0 %v529, 16
        %v535 = vpop.permute.xlu0 %534
        %538 = vrot.lane.b32.xlu0 %v512, 32
        %v539 = vpop.permute.xlu0 %538
        %542 = vrot.lane.b32.xlu0 %v530, 48
        %v543 = vpop.permute.xlu0 %542
        %546 = vrot.lane.b32.xlu0 %v521, 64
        %v547 = vpop.permute.xlu0 %546
        %550 = vrot.lane.b32.xlu0 %v531, 80
        %v551 = vpop.permute.xlu0 %550
        %554 = vrot.lane.b32.xlu0 %v528, 96
        %v555 = vpop.permute.xlu0 %554
        %558 = vrot.lane.b32.xlu0 %v532, 112
        %v559 = vpop.permute.xlu0 %558
        %v561 = vsel %vm435, %v505, %v535
        %v562 = vsel %vm437, %v561, %v539
        %v563 = vsel %vm439, %v562, %v543
        %v564 = vsel %vm441, %v563, %v547
        %v565 = vsel %vm443, %v564, %v551
        %v566 = vsel %vm445, %v565, %v555
        %v567 = vsel %vm447, %v566, %v559
        %v568 = vld [vmem:[#allocation2 + $0x1] sm:$0xff]
        %v569 = vld [vmem:[#allocation2 + $0x11] sm:$0xff]
        %v570 = vld [vmem:[#allocation2 + $0x21] sm:$0xff]
        %v571 = vld [vmem:[#allocation2 + $0x31] sm:$0xff]
        %v572 = vcombine.low %v568, %v570
        %v573 = vcombine.high %v568, %v570
        %v575 = vunpack.c.l.s4 1983009808
        %v576 = vunpack.c.0.s8 %v575
        %v577 = vlaneseq
        %v578 = vshrl.u32 %v577, 7
        %v579 = vsub.s32 %v576, %v578
        %v580 = vrot.slane %v572, %v579
        %v582 = vunpack.c.l.s4 1983009808
        %v583 = vunpack.c.0.s8 %v582
        %v584 = vlaneseq
        %v585 = vshrl.u32 %v584, 7
        %v586 = vsub.s32 %v583, %v585
        %v587 = vrot.slane %v573, %v586
        %v588 = vcombine.low %v569, %v571
        %v589 = vcombine.high %v569, %v571
        %v591 = vunpack.c.l.s4 1983009808
        %v592 = vunpack.c.0.s8 %v591
        %v593 = vlaneseq
        %v594 = vshrl.u32 %v593, 7
        %v595 = vsub.s32 %v592, %v594
        %v596 = vrot.slane %v588, %v595
        %v598 = vunpack.c.l.s4 1983009808
        %v599 = vunpack.c.0.s8 %v598
        %v600 = vlaneseq
        %v601 = vshrl.u32 %v600, 7
        %v602 = vsub.s32 %v599, %v601
        %v603 = vrot.slane %v589, %v602
        %v604 = vcombine.low %v580, %v596
        %v605 = vcombine.high %v580, %v596
        %v607 = vunpack.c.l.s4 1934713408
        %v608 = vunpack.c.0.s8 %v607
        %v609 = vlaneseq
        %v610 = vshrl.u32 %v609, 7
        %v611 = vsub.s32 %v608, %v610
        %v612 = vrot.slane %v604, %v611
        %v614 = vunpack.c.l.s4 1934713408
        %v615 = vunpack.c.0.s8 %v614
        %v616 = vlaneseq
        %v617 = vshrl.u32 %v616, 7
        %v618 = vsub.s32 %v615, %v617
        %v619 = vrot.slane %v605, %v618
        %v620 = vcombine.low %v587, %v603
        %v621 = vcombine.high %v587, %v603
        %v623 = vunpack.c.l.s4 1934713408
        %v624 = vunpack.c.0.s8 %v623
        %v625 = vlaneseq
        %v626 = vshrl.u32 %v625, 7
        %v627 = vsub.s32 %v624, %v626
        %v628 = vrot.slane %v620, %v627
        %v630 = vunpack.c.l.s4 1934713408
        %v631 = vunpack.c.0.s8 %v630
        %v632 = vlaneseq
        %v633 = vshrl.u32 %v632, 7
        %v634 = vsub.s32 %v631, %v633
        %v635 = vrot.slane %v621, %v634
        %v636 = vcombine.high %v612, 0.0
        %v637 = vcombine.high %v619, 0.0
        %v638 = vcombine.high %v628, 0.0
        %v639 = vcombine.high %v635, 0.0
        %641 = vrot.lane.b32.xlu0 %v636, 16
        %v642 = vpop.permute.xlu0 %641
        %645 = vrot.lane.b32.xlu0 %v619, 32
        %v646 = vpop.permute.xlu0 %645
        %649 = vrot.lane.b32.xlu0 %v637, 48
        %v650 = vpop.permute.xlu0 %649
        %653 = vrot.lane.b32.xlu0 %v628, 64
        %v654 = vpop.permute.xlu0 %653
        %657 = vrot.lane.b32.xlu0 %v638, 80
        %v658 = vpop.permute.xlu0 %657
        %661 = vrot.lane.b32.xlu0 %v635, 96
        %v662 = vpop.permute.xlu0 %661
        %665 = vrot.lane.b32.xlu0 %v639, 112
        %v666 = vpop.permute.xlu0 %665
        %v668 = vsel %vm435, %v612, %v642
        %v669 = vsel %vm437, %v668, %v646
        %v670 = vsel %vm439, %v669, %v650
        %v671 = vsel %vm441, %v670, %v654
        %v672 = vsel %vm443, %v671, %v658
        %v673 = vsel %vm445, %v672, %v662
        %v674 = vsel %vm447, %v673, %v666
        %679 = vrot.lane.b32.xlu0 %v568, 127
        %v680 = vpop.permute.xlu0 %679
        %681 = vrot.lane.b32.xlu0 %v569, 127
        %v682 = vpop.permute.xlu0 %681
        %683 = vrot.lane.b32.xlu0 %v570, 127
        %v684 = vpop.permute.xlu0 %683
        %685 = vrot.lane.b32.xlu0 %v571, 127
        %v686 = vpop.permute.xlu0 %685
        %v691 = vcombine.low %v680, %v684
        %v692 = vcombine.high %v680, %v684
        %v694 = vunpack.c.l.s4 1983009808
        %v695 = vunpack.c.0.s8 %v694
        %v696 = vlaneseq
        %v697 = vshrl.u32 %v696, 7
        %v698 = vsub.s32 %v695, %v697
        %v699 = vrot.slane %v691, %v698
        %v701 = vunpack.c.l.s4 1983009808
        %v702 = vunpack.c.0.s8 %v701
        %v703 = vlaneseq
        %v704 = vshrl.u32 %v703, 7
        %v705 = vsub.s32 %v702, %v704
        %v706 = vrot.slane %v692, %v705
        %v707 = vcombine.low %v682, %v686
        %v708 = vcombine.high %v682, %v686
        %v710 = vunpack.c.l.s4 1983009808
        %v711 = vunpack.c.0.s8 %v710
        %v712 = vlaneseq
        %v713 = vshrl.u32 %v712, 7
        %v714 = vsub.s32 %v711, %v713
        %v715 = vrot.slane %v707, %v714
        %v717 = vunpack.c.l.s4 1983009808
        %v718 = vunpack.c.0.s8 %v717
        %v719 = vlaneseq
        %v720 = vshrl.u32 %v719, 7
        %v721 = vsub.s32 %v718, %v720
        %v722 = vrot.slane %v708, %v721
        %v723 = vcombine.low %v699, %v715
        %v724 = vcombine.high %v699, %v715
        %v726 = vunpack.c.l.s4 1934713408
        %v727 = vunpack.c.0.s8 %v726
        %v728 = vlaneseq
        %v729 = vshrl.u32 %v728, 7
        %v730 = vsub.s32 %v727, %v729
        %v731 = vrot.slane %v723, %v730
        %v733 = vunpack.c.l.s4 1934713408
        %v734 = vunpack.c.0.s8 %v733
        %v735 = vlaneseq
        %v736 = vshrl.u32 %v735, 7
        %v737 = vsub.s32 %v734, %v736
        %v738 = vrot.slane %v724, %v737
        %v739 = vcombine.low %v706, %v722
        %v740 = vcombine.high %v706, %v722
        %v742 = vunpack.c.l.s4 1934713408
        %v743 = vunpack.c.0.s8 %v742
        %v744 = vlaneseq
        %v745 = vshrl.u32 %v744, 7
        %v746 = vsub.s32 %v743, %v745
        %v747 = vrot.slane %v739, %v746
        %v749 = vunpack.c.l.s4 1934713408
        %v750 = vunpack.c.0.s8 %v749
        %v751 = vlaneseq
        %v752 = vshrl.u32 %v751, 7
        %v753 = vsub.s32 %v750, %v752
        %v754 = vrot.slane %v740, %v753
        %v755 = vcombine.high %v731, 0.0
        %v756 = vcombine.high %v738, 0.0
        %v757 = vcombine.high %v747, 0.0
        %v758 = vcombine.high %v754, 0.0
        %760 = vrot.lane.b32.xlu0 %v755, 16
        %v761 = vpop.permute.xlu0 %760
        %764 = vrot.lane.b32.xlu0 %v738, 32
        %v765 = vpop.permute.xlu0 %764
        %768 = vrot.lane.b32.xlu0 %v756, 48
        %v769 = vpop.permute.xlu0 %768
        %772 = vrot.lane.b32.xlu0 %v747, 64
        %v773 = vpop.permute.xlu0 %772
        %776 = vrot.lane.b32.xlu0 %v757, 80
        %v777 = vpop.permute.xlu0 %776
        %780 = vrot.lane.b32.xlu0 %v754, 96
        %v781 = vpop.permute.xlu0 %780
        %784 = vrot.lane.b32.xlu0 %v758, 112
        %v785 = vpop.permute.xlu0 %784
        %v787 = vsel %vm435, %v731, %v761
        %v788 = vsel %vm437, %v787, %v765
        %v789 = vsel %vm439, %v788, %v769
        %v790 = vsel %vm441, %v789, %v773
        %v791 = vsel %vm443, %v790, %v777
        %v792 = vsel %vm445, %v791, %v781
        %v793 = vsel %vm447, %v792, %v785
        %v795 = vrot.slane %v567, 4
        %v798 = vrot.slane %v793, 4
        %vm800 = vcmask 1043456
        %v801 = vsel %vm800, %v448, %v795
        %v802 = vsel %vm800, %v674, %v798
        %v803 = vld [vmem:[%s1] sm:$0xf]
        %v804 = vld [vmem:[%s2] sm:$0xf]
        %806 = vset.pattern.permute.xlu0 0
        %807 = vperm.xlu0 %806, %v804
        %v808 = vpop.permute.xlu0 %807
        %v811 = vsel %vm435, %v803, 0
        %813 = vmatprep.subr.mxu0 0.0
        %814 = vmatpush1.msra.mxu0 %v801
        %815 = vmatprep.subr.mxu0 0.0
        %816 = vmatpush1.msra.mxu0 %v802
        %817 = vmatprep.subr.mxu0 0.0
        %818 = vmatpush1.msra.mxu0 0.0
        %819 = vmatprep.subr.mxu0 0.0
        %820 = vmatpush1.msra.mxu0 0.0
        %821 = vmatprep.subr.mxu0 0.0
        %822 = vmatpush1.msra.mxu0 0.0
        %823 = vmatprep.subr.mxu0 0.0
        %824 = vmatpush1.msra.mxu0 0.0
        %825 = vmatprep.subr.mxu0 0.0
        %826 = vmatpush1.msra.mxu0 0.0
        %827 = vmatprep.subr.mxu0 0.0
        %828 = vmatpush1.msra.mxu0 0.0
        %829 = vmatprep.subr.mxu0 0.0
        %830 = vmatpush1.msra.mxu0 0.0
        %831 = vmatprep.subr.mxu0 0.0
        %832 = vmatpush1.msra.mxu0 0.0
        %833 = vmatprep.subr.mxu0 0.0
        %834 = vmatpush1.msra.mxu0 0.0
        %835 = vmatprep.subr.mxu0 0.0
        %836 = vmatpush1.msra.mxu0 0.0
        %837 = vmatprep.subr.mxu0 0.0
        %838 = vmatpush1.msra.mxu0 0.0
        %839 = vmatprep.subr.mxu0 0.0
        %840 = vmatpush1.msra.mxu0 0.0
        %841 = vmatprep.subr.mxu0 0.0
        %842 = vmatpush1.msra.mxu0 0.0
        %843 = vmatprep.subr.mxu0 0.0
        %844 = vmatpush1.msra.mxu0 0.0
        %845 = vmatprep.subr.mxu0 0.0
        %846 = vmatpush1.msra.mxu0 0.0
        %847 = vmatprep.subr.mxu0 0.0
        %848 = vmatpush1.msra.mxu0 0.0
        %849 = vmatprep.subr.mxu0 0.0
        %850 = vmatpush1.msra.mxu0 0.0
        %851 = vmatprep.subr.mxu0 0.0
        %852 = vmatpush1.msra.mxu0 0.0
        %853 = vmatprep.subr.mxu0 0.0
        %854 = vmatpush1.msra.mxu0 0.0
        %855 = vmatprep.subr.mxu0 0.0
        %856 = vmatpush1.msra.mxu0 0.0
        %857 = vmatprep.subr.mxu0 0.0
        %858 = vmatpush1.msra.mxu0 0.0
        %859 = vmatprep.subr.mxu0 0.0
        %860 = vmatpush1.msra.mxu0 0.0
        %861 = vmatprep.subr.mxu0 0.0
        %862 = vmatpush1.msra.mxu0 0.0
        %863 = vmatprep.subr.mxu0 0.0
        %864 = vmatpush1.msra.mxu0 0.0
        %865 = vmatprep.subr.mxu0 0.0
        %866 = vmatpush1.msra.mxu0 0.0
        %867 = vmatprep.subr.mxu0 0.0
        %868 = vmatpush1.msra.mxu0 0.0
        %869 = vmatprep.subr.mxu0 0.0
        %870 = vmatpush1.msra.mxu0 0.0
        %871 = vmatprep.subr.mxu0 0.0
        %872 = vmatpush1.msra.mxu0 0.0
        %873 = vmatprep.subr.mxu0 0.0
        %874 = vmatpush1.msra.mxu0 0.0
        %875 = vmatprep.subr.mxu0 0.0
        %876 = vmatpush1.msra.mxu0 0.0
        %877 = vmatprep.mubr.f32.mxu0 0.0
        %878 = vmatmul.mubr.f32.gmra.mrb[0].mxu0 %v811
        %v879 = vpop.f32.mrb[0].mxu0
        %v880 = vadd.f32 %v808, %v879
        %v881 = vpop.f32.mrb[0].mxu0
        %882 = vdwg.mxu0
        %v883 = vld [vmem:[#allocation2] sm:$0xff]
        %v884 = vld [vmem:[#allocation2 + $0x10] sm:$0xff]
        %v885 = vld [vmem:[#allocation2 + $0x20] sm:$0xff]
        %v886 = vld [vmem:[#allocation2 + $0x30] sm:$0xff]
        %891 = vrot.lane.b32.xlu0 %v883, 126
        %v892 = vpop.permute.xlu0 %891
        %893 = vrot.lane.b32.xlu0 %v884, 126
        %v894 = vpop.permute.xlu0 %893
        %895 = vrot.lane.b32.xlu0 %v885, 126
        %v896 = vpop.permute.xlu0 %895
        %897 = vrot.lane.b32.xlu0 %v886, 126
        %v898 = vpop.permute.xlu0 %897
        %v903 = vcombine.low %v892, %v896
        %v904 = vcombine.high %v892, %v896
        %v906 = vunpack.c.l.s4 1983009808
        %v907 = vunpack.c.0.s8 %v906
        %v908 = vlaneseq
        %v909 = vshrl.u32 %v908, 7
        %v910 = vsub.s32 %v907, %v909
        %v911 = vrot.slane %v903, %v910
        %v913 = vunpack.c.l.s4 1983009808
        %v914 = vunpack.c.0.s8 %v913
        %v915 = vlaneseq
        %v916 = vshrl.u32 %v915, 7
        %v917 = vsub.s32 %v914, %v916
        %v918 = vrot.slane %v904, %v917
        %v919 = vcombine.low %v894, %v898
        %v920 = vcombine.high %v894, %v898
        %v922 = vunpack.c.l.s4 1983009808
        %v923 = vunpack.c.0.s8 %v922
        %v924 = vlaneseq
        %v925 = vshrl.u32 %v924, 7
        %v926 = vsub.s32 %v923, %v925
        %v927 = vrot.slane %v919, %v926
        %v929 = vunpack.c.l.s4 1983009808
        %v930 = vunpack.c.0.s8 %v929
        %v931 = vlaneseq
        %v932 = vshrl.u32 %v931, 7
        %v933 = vsub.s32 %v930, %v932
        %v934 = vrot.slane %v920, %v933
        %v935 = vcombine.low %v911, %v927
        %v936 = vcombine.high %v911, %v927
        %v938 = vunpack.c.l.s4 1934713408
        %v939 = vunpack.c.0.s8 %v938
        %v940 = vlaneseq
        %v941 = vshrl.u32 %v940, 7
        %v942 = vsub.s32 %v939, %v941
        %v943 = vrot.slane %v935, %v942
        %v945 = vunpack.c.l.s4 1934713408
        %v946 = vunpack.c.0.s8 %v945
        %v947 = vlaneseq
        %v948 = vshrl.u32 %v947, 7
        %v949 = vsub.s32 %v946, %v948
        %v950 = vrot.slane %v936, %v949
        %v951 = vcombine.low %v918, %v934
        %v952 = vcombine.high %v918, %v934
        %v954 = vunpack.c.l.s4 1934713408
        %v955 = vunpack.c.0.s8 %v954
        %v956 = vlaneseq
        %v957 = vshrl.u32 %v956, 7
        %v958 = vsub.s32 %v955, %v957
        %v959 = vrot.slane %v951, %v958
        %v961 = vunpack.c.l.s4 1934713408
        %v962 = vunpack.c.0.s8 %v961
        %v963 = vlaneseq
        %v964 = vshrl.u32 %v963, 7
        %v965 = vsub.s32 %v962, %v964
        %v966 = vrot.slane %v952, %v965
        %v967 = vcombine.high %v943, 0.0
        %v968 = vcombine.high %v950, 0.0
        %v969 = vcombine.high %v959, 0.0
        %v970 = vcombine.high %v966, 0.0
        %972 = vrot.lane.b32.xlu0 %v967, 16
        %v973 = vpop.permute.xlu0 %972
        %976 = vrot.lane.b32.xlu0 %v950, 32
        %v977 = vpop.permute.xlu0 %976
        %980 = vrot.lane.b32.xlu0 %v968, 48
        %v981 = vpop.permute.xlu0 %980
        %984 = vrot.lane.b32.xlu0 %v959, 64
        %v985 = vpop.permute.xlu0 %984
        %988 = vrot.lane.b32.xlu0 %v969, 80
        %v989 = vpop.permute.xlu0 %988
        %992 = vrot.lane.b32.xlu0 %v966, 96
        %v993 = vpop.permute.xlu0 %992
        %996 = vrot.lane.b32.xlu0 %v970, 112
        %v997 = vpop.permute.xlu0 %996
        %v999 = vsel %vm435, %v943, %v973
        %v1000 = vsel %vm437, %v999, %v977
        %v1001 = vsel %vm439, %v1000, %v981
        %v1002 = vsel %vm441, %v1001, %v985
        %v1003 = vsel %vm443, %v1002, %v989
        %v1004 = vsel %vm445, %v1003, %v993
        %v1005 = vsel %vm447, %v1004, %v997
        %v1006 = vld [vmem:[#allocation2 + $0x1] sm:$0xff]
        %v1007 = vld [vmem:[#allocation2 + $0x11] sm:$0xff]
        %v1008 = vld [vmem:[#allocation2 + $0x21] sm:$0xff]
        %v1009 = vld [vmem:[#allocation2 + $0x31] sm:$0xff]
        %1014 = vrot.lane.b32.xlu0 %v1006, 126
        %v1015 = vpop.permute.xlu0 %1014
        %1016 = vrot.lane.b32.xlu0 %v1007, 126
        %v1017 = vpop.permute.xlu0 %1016
        %1018 = vrot.lane.b32.xlu0 %v1008, 126
        %v1019 = vpop.permute.xlu0 %1018
        %1020 = vrot.lane.b32.xlu0 %v1009, 126
        %v1021 = vpop.permute.xlu0 %1020
        %v1026 = vcombine.low %v1015, %v1019
        %v1027 = vcombine.high %v1015, %v1019
        %v1029 = vunpack.c.l.s4 1983009808
        %v1030 = vunpack.c.0.s8 %v1029
        %v1031 = vlaneseq
        %v1032 = vshrl.u32 %v1031, 7
        %v1033 = vsub.s32 %v1030, %v1032
        %v1034 = vrot.slane %v1026, %v1033
        %v1036 = vunpack.c.l.s4 1983009808
        %v1037 = vunpack.c.0.s8 %v1036
        %v1038 = vlaneseq
        %v1039 = vshrl.u32 %v1038, 7
        %v1040 = vsub.s32 %v1037, %v1039
        %v1041 = vrot.slane %v1027, %v1040
        %v1042 = vcombine.low %v1017, %v1021
        %v1043 = vcombine.high %v1017, %v1021
        %v1045 = vunpack.c.l.s4 1983009808
        %v1046 = vunpack.c.0.s8 %v1045
        %v1047 = vlaneseq
        %v1048 = vshrl.u32 %v1047, 7
        %v1049 = vsub.s32 %v1046, %v1048
        %v1050 = vrot.slane %v1042, %v1049
        %v1052 = vunpack.c.l.s4 1983009808
        %v1053 = vunpack.c.0.s8 %v1052
        %v1054 = vlaneseq
        %v1055 = vshrl.u32 %v1054, 7
        %v1056 = vsub.s32 %v1053, %v1055
        %v1057 = vrot.slane %v1043, %v1056
        %v1058 = vcombine.low %v1034, %v1050
        %v1059 = vcombine.high %v1034, %v1050
        %v1061 = vunpack.c.l.s4 1934713408
        %v1062 = vunpack.c.0.s8 %v1061
        %v1063 = vlaneseq
        %v1064 = vshrl.u32 %v1063, 7
        %v1065 = vsub.s32 %v1062, %v1064
        %v1066 = vrot.slane %v1058, %v1065
        %v1068 = vunpack.c.l.s4 1934713408
        %v1069 = vunpack.c.0.s8 %v1068
        %v1070 = vlaneseq
        %v1071 = vshrl.u32 %v1070, 7
        %v1072 = vsub.s32 %v1069, %v1071
        %v1073 = vrot.slane %v1059, %v1072
        %v1074 = vcombine.low %v1041, %v1057
        %v1075 = vcombine.high %v1041, %v1057
        %v1077 = vunpack.c.l.s4 1934713408
        %v1078 = vunpack.c.0.s8 %v1077
        %v1079 = vlaneseq
        %v1080 = vshrl.u32 %v1079, 7
        %v1081 = vsub.s32 %v1078, %v1080
        %v1082 = vrot.slane %v1074, %v1081
        %v1084 = vunpack.c.l.s4 1934713408
        %v1085 = vunpack.c.0.s8 %v1084
        %v1086 = vlaneseq
        %v1087 = vshrl.u32 %v1086, 7
        %v1088 = vsub.s32 %v1085, %v1087
        %v1089 = vrot.slane %v1075, %v1088
        %v1090 = vcombine.high %v1066, 0.0
        %v1091 = vcombine.high %v1073, 0.0
        %v1092 = vcombine.high %v1082, 0.0
        %v1093 = vcombine.high %v1089, 0.0
        %1095 = vrot.lane.b32.xlu0 %v1090, 16
        %v1096 = vpop.permute.xlu0 %1095
        %1099 = vrot.lane.b32.xlu0 %v1073, 32
        %v1100 = vpop.permute.xlu0 %1099
        %1103 = vrot.lane.b32.xlu0 %v1091, 48
        %v1104 = vpop.permute.xlu0 %1103
        %1107 = vrot.lane.b32.xlu0 %v1082, 64
        %v1108 = vpop.permute.xlu0 %1107
        %1111 = vrot.lane.b32.xlu0 %v1092, 80
        %v1112 = vpop.permute.xlu0 %1111
        %1115 = vrot.lane.b32.xlu0 %v1089, 96
        %v1116 = vpop.permute.xlu0 %1115
        %1119 = vrot.lane.b32.xlu0 %v1093, 112
        %v1120 = vpop.permute.xlu0 %1119
        %v1122 = vsel %vm435, %v1066, %v1096
        %v1123 = vsel %vm437, %v1122, %v1100
        %v1124 = vsel %vm439, %v1123, %v1104
        %v1125 = vsel %vm441, %v1124, %v1108
        %v1126 = vsel %vm443, %v1125, %v1112
        %v1127 = vsel %vm445, %v1126, %v1116
        %v1128 = vsel %vm447, %v1127, %v1120
        %v1130 = vrot.slane %v1005, 4
        %v1133 = vrot.slane %v1128, 4
        %v1135 = vsel %vm800, %v567, %v1130
        %v1136 = vsel %vm800, %v793, %v1133
        %s1137 = scalar_lea.vmem %s1, 4
        %v1138 = vld [vmem:[%s1137] sm:$0xf]
        %v1140 = vsel %vm435, %v1138, 0
        %1142 = vmatprep.subr.mxu0 0.0
        %1143 = vmatpush1.msra.mxu0 %v1135
        %1144 = vmatprep.subr.mxu0 0.0
        %1145 = vmatpush1.msra.mxu0 %v1136
        %1146 = vmatprep.subr.mxu0 0.0
        %1147 = vmatpush1.msra.mxu0 0.0
        %1148 = vmatprep.subr.mxu0 0.0
        %1149 = vmatpush1.msra.mxu0 0.0
        %1150 = vmatprep.subr.mxu0 0.0
        %1151 = vmatpush1.msra.mxu0 0.0
        %1152 = vmatprep.subr.mxu0 0.0
        %1153 = vmatpush1.msra.mxu0 0.0
        %1154 = vmatprep.subr.mxu0 0.0
        %1155 = vmatpush1.msra.mxu0 0.0
        %1156 = vmatprep.subr.mxu0 0.0
        %1157 = vmatpush1.msra.mxu0 0.0
        %1158 = vmatprep.subr.mxu0 0.0
        %1159 = vmatpush1.msra.mxu0 0.0
        %1160 = vmatprep.subr.mxu0 0.0
        %1161 = vmatpush1.msra.mxu0 0.0
        %1162 = vmatprep.subr.mxu0 0.0
        %1163 = vmatpush1.msra.mxu0 0.0
        %1164 = vmatprep.subr.mxu0 0.0
        %1165 = vmatpush1.msra.mxu0 0.0
        %1166 = vmatprep.subr.mxu0 0.0
        %1167 = vmatpush1.msra.mxu0 0.0
        %1168 = vmatprep.subr.mxu0 0.0
        %1169 = vmatpush1.msra.mxu0 0.0
        %1170 = vmatprep.subr.mxu0 0.0
        %1171 = vmatpush1.msra.mxu0 0.0
        %1172 = vmatprep.subr.mxu0 0.0
        %1173 = vmatpush1.msra.mxu0 0.0
        %1174 = vmatprep.subr.mxu0 0.0
        %1175 = vmatpush1.msra.mxu0 0.0
        %1176 = vmatprep.subr.mxu0 0.0
        %1177 = vmatpush1.msra.mxu0 0.0
        %1178 = vmatprep.subr.mxu0 0.0
        %1179 = vmatpush1.msra.mxu0 0.0
        %1180 = vmatprep.subr.mxu0 0.0
        %1181 = vmatpush1.msra.mxu0 0.0
        %1182 = vmatprep.subr.mxu0 0.0
        %1183 = vmatpush1.msra.mxu0 0.0
        %1184 = vmatprep.subr.mxu0 0.0
        %1185 = vmatpush1.msra.mxu0 0.0
        %1186 = vmatprep.subr.mxu0 0.0
        %1187 = vmatpush1.msra.mxu0 0.0
        %1188 = vmatprep.subr.mxu0 0.0
        %1189 = vmatpush1.msra.mxu0 0.0
        %1190 = vmatprep.subr.mxu0 0.0
        %1191 = vmatpush1.msra.mxu0 0.0
        %1192 = vmatprep.subr.mxu0 0.0
        %1193 = vmatpush1.msra.mxu0 0.0
        %1194 = vmatprep.subr.mxu0 0.0
        %1195 = vmatpush1.msra.mxu0 0.0
        %1196 = vmatprep.subr.mxu0 0.0
        %1197 = vmatpush1.msra.mxu0 0.0
        %1198 = vmatprep.subr.mxu0 0.0
        %1199 = vmatpush1.msra.mxu0 0.0
        %1200 = vmatprep.subr.mxu0 0.0
        %1201 = vmatpush1.msra.mxu0 0.0
        %1202 = vmatprep.subr.mxu0 0.0
        %1203 = vmatpush1.msra.mxu0 0.0
        %1204 = vmatprep.subr.mxu0 0.0
        %1205 = vmatpush1.msra.mxu0 0.0
        %1206 = vmatprep.mubr.f32.mxu0 0.0
        %1207 = vmatmul.mubr.f32.gmra.mrb[0].mxu0 %v1140
        %v1208 = vpop.f32.mrb[0].mxu0
        %v1209 = vadd.f32 %v808, %v1208
        %v1210 = vpop.f32.mrb[0].mxu0
        %1211 = vdwg.mxu0
        %v1212 = vlaneseq
        %v1213 = vshrl.u32 %v1212, 7
        %v1214 = vsub.s32 0, %v1213
        %v1215 = vrot.slane %v880, %v1214
        %1217 = vbcast.lane.b32.xlu0 %v1215, 256
        %v1218 = vpop.permute.xlu0 %1217
        %s1220 = sor.u32 256, 8
        %1221 = vbcast.lane.b32.xlu0 %v1215, %s1220
        %v1222 = vpop.permute.xlu0 %1221
        %s1224 = sor.u32 256, 16
        %1225 = vbcast.lane.b32.xlu0 %v1215, %s1224
        %v1226 = vpop.permute.xlu0 %1225
        %s1228 = sor.u32 256, 24
        %1229 = vbcast.lane.b32.xlu0 %v1215, %s1228
        %v1230 = vpop.permute.xlu0 %1229
        %s1232 = sor.u32 256, 32
        %1233 = vbcast.lane.b32.xlu0 %v1215, %s1232
        %v1234 = vpop.permute.xlu0 %1233
        %s1236 = sor.u32 256, 40
        %1237 = vbcast.lane.b32.xlu0 %v1215, %s1236
        %v1238 = vpop.permute.xlu0 %1237
        %s1240 = sor.u32 256, 48
        %1241 = vbcast.lane.b32.xlu0 %v1215, %s1240
        %v1242 = vpop.permute.xlu0 %1241
        %s1244 = sor.u32 256, 56
        %1245 = vbcast.lane.b32.xlu0 %v1215, %s1244
        %v1246 = vpop.permute.xlu0 %1245
        %s1248 = sor.u32 256, 64
        %1249 = vbcast.lane.b32.xlu0 %v1215, %s1248
        %v1250 = vpop.permute.xlu0 %1249
        %s1252 = sor.u32 256, 72
        %1253 = vbcast.lane.b32.xlu0 %v1215, %s1252
        %v1254 = vpop.permute.xlu0 %1253
        %s1256 = sor.u32 256, 80
        %1257 = vbcast.lane.b32.xlu0 %v1215, %s1256
        %v1258 = vpop.permute.xlu0 %1257
        %s1260 = sor.u32 256, 88
        %1261 = vbcast.lane.b32.xlu0 %v1215, %s1260
        %v1262 = vpop.permute.xlu0 %1261
        %s1264 = sor.u32 256, 96
        %1265 = vbcast.lane.b32.xlu0 %v1215, %s1264
        %v1266 = vpop.permute.xlu0 %1265
        %s1268 = sor.u32 256, 104
        %1269 = vbcast.lane.b32.xlu0 %v1215, %s1268
        %v1270 = vpop.permute.xlu0 %1269
        %s1272 = sor.u32 256, 112
        %1273 = vbcast.lane.b32.xlu0 %v1215, %s1272
        %v1274 = vpop.permute.xlu0 %1273
        %s1276 = sor.u32 256, 120
        %1277 = vbcast.lane.b32.xlu0 %v1215, %s1276
        %v1278 = vpop.permute.xlu0 %1277
        %v1279 = vlaneseq
        %v1280 = vshrl.u32 %v1279, 7
        %v1281 = vsub.s32 1, %v1280
        %v1282 = vrot.slane %v880, %v1281
        %1284 = vbcast.lane.b32.xlu0 %v1282, 256
        %v1285 = vpop.permute.xlu0 %1284
        %s1287 = sor.u32 256, 8
        %1288 = vbcast.lane.b32.xlu0 %v1282, %s1287
        %v1289 = vpop.permute.xlu0 %1288
        %s1291 = sor.u32 256, 16
        %1292 = vbcast.lane.b32.xlu0 %v1282, %s1291
        %v1293 = vpop.permute.xlu0 %1292
        %s1295 = sor.u32 256, 24
        %1296 = vbcast.lane.b32.xlu0 %v1282, %s1295
        %v1297 = vpop.permute.xlu0 %1296
        %s1299 = sor.u32 256, 32
        %1300 = vbcast.lane.b32.xlu0 %v1282, %s1299
        %v1301 = vpop.permute.xlu0 %1300
        %s1303 = sor.u32 256, 40
        %1304 = vbcast.lane.b32.xlu0 %v1282, %s1303
        %v1305 = vpop.permute.xlu0 %1304
        %s1307 = sor.u32 256, 48
        %1308 = vbcast.lane.b32.xlu0 %v1282, %s1307
        %v1309 = vpop.permute.xlu0 %1308
        %s1311 = sor.u32 256, 56
        %1312 = vbcast.lane.b32.xlu0 %v1282, %s1311
        %v1313 = vpop.permute.xlu0 %1312
        %s1315 = sor.u32 256, 64
        %1316 = vbcast.lane.b32.xlu0 %v1282, %s1315
        %v1317 = vpop.permute.xlu0 %1316
        %s1319 = sor.u32 256, 72
        %1320 = vbcast.lane.b32.xlu0 %v1282, %s1319
        %v1321 = vpop.permute.xlu0 %1320
        %s1323 = sor.u32 256, 80
        %1324 = vbcast.lane.b32.xlu0 %v1282, %s1323
        %v1325 = vpop.permute.xlu0 %1324
        %s1327 = sor.u32 256, 88
        %1328 = vbcast.lane.b32.xlu0 %v1282, %s1327
        %v1329 = vpop.permute.xlu0 %1328
        %s1331 = sor.u32 256, 96
        %1332 = vbcast.lane.b32.xlu0 %v1282, %s1331
        %v1333 = vpop.permute.xlu0 %1332
        %s1335 = sor.u32 256, 104
        %1336 = vbcast.lane.b32.xlu0 %v1282, %s1335
        %v1337 = vpop.permute.xlu0 %1336
        %s1339 = sor.u32 256, 112
        %1340 = vbcast.lane.b32.xlu0 %v1282, %s1339
        %v1341 = vpop.permute.xlu0 %1340
        %s1343 = sor.u32 256, 120
        %1344 = vbcast.lane.b32.xlu0 %v1282, %s1343
        %v1345 = vpop.permute.xlu0 %1344
        %v1346 = vlaneseq
        %v1347 = vshrl.u32 %v1346, 7
        %v1348 = vsub.s32 2, %v1347
        %v1349 = vrot.slane %v880, %v1348
        %1351 = vbcast.lane.b32.xlu0 %v1349, 256
        %v1352 = vpop.permute.xlu0 %1351
        %s1354 = sor.u32 256, 8
        %1355 = vbcast.lane.b32.xlu0 %v1349, %s1354
        %v1356 = vpop.permute.xlu0 %1355
        %s1358 = sor.u32 256, 16
        %1359 = vbcast.lane.b32.xlu0 %v1349, %s1358
        %v1360 = vpop.permute.xlu0 %1359
        %s1362 = sor.u32 256, 24
        %1363 = vbcast.lane.b32.xlu0 %v1349, %s1362
        %v1364 = vpop.permute.xlu0 %1363
        %s1366 = sor.u32 256, 32
        %1367 = vbcast.lane.b32.xlu0 %v1349, %s1366
        %v1368 = vpop.permute.xlu0 %1367
        %s1370 = sor.u32 256, 40
        %1371 = vbcast.lane.b32.xlu0 %v1349, %s1370
        %v1372 = vpop.permute.xlu0 %1371
        %s1374 = sor.u32 256, 48
        %1375 = vbcast.lane.b32.xlu0 %v1349, %s1374
        %v1376 = vpop.permute.xlu0 %1375
        %s1378 = sor.u32 256, 56
        %1379 = vbcast.lane.b32.xlu0 %v1349, %s1378
        %v1380 = vpop.permute.xlu0 %1379
        %s1382 = sor.u32 256, 64
        %1383 = vbcast.lane.b32.xlu0 %v1349, %s1382
        %v1384 = vpop.permute.xlu0 %1383
        %s1386 = sor.u32 256, 72
        %1387 = vbcast.lane.b32.xlu0 %v1349, %s1386
        %v1388 = vpop.permute.xlu0 %1387
        %s1390 = sor.u32 256, 80
        %1391 = vbcast.lane.b32.xlu0 %v1349, %s1390
        %v1392 = vpop.permute.xlu0 %1391
        %s1394 = sor.u32 256, 88
        %1395 = vbcast.lane.b32.xlu0 %v1349, %s1394
        %v1396 = vpop.permute.xlu0 %1395
        %s1398 = sor.u32 256, 96
        %1399 = vbcast.lane.b32.xlu0 %v1349, %s1398
        %v1400 = vpop.permute.xlu0 %1399
        %s1402 = sor.u32 256, 104
        %1403 = vbcast.lane.b32.xlu0 %v1349, %s1402
        %v1404 = vpop.permute.xlu0 %1403
        %s1406 = sor.u32 256, 112
        %1407 = vbcast.lane.b32.xlu0 %v1349, %s1406
        %v1408 = vpop.permute.xlu0 %1407
        %s1410 = sor.u32 256, 120
        %1411 = vbcast.lane.b32.xlu0 %v1349, %s1410
        %v1412 = vpop.permute.xlu0 %1411
        %v1413 = vlaneseq
        %v1414 = vshrl.u32 %v1413, 7
        %v1415 = vsub.s32 3, %v1414
        %v1416 = vrot.slane %v880, %v1415
        %1418 = vbcast.lane.b32.xlu0 %v1416, 256
        %v1419 = vpop.permute.xlu0 %1418
        %s1421 = sor.u32 256, 8
        %1422 = vbcast.lane.b32.xlu0 %v1416, %s1421
        %v1423 = vpop.permute.xlu0 %1422
        %s1425 = sor.u32 256, 16
        %1426 = vbcast.lane.b32.xlu0 %v1416, %s1425
        %v1427 = vpop.permute.xlu0 %1426
        %s1429 = sor.u32 256, 24
        %1430 = vbcast.lane.b32.xlu0 %v1416, %s1429
        %v1431 = vpop.permute.xlu0 %1430
        %s1433 = sor.u32 256, 32
        %1434 = vbcast.lane.b32.xlu0 %v1416, %s1433
        %v1435 = vpop.permute.xlu0 %1434
        %s1437 = sor.u32 256, 40
        %1438 = vbcast.lane.b32.xlu0 %v1416, %s1437
        %v1439 = vpop.permute.xlu0 %1438
        %s1441 = sor.u32 256, 48
        %1442 = vbcast.lane.b32.xlu0 %v1416, %s1441
        %v1443 = vpop.permute.xlu0 %1442
        %s1445 = sor.u32 256, 56
        %1446 = vbcast.lane.b32.xlu0 %v1416, %s1445
        %v1447 = vpop.permute.xlu0 %1446
        %s1449 = sor.u32 256, 64
        %1450 = vbcast.lane.b32.xlu0 %v1416, %s1449
        %v1451 = vpop.permute.xlu0 %1450
        %s1453 = sor.u32 256, 72
        %1454 = vbcast.lane.b32.xlu0 %v1416, %s1453
        %v1455 = vpop.permute.xlu0 %1454
        %s1457 = sor.u32 256, 80
        %1458 = vbcast.lane.b32.xlu0 %v1416, %s1457
        %v1459 = vpop.permute.xlu0 %1458
        %s1461 = sor.u32 256, 88
        %1462 = vbcast.lane.b32.xlu0 %v1416, %s1461
        %v1463 = vpop.permute.xlu0 %1462
        %s1465 = sor.u32 256, 96
        %1466 = vbcast.lane.b32.xlu0 %v1416, %s1465
        %v1467 = vpop.permute.xlu0 %1466
        %s1469 = sor.u32 256, 104
        %1470 = vbcast.lane.b32.xlu0 %v1416, %s1469
        %v1471 = vpop.permute.xlu0 %1470
        %s1473 = sor.u32 256, 112
        %1474 = vbcast.lane.b32.xlu0 %v1416, %s1473
        %v1475 = vpop.permute.xlu0 %1474
        %s1477 = sor.u32 256, 120
        %1478 = vbcast.lane.b32.xlu0 %v1416, %s1477
        %v1479 = vpop.permute.xlu0 %1478
        %v1480 = vcombine.low %v1218, %v1352
        %v1481 = vcombine.high %v1218, %v1352
        %v1483 = vunpack.c.l.s4 1983009808
        %v1484 = vunpack.c.0.s8 %v1483
        %v1485 = vlaneseq
        %v1486 = vshrl.u32 %v1485, 7
        %v1487 = vsub.s32 %v1484, %v1486
        %v1488 = vrot.slane %v1480, %v1487
        %v1490 = vunpack.c.l.s4 1983009808
        %v1491 = vunpack.c.0.s8 %v1490
        %v1492 = vlaneseq
        %v1493 = vshrl.u32 %v1492, 7
        %v1494 = vsub.s32 %v1491, %v1493
        %v1495 = vrot.slane %v1481, %v1494
        %v1496 = vcombine.low %v1285, %v1419
        %v1497 = vcombine.high %v1285, %v1419
        %v1499 = vunpack.c.l.s4 1983009808
        %v1500 = vunpack.c.0.s8 %v1499
        %v1501 = vlaneseq
        %v1502 = vshrl.u32 %v1501, 7
        %v1503 = vsub.s32 %v1500, %v1502
        %v1504 = vrot.slane %v1496, %v1503
        %v1506 = vunpack.c.l.s4 1983009808
        %v1507 = vunpack.c.0.s8 %v1506
        %v1508 = vlaneseq
        %v1509 = vshrl.u32 %v1508, 7
        %v1510 = vsub.s32 %v1507, %v1509
        %v1511 = vrot.slane %v1497, %v1510
        %v1512 = vcombine.low %v1488, %v1504
        %v1513 = vcombine.high %v1488, %v1504
        %v1515 = vunpack.c.l.s4 1934713408
        %v1516 = vunpack.c.0.s8 %v1515
        %v1517 = vlaneseq
        %v1518 = vshrl.u32 %v1517, 7
        %v1519 = vsub.s32 %v1516, %v1518
        %v1520 = vrot.slane %v1512, %v1519
        %v1522 = vunpack.c.l.s4 1934713408
        %v1523 = vunpack.c.0.s8 %v1522
        %v1524 = vlaneseq
        %v1525 = vshrl.u32 %v1524, 7
        %v1526 = vsub.s32 %v1523, %v1525
        %v1527 = vrot.slane %v1513, %v1526
        %v1528 = vcombine.low %v1495, %v1511
        %v1529 = vcombine.high %v1495, %v1511
        %v1531 = vunpack.c.l.s4 1934713408
        %v1532 = vunpack.c.0.s8 %v1531
        %v1533 = vlaneseq
        %v1534 = vshrl.u32 %v1533, 7
        %v1535 = vsub.s32 %v1532, %v1534
        %v1536 = vrot.slane %v1528, %v1535
        %v1538 = vunpack.c.l.s4 1934713408
        %v1539 = vunpack.c.0.s8 %v1538
        %v1540 = vlaneseq
        %v1541 = vshrl.u32 %v1540, 7
        %v1542 = vsub.s32 %v1539, %v1541
        %v1543 = vrot.slane %v1529, %v1542
        %v1544 = vcombine.high %v1520, 0.0
        %v1545 = vcombine.high %v1527, 0.0
        %v1546 = vcombine.high %v1536, 0.0
        %v1547 = vcombine.high %v1543, 0.0
        %v1548 = vcombine.low %v1222, %v1356
        %v1549 = vcombine.high %v1222, %v1356
        %v1551 = vunpack.c.l.s4 1983009808
        %v1552 = vunpack.c.0.s8 %v1551
        %v1553 = vlaneseq
        %v1554 = vshrl.u32 %v1553, 7
        %v1555 = vsub.s32 %v1552, %v1554
        %v1556 = vrot.slane %v1548, %v1555
        %v1558 = vunpack.c.l.s4 1983009808
        %v1559 = vunpack.c.0.s8 %v1558
        %v1560 = vlaneseq
        %v1561 = vshrl.u32 %v1560, 7
        %v1562 = vsub.s32 %v1559, %v1561
        %v1563 = vrot.slane %v1549, %v1562
        %v1564 = vcombine.low %v1289, %v1423
        %v1565 = vcombine.high %v1289, %v1423
        %v1567 = vunpack.c.l.s4 1983009808
        %v1568 = vunpack.c.0.s8 %v1567
        %v1569 = vlaneseq
        %v1570 = vshrl.u32 %v1569, 7
        %v1571 = vsub.s32 %v1568, %v1570
        %v1572 = vrot.slane %v1564, %v1571
        %v1574 = vunpack.c.l.s4 1983009808
        %v1575 = vunpack.c.0.s8 %v1574
        %v1576 = vlaneseq
        %v1577 = vshrl.u32 %v1576, 7
        %v1578 = vsub.s32 %v1575, %v1577
        %v1579 = vrot.slane %v1565, %v1578
        %v1580 = vcombine.low %v1556, %v1572
        %v1581 = vcombine.high %v1556, %v1572
        %v1583 = vunpack.c.l.s4 1934713408
        %v1584 = vunpack.c.0.s8 %v1583
        %v1585 = vlaneseq
        %v1586 = vshrl.u32 %v1585, 7
        %v1587 = vsub.s32 %v1584, %v1586
        %v1588 = vrot.slane %v1580, %v1587
        %v1590 = vunpack.c.l.s4 1934713408
        %v1591 = vunpack.c.0.s8 %v1590
        %v1592 = vlaneseq
        %v1593 = vshrl.u32 %v1592, 7
        %v1594 = vsub.s32 %v1591, %v1593
        %v1595 = vrot.slane %v1581, %v1594
        %v1596 = vcombine.low %v1563, %v1579
        %v1597 = vcombine.high %v1563, %v1579
        %v1599 = vunpack.c.l.s4 1934713408
        %v1600 = vunpack.c.0.s8 %v1599
        %v1601 = vlaneseq
        %v1602 = vshrl.u32 %v1601, 7
        %v1603 = vsub.s32 %v1600, %v1602
        %v1604 = vrot.slane %v1596, %v1603
        %v1606 = vunpack.c.l.s4 1934713408
        %v1607 = vunpack.c.0.s8 %v1606
        %v1608 = vlaneseq
        %v1609 = vshrl.u32 %v1608, 7
        %v1610 = vsub.s32 %v1607, %v1609
        %v1611 = vrot.slane %v1597, %v1610
        %v1612 = vcombine.high %v1588, 0.0
        %v1613 = vcombine.high %v1595, 0.0
        %v1614 = vcombine.high %v1604, 0.0
        %v1615 = vcombine.high %v1611, 0.0
        %v1616 = vcombine.low %v1226, %v1360
        %v1617 = vcombine.high %v1226, %v1360
        %v1619 = vunpack.c.l.s4 1983009808
        %v1620 = vunpack.c.0.s8 %v1619
        %v1621 = vlaneseq
        %v1622 = vshrl.u32 %v1621, 7
        %v1623 = vsub.s32 %v1620, %v1622
        %v1624 = vrot.slane %v1616, %v1623
        %v1626 = vunpack.c.l.s4 1983009808
        %v1627 = vunpack.c.0.s8 %v1626
        %v1628 = vlaneseq
        %v1629 = vshrl.u32 %v1628, 7
        %v1630 = vsub.s32 %v1627, %v1629
        %v1631 = vrot.slane %v1617, %v1630
        %v1632 = vcombine.low %v1293, %v1427
        %v1633 = vcombine.high %v1293, %v1427
        %v1635 = vunpack.c.l.s4 1983009808
        %v1636 = vunpack.c.0.s8 %v1635
        %v1637 = vlaneseq
        %v1638 = vshrl.u32 %v1637, 7
        %v1639 = vsub.s32 %v1636, %v1638
        %v1640 = vrot.slane %v1632, %v1639
        %v1642 = vunpack.c.l.s4 1983009808
        %v1643 = vunpack.c.0.s8 %v1642
        %v1644 = vlaneseq
        %v1645 = vshrl.u32 %v1644, 7
        %v1646 = vsub.s32 %v1643, %v1645
        %v1647 = vrot.slane %v1633, %v1646
        %v1648 = vcombine.low %v1624, %v1640
        %v1649 = vcombine.high %v1624, %v1640
        %v1651 = vunpack.c.l.s4 1934713408
        %v1652 = vunpack.c.0.s8 %v1651
        %v1653 = vlaneseq
        %v1654 = vshrl.u32 %v1653, 7
        %v1655 = vsub.s32 %v1652, %v1654
        %v1656 = vrot.slane %v1648, %v1655
        %v1658 = vunpack.c.l.s4 1934713408
        %v1659 = vunpack.c.0.s8 %v1658
        %v1660 = vlaneseq
        %v1661 = vshrl.u32 %v1660, 7
        %v1662 = vsub.s32 %v1659, %v1661
        %v1663 = vrot.slane %v1649, %v1662
        %v1664 = vcombine.low %v1631, %v1647
        %v1665 = vcombine.high %v1631, %v1647
        %v1667 = vunpack.c.l.s4 1934713408
        %v1668 = vunpack.c.0.s8 %v1667
        %v1669 = vlaneseq
        %v1670 = vshrl.u32 %v1669, 7
        %v1671 = vsub.s32 %v1668, %v1670
        %v1672 = vrot.slane %v1664, %v1671
        %v1674 = vunpack.c.l.s4 1934713408
        %v1675 = vunpack.c.0.s8 %v1674
        %v1676 = vlaneseq
        %v1677 = vshrl.u32 %v1676, 7
        %v1678 = vsub.s32 %v1675, %v1677
        %v1679 = vrot.slane %v1665, %v1678
        %v1680 = vcombine.high %v1656, 0.0
        %v1681 = vcombine.high %v1663, 0.0
        %v1682 = vcombine.high %v1672, 0.0
        %v1683 = vcombine.high %v1679, 0.0
        %v1684 = vcombine.low %v1230, %v1364
        %v1685 = vcombine.high %v1230, %v1364
        %v1687 = vunpack.c.l.s4 1983009808
        %v1688 = vunpack.c.0.s8 %v1687
        %v1689 = vlaneseq
        %v1690 = vshrl.u32 %v1689, 7
        %v1691 = vsub.s32 %v1688, %v1690
        %v1692 = vrot.slane %v1684, %v1691
        %v1694 = vunpack.c.l.s4 1983009808
        %v1695 = vunpack.c.0.s8 %v1694
        %v1696 = vlaneseq
        %v1697 = vshrl.u32 %v1696, 7
        %v1698 = vsub.s32 %v1695, %v1697
        %v1699 = vrot.slane %v1685, %v1698
        %v1700 = vcombine.low %v1297, %v1431
        %v1701 = vcombine.high %v1297, %v1431
        %v1703 = vunpack.c.l.s4 1983009808
        %v1704 = vunpack.c.0.s8 %v1703
        %v1705 = vlaneseq
        %v1706 = vshrl.u32 %v1705, 7
        %v1707 = vsub.s32 %v1704, %v1706
        %v1708 = vrot.slane %v1700, %v1707
        %v1710 = vunpack.c.l.s4 1983009808
        %v1711 = vunpack.c.0.s8 %v1710
        %v1712 = vlaneseq
        %v1713 = vshrl.u32 %v1712, 7
        %v1714 = vsub.s32 %v1711, %v1713
        %v1715 = vrot.slane %v1701, %v1714
        %v1716 = vcombine.low %v1692, %v1708
        %v1717 = vcombine.high %v1692, %v1708
        %v1719 = vunpack.c.l.s4 1934713408
        %v1720 = vunpack.c.0.s8 %v1719
        %v1721 = vlaneseq
        %v1722 = vshrl.u32 %v1721, 7
        %v1723 = vsub.s32 %v1720, %v1722
        %v1724 = vrot.slane %v1716, %v1723
        %v1726 = vunpack.c.l.s4 1934713408
        %v1727 = vunpack.c.0.s8 %v1726
        %v1728 = vlaneseq
        %v1729 = vshrl.u32 %v1728, 7
        %v1730 = vsub.s32 %v1727, %v1729
        %v1731 = vrot.slane %v1717, %v1730
        %v1732 = vcombine.low %v1699, %v1715
        %v1733 = vcombine.high %v1699, %v1715
        %v1735 = vunpack.c.l.s4 1934713408
        %v1736 = vunpack.c.0.s8 %v1735
        %v1737 = vlaneseq
        %v1738 = vshrl.u32 %v1737, 7
        %v1739 = vsub.s32 %v1736, %v1738
        %v1740 = vrot.slane %v1732, %v1739
        %v1742 = vunpack.c.l.s4 1934713408
        %v1743 = vunpack.c.0.s8 %v1742
        %v1744 = vlaneseq
        %v1745 = vshrl.u32 %v1744, 7
        %v1746 = vsub.s32 %v1743, %v1745
        %v1747 = vrot.slane %v1733, %v1746
        %v1748 = vcombine.high %v1724, 0.0
        %v1749 = vcombine.high %v1731, 0.0
        %v1750 = vcombine.high %v1740, 0.0
        %v1751 = vcombine.high %v1747, 0.0
        %v1752 = vcombine.low %v1234, %v1368
        %v1753 = vcombine.high %v1234, %v1368
        %v1755 = vunpack.c.l.s4 1983009808
        %v1756 = vunpack.c.0.s8 %v1755
        %v1757 = vlaneseq
        %v1758 = vshrl.u32 %v1757, 7
        %v1759 = vsub.s32 %v1756, %v1758
        %v1760 = vrot.slane %v1752, %v1759
        %v1762 = vunpack.c.l.s4 1983009808
        %v1763 = vunpack.c.0.s8 %v1762
        %v1764 = vlaneseq
        %v1765 = vshrl.u32 %v1764, 7
        %v1766 = vsub.s32 %v1763, %v1765
        %v1767 = vrot.slane %v1753, %v1766
        %v1768 = vcombine.low %v1301, %v1435
        %v1769 = vcombine.high %v1301, %v1435
        %v1771 = vunpack.c.l.s4 1983009808
        %v1772 = vunpack.c.0.s8 %v1771
        %v1773 = vlaneseq
        %v1774 = vshrl.u32 %v1773, 7
        %v1775 = vsub.s32 %v1772, %v1774
        %v1776 = vrot.slane %v1768, %v1775
        %v1778 = vunpack.c.l.s4 1983009808
        %v1779 = vunpack.c.0.s8 %v1778
        %v1780 = vlaneseq
        %v1781 = vshrl.u32 %v1780, 7
        %v1782 = vsub.s32 %v1779, %v1781
        %v1783 = vrot.slane %v1769, %v1782
        %v1784 = vcombine.low %v1760, %v1776
        %v1785 = vcombine.high %v1760, %v1776
        %v1787 = vunpack.c.l.s4 1934713408
        %v1788 = vunpack.c.0.s8 %v1787
        %v1789 = vlaneseq
        %v1790 = vshrl.u32 %v1789, 7
        %v1791 = vsub.s32 %v1788, %v1790
        %v1792 = vrot.slane %v1784, %v1791
        %v1794 = vunpack.c.l.s4 1934713408
        %v1795 = vunpack.c.0.s8 %v1794
        %v1796 = vlaneseq
        %v1797 = vshrl.u32 %v1796, 7
        %v1798 = vsub.s32 %v1795, %v1797
        %v1799 = vrot.slane %v1785, %v1798
        %v1800 = vcombine.low %v1767, %v1783
        %v1801 = vcombine.high %v1767, %v1783
        %v1803 = vunpack.c.l.s4 1934713408
        %v1804 = vunpack.c.0.s8 %v1803
        %v1805 = vlaneseq
        %v1806 = vshrl.u32 %v1805, 7
        %v1807 = vsub.s32 %v1804, %v1806
        %v1808 = vrot.slane %v1800, %v1807
        %v1810 = vunpack.c.l.s4 1934713408
        %v1811 = vunpack.c.0.s8 %v1810
        %v1812 = vlaneseq
        %v1813 = vshrl.u32 %v1812, 7
        %v1814 = vsub.s32 %v1811, %v1813
        %v1815 = vrot.slane %v1801, %v1814
        %v1816 = vcombine.high %v1792, 0.0
        %v1817 = vcombine.high %v1799, 0.0
        %v1818 = vcombine.high %v1808, 0.0
        %v1819 = vcombine.high %v1815, 0.0
        %v1820 = vcombine.low %v1238, %v1372
        %v1821 = vcombine.high %v1238, %v1372
        %v1823 = vunpack.c.l.s4 1983009808
        %v1824 = vunpack.c.0.s8 %v1823
        %v1825 = vlaneseq
        %v1826 = vshrl.u32 %v1825, 7
        %v1827 = vsub.s32 %v1824, %v1826
        %v1828 = vrot.slane %v1820, %v1827
        %v1830 = vunpack.c.l.s4 1983009808
        %v1831 = vunpack.c.0.s8 %v1830
        %v1832 = vlaneseq
        %v1833 = vshrl.u32 %v1832, 7
        %v1834 = vsub.s32 %v1831, %v1833
        %v1835 = vrot.slane %v1821, %v1834
        %v1836 = vcombine.low %v1305, %v1439
        %v1837 = vcombine.high %v1305, %v1439
        %v1839 = vunpack.c.l.s4 1983009808
        %v1840 = vunpack.c.0.s8 %v1839
        %v1841 = vlaneseq
        %v1842 = vshrl.u32 %v1841, 7
        %v1843 = vsub.s32 %v1840, %v1842
        %v1844 = vrot.slane %v1836, %v1843
        %v1846 = vunpack.c.l.s4 1983009808
        %v1847 = vunpack.c.0.s8 %v1846
        %v1848 = vlaneseq
        %v1849 = vshrl.u32 %v1848, 7
        %v1850 = vsub.s32 %v1847, %v1849
        %v1851 = vrot.slane %v1837, %v1850
        %v1852 = vcombine.low %v1828, %v1844
        %v1853 = vcombine.high %v1828, %v1844
        %v1855 = vunpack.c.l.s4 1934713408
        %v1856 = vunpack.c.0.s8 %v1855
        %v1857 = vlaneseq
        %v1858 = vshrl.u32 %v1857, 7
        %v1859 = vsub.s32 %v1856, %v1858
        %v1860 = vrot.slane %v1852, %v1859
        %v1862 = vunpack.c.l.s4 1934713408
        %v1863 = vunpack.c.0.s8 %v1862
        %v1864 = vlaneseq
        %v1865 = vshrl.u32 %v1864, 7
        %v1866 = vsub.s32 %v1863, %v1865
        %v1867 = vrot.slane %v1853, %v1866
        %v1868 = vcombine.low %v1835, %v1851
        %v1869 = vcombine.high %v1835, %v1851
        %v1871 = vunpack.c.l.s4 1934713408
        %v1872 = vunpack.c.0.s8 %v1871
        %v1873 = vlaneseq
        %v1874 = vshrl.u32 %v1873, 7
        %v1875 = vsub.s32 %v1872, %v1874
        %v1876 = vrot.slane %v1868, %v1875
        %v1878 = vunpack.c.l.s4 1934713408
        %v1879 = vunpack.c.0.s8 %v1878
        %v1880 = vlaneseq
        %v1881 = vshrl.u32 %v1880, 7
        %v1882 = vsub.s32 %v1879, %v1881
        %v1883 = vrot.slane %v1869, %v1882
        %v1884 = vcombine.high %v1860, 0.0
        %v1885 = vcombine.high %v1867, 0.0
        %v1886 = vcombine.high %v1876, 0.0
        %v1887 = vcombine.high %v1883, 0.0
        %v1888 = vcombine.low %v1242, %v1376
        %v1889 = vcombine.high %v1242, %v1376
        %v1891 = vunpack.c.l.s4 1983009808
        %v1892 = vunpack.c.0.s8 %v1891
        %v1893 = vlaneseq
        %v1894 = vshrl.u32 %v1893, 7
        %v1895 = vsub.s32 %v1892, %v1894
        %v1896 = vrot.slane %v1888, %v1895
        %v1898 = vunpack.c.l.s4 1983009808
        %v1899 = vunpack.c.0.s8 %v1898
        %v1900 = vlaneseq
        %v1901 = vshrl.u32 %v1900, 7
        %v1902 = vsub.s32 %v1899, %v1901
        %v1903 = vrot.slane %v1889, %v1902
        %v1904 = vcombine.low %v1309, %v1443
        %v1905 = vcombine.high %v1309, %v1443
        %v1907 = vunpack.c.l.s4 1983009808
        %v1908 = vunpack.c.0.s8 %v1907
        %v1909 = vlaneseq
        %v1910 = vshrl.u32 %v1909, 7
        %v1911 = vsub.s32 %v1908, %v1910
        %v1912 = vrot.slane %v1904, %v1911
        %v1914 = vunpack.c.l.s4 1983009808
        %v1915 = vunpack.c.0.s8 %v1914
        %v1916 = vlaneseq
        %v1917 = vshrl.u32 %v1916, 7
        %v1918 = vsub.s32 %v1915, %v1917
        %v1919 = vrot.slane %v1905, %v1918
        %v1920 = vcombine.low %v1896, %v1912
        %v1921 = vcombine.high %v1896, %v1912
        %v1923 = vunpack.c.l.s4 1934713408
        %v1924 = vunpack.c.0.s8 %v1923
        %v1925 = vlaneseq
        %v1926 = vshrl.u32 %v1925, 7
        %v1927 = vsub.s32 %v1924, %v1926
        %v1928 = vrot.slane %v1920, %v1927
        %v1930 = vunpack.c.l.s4 1934713408
        %v1931 = vunpack.c.0.s8 %v1930
        %v1932 = vlaneseq
        %v1933 = vshrl.u32 %v1932, 7
        %v1934 = vsub.s32 %v1931, %v1933
        %v1935 = vrot.slane %v1921, %v1934
        %v1936 = vcombine.low %v1903, %v1919
        %v1937 = vcombine.high %v1903, %v1919
        %v1939 = vunpack.c.l.s4 1934713408
        %v1940 = vunpack.c.0.s8 %v1939
        %v1941 = vlaneseq
        %v1942 = vshrl.u32 %v1941, 7
        %v1943 = vsub.s32 %v1940, %v1942
        %v1944 = vrot.slane %v1936, %v1943
        %v1946 = vunpack.c.l.s4 1934713408
        %v1947 = vunpack.c.0.s8 %v1946
        %v1948 = vlaneseq
        %v1949 = vshrl.u32 %v1948, 7
        %v1950 = vsub.s32 %v1947, %v1949
        %v1951 = vrot.slane %v1937, %v1950
        %v1952 = vcombine.high %v1928, 0.0
        %v1953 = vcombine.high %v1935, 0.0
        %v1954 = vcombine.high %v1944, 0.0
        %v1955 = vcombine.high %v1951, 0.0
        %v1956 = vcombine.low %v1246, %v1380
        %v1957 = vcombine.high %v1246, %v1380
        %v1959 = vunpack.c.l.s4 1983009808
        %v1960 = vunpack.c.0.s8 %v1959
        %v1961 = vlaneseq
        %v1962 = vshrl.u32 %v1961, 7
        %v1963 = vsub.s32 %v1960, %v1962
        %v1964 = vrot.slane %v1956, %v1963
        %v1966 = vunpack.c.l.s4 1983009808
        %v1967 = vunpack.c.0.s8 %v1966
        %v1968 = vlaneseq
        %v1969 = vshrl.u32 %v1968, 7
        %v1970 = vsub.s32 %v1967, %v1969
        %v1971 = vrot.slane %v1957, %v1970
        %v1972 = vcombine.low %v1313, %v1447
        %v1973 = vcombine.high %v1313, %v1447
        %v1975 = vunpack.c.l.s4 1983009808
        %v1976 = vunpack.c.0.s8 %v1975
        %v1977 = vlaneseq
        %v1978 = vshrl.u32 %v1977, 7
        %v1979 = vsub.s32 %v1976, %v1978
        %v1980 = vrot.slane %v1972, %v1979
        %v1982 = vunpack.c.l.s4 1983009808
        %v1983 = vunpack.c.0.s8 %v1982
        %v1984 = vlaneseq
        %v1985 = vshrl.u32 %v1984, 7
        %v1986 = vsub.s32 %v1983, %v1985
        %v1987 = vrot.slane %v1973, %v1986
        %v1988 = vcombine.low %v1964, %v1980
        %v1989 = vcombine.high %v1964, %v1980
        %v1991 = vunpack.c.l.s4 1934713408
        %v1992 = vunpack.c.0.s8 %v1991
        %v1993 = vlaneseq
        %v1994 = vshrl.u32 %v1993, 7
        %v1995 = vsub.s32 %v1992, %v1994
        %v1996 = vrot.slane %v1988, %v1995
        %v1998 = vunpack.c.l.s4 1934713408
        %v1999 = vunpack.c.0.s8 %v1998
        %v2000 = vlaneseq
        %v2001 = vshrl.u32 %v2000, 7
        %v2002 = vsub.s32 %v1999, %v2001
        %v2003 = vrot.slane %v1989, %v2002
        %v2004 = vcombine.low %v1971, %v1987
        %v2005 = vcombine.high %v1971, %v1987
        %v2007 = vunpack.c.l.s4 1934713408
        %v2008 = vunpack.c.0.s8 %v2007
        %v2009 = vlaneseq
        %v2010 = vshrl.u32 %v2009, 7
        %v2011 = vsub.s32 %v2008, %v2010
        %v2012 = vrot.slane %v2004, %v2011
        %v2014 = vunpack.c.l.s4 1934713408
        %v2015 = vunpack.c.0.s8 %v2014
        %v2016 = vlaneseq
        %v2017 = vshrl.u32 %v2016, 7
        %v2018 = vsub.s32 %v2015, %v2017
        %v2019 = vrot.slane %v2005, %v2018
        %v2020 = vcombine.high %v1996, 0.0
        %v2021 = vcombine.high %v2003, 0.0
        %v2022 = vcombine.high %v2012, 0.0
        %v2023 = vcombine.high %v2019, 0.0
        %v2024 = vcombine.low %v1250, %v1384
        %v2025 = vcombine.high %v1250, %v1384
        %v2027 = vunpack.c.l.s4 1983009808
        %v2028 = vunpack.c.0.s8 %v2027
        %v2029 = vlaneseq
        %v2030 = vshrl.u32 %v2029, 7
        %v2031 = vsub.s32 %v2028, %v2030
        %v2032 = vrot.slane %v2024, %v2031
        %v2034 = vunpack.c.l.s4 1983009808
        %v2035 = vunpack.c.0.s8 %v2034
        %v2036 = vlaneseq
        %v2037 = vshrl.u32 %v2036, 7
        %v2038 = vsub.s32 %v2035, %v2037
        %v2039 = vrot.slane %v2025, %v2038
        %v2040 = vcombine.low %v1317, %v1451
        %v2041 = vcombine.high %v1317, %v1451
        %v2043 = vunpack.c.l.s4 1983009808
        %v2044 = vunpack.c.0.s8 %v2043
        %v2045 = vlaneseq
        %v2046 = vshrl.u32 %v2045, 7
        %v2047 = vsub.s32 %v2044, %v2046
        %v2048 = vrot.slane %v2040, %v2047
        %v2050 = vunpack.c.l.s4 1983009808
        %v2051 = vunpack.c.0.s8 %v2050
        %v2052 = vlaneseq
        %v2053 = vshrl.u32 %v2052, 7
        %v2054 = vsub.s32 %v2051, %v2053
        %v2055 = vrot.slane %v2041, %v2054
        %v2056 = vcombine.low %v2032, %v2048
        %v2057 = vcombine.high %v2032, %v2048
        %v2059 = vunpack.c.l.s4 1934713408
        %v2060 = vunpack.c.0.s8 %v2059
        %v2061 = vlaneseq
        %v2062 = vshrl.u32 %v2061, 7
        %v2063 = vsub.s32 %v2060, %v2062
        %v2064 = vrot.slane %v2056, %v2063
        %v2066 = vunpack.c.l.s4 1934713408
        %v2067 = vunpack.c.0.s8 %v2066
        %v2068 = vlaneseq
        %v2069 = vshrl.u32 %v2068, 7
        %v2070 = vsub.s32 %v2067, %v2069
        %v2071 = vrot.slane %v2057, %v2070
        %v2072 = vcombine.low %v2039, %v2055
        %v2073 = vcombine.high %v2039, %v2055
        %v2075 = vunpack.c.l.s4 1934713408
        %v2076 = vunpack.c.0.s8 %v2075
        %v2077 = vlaneseq
        %v2078 = vshrl.u32 %v2077, 7
        %v2079 = vsub.s32 %v2076, %v2078
        %v2080 = vrot.slane %v2072, %v2079
        %v2082 = vunpack.c.l.s4 1934713408
        %v2083 = vunpack.c.0.s8 %v2082
        %v2084 = vlaneseq
        %v2085 = vshrl.u32 %v2084, 7
        %v2086 = vsub.s32 %v2083, %v2085
        %v2087 = vrot.slane %v2073, %v2086
        %v2088 = vcombine.high %v2064, 0.0
        %v2089 = vcombine.high %v2071, 0.0
        %v2090 = vcombine.high %v2080, 0.0
        %v2091 = vcombine.high %v2087, 0.0
        %v2092 = vcombine.low %v1254, %v1388
        %v2093 = vcombine.high %v1254, %v1388
        %v2095 = vunpack.c.l.s4 1983009808
        %v2096 = vunpack.c.0.s8 %v2095
        %v2097 = vlaneseq
        %v2098 = vshrl.u32 %v2097, 7
        %v2099 = vsub.s32 %v2096, %v2098
        %v2100 = vrot.slane %v2092, %v2099
        %v2102 = vunpack.c.l.s4 1983009808
        %v2103 = vunpack.c.0.s8 %v2102
        %v2104 = vlaneseq
        %v2105 = vshrl.u32 %v2104, 7
        %v2106 = vsub.s32 %v2103, %v2105
        %v2107 = vrot.slane %v2093, %v2106
        %v2108 = vcombine.low %v1321, %v1455
        %v2109 = vcombine.high %v1321, %v1455
        %v2111 = vunpack.c.l.s4 1983009808
        %v2112 = vunpack.c.0.s8 %v2111
        %v2113 = vlaneseq
        %v2114 = vshrl.u32 %v2113, 7
        %v2115 = vsub.s32 %v2112, %v2114
        %v2116 = vrot.slane %v2108, %v2115
        %v2118 = vunpack.c.l.s4 1983009808
        %v2119 = vunpack.c.0.s8 %v2118
        %v2120 = vlaneseq
        %v2121 = vshrl.u32 %v2120, 7
        %v2122 = vsub.s32 %v2119, %v2121
        %v2123 = vrot.slane %v2109, %v2122
        %v2124 = vcombine.low %v2100, %v2116
        %v2125 = vcombine.high %v2100, %v2116
        %v2127 = vunpack.c.l.s4 1934713408
        %v2128 = vunpack.c.0.s8 %v2127
        %v2129 = vlaneseq
        %v2130 = vshrl.u32 %v2129, 7
        %v2131 = vsub.s32 %v2128, %v2130
        %v2132 = vrot.slane %v2124, %v2131
        %v2134 = vunpack.c.l.s4 1934713408
        %v2135 = vunpack.c.0.s8 %v2134
        %v2136 = vlaneseq
        %v2137 = vshrl.u32 %v2136, 7
        %v2138 = vsub.s32 %v2135, %v2137
        %v2139 = vrot.slane %v2125, %v2138
        %v2140 = vcombine.low %v2107, %v2123
        %v2141 = vcombine.high %v2107, %v2123
        %v2143 = vunpack.c.l.s4 1934713408
        %v2144 = vunpack.c.0.s8 %v2143
        %v2145 = vlaneseq
        %v2146 = vshrl.u32 %v2145, 7
        %v2147 = vsub.s32 %v2144, %v2146
        %v2148 = vrot.slane %v2140, %v2147
        %v2150 = vunpack.c.l.s4 1934713408
        %v2151 = vunpack.c.0.s8 %v2150
        %v2152 = vlaneseq
        %v2153 = vshrl.u32 %v2152, 7
        %v2154 = vsub.s32 %v2151, %v2153
        %v2155 = vrot.slane %v2141, %v2154
        %v2156 = vcombine.high %v2132, 0.0
        %v2157 = vcombine.high %v2139, 0.0
        %v2158 = vcombine.high %v2148, 0.0
        %v2159 = vcombine.high %v2155, 0.0
        %v2160 = vcombine.low %v1258, %v1392
        %v2161 = vcombine.high %v1258, %v1392
        %v2163 = vunpack.c.l.s4 1983009808
        %v2164 = vunpack.c.0.s8 %v2163
        %v2165 = vlaneseq
        %v2166 = vshrl.u32 %v2165, 7
        %v2167 = vsub.s32 %v2164, %v2166
        %v2168 = vrot.slane %v2160, %v2167
        %v2170 = vunpack.c.l.s4 1983009808
        %v2171 = vunpack.c.0.s8 %v2170
        %v2172 = vlaneseq
        %v2173 = vshrl.u32 %v2172, 7
        %v2174 = vsub.s32 %v2171, %v2173
        %v2175 = vrot.slane %v2161, %v2174
        %v2176 = vcombine.low %v1325, %v1459
        %v2177 = vcombine.high %v1325, %v1459
        %v2179 = vunpack.c.l.s4 1983009808
        %v2180 = vunpack.c.0.s8 %v2179
        %v2181 = vlaneseq
        %v2182 = vshrl.u32 %v2181, 7
        %v2183 = vsub.s32 %v2180, %v2182
        %v2184 = vrot.slane %v2176, %v2183
        %v2186 = vunpack.c.l.s4 1983009808
        %v2187 = vunpack.c.0.s8 %v2186
        %v2188 = vlaneseq
        %v2189 = vshrl.u32 %v2188, 7
        %v2190 = vsub.s32 %v2187, %v2189
        %v2191 = vrot.slane %v2177, %v2190
        %v2192 = vcombine.low %v2168, %v2184
        %v2193 = vcombine.high %v2168, %v2184
        %v2195 = vunpack.c.l.s4 1934713408
        %v2196 = vunpack.c.0.s8 %v2195
        %v2197 = vlaneseq
        %v2198 = vshrl.u32 %v2197, 7
        %v2199 = vsub.s32 %v2196, %v2198
        %v2200 = vrot.slane %v2192, %v2199
        %v2202 = vunpack.c.l.s4 1934713408
        %v2203 = vunpack.c.0.s8 %v2202
        %v2204 = vlaneseq
        %v2205 = vshrl.u32 %v2204, 7
        %v2206 = vsub.s32 %v2203, %v2205
        %v2207 = vrot.slane %v2193, %v2206
        %v2208 = vcombine.low %v2175, %v2191
        %v2209 = vcombine.high %v2175, %v2191
        %v2211 = vunpack.c.l.s4 1934713408
        %v2212 = vunpack.c.0.s8 %v2211
        %v2213 = vlaneseq
        %v2214 = vshrl.u32 %v2213, 7
        %v2215 = vsub.s32 %v2212, %v2214
        %v2216 = vrot.slane %v2208, %v2215
        %v2218 = vunpack.c.l.s4 1934713408
        %v2219 = vunpack.c.0.s8 %v2218
        %v2220 = vlaneseq
        %v2221 = vshrl.u32 %v2220, 7
        %v2222 = vsub.s32 %v2219, %v2221
        %v2223 = vrot.slane %v2209, %v2222
        %v2224 = vcombine.high %v2200, 0.0
        %v2225 = vcombine.high %v2207, 0.0
        %v2226 = vcombine.high %v2216, 0.0
        %v2227 = vcombine.high %v2223, 0.0
        %v2228 = vcombine.low %v1262, %v1396
        %v2229 = vcombine.high %v1262, %v1396
        %v2231 = vunpack.c.l.s4 1983009808
        %v2232 = vunpack.c.0.s8 %v2231
        %v2233 = vlaneseq
        %v2234 = vshrl.u32 %v2233, 7
        %v2235 = vsub.s32 %v2232, %v2234
        %v2236 = vrot.slane %v2228, %v2235
        %v2238 = vunpack.c.l.s4 1983009808
        %v2239 = vunpack.c.0.s8 %v2238
        %v2240 = vlaneseq
        %v2241 = vshrl.u32 %v2240, 7
        %v2242 = vsub.s32 %v2239, %v2241
        %v2243 = vrot.slane %v2229, %v2242
        %v2244 = vcombine.low %v1329, %v1463
        %v2245 = vcombine.high %v1329, %v1463
        %v2247 = vunpack.c.l.s4 1983009808
        %v2248 = vunpack.c.0.s8 %v2247
        %v2249 = vlaneseq
        %v2250 = vshrl.u32 %v2249, 7
        %v2251 = vsub.s32 %v2248, %v2250
        %v2252 = vrot.slane %v2244, %v2251
        %v2254 = vunpack.c.l.s4 1983009808
        %v2255 = vunpack.c.0.s8 %v2254
        %v2256 = vlaneseq
        %v2257 = vshrl.u32 %v2256, 7
        %v2258 = vsub.s32 %v2255, %v2257
        %v2259 = vrot.slane %v2245, %v2258
        %v2260 = vcombine.low %v2236, %v2252
        %v2261 = vcombine.high %v2236, %v2252
        %v2263 = vunpack.c.l.s4 1934713408
        %v2264 = vunpack.c.0.s8 %v2263
        %v2265 = vlaneseq
        %v2266 = vshrl.u32 %v2265, 7
        %v2267 = vsub.s32 %v2264, %v2266
        %v2268 = vrot.slane %v2260, %v2267
        %v2270 = vunpack.c.l.s4 1934713408
        %v2271 = vunpack.c.0.s8 %v2270
        %v2272 = vlaneseq
        %v2273 = vshrl.u32 %v2272, 7
        %v2274 = vsub.s32 %v2271, %v2273
        %v2275 = vrot.slane %v2261, %v2274
        %v2276 = vcombine.low %v2243, %v2259
        %v2277 = vcombine.high %v2243, %v2259
        %v2279 = vunpack.c.l.s4 1934713408
        %v2280 = vunpack.c.0.s8 %v2279
        %v2281 = vlaneseq
        %v2282 = vshrl.u32 %v2281, 7
        %v2283 = vsub.s32 %v2280, %v2282
        %v2284 = vrot.slane %v2276, %v2283
        %v2286 = vunpack.c.l.s4 1934713408
        %v2287 = vunpack.c.0.s8 %v2286
        %v2288 = vlaneseq
        %v2289 = vshrl.u32 %v2288, 7
        %v2290 = vsub.s32 %v2287, %v2289
        %v2291 = vrot.slane %v2277, %v2290
        %v2292 = vcombine.high %v2268, 0.0
        %v2293 = vcombine.high %v2275, 0.0
        %v2294 = vcombine.high %v2284, 0.0
        %v2295 = vcombine.high %v2291, 0.0
        %v2296 = vcombine.low %v1266, %v1400
        %v2297 = vcombine.high %v1266, %v1400
        %v2299 = vunpack.c.l.s4 1983009808
        %v2300 = vunpack.c.0.s8 %v2299
        %v2301 = vlaneseq
        %v2302 = vshrl.u32 %v2301, 7
        %v2303 = vsub.s32 %v2300, %v2302
        %v2304 = vrot.slane %v2296, %v2303
        %v2306 = vunpack.c.l.s4 1983009808
        %v2307 = vunpack.c.0.s8 %v2306
        %v2308 = vlaneseq
        %v2309 = vshrl.u32 %v2308, 7
        %v2310 = vsub.s32 %v2307, %v2309
        %v2311 = vrot.slane %v2297, %v2310
        %v2312 = vcombine.low %v1333, %v1467
        %v2313 = vcombine.high %v1333, %v1467
        %v2315 = vunpack.c.l.s4 1983009808
        %v2316 = vunpack.c.0.s8 %v2315
        %v2317 = vlaneseq
        %v2318 = vshrl.u32 %v2317, 7
        %v2319 = vsub.s32 %v2316, %v2318
        %v2320 = vrot.slane %v2312, %v2319
        %v2322 = vunpack.c.l.s4 1983009808
        %v2323 = vunpack.c.0.s8 %v2322
        %v2324 = vlaneseq
        %v2325 = vshrl.u32 %v2324, 7
        %v2326 = vsub.s32 %v2323, %v2325
        %v2327 = vrot.slane %v2313, %v2326
        %v2328 = vcombine.low %v2304, %v2320
        %v2329 = vcombine.high %v2304, %v2320
        %v2331 = vunpack.c.l.s4 1934713408
        %v2332 = vunpack.c.0.s8 %v2331
        %v2333 = vlaneseq
        %v2334 = vshrl.u32 %v2333, 7
        %v2335 = vsub.s32 %v2332, %v2334
        %v2336 = vrot.slane %v2328, %v2335
        %v2338 = vunpack.c.l.s4 1934713408
        %v2339 = vunpack.c.0.s8 %v2338
        %v2340 = vlaneseq
        %v2341 = vshrl.u32 %v2340, 7
        %v2342 = vsub.s32 %v2339, %v2341
        %v2343 = vrot.slane %v2329, %v2342
        %v2344 = vcombine.low %v2311, %v2327
        %v2345 = vcombine.high %v2311, %v2327
        %v2347 = vunpack.c.l.s4 1934713408
        %v2348 = vunpack.c.0.s8 %v2347
        %v2349 = vlaneseq
        %v2350 = vshrl.u32 %v2349, 7
        %v2351 = vsub.s32 %v2348, %v2350
        %v2352 = vrot.slane %v2344, %v2351
        %v2354 = vunpack.c.l.s4 1934713408
        %v2355 = vunpack.c.0.s8 %v2354
        %v2356 = vlaneseq
        %v2357 = vshrl.u32 %v2356, 7
        %v2358 = vsub.s32 %v2355, %v2357
        %v2359 = vrot.slane %v2345, %v2358
        %v2360 = vcombine.high %v2336, 0.0
        %v2361 = vcombine.high %v2343, 0.0
        %v2362 = vcombine.high %v2352, 0.0
        %v2363 = vcombine.high %v2359, 0.0
        %v2364 = vcombine.low %v1270, %v1404
        %v2365 = vcombine.high %v1270, %v1404
        %v2367 = vunpack.c.l.s4 1983009808
        %v2368 = vunpack.c.0.s8 %v2367
        %v2369 = vlaneseq
        %v2370 = vshrl.u32 %v2369, 7
        %v2371 = vsub.s32 %v2368, %v2370
        %v2372 = vrot.slane %v2364, %v2371
        %v2374 = vunpack.c.l.s4 1983009808
        %v2375 = vunpack.c.0.s8 %v2374
        %v2376 = vlaneseq
        %v2377 = vshrl.u32 %v2376, 7
        %v2378 = vsub.s32 %v2375, %v2377
        %v2379 = vrot.slane %v2365, %v2378
        %v2380 = vcombine.low %v1337, %v1471
        %v2381 = vcombine.high %v1337, %v1471
        %v2383 = vunpack.c.l.s4 1983009808
        %v2384 = vunpack.c.0.s8 %v2383
        %v2385 = vlaneseq
        %v2386 = vshrl.u32 %v2385, 7
        %v2387 = vsub.s32 %v2384, %v2386
        %v2388 = vrot.slane %v2380, %v2387
        %v2390 = vunpack.c.l.s4 1983009808
        %v2391 = vunpack.c.0.s8 %v2390
        %v2392 = vlaneseq
        %v2393 = vshrl.u32 %v2392, 7
        %v2394 = vsub.s32 %v2391, %v2393
        %v2395 = vrot.slane %v2381, %v2394
        %v2396 = vcombine.low %v2372, %v2388
        %v2397 = vcombine.high %v2372, %v2388
        %v2399 = vunpack.c.l.s4 1934713408
        %v2400 = vunpack.c.0.s8 %v2399
        %v2401 = vlaneseq
        %v2402 = vshrl.u32 %v2401, 7
        %v2403 = vsub.s32 %v2400, %v2402
        %v2404 = vrot.slane %v2396, %v2403
        %v2406 = vunpack.c.l.s4 1934713408
        %v2407 = vunpack.c.0.s8 %v2406
        %v2408 = vlaneseq
        %v2409 = vshrl.u32 %v2408, 7
        %v2410 = vsub.s32 %v2407, %v2409
        %v2411 = vrot.slane %v2397, %v2410
        %v2412 = vcombine.low %v2379, %v2395
        %v2413 = vcombine.high %v2379, %v2395
        %v2415 = vunpack.c.l.s4 1934713408
        %v2416 = vunpack.c.0.s8 %v2415
        %v2417 = vlaneseq
        %v2418 = vshrl.u32 %v2417, 7
        %v2419 = vsub.s32 %v2416, %v2418
        %v2420 = vrot.slane %v2412, %v2419
        %v2422 = vunpack.c.l.s4 1934713408
        %v2423 = vunpack.c.0.s8 %v2422
        %v2424 = vlaneseq
        %v2425 = vshrl.u32 %v2424, 7
        %v2426 = vsub.s32 %v2423, %v2425
        %v2427 = vrot.slane %v2413, %v2426
        %v2428 = vcombine.high %v2404, 0.0
        %v2429 = vcombine.high %v2411, 0.0
        %v2430 = vcombine.high %v2420, 0.0
        %v2431 = vcombine.high %v2427, 0.0
        %v2432 = vcombine.low %v1274, %v1408
        %v2433 = vcombine.high %v1274, %v1408
        %v2435 = vunpack.c.l.s4 1983009808
        %v2436 = vunpack.c.0.s8 %v2435
        %v2437 = vlaneseq
        %v2438 = vshrl.u32 %v2437, 7
        %v2439 = vsub.s32 %v2436, %v2438
        %v2440 = vrot.slane %v2432, %v2439
        %v2442 = vunpack.c.l.s4 1983009808
        %v2443 = vunpack.c.0.s8 %v2442
        %v2444 = vlaneseq
        %v2445 = vshrl.u32 %v2444, 7
        %v2446 = vsub.s32 %v2443, %v2445
        %v2447 = vrot.slane %v2433, %v2446
        %v2448 = vcombine.low %v1341, %v1475
        %v2449 = vcombine.high %v1341, %v1475
        %v2451 = vunpack.c.l.s4 1983009808
        %v2452 = vunpack.c.0.s8 %v2451
        %v2453 = vlaneseq
        %v2454 = vshrl.u32 %v2453, 7
        %v2455 = vsub.s32 %v2452, %v2454
        %v2456 = vrot.slane %v2448, %v2455
        %v2458 = vunpack.c.l.s4 1983009808
        %v2459 = vunpack.c.0.s8 %v2458
        %v2460 = vlaneseq
        %v2461 = vshrl.u32 %v2460, 7
        %v2462 = vsub.s32 %v2459, %v2461
        %v2463 = vrot.slane %v2449, %v2462
        %v2464 = vcombine.low %v2440, %v2456
        %v2465 = vcombine.high %v2440, %v2456
        %v2467 = vunpack.c.l.s4 1934713408
        %v2468 = vunpack.c.0.s8 %v2467
        %v2469 = vlaneseq
        %v2470 = vshrl.u32 %v2469, 7
        %v2471 = vsub.s32 %v2468, %v2470
        %v2472 = vrot.slane %v2464, %v2471
        %v2474 = vunpack.c.l.s4 1934713408
        %v2475 = vunpack.c.0.s8 %v2474
        %v2476 = vlaneseq
        %v2477 = vshrl.u32 %v2476, 7
        %v2478 = vsub.s32 %v2475, %v2477
        %v2479 = vrot.slane %v2465, %v2478
        %v2480 = vcombine.low %v2447, %v2463
        %v2481 = vcombine.high %v2447, %v2463
        %v2483 = vunpack.c.l.s4 1934713408
        %v2484 = vunpack.c.0.s8 %v2483
        %v2485 = vlaneseq
        %v2486 = vshrl.u32 %v2485, 7
        %v2487 = vsub.s32 %v2484, %v2486
        %v2488 = vrot.slane %v2480, %v2487
        %v2490 = vunpack.c.l.s4 1934713408
        %v2491 = vunpack.c.0.s8 %v2490
        %v2492 = vlaneseq
        %v2493 = vshrl.u32 %v2492, 7
        %v2494 = vsub.s32 %v2491, %v2493
        %v2495 = vrot.slane %v2481, %v2494
        %v2496 = vcombine.high %v2472, 0.0
        %v2497 = vcombine.high %v2479, 0.0
        %v2498 = vcombine.high %v2488, 0.0
        %v2499 = vcombine.high %v2495, 0.0
        %v2500 = vcombine.low %v1278, %v1412
        %v2501 = vcombine.high %v1278, %v1412
        %v2503 = vunpack.c.l.s4 1983009808
        %v2504 = vunpack.c.0.s8 %v2503
        %v2505 = vlaneseq
        %v2506 = vshrl.u32 %v2505, 7
        %v2507 = vsub.s32 %v2504, %v2506
        %v2508 = vrot.slane %v2500, %v2507
        %v2510 = vunpack.c.l.s4 1983009808
        %v2511 = vunpack.c.0.s8 %v2510
        %v2512 = vlaneseq
        %v2513 = vshrl.u32 %v2512, 7
        %v2514 = vsub.s32 %v2511, %v2513
        %v2515 = vrot.slane %v2501, %v2514
        %v2516 = vcombine.low %v1345, %v1479
        %v2517 = vcombine.high %v1345, %v1479
        %v2519 = vunpack.c.l.s4 1983009808
        %v2520 = vunpack.c.0.s8 %v2519
        %v2521 = vlaneseq
        %v2522 = vshrl.u32 %v2521, 7
        %v2523 = vsub.s32 %v2520, %v2522
        %v2524 = vrot.slane %v2516, %v2523
        %v2526 = vunpack.c.l.s4 1983009808
        %v2527 = vunpack.c.0.s8 %v2526
        %v2528 = vlaneseq
        %v2529 = vshrl.u32 %v2528, 7
        %v2530 = vsub.s32 %v2527, %v2529
        %v2531 = vrot.slane %v2517, %v2530
        %v2532 = vcombine.low %v2508, %v2524
        %v2533 = vcombine.high %v2508, %v2524
        %v2535 = vunpack.c.l.s4 1934713408
        %v2536 = vunpack.c.0.s8 %v2535
        %v2537 = vlaneseq
        %v2538 = vshrl.u32 %v2537, 7
        %v2539 = vsub.s32 %v2536, %v2538
        %v2540 = vrot.slane %v2532, %v2539
        %v2542 = vunpack.c.l.s4 1934713408
        %v2543 = vunpack.c.0.s8 %v2542
        %v2544 = vlaneseq
        %v2545 = vshrl.u32 %v2544, 7
        %v2546 = vsub.s32 %v2543, %v2545
        %v2547 = vrot.slane %v2533, %v2546
        %v2548 = vcombine.low %v2515, %v2531
        %v2549 = vcombine.high %v2515, %v2531
        %v2551 = vunpack.c.l.s4 1934713408
        %v2552 = vunpack.c.0.s8 %v2551
        %v2553 = vlaneseq
        %v2554 = vshrl.u32 %v2553, 7
        %v2555 = vsub.s32 %v2552, %v2554
        %v2556 = vrot.slane %v2548, %v2555
        %v2558 = vunpack.c.l.s4 1934713408
        %v2559 = vunpack.c.0.s8 %v2558
        %v2560 = vlaneseq
        %v2561 = vshrl.u32 %v2560, 7
        %v2562 = vsub.s32 %v2559, %v2561
        %v2563 = vrot.slane %v2549, %v2562
        %v2564 = vcombine.high %v2540, 0.0
        %v2565 = vcombine.high %v2547, 0.0
        %v2566 = vcombine.high %v2556, 0.0
        %v2567 = vcombine.high %v2563, 0.0
        %2569 = vrot.lane.b32.xlu0 %v1544, 2
        %v2570 = vpop.permute.xlu0 %2569
        %2573 = vrot.lane.b32.xlu0 %v1527, 4
        %v2574 = vpop.permute.xlu0 %2573
        %2577 = vrot.lane.b32.xlu0 %v1545, 6
        %v2578 = vpop.permute.xlu0 %2577
        %2581 = vrot.lane.b32.xlu0 %v1536, 8
        %v2582 = vpop.permute.xlu0 %2581
        %2585 = vrot.lane.b32.xlu0 %v1546, 10
        %v2586 = vpop.permute.xlu0 %2585
        %2589 = vrot.lane.b32.xlu0 %v1543, 12
        %v2590 = vpop.permute.xlu0 %2589
        %2593 = vrot.lane.b32.xlu0 %v1547, 14
        %v2594 = vpop.permute.xlu0 %2593
        %2597 = vrot.lane.b32.xlu0 %v1588, 16
        %v2598 = vpop.permute.xlu0 %2597
        %2601 = vrot.lane.b32.xlu0 %v1612, 18
        %v2602 = vpop.permute.xlu0 %2601
        %2605 = vrot.lane.b32.xlu0 %v1595, 20
        %v2606 = vpop.permute.xlu0 %2605
        %2609 = vrot.lane.b32.xlu0 %v1613, 22
        %v2610 = vpop.permute.xlu0 %2609
        %2613 = vrot.lane.b32.xlu0 %v1604, 24
        %v2614 = vpop.permute.xlu0 %2613
        %2617 = vrot.lane.b32.xlu0 %v1614, 26
        %v2618 = vpop.permute.xlu0 %2617
        %2621 = vrot.lane.b32.xlu0 %v1611, 28
        %v2622 = vpop.permute.xlu0 %2621
        %2625 = vrot.lane.b32.xlu0 %v1615, 30
        %v2626 = vpop.permute.xlu0 %2625
        %2629 = vrot.lane.b32.xlu0 %v1656, 32
        %v2630 = vpop.permute.xlu0 %2629
        %2633 = vrot.lane.b32.xlu0 %v1680, 34
        %v2634 = vpop.permute.xlu0 %2633
        %2637 = vrot.lane.b32.xlu0 %v1663, 36
        %v2638 = vpop.permute.xlu0 %2637
        %2641 = vrot.lane.b32.xlu0 %v1681, 38
        %v2642 = vpop.permute.xlu0 %2641
        %2645 = vrot.lane.b32.xlu0 %v1672, 40
        %v2646 = vpop.permute.xlu0 %2645
        %2649 = vrot.lane.b32.xlu0 %v1682, 42
        %v2650 = vpop.permute.xlu0 %2649
        %2653 = vrot.lane.b32.xlu0 %v1679, 44
        %v2654 = vpop.permute.xlu0 %2653
        %2657 = vrot.lane.b32.xlu0 %v1683, 46
        %v2658 = vpop.permute.xlu0 %2657
        %2661 = vrot.lane.b32.xlu0 %v1724, 48
        %v2662 = vpop.permute.xlu0 %2661
        %2665 = vrot.lane.b32.xlu0 %v1748, 50
        %v2666 = vpop.permute.xlu0 %2665
        %2669 = vrot.lane.b32.xlu0 %v1731, 52
        %v2670 = vpop.permute.xlu0 %2669
        %2673 = vrot.lane.b32.xlu0 %v1749, 54
        %v2674 = vpop.permute.xlu0 %2673
        %2677 = vrot.lane.b32.xlu0 %v1740, 56
        %v2678 = vpop.permute.xlu0 %2677
        %2681 = vrot.lane.b32.xlu0 %v1750, 58
        %v2682 = vpop.permute.xlu0 %2681
        %2685 = vrot.lane.b32.xlu0 %v1747, 60
        %v2686 = vpop.permute.xlu0 %2685
        %2689 = vrot.lane.b32.xlu0 %v1751, 62
        %v2690 = vpop.permute.xlu0 %2689
        %2693 = vrot.lane.b32.xlu0 %v1792, 64
        %v2694 = vpop.permute.xlu0 %2693
        %2697 = vrot.lane.b32.xlu0 %v1816, 66
        %v2698 = vpop.permute.xlu0 %2697
        %2701 = vrot.lane.b32.xlu0 %v1799, 68
        %v2702 = vpop.permute.xlu0 %2701
        %2705 = vrot.lane.b32.xlu0 %v1817, 70
        %v2706 = vpop.permute.xlu0 %2705
        %2709 = vrot.lane.b32.xlu0 %v1808, 72
        %v2710 = vpop.permute.xlu0 %2709
        %2713 = vrot.lane.b32.xlu0 %v1818, 74
        %v2714 = vpop.permute.xlu0 %2713
        %2717 = vrot.lane.b32.xlu0 %v1815, 76
        %v2718 = vpop.permute.xlu0 %2717
        %2721 = vrot.lane.b32.xlu0 %v1819, 78
        %v2722 = vpop.permute.xlu0 %2721
        %2725 = vrot.lane.b32.xlu0 %v1860, 80
        %v2726 = vpop.permute.xlu0 %2725
        %2729 = vrot.lane.b32.xlu0 %v1884, 82
        %v2730 = vpop.permute.xlu0 %2729
        %2733 = vrot.lane.b32.xlu0 %v1867, 84
        %v2734 = vpop.permute.xlu0 %2733
        %2737 = vrot.lane.b32.xlu0 %v1885, 86
        %v2738 = vpop.permute.xlu0 %2737
        %2741 = vrot.lane.b32.xlu0 %v1876, 88
        %v2742 = vpop.permute.xlu0 %2741
        %2745 = vrot.lane.b32.xlu0 %v1886, 90
        %v2746 = vpop.permute.xlu0 %2745
        %2749 = vrot.lane.b32.xlu0 %v1883, 92
        %v2750 = vpop.permute.xlu0 %2749
        %2753 = vrot.lane.b32.xlu0 %v1887, 94
        %v2754 = vpop.permute.xlu0 %2753
        %2757 = vrot.lane.b32.xlu0 %v1928, 96
        %v2758 = vpop.permute.xlu0 %2757
        %2761 = vrot.lane.b32.xlu0 %v1952, 98
        %v2762 = vpop.permute.xlu0 %2761
        %2765 = vrot.lane.b32.xlu0 %v1935, 100
        %v2766 = vpop.permute.xlu0 %2765
        %2769 = vrot.lane.b32.xlu0 %v1953, 102
        %v2770 = vpop.permute.xlu0 %2769
        %2773 = vrot.lane.b32.xlu0 %v1944, 104
        %v2774 = vpop.permute.xlu0 %2773
        %2777 = vrot.lane.b32.xlu0 %v1954, 106
        %v2778 = vpop.permute.xlu0 %2777
        %2781 = vrot.lane.b32.xlu0 %v1951, 108
        %v2782 = vpop.permute.xlu0 %2781
        %2785 = vrot.lane.b32.xlu0 %v1955, 110
        %v2786 = vpop.permute.xlu0 %2785
        %2789 = vrot.lane.b32.xlu0 %v1996, 112
        %v2790 = vpop.permute.xlu0 %2789
        %2793 = vrot.lane.b32.xlu0 %v2020, 114
        %v2794 = vpop.permute.xlu0 %2793
        %2797 = vrot.lane.b32.xlu0 %v2003, 116
        %v2798 = vpop.permute.xlu0 %2797
        %2801 = vrot.lane.b32.xlu0 %v2021, 118
        %v2802 = vpop.permute.xlu0 %2801
        %2805 = vrot.lane.b32.xlu0 %v2012, 120
        %v2806 = vpop.permute.xlu0 %2805
        %2809 = vrot.lane.b32.xlu0 %v2022, 122
        %v2810 = vpop.permute.xlu0 %2809
        %2813 = vrot.lane.b32.xlu0 %v2019, 124
        %v2814 = vpop.permute.xlu0 %2813
        %2817 = vrot.lane.b32.xlu0 %v2023, 126
        %v2818 = vpop.permute.xlu0 %2817
        %2821 = vrot.lane.b32.xlu0 %v2088, 2
        %v2822 = vpop.permute.xlu0 %2821
        %2825 = vrot.lane.b32.xlu0 %v2071, 4
        %v2826 = vpop.permute.xlu0 %2825
        %2829 = vrot.lane.b32.xlu0 %v2089, 6
        %v2830 = vpop.permute.xlu0 %2829
        %2833 = vrot.lane.b32.xlu0 %v2080, 8
        %v2834 = vpop.permute.xlu0 %2833
        %2837 = vrot.lane.b32.xlu0 %v2090, 10
        %v2838 = vpop.permute.xlu0 %2837
        %2841 = vrot.lane.b32.xlu0 %v2087, 12
        %v2842 = vpop.permute.xlu0 %2841
        %2845 = vrot.lane.b32.xlu0 %v2091, 14
        %v2846 = vpop.permute.xlu0 %2845
        %2849 = vrot.lane.b32.xlu0 %v2132, 16
        %v2850 = vpop.permute.xlu0 %2849
        %2853 = vrot.lane.b32.xlu0 %v2156, 18
        %v2854 = vpop.permute.xlu0 %2853
        %2857 = vrot.lane.b32.xlu0 %v2139, 20
        %v2858 = vpop.permute.xlu0 %2857
        %2861 = vrot.lane.b32.xlu0 %v2157, 22
        %v2862 = vpop.permute.xlu0 %2861
        %2865 = vrot.lane.b32.xlu0 %v2148, 24
        %v2866 = vpop.permute.xlu0 %2865
        %2869 = vrot.lane.b32.xlu0 %v2158, 26
        %v2870 = vpop.permute.xlu0 %2869
        %2873 = vrot.lane.b32.xlu0 %v2155, 28
        %v2874 = vpop.permute.xlu0 %2873
        %2877 = vrot.lane.b32.xlu0 %v2159, 30
        %v2878 = vpop.permute.xlu0 %2877
        %2881 = vrot.lane.b32.xlu0 %v2200, 32
        %v2882 = vpop.permute.xlu0 %2881
        %2885 = vrot.lane.b32.xlu0 %v2224, 34
        %v2886 = vpop.permute.xlu0 %2885
        %2889 = vrot.lane.b32.xlu0 %v2207, 36
        %v2890 = vpop.permute.xlu0 %2889
        %2893 = vrot.lane.b32.xlu0 %v2225, 38
        %v2894 = vpop.permute.xlu0 %2893
        %2897 = vrot.lane.b32.xlu0 %v2216, 40
        %v2898 = vpop.permute.xlu0 %2897
        %2901 = vrot.lane.b32.xlu0 %v2226, 42
        %v2902 = vpop.permute.xlu0 %2901
        %2905 = vrot.lane.b32.xlu0 %v2223, 44
        %v2906 = vpop.permute.xlu0 %2905
        %2909 = vrot.lane.b32.xlu0 %v2227, 46
        %v2910 = vpop.permute.xlu0 %2909
        %2913 = vrot.lane.b32.xlu0 %v2268, 48
        %v2914 = vpop.permute.xlu0 %2913
        %2917 = vrot.lane.b32.xlu0 %v2292, 50
        %v2918 = vpop.permute.xlu0 %2917
        %2921 = vrot.lane.b32.xlu0 %v2275, 52
        %v2922 = vpop.permute.xlu0 %2921
        %2925 = vrot.lane.b32.xlu0 %v2293, 54
        %v2926 = vpop.permute.xlu0 %2925
        %2929 = vrot.lane.b32.xlu0 %v2284, 56
        %v2930 = vpop.permute.xlu0 %2929
        %2933 = vrot.lane.b32.xlu0 %v2294, 58
        %v2934 = vpop.permute.xlu0 %2933
        %2937 = vrot.lane.b32.xlu0 %v2291, 60
        %v2938 = vpop.permute.xlu0 %2937
        %2941 = vrot.lane.b32.xlu0 %v2295, 62
        %v2942 = vpop.permute.xlu0 %2941
        %2945 = vrot.lane.b32.xlu0 %v2336, 64
        %v2946 = vpop.permute.xlu0 %2945
        %2949 = vrot.lane.b32.xlu0 %v2360, 66
        %v2950 = vpop.permute.xlu0 %2949
        %2953 = vrot.lane.b32.xlu0 %v2343, 68
        %v2954 = vpop.permute.xlu0 %2953
        %2957 = vrot.lane.b32.xlu0 %v2361, 70
        %v2958 = vpop.permute.xlu0 %2957
        %2961 = vrot.lane.b32.xlu0 %v2352, 72
        %v2962 = vpop.permute.xlu0 %2961
        %2965 = vrot.lane.b32.xlu0 %v2362, 74
        %v2966 = vpop.permute.xlu0 %2965
        %2969 = vrot.lane.b32.xlu0 %v2359, 76
        %v2970 = vpop.permute.xlu0 %2969
        %2973 = vrot.lane.b32.xlu0 %v2363, 78
        %v2974 = vpop.permute.xlu0 %2973
        %2977 = vrot.lane.b32.xlu0 %v2404, 80
        %v2978 = vpop.permute.xlu0 %2977
        %2981 = vrot.lane.b32.xlu0 %v2428, 82
        %v2982 = vpop.permute.xlu0 %2981
        %2985 = vrot.lane.b32.xlu0 %v2411, 84
        %v2986 = vpop.permute.xlu0 %2985
        %2989 = vrot.lane.b32.xlu0 %v2429, 86
        %v2990 = vpop.permute.xlu0 %2989
        %2993 = vrot.lane.b32.xlu0 %v2420, 88
        %v2994 = vpop.permute.xlu0 %2993
        %2997 = vrot.lane.b32.xlu0 %v2430, 90
        %v2998 = vpop.permute.xlu0 %2997
        %3001 = vrot.lane.b32.xlu0 %v2427, 92
        %v3002 = vpop.permute.xlu0 %3001
        %3005 = vrot.lane.b32.xlu0 %v2431, 94
        %v3006 = vpop.permute.xlu0 %3005
        %3009 = vrot.lane.b32.xlu0 %v2472, 96
        %v3010 = vpop.permute.xlu0 %3009
        %3013 = vrot.lane.b32.xlu0 %v2496, 98
        %v3014 = vpop.permute.xlu0 %3013
        %3017 = vrot.lane.b32.xlu0 %v2479, 100
        %v3018 = vpop.permute.xlu0 %3017
        %3021 = vrot.lane.b32.xlu0 %v2497, 102
        %v3022 = vpop.permute.xlu0 %3021
        %3025 = vrot.lane.b32.xlu0 %v2488, 104
        %v3026 = vpop.permute.xlu0 %3025
        %3029 = vrot.lane.b32.xlu0 %v2498, 106
        %v3030 = vpop.permute.xlu0 %3029
        %3033 = vrot.lane.b32.xlu0 %v2495, 108
        %v3034 = vpop.permute.xlu0 %3033
        %3037 = vrot.lane.b32.xlu0 %v2499, 110
        %v3038 = vpop.permute.xlu0 %3037
        %3041 = vrot.lane.b32.xlu0 %v2540, 112
        %v3042 = vpop.permute.xlu0 %3041
        %3045 = vrot.lane.b32.xlu0 %v2564, 114
        %v3046 = vpop.permute.xlu0 %3045
        %3049 = vrot.lane.b32.xlu0 %v2547, 116
        %v3050 = vpop.permute.xlu0 %3049
        %3053 = vrot.lane.b32.xlu0 %v2565, 118
        %v3054 = vpop.permute.xlu0 %3053
        %3057 = vrot.lane.b32.xlu0 %v2556, 120
        %v3058 = vpop.permute.xlu0 %3057
        %3061 = vrot.lane.b32.xlu0 %v2566, 122
        %v3062 = vpop.permute.xlu0 %3061
        %3065 = vrot.lane.b32.xlu0 %v2563, 124
        %v3066 = vpop.permute.xlu0 %3065
        %3069 = vrot.lane.b32.xlu0 %v2567, 126
        %v3070 = vpop.permute.xlu0 %3069
        %vm3072 = vcmask 15360
        %v3073 = vsel %vm3072, %v1520, %v2570
        %vm3074 = vcmask 31744
        %v3075 = vsel %vm3074, %v3073, %v2574
        %vm3076 = vcmask 48128
        %v3077 = vsel %vm3076, %v3075, %v2578
        %vm3078 = vcmask 64512
        %v3079 = vsel %vm3078, %v3077, %v2582
        %vm3080 = vcmask 80896
        %v3081 = vsel %vm3080, %v3079, %v2586
        %vm3082 = vcmask 97280
        %v3083 = vsel %vm3082, %v3081, %v2590
        %vm3084 = vcmask 113664
        %v3085 = vsel %vm3084, %v3083, %v2594
        %v3086 = vsel %vm435, %v3085, %v2598
        %vm3087 = vcmask 146432
        %v3088 = vsel %vm3087, %v3086, %v2602
        %vm3089 = vcmask 162816
        %v3090 = vsel %vm3089, %v3088, %v2606
        %vm3091 = vcmask 179200
        %v3092 = vsel %vm3091, %v3090, %v2610
        %vm3093 = vcmask 195584
        %v3094 = vsel %vm3093, %v3092, %v2614
        %vm3095 = vcmask 211968
        %v3096 = vsel %vm3095, %v3094, %v2618
        %vm3097 = vcmask 228352
        %v3098 = vsel %vm3097, %v3096, %v2622
        %vm3099 = vcmask 244736
        %v3100 = vsel %vm3099, %v3098, %v2626
        %v3101 = vsel %vm437, %v3100, %v2630
        %vm3102 = vcmask 277504
        %v3103 = vsel %vm3102, %v3101, %v2634
        %vm3104 = vcmask 293888
        %v3105 = vsel %vm3104, %v3103, %v2638
        %vm3106 = vcmask 310272
        %v3107 = vsel %vm3106, %v3105, %v2642
        %vm3108 = vcmask 326656
        %v3109 = vsel %vm3108, %v3107, %v2646
        %vm3110 = vcmask 343040
        %v3111 = vsel %vm3110, %v3109, %v2650
        %vm3112 = vcmask 359424
        %v3113 = vsel %vm3112, %v3111, %v2654
        %vm3114 = vcmask 375808
        %v3115 = vsel %vm3114, %v3113, %v2658
        %v3116 = vsel %vm439, %v3115, %v2662
        %vm3117 = vcmask 408576
        %v3118 = vsel %vm3117, %v3116, %v2666
        %vm3119 = vcmask 424960
        %v3120 = vsel %vm3119, %v3118, %v2670
        %vm3121 = vcmask 441344
        %v3122 = vsel %vm3121, %v3120, %v2674
        %vm3123 = vcmask 457728
        %v3124 = vsel %vm3123, %v3122, %v2678
        %vm3125 = vcmask 474112
        %v3126 = vsel %vm3125, %v3124, %v2682
        %vm3127 = vcmask 490496
        %v3128 = vsel %vm3127, %v3126, %v2686
        %vm3129 = vcmask 506880
        %v3130 = vsel %vm3129, %v3128, %v2690
        %v3131 = vsel %vm441, %v3130, %v2694
        %vm3132 = vcmask 539648
        %v3133 = vsel %vm3132, %v3131, %v2698
        %vm3134 = vcmask 556032
        %v3135 = vsel %vm3134, %v3133, %v2702
        %vm3136 = vcmask 572416
        %v3137 = vsel %vm3136, %v3135, %v2706
        %vm3138 = vcmask 588800
        %v3139 = vsel %vm3138, %v3137, %v2710
        %vm3140 = vcmask 605184
        %v3141 = vsel %vm3140, %v3139, %v2714
        %vm3142 = vcmask 621568
        %v3143 = vsel %vm3142, %v3141, %v2718
        %vm3144 = vcmask 637952
        %v3145 = vsel %vm3144, %v3143, %v2722
        %v3146 = vsel %vm443, %v3145, %v2726
        %vm3147 = vcmask 670720
        %v3148 = vsel %vm3147, %v3146, %v2730
        %vm3149 = vcmask 687104
        %v3150 = vsel %vm3149, %v3148, %v2734
        %vm3151 = vcmask 703488
        %v3152 = vsel %vm3151, %v3150, %v2738
        %vm3153 = vcmask 719872
        %v3154 = vsel %vm3153, %v3152, %v2742
        %vm3155 = vcmask 736256
        %v3156 = vsel %vm3155, %v3154, %v2746
        %vm3157 = vcmask 752640
        %v3158 = vsel %vm3157, %v3156, %v2750
        %vm3159 = vcmask 769024
        %v3160 = vsel %vm3159, %v3158, %v2754
        %v3161 = vsel %vm445, %v3160, %v2758
        %vm3162 = vcmask 801792
        %v3163 = vsel %vm3162, %v3161, %v2762
        %vm3164 = vcmask 818176
        %v3165 = vsel %vm3164, %v3163, %v2766
        %vm3166 = vcmask 834560
        %v3167 = vsel %vm3166, %v3165, %v2770
        %vm3168 = vcmask 850944
        %v3169 = vsel %vm3168, %v3167, %v2774
        %vm3170 = vcmask 867328
        %v3171 = vsel %vm3170, %v3169, %v2778
        %vm3172 = vcmask 883712
        %v3173 = vsel %vm3172, %v3171, %v2782
        %vm3174 = vcmask 900096
        %v3175 = vsel %vm3174, %v3173, %v2786
        %v3176 = vsel %vm447, %v3175, %v2790
        %vm3177 = vcmask 932864
        %v3178 = vsel %vm3177, %v3176, %v2794
        %vm3179 = vcmask 949248
        %v3180 = vsel %vm3179, %v3178, %v2798
        %vm3181 = vcmask 965632
        %v3182 = vsel %vm3181, %v3180, %v2802
        %vm3183 = vcmask 982016
        %v3184 = vsel %vm3183, %v3182, %v2806
        %vm3185 = vcmask 998400
        %v3186 = vsel %vm3185, %v3184, %v2810
        %vm3187 = vcmask 1014784
        %v3188 = vsel %vm3187, %v3186, %v2814
        %vm3189 = vcmask 1031168
        %v3190 = vsel %vm3189, %v3188, %v2818
        %v3191 = vsel %vm3072, %v2064, %v2822
        %v3192 = vsel %vm3074, %v3191, %v2826
        %v3193 = vsel %vm3076, %v3192, %v2830
        %v3194 = vsel %vm3078, %v3193, %v2834
        %v3195 = vsel %vm3080, %v3194, %v2838
        %v3196 = vsel %vm3082, %v3195, %v2842
        %v3197 = vsel %vm3084, %v3196, %v2846
        %v3198 = vsel %vm435, %v3197, %v2850
        %v3199 = vsel %vm3087, %v3198, %v2854
        %v3200 = vsel %vm3089, %v3199, %v2858
        %v3201 = vsel %vm3091, %v3200, %v2862
        %v3202 = vsel %vm3093, %v3201, %v2866
        %v3203 = vsel %vm3095, %v3202, %v2870
        %v3204 = vsel %vm3097, %v3203, %v2874
        %v3205 = vsel %vm3099, %v3204, %v2878
        %v3206 = vsel %vm437, %v3205, %v2882
        %v3207 = vsel %vm3102, %v3206, %v2886
        %v3208 = vsel %vm3104, %v3207, %v2890
        %v3209 = vsel %vm3106, %v3208, %v2894
        %v3210 = vsel %vm3108, %v3209, %v2898
        %v3211 = vsel %vm3110, %v3210, %v2902
        %v3212 = vsel %vm3112, %v3211, %v2906
        %v3213 = vsel %vm3114, %v3212, %v2910
        %v3214 = vsel %vm439, %v3213, %v2914
        %v3215 = vsel %vm3117, %v3214, %v2918
        %v3216 = vsel %vm3119, %v3215, %v2922
        %v3217 = vsel %vm3121, %v3216, %v2926
        %v3218 = vsel %vm3123, %v3217, %v2930
        %v3219 = vsel %vm3125, %v3218, %v2934
        %v3220 = vsel %vm3127, %v3219, %v2938
        %v3221 = vsel %vm3129, %v3220, %v2942
        %v3222 = vsel %vm441, %v3221, %v2946
        %v3223 = vsel %vm3132, %v3222, %v2950
        %v3224 = vsel %vm3134, %v3223, %v2954
        %v3225 = vsel %vm3136, %v3224, %v2958
        %v3226 = vsel %vm3138, %v3225, %v2962
        %v3227 = vsel %vm3140, %v3226, %v2966
        %v3228 = vsel %vm3142, %v3227, %v2970
        %v3229 = vsel %vm3144, %v3228, %v2974
        %v3230 = vsel %vm443, %v3229, %v2978
        %v3231 = vsel %vm3147, %v3230, %v2982
        %v3232 = vsel %vm3149, %v3231, %v2986
        %v3233 = vsel %vm3151, %v3232, %v2990
        %v3234 = vsel %vm3153, %v3233, %v2994
        %v3235 = vsel %vm3155, %v3234, %v2998
        %v3236 = vsel %vm3157, %v3235, %v3002
        %v3237 = vsel %vm3159, %v3236, %v3006
        %v3238 = vsel %vm445, %v3237, %v3010
        %v3239 = vsel %vm3162, %v3238, %v3014
        %v3240 = vsel %vm3164, %v3239, %v3018
        %v3241 = vsel %vm3166, %v3240, %v3022
        %v3242 = vsel %vm3168, %v3241, %v3026
        %v3243 = vsel %vm3170, %v3242, %v3030
        %v3244 = vsel %vm3172, %v3243, %v3034
        %v3245 = vsel %vm3174, %v3244, %v3038
        %v3246 = vsel %vm447, %v3245, %v3042
        %v3247 = vsel %vm3177, %v3246, %v3046
        %v3248 = vsel %vm3179, %v3247, %v3050
        %v3249 = vsel %vm3181, %v3248, %v3054
        %v3250 = vsel %vm3183, %v3249, %v3058
        %v3251 = vsel %vm3185, %v3250, %v3062
        %v3252 = vsel %vm3187, %v3251, %v3066
        %v3253 = vsel %vm3189, %v3252, %v3070
        %v3254 = vlaneseq
        %v3255 = vshrl.u32 %v3254, 7
        %v3256 = vsub.s32 0, %v3255
        %v3257 = vrot.slane %v1209, %v3256
        %3259 = vbcast.lane.b32.xlu0 %v3257, 256
        %v3260 = vpop.permute.xlu0 %3259
        %s3262 = sor.u32 256, 8
        %3263 = vbcast.lane.b32.xlu0 %v3257, %s3262
        %v3264 = vpop.permute.xlu0 %3263
        %s3266 = sor.u32 256, 16
        %3267 = vbcast.lane.b32.xlu0 %v3257, %s3266
        %v3268 = vpop.permute.xlu0 %3267
        %s3270 = sor.u32 256, 24
        %3271 = vbcast.lane.b32.xlu0 %v3257, %s3270
        %v3272 = vpop.permute.xlu0 %3271
        %s3274 = sor.u32 256, 32
        %3275 = vbcast.lane.b32.xlu0 %v3257, %s3274
        %v3276 = vpop.permute.xlu0 %3275
        %s3278 = sor.u32 256, 40
        %3279 = vbcast.lane.b32.xlu0 %v3257, %s3278
        %v3280 = vpop.permute.xlu0 %3279
        %s3282 = sor.u32 256, 48
        %3283 = vbcast.lane.b32.xlu0 %v3257, %s3282
        %v3284 = vpop.permute.xlu0 %3283
        %s3286 = sor.u32 256, 56
        %3287 = vbcast.lane.b32.xlu0 %v3257, %s3286
        %v3288 = vpop.permute.xlu0 %3287
        %s3290 = sor.u32 256, 64
        %3291 = vbcast.lane.b32.xlu0 %v3257, %s3290
        %v3292 = vpop.permute.xlu0 %3291
        %s3294 = sor.u32 256, 72
        %3295 = vbcast.lane.b32.xlu0 %v3257, %s3294
        %v3296 = vpop.permute.xlu0 %3295
        %s3298 = sor.u32 256, 80
        %3299 = vbcast.lane.b32.xlu0 %v3257, %s3298
        %v3300 = vpop.permute.xlu0 %3299
        %s3302 = sor.u32 256, 88
        %3303 = vbcast.lane.b32.xlu0 %v3257, %s3302
        %v3304 = vpop.permute.xlu0 %3303
        %s3306 = sor.u32 256, 96
        %3307 = vbcast.lane.b32.xlu0 %v3257, %s3306
        %v3308 = vpop.permute.xlu0 %3307
        %s3310 = sor.u32 256, 104
        %3311 = vbcast.lane.b32.xlu0 %v3257, %s3310
        %v3312 = vpop.permute.xlu0 %3311
        %s3314 = sor.u32 256, 112
        %3315 = vbcast.lane.b32.xlu0 %v3257, %s3314
        %v3316 = vpop.permute.xlu0 %3315
        %s3318 = sor.u32 256, 120
        %3319 = vbcast.lane.b32.xlu0 %v3257, %s3318
        %v3320 = vpop.permute.xlu0 %3319
        %v3321 = vlaneseq
        %v3322 = vshrl.u32 %v3321, 7
        %v3323 = vsub.s32 1, %v3322
        %v3324 = vrot.slane %v1209, %v3323
        %3326 = vbcast.lane.b32.xlu0 %v3324, 256
        %v3327 = vpop.permute.xlu0 %3326
        %s3329 = sor.u32 256, 8
        %3330 = vbcast.lane.b32.xlu0 %v3324, %s3329
        %v3331 = vpop.permute.xlu0 %3330
        %s3333 = sor.u32 256, 16
        %3334 = vbcast.lane.b32.xlu0 %v3324, %s3333
        %v3335 = vpop.permute.xlu0 %3334
        %s3337 = sor.u32 256, 24
        %3338 = vbcast.lane.b32.xlu0 %v3324, %s3337
        %v3339 = vpop.permute.xlu0 %3338
        %s3341 = sor.u32 256, 32
        %3342 = vbcast.lane.b32.xlu0 %v3324, %s3341
        %v3343 = vpop.permute.xlu0 %3342
        %s3345 = sor.u32 256, 40
        %3346 = vbcast.lane.b32.xlu0 %v3324, %s3345
        %v3347 = vpop.permute.xlu0 %3346
        %s3349 = sor.u32 256, 48
        %3350 = vbcast.lane.b32.xlu0 %v3324, %s3349
        %v3351 = vpop.permute.xlu0 %3350
        %s3353 = sor.u32 256, 56
        %3354 = vbcast.lane.b32.xlu0 %v3324, %s3353
        %v3355 = vpop.permute.xlu0 %3354
        %s3357 = sor.u32 256, 64
        %3358 = vbcast.lane.b32.xlu0 %v3324, %s3357
        %v3359 = vpop.permute.xlu0 %3358
        %s3361 = sor.u32 256, 72
        %3362 = vbcast.lane.b32.xlu0 %v3324, %s3361
        %v3363 = vpop.permute.xlu0 %3362
        %s3365 = sor.u32 256, 80
        %3366 = vbcast.lane.b32.xlu0 %v3324, %s3365
        %v3367 = vpop.permute.xlu0 %3366
        %s3369 = sor.u32 256, 88
        %3370 = vbcast.lane.b32.xlu0 %v3324, %s3369
        %v3371 = vpop.permute.xlu0 %3370
        %s3373 = sor.u32 256, 96
        %3374 = vbcast.lane.b32.xlu0 %v3324, %s3373
        %v3375 = vpop.permute.xlu0 %3374
        %s3377 = sor.u32 256, 104
        %3378 = vbcast.lane.b32.xlu0 %v3324, %s3377
        %v3379 = vpop.permute.xlu0 %3378
        %s3381 = sor.u32 256, 112
        %3382 = vbcast.lane.b32.xlu0 %v3324, %s3381
        %v3383 = vpop.permute.xlu0 %3382
        %s3385 = sor.u32 256, 120
        %3386 = vbcast.lane.b32.xlu0 %v3324, %s3385
        %v3387 = vpop.permute.xlu0 %3386
        %v3388 = vlaneseq
        %v3389 = vshrl.u32 %v3388, 7
        %v3390 = vsub.s32 2, %v3389
        %v3391 = vrot.slane %v1209, %v3390
        %3393 = vbcast.lane.b32.xlu0 %v3391, 256
        %v3394 = vpop.permute.xlu0 %3393
        %s3396 = sor.u32 256, 8
        %3397 = vbcast.lane.b32.xlu0 %v3391, %s3396
        %v3398 = vpop.permute.xlu0 %3397
        %s3400 = sor.u32 256, 16
        %3401 = vbcast.lane.b32.xlu0 %v3391, %s3400
        %v3402 = vpop.permute.xlu0 %3401
        %s3404 = sor.u32 256, 24
        %3405 = vbcast.lane.b32.xlu0 %v3391, %s3404
        %v3406 = vpop.permute.xlu0 %3405
        %s3408 = sor.u32 256, 32
        %3409 = vbcast.lane.b32.xlu0 %v3391, %s3408
        %v3410 = vpop.permute.xlu0 %3409
        %s3412 = sor.u32 256, 40
        %3413 = vbcast.lane.b32.xlu0 %v3391, %s3412
        %v3414 = vpop.permute.xlu0 %3413
        %s3416 = sor.u32 256, 48
        %3417 = vbcast.lane.b32.xlu0 %v3391, %s3416
        %v3418 = vpop.permute.xlu0 %3417
        %s3420 = sor.u32 256, 56
        %3421 = vbcast.lane.b32.xlu0 %v3391, %s3420
        %v3422 = vpop.permute.xlu0 %3421
        %s3424 = sor.u32 256, 64
        %3425 = vbcast.lane.b32.xlu0 %v3391, %s3424
        %v3426 = vpop.permute.xlu0 %3425
        %s3428 = sor.u32 256, 72
        %3429 = vbcast.lane.b32.xlu0 %v3391, %s3428
        %v3430 = vpop.permute.xlu0 %3429
        %s3432 = sor.u32 256, 80
        %3433 = vbcast.lane.b32.xlu0 %v3391, %s3432
        %v3434 = vpop.permute.xlu0 %3433
        %s3436 = sor.u32 256, 88
        %3437 = vbcast.lane.b32.xlu0 %v3391, %s3436
        %v3438 = vpop.permute.xlu0 %3437
        %s3440 = sor.u32 256, 96
        %3441 = vbcast.lane.b32.xlu0 %v3391, %s3440
        %v3442 = vpop.permute.xlu0 %3441
        %s3444 = sor.u32 256, 104
        %3445 = vbcast.lane.b32.xlu0 %v3391, %s3444
        %v3446 = vpop.permute.xlu0 %3445
        %s3448 = sor.u32 256, 112
        %3449 = vbcast.lane.b32.xlu0 %v3391, %s3448
        %v3450 = vpop.permute.xlu0 %3449
        %s3452 = sor.u32 256, 120
        %3453 = vbcast.lane.b32.xlu0 %v3391, %s3452
        %v3454 = vpop.permute.xlu0 %3453
        %v3455 = vlaneseq
        %v3456 = vshrl.u32 %v3455, 7
        %v3457 = vsub.s32 3, %v3456
        %v3458 = vrot.slane %v1209, %v3457
        %3460 = vbcast.lane.b32.xlu0 %v3458, 256
        %v3461 = vpop.permute.xlu0 %3460
        %s3463 = sor.u32 256, 8
        %3464 = vbcast.lane.b32.xlu0 %v3458, %s3463
        %v3465 = vpop.permute.xlu0 %3464
        %s3467 = sor.u32 256, 16
        %3468 = vbcast.lane.b32.xlu0 %v3458, %s3467
        %v3469 = vpop.permute.xlu0 %3468
        %s3471 = sor.u32 256, 24
        %3472 = vbcast.lane.b32.xlu0 %v3458, %s3471
        %v3473 = vpop.permute.xlu0 %3472
        %s3475 = sor.u32 256, 32
        %3476 = vbcast.lane.b32.xlu0 %v3458, %s3475
        %v3477 = vpop.permute.xlu0 %3476
        %s3479 = sor.u32 256, 40
        %3480 = vbcast.lane.b32.xlu0 %v3458, %s3479
        %v3481 = vpop.permute.xlu0 %3480
        %s3483 = sor.u32 256, 48
        %3484 = vbcast.lane.b32.xlu0 %v3458, %s3483
        %v3485 = vpop.permute.xlu0 %3484
        %s3487 = sor.u32 256, 56
        %3488 = vbcast.lane.b32.xlu0 %v3458, %s3487
        %v3489 = vpop.permute.xlu0 %3488
        %s3491 = sor.u32 256, 64
        %3492 = vbcast.lane.b32.xlu0 %v3458, %s3491
        %v3493 = vpop.permute.xlu0 %3492
        %s3495 = sor.u32 256, 72
        %3496 = vbcast.lane.b32.xlu0 %v3458, %s3495
        %v3497 = vpop.permute.xlu0 %3496
        %s3499 = sor.u32 256, 80
        %3500 = vbcast.lane.b32.xlu0 %v3458, %s3499
        %v3501 = vpop.permute.xlu0 %3500
        %s3503 = sor.u32 256, 88
        %3504 = vbcast.lane.b32.xlu0 %v3458, %s3503
        %v3505 = vpop.permute.xlu0 %3504
        %s3507 = sor.u32 256, 96
        %3508 = vbcast.lane.b32.xlu0 %v3458, %s3507
        %v3509 = vpop.permute.xlu0 %3508
        %s3511 = sor.u32 256, 104
        %3512 = vbcast.lane.b32.xlu0 %v3458, %s3511
        %v3513 = vpop.permute.xlu0 %3512
        %s3515 = sor.u32 256, 112
        %3516 = vbcast.lane.b32.xlu0 %v3458, %s3515
        %v3517 = vpop.permute.xlu0 %3516
        %s3519 = sor.u32 256, 120
        %3520 = vbcast.lane.b32.xlu0 %v3458, %s3519
        %v3521 = vpop.permute.xlu0 %3520
        %v3522 = vcombine.low %v3260, %v3394
        %v3523 = vcombine.high %v3260, %v3394
        %v3525 = vunpack.c.l.s4 1983009808
        %v3526 = vunpack.c.0.s8 %v3525
        %v3527 = vlaneseq
        %v3528 = vshrl.u32 %v3527, 7
        %v3529 = vsub.s32 %v3526, %v3528
        %v3530 = vrot.slane %v3522, %v3529
        %v3532 = vunpack.c.l.s4 1983009808
        %v3533 = vunpack.c.0.s8 %v3532
        %v3534 = vlaneseq
        %v3535 = vshrl.u32 %v3534, 7
        %v3536 = vsub.s32 %v3533, %v3535
        %v3537 = vrot.slane %v3523, %v3536
        %v3538 = vcombine.low %v3327, %v3461
        %v3539 = vcombine.high %v3327, %v3461
        %v3541 = vunpack.c.l.s4 1983009808
        %v3542 = vunpack.c.0.s8 %v3541
        %v3543 = vlaneseq
        %v3544 = vshrl.u32 %v3543, 7
        %v3545 = vsub.s32 %v3542, %v3544
        %v3546 = vrot.slane %v3538, %v3545
        %v3548 = vunpack.c.l.s4 1983009808
        %v3549 = vunpack.c.0.s8 %v3548
        %v3550 = vlaneseq
        %v3551 = vshrl.u32 %v3550, 7
        %v3552 = vsub.s32 %v3549, %v3551
        %v3553 = vrot.slane %v3539, %v3552
        %v3554 = vcombine.low %v3530, %v3546
        %v3555 = vcombine.high %v3530, %v3546
        %v3557 = vunpack.c.l.s4 1934713408
        %v3558 = vunpack.c.0.s8 %v3557
        %v3559 = vlaneseq
        %v3560 = vshrl.u32 %v3559, 7
        %v3561 = vsub.s32 %v3558, %v3560
        %v3562 = vrot.slane %v3554, %v3561
        %v3564 = vunpack.c.l.s4 1934713408
        %v3565 = vunpack.c.0.s8 %v3564
        %v3566 = vlaneseq
        %v3567 = vshrl.u32 %v3566, 7
        %v3568 = vsub.s32 %v3565, %v3567
        %v3569 = vrot.slane %v3555, %v3568
        %v3570 = vcombine.low %v3537, %v3553
        %v3571 = vcombine.high %v3537, %v3553
        %v3573 = vunpack.c.l.s4 1934713408
        %v3574 = vunpack.c.0.s8 %v3573
        %v3575 = vlaneseq
        %v3576 = vshrl.u32 %v3575, 7
        %v3577 = vsub.s32 %v3574, %v3576
        %v3578 = vrot.slane %v3570, %v3577
        %v3580 = vunpack.c.l.s4 1934713408
        %v3581 = vunpack.c.0.s8 %v3580
        %v3582 = vlaneseq
        %v3583 = vshrl.u32 %v3582, 7
        %v3584 = vsub.s32 %v3581, %v3583
        %v3585 = vrot.slane %v3571, %v3584
        %v3586 = vcombine.high %v3562, 0.0
        %v3587 = vcombine.high %v3569, 0.0
        %v3588 = vcombine.high %v3578, 0.0
        %v3589 = vcombine.high %v3585, 0.0
        %v3590 = vcombine.low %v3264, %v3398
        %v3591 = vcombine.high %v3264, %v3398
        %v3593 = vunpack.c.l.s4 1983009808
        %v3594 = vunpack.c.0.s8 %v3593
        %v3595 = vlaneseq
        %v3596 = vshrl.u32 %v3595, 7
        %v3597 = vsub.s32 %v3594, %v3596
        %v3598 = vrot.slane %v3590, %v3597
        %v3600 = vunpack.c.l.s4 1983009808
        %v3601 = vunpack.c.0.s8 %v3600
        %v3602 = vlaneseq
        %v3603 = vshrl.u32 %v3602, 7
        %v3604 = vsub.s32 %v3601, %v3603
        %v3605 = vrot.slane %v3591, %v3604
        %v3606 = vcombine.low %v3331, %v3465
        %v3607 = vcombine.high %v3331, %v3465
        %v3609 = vunpack.c.l.s4 1983009808
        %v3610 = vunpack.c.0.s8 %v3609
        %v3611 = vlaneseq
        %v3612 = vshrl.u32 %v3611, 7
        %v3613 = vsub.s32 %v3610, %v3612
        %v3614 = vrot.slane %v3606, %v3613
        %v3616 = vunpack.c.l.s4 1983009808
        %v3617 = vunpack.c.0.s8 %v3616
        %v3618 = vlaneseq
        %v3619 = vshrl.u32 %v3618, 7
        %v3620 = vsub.s32 %v3617, %v3619
        %v3621 = vrot.slane %v3607, %v3620
        %v3622 = vcombine.low %v3598, %v3614
        %v3623 = vcombine.high %v3598, %v3614
        %v3625 = vunpack.c.l.s4 1934713408
        %v3626 = vunpack.c.0.s8 %v3625
        %v3627 = vlaneseq
        %v3628 = vshrl.u32 %v3627, 7
        %v3629 = vsub.s32 %v3626, %v3628
        %v3630 = vrot.slane %v3622, %v3629
        %v3632 = vunpack.c.l.s4 1934713408
        %v3633 = vunpack.c.0.s8 %v3632
        %v3634 = vlaneseq
        %v3635 = vshrl.u32 %v3634, 7
        %v3636 = vsub.s32 %v3633, %v3635
        %v3637 = vrot.slane %v3623, %v3636
        %v3638 = vcombine.low %v3605, %v3621
        %v3639 = vcombine.high %v3605, %v3621
        %v3641 = vunpack.c.l.s4 1934713408
        %v3642 = vunpack.c.0.s8 %v3641
        %v3643 = vlaneseq
        %v3644 = vshrl.u32 %v3643, 7
        %v3645 = vsub.s32 %v3642, %v3644
        %v3646 = vrot.slane %v3638, %v3645
        %v3648 = vunpack.c.l.s4 1934713408
        %v3649 = vunpack.c.0.s8 %v3648
        %v3650 = vlaneseq
        %v3651 = vshrl.u32 %v3650, 7
        %v3652 = vsub.s32 %v3649, %v3651
        %v3653 = vrot.slane %v3639, %v3652
        %v3654 = vcombine.high %v3630, 0.0
        %v3655 = vcombine.high %v3637, 0.0
        %v3656 = vcombine.high %v3646, 0.0
        %v3657 = vcombine.high %v3653, 0.0
        %v3658 = vcombine.low %v3268, %v3402
        %v3659 = vcombine.high %v3268, %v3402
        %v3661 = vunpack.c.l.s4 1983009808
        %v3662 = vunpack.c.0.s8 %v3661
        %v3663 = vlaneseq
        %v3664 = vshrl.u32 %v3663, 7
        %v3665 = vsub.s32 %v3662, %v3664
        %v3666 = vrot.slane %v3658, %v3665
        %v3668 = vunpack.c.l.s4 1983009808
        %v3669 = vunpack.c.0.s8 %v3668
        %v3670 = vlaneseq
        %v3671 = vshrl.u32 %v3670, 7
        %v3672 = vsub.s32 %v3669, %v3671
        %v3673 = vrot.slane %v3659, %v3672
        %v3674 = vcombine.low %v3335, %v3469
        %v3675 = vcombine.high %v3335, %v3469
        %v3677 = vunpack.c.l.s4 1983009808
        %v3678 = vunpack.c.0.s8 %v3677
        %v3679 = vlaneseq
        %v3680 = vshrl.u32 %v3679, 7
        %v3681 = vsub.s32 %v3678, %v3680
        %v3682 = vrot.slane %v3674, %v3681
        %v3684 = vunpack.c.l.s4 1983009808
        %v3685 = vunpack.c.0.s8 %v3684
        %v3686 = vlaneseq
        %v3687 = vshrl.u32 %v3686, 7
        %v3688 = vsub.s32 %v3685, %v3687
        %v3689 = vrot.slane %v3675, %v3688
        %v3690 = vcombine.low %v3666, %v3682
        %v3691 = vcombine.high %v3666, %v3682
        %v3693 = vunpack.c.l.s4 1934713408
        %v3694 = vunpack.c.0.s8 %v3693
        %v3695 = vlaneseq
        %v3696 = vshrl.u32 %v3695, 7
        %v3697 = vsub.s32 %v3694, %v3696
        %v3698 = vrot.slane %v3690, %v3697
        %v3700 = vunpack.c.l.s4 1934713408
        %v3701 = vunpack.c.0.s8 %v3700
        %v3702 = vlaneseq
        %v3703 = vshrl.u32 %v3702, 7
        %v3704 = vsub.s32 %v3701, %v3703
        %v3705 = vrot.slane %v3691, %v3704
        %v3706 = vcombine.low %v3673, %v3689
        %v3707 = vcombine.high %v3673, %v3689
        %v3709 = vunpack.c.l.s4 1934713408
        %v3710 = vunpack.c.0.s8 %v3709
        %v3711 = vlaneseq
        %v3712 = vshrl.u32 %v3711, 7
        %v3713 = vsub.s32 %v3710, %v3712
        %v3714 = vrot.slane %v3706, %v3713
        %v3716 = vunpack.c.l.s4 1934713408
        %v3717 = vunpack.c.0.s8 %v3716
        %v3718 = vlaneseq
        %v3719 = vshrl.u32 %v3718, 7
        %v3720 = vsub.s32 %v3717, %v3719
        %v3721 = vrot.slane %v3707, %v3720
        %v3722 = vcombine.high %v3698, 0.0
        %v3723 = vcombine.high %v3705, 0.0
        %v3724 = vcombine.high %v3714, 0.0
        %v3725 = vcombine.high %v3721, 0.0
        %v3726 = vcombine.low %v3272, %v3406
        %v3727 = vcombine.high %v3272, %v3406
        %v3729 = vunpack.c.l.s4 1983009808
        %v3730 = vunpack.c.0.s8 %v3729
        %v3731 = vlaneseq
        %v3732 = vshrl.u32 %v3731, 7
        %v3733 = vsub.s32 %v3730, %v3732
        %v3734 = vrot.slane %v3726, %v3733
        %v3736 = vunpack.c.l.s4 1983009808
        %v3737 = vunpack.c.0.s8 %v3736
        %v3738 = vlaneseq
        %v3739 = vshrl.u32 %v3738, 7
        %v3740 = vsub.s32 %v3737, %v3739
        %v3741 = vrot.slane %v3727, %v3740
        %v3742 = vcombine.low %v3339, %v3473
        %v3743 = vcombine.high %v3339, %v3473
        %v3745 = vunpack.c.l.s4 1983009808
        %v3746 = vunpack.c.0.s8 %v3745
        %v3747 = vlaneseq
        %v3748 = vshrl.u32 %v3747, 7
        %v3749 = vsub.s32 %v3746, %v3748
        %v3750 = vrot.slane %v3742, %v3749
        %v3752 = vunpack.c.l.s4 1983009808
        %v3753 = vunpack.c.0.s8 %v3752
        %v3754 = vlaneseq
        %v3755 = vshrl.u32 %v3754, 7
        %v3756 = vsub.s32 %v3753, %v3755
        %v3757 = vrot.slane %v3743, %v3756
        %v3758 = vcombine.low %v3734, %v3750
        %v3759 = vcombine.high %v3734, %v3750
        %v3761 = vunpack.c.l.s4 1934713408
        %v3762 = vunpack.c.0.s8 %v3761
        %v3763 = vlaneseq
        %v3764 = vshrl.u32 %v3763, 7
        %v3765 = vsub.s32 %v3762, %v3764
        %v3766 = vrot.slane %v3758, %v3765
        %v3768 = vunpack.c.l.s4 1934713408
        %v3769 = vunpack.c.0.s8 %v3768
        %v3770 = vlaneseq
        %v3771 = vshrl.u32 %v3770, 7
        %v3772 = vsub.s32 %v3769, %v3771
        %v3773 = vrot.slane %v3759, %v3772
        %v3774 = vcombine.low %v3741, %v3757
        %v3775 = vcombine.high %v3741, %v3757
        %v3777 = vunpack.c.l.s4 1934713408
        %v3778 = vunpack.c.0.s8 %v3777
        %v3779 = vlaneseq
        %v3780 = vshrl.u32 %v3779, 7
        %v3781 = vsub.s32 %v3778, %v3780
        %v3782 = vrot.slane %v3774, %v3781
        %v3784 = vunpack.c.l.s4 1934713408
        %v3785 = vunpack.c.0.s8 %v3784
        %v3786 = vlaneseq
        %v3787 = vshrl.u32 %v3786, 7
        %v3788 = vsub.s32 %v3785, %v3787
        %v3789 = vrot.slane %v3775, %v3788
        %v3790 = vcombine.high %v3766, 0.0
        %v3791 = vcombine.high %v3773, 0.0
        %v3792 = vcombine.high %v3782, 0.0
        %v3793 = vcombine.high %v3789, 0.0
        %v3794 = vcombine.low %v3276, %v3410
        %v3795 = vcombine.high %v3276, %v3410
        %v3797 = vunpack.c.l.s4 1983009808
        %v3798 = vunpack.c.0.s8 %v3797
        %v3799 = vlaneseq
        %v3800 = vshrl.u32 %v3799, 7
        %v3801 = vsub.s32 %v3798, %v3800
        %v3802 = vrot.slane %v3794, %v3801
        %v3804 = vunpack.c.l.s4 1983009808
        %v3805 = vunpack.c.0.s8 %v3804
        %v3806 = vlaneseq
        %v3807 = vshrl.u32 %v3806, 7
        %v3808 = vsub.s32 %v3805, %v3807
        %v3809 = vrot.slane %v3795, %v3808
        %v3810 = vcombine.low %v3343, %v3477
        %v3811 = vcombine.high %v3343, %v3477
        %v3813 = vunpack.c.l.s4 1983009808
        %v3814 = vunpack.c.0.s8 %v3813
        %v3815 = vlaneseq
        %v3816 = vshrl.u32 %v3815, 7
        %v3817 = vsub.s32 %v3814, %v3816
        %v3818 = vrot.slane %v3810, %v3817
        %v3820 = vunpack.c.l.s4 1983009808
        %v3821 = vunpack.c.0.s8 %v3820
        %v3822 = vlaneseq
        %v3823 = vshrl.u32 %v3822, 7
        %v3824 = vsub.s32 %v3821, %v3823
        %v3825 = vrot.slane %v3811, %v3824
        %v3826 = vcombine.low %v3802, %v3818
        %v3827 = vcombine.high %v3802, %v3818
        %v3829 = vunpack.c.l.s4 1934713408
        %v3830 = vunpack.c.0.s8 %v3829
        %v3831 = vlaneseq
        %v3832 = vshrl.u32 %v3831, 7
        %v3833 = vsub.s32 %v3830, %v3832
        %v3834 = vrot.slane %v3826, %v3833
        %v3836 = vunpack.c.l.s4 1934713408
        %v3837 = vunpack.c.0.s8 %v3836
        %v3838 = vlaneseq
        %v3839 = vshrl.u32 %v3838, 7
        %v3840 = vsub.s32 %v3837, %v3839
        %v3841 = vrot.slane %v3827, %v3840
        %v3842 = vcombine.low %v3809, %v3825
        %v3843 = vcombine.high %v3809, %v3825
        %v3845 = vunpack.c.l.s4 1934713408
        %v3846 = vunpack.c.0.s8 %v3845
        %v3847 = vlaneseq
        %v3848 = vshrl.u32 %v3847, 7
        %v3849 = vsub.s32 %v3846, %v3848
        %v3850 = vrot.slane %v3842, %v3849
        %v3852 = vunpack.c.l.s4 1934713408
        %v3853 = vunpack.c.0.s8 %v3852
        %v3854 = vlaneseq
        %v3855 = vshrl.u32 %v3854, 7
        %v3856 = vsub.s32 %v3853, %v3855
        %v3857 = vrot.slane %v3843, %v3856
        %v3858 = vcombine.high %v3834, 0.0
        %v3859 = vcombine.high %v3841, 0.0
        %v3860 = vcombine.high %v3850, 0.0
        %v3861 = vcombine.high %v3857, 0.0
        %v3862 = vcombine.low %v3280, %v3414
        %v3863 = vcombine.high %v3280, %v3414
        %v3865 = vunpack.c.l.s4 1983009808
        %v3866 = vunpack.c.0.s8 %v3865
        %v3867 = vlaneseq
        %v3868 = vshrl.u32 %v3867, 7
        %v3869 = vsub.s32 %v3866, %v3868
        %v3870 = vrot.slane %v3862, %v3869
        %v3872 = vunpack.c.l.s4 1983009808
        %v3873 = vunpack.c.0.s8 %v3872
        %v3874 = vlaneseq
        %v3875 = vshrl.u32 %v3874, 7
        %v3876 = vsub.s32 %v3873, %v3875
        %v3877 = vrot.slane %v3863, %v3876
        %v3878 = vcombine.low %v3347, %v3481
        %v3879 = vcombine.high %v3347, %v3481
        %v3881 = vunpack.c.l.s4 1983009808
        %v3882 = vunpack.c.0.s8 %v3881
        %v3883 = vlaneseq
        %v3884 = vshrl.u32 %v3883, 7
        %v3885 = vsub.s32 %v3882, %v3884
        %v3886 = vrot.slane %v3878, %v3885
        %v3888 = vunpack.c.l.s4 1983009808
        %v3889 = vunpack.c.0.s8 %v3888
        %v3890 = vlaneseq
        %v3891 = vshrl.u32 %v3890, 7
        %v3892 = vsub.s32 %v3889, %v3891
        %v3893 = vrot.slane %v3879, %v3892
        %v3894 = vcombine.low %v3870, %v3886
        %v3895 = vcombine.high %v3870, %v3886
        %v3897 = vunpack.c.l.s4 1934713408
        %v3898 = vunpack.c.0.s8 %v3897
        %v3899 = vlaneseq
        %v3900 = vshrl.u32 %v3899, 7
        %v3901 = vsub.s32 %v3898, %v3900
        %v3902 = vrot.slane %v3894, %v3901
        %v3904 = vunpack.c.l.s4 1934713408
        %v3905 = vunpack.c.0.s8 %v3904
        %v3906 = vlaneseq
        %v3907 = vshrl.u32 %v3906, 7
        %v3908 = vsub.s32 %v3905, %v3907
        %v3909 = vrot.slane %v3895, %v3908
        %v3910 = vcombine.low %v3877, %v3893
        %v3911 = vcombine.high %v3877, %v3893
        %v3913 = vunpack.c.l.s4 1934713408
        %v3914 = vunpack.c.0.s8 %v3913
        %v3915 = vlaneseq
        %v3916 = vshrl.u32 %v3915, 7
        %v3917 = vsub.s32 %v3914, %v3916
        %v3918 = vrot.slane %v3910, %v3917
        %v3920 = vunpack.c.l.s4 1934713408
        %v3921 = vunpack.c.0.s8 %v3920
        %v3922 = vlaneseq
        %v3923 = vshrl.u32 %v3922, 7
        %v3924 = vsub.s32 %v3921, %v3923
        %v3925 = vrot.slane %v3911, %v3924
        %v3926 = vcombine.high %v3902, 0.0
        %v3927 = vcombine.high %v3909, 0.0
        %v3928 = vcombine.high %v3918, 0.0
        %v3929 = vcombine.high %v3925, 0.0
        %v3930 = vcombine.low %v3284, %v3418
        %v3931 = vcombine.high %v3284, %v3418
        %v3933 = vunpack.c.l.s4 1983009808
        %v3934 = vunpack.c.0.s8 %v3933
        %v3935 = vlaneseq
        %v3936 = vshrl.u32 %v3935, 7
        %v3937 = vsub.s32 %v3934, %v3936
        %v3938 = vrot.slane %v3930, %v3937
        %v3940 = vunpack.c.l.s4 1983009808
        %v3941 = vunpack.c.0.s8 %v3940
        %v3942 = vlaneseq
        %v3943 = vshrl.u32 %v3942, 7
        %v3944 = vsub.s32 %v3941, %v3943
        %v3945 = vrot.slane %v3931, %v3944
        %v3946 = vcombine.low %v3351, %v3485
        %v3947 = vcombine.high %v3351, %v3485
        %v3949 = vunpack.c.l.s4 1983009808
        %v3950 = vunpack.c.0.s8 %v3949
        %v3951 = vlaneseq
        %v3952 = vshrl.u32 %v3951, 7
        %v3953 = vsub.s32 %v3950, %v3952
        %v3954 = vrot.slane %v3946, %v3953
        %v3956 = vunpack.c.l.s4 1983009808
        %v3957 = vunpack.c.0.s8 %v3956
        %v3958 = vlaneseq
        %v3959 = vshrl.u32 %v3958, 7
        %v3960 = vsub.s32 %v3957, %v3959
        %v3961 = vrot.slane %v3947, %v3960
        %v3962 = vcombine.low %v3938, %v3954
        %v3963 = vcombine.high %v3938, %v3954
        %v3965 = vunpack.c.l.s4 1934713408
        %v3966 = vunpack.c.0.s8 %v3965
        %v3967 = vlaneseq
        %v3968 = vshrl.u32 %v3967, 7
        %v3969 = vsub.s32 %v3966, %v3968
        %v3970 = vrot.slane %v3962, %v3969
        %v3972 = vunpack.c.l.s4 1934713408
        %v3973 = vunpack.c.0.s8 %v3972
        %v3974 = vlaneseq
        %v3975 = vshrl.u32 %v3974, 7
        %v3976 = vsub.s32 %v3973, %v3975
        %v3977 = vrot.slane %v3963, %v3976
        %v3978 = vcombine.low %v3945, %v3961
        %v3979 = vcombine.high %v3945, %v3961
        %v3981 = vunpack.c.l.s4 1934713408
        %v3982 = vunpack.c.0.s8 %v3981
        %v3983 = vlaneseq
        %v3984 = vshrl.u32 %v3983, 7
        %v3985 = vsub.s32 %v3982, %v3984
        %v3986 = vrot.slane %v3978, %v3985
        %v3988 = vunpack.c.l.s4 1934713408
        %v3989 = vunpack.c.0.s8 %v3988
        %v3990 = vlaneseq
        %v3991 = vshrl.u32 %v3990, 7
        %v3992 = vsub.s32 %v3989, %v3991
        %v3993 = vrot.slane %v3979, %v3992
        %v3994 = vcombine.high %v3970, 0.0
        %v3995 = vcombine.high %v3977, 0.0
        %v3996 = vcombine.high %v3986, 0.0
        %v3997 = vcombine.high %v3993, 0.0
        %v3998 = vcombine.low %v3288, %v3422
        %v3999 = vcombine.high %v3288, %v3422
        %v4001 = vunpack.c.l.s4 1983009808
        %v4002 = vunpack.c.0.s8 %v4001
        %v4003 = vlaneseq
        %v4004 = vshrl.u32 %v4003, 7
        %v4005 = vsub.s32 %v4002, %v4004
        %v4006 = vrot.slane %v3998, %v4005
        %v4008 = vunpack.c.l.s4 1983009808
        %v4009 = vunpack.c.0.s8 %v4008
        %v4010 = vlaneseq
        %v4011 = vshrl.u32 %v4010, 7
        %v4012 = vsub.s32 %v4009, %v4011
        %v4013 = vrot.slane %v3999, %v4012
        %v4014 = vcombine.low %v3355, %v3489
        %v4015 = vcombine.high %v3355, %v3489
        %v4017 = vunpack.c.l.s4 1983009808
        %v4018 = vunpack.c.0.s8 %v4017
        %v4019 = vlaneseq
        %v4020 = vshrl.u32 %v4019, 7
        %v4021 = vsub.s32 %v4018, %v4020
        %v4022 = vrot.slane %v4014, %v4021
        %v4024 = vunpack.c.l.s4 1983009808
        %v4025 = vunpack.c.0.s8 %v4024
        %v4026 = vlaneseq
        %v4027 = vshrl.u32 %v4026, 7
        %v4028 = vsub.s32 %v4025, %v4027
        %v4029 = vrot.slane %v4015, %v4028
        %v4030 = vcombine.low %v4006, %v4022
        %v4031 = vcombine.high %v4006, %v4022
        %v4033 = vunpack.c.l.s4 1934713408
        %v4034 = vunpack.c.0.s8 %v4033
        %v4035 = vlaneseq
        %v4036 = vshrl.u32 %v4035, 7
        %v4037 = vsub.s32 %v4034, %v4036
        %v4038 = vrot.slane %v4030, %v4037
        %v4040 = vunpack.c.l.s4 1934713408
        %v4041 = vunpack.c.0.s8 %v4040
        %v4042 = vlaneseq
        %v4043 = vshrl.u32 %v4042, 7
        %v4044 = vsub.s32 %v4041, %v4043
        %v4045 = vrot.slane %v4031, %v4044
        %v4046 = vcombine.low %v4013, %v4029
        %v4047 = vcombine.high %v4013, %v4029
        %v4049 = vunpack.c.l.s4 1934713408
        %v4050 = vunpack.c.0.s8 %v4049
        %v4051 = vlaneseq
        %v4052 = vshrl.u32 %v4051, 7
        %v4053 = vsub.s32 %v4050, %v4052
        %v4054 = vrot.slane %v4046, %v4053
        %v4056 = vunpack.c.l.s4 1934713408
        %v4057 = vunpack.c.0.s8 %v4056
        %v4058 = vlaneseq
        %v4059 = vshrl.u32 %v4058, 7
        %v4060 = vsub.s32 %v4057, %v4059
        %v4061 = vrot.slane %v4047, %v4060
        %v4062 = vcombine.high %v4038, 0.0
        %v4063 = vcombine.high %v4045, 0.0
        %v4064 = vcombine.high %v4054, 0.0
        %v4065 = vcombine.high %v4061, 0.0
        %v4066 = vcombine.low %v3292, %v3426
        %v4067 = vcombine.high %v3292, %v3426
        %v4069 = vunpack.c.l.s4 1983009808
        %v4070 = vunpack.c.0.s8 %v4069
        %v4071 = vlaneseq
        %v4072 = vshrl.u32 %v4071, 7
        %v4073 = vsub.s32 %v4070, %v4072
        %v4074 = vrot.slane %v4066, %v4073
        %v4076 = vunpack.c.l.s4 1983009808
        %v4077 = vunpack.c.0.s8 %v4076
        %v4078 = vlaneseq
        %v4079 = vshrl.u32 %v4078, 7
        %v4080 = vsub.s32 %v4077, %v4079
        %v4081 = vrot.slane %v4067, %v4080
        %v4082 = vcombine.low %v3359, %v3493
        %v4083 = vcombine.high %v3359, %v3493
        %v4085 = vunpack.c.l.s4 1983009808
        %v4086 = vunpack.c.0.s8 %v4085
        %v4087 = vlaneseq
        %v4088 = vshrl.u32 %v4087, 7
        %v4089 = vsub.s32 %v4086, %v4088
        %v4090 = vrot.slane %v4082, %v4089
        %v4092 = vunpack.c.l.s4 1983009808
        %v4093 = vunpack.c.0.s8 %v4092
        %v4094 = vlaneseq
        %v4095 = vshrl.u32 %v4094, 7
        %v4096 = vsub.s32 %v4093, %v4095
        %v4097 = vrot.slane %v4083, %v4096
        %v4098 = vcombine.low %v4074, %v4090
        %v4099 = vcombine.high %v4074, %v4090
        %v4101 = vunpack.c.l.s4 1934713408
        %v4102 = vunpack.c.0.s8 %v4101
        %v4103 = vlaneseq
        %v4104 = vshrl.u32 %v4103, 7
        %v4105 = vsub.s32 %v4102, %v4104
        %v4106 = vrot.slane %v4098, %v4105
        %v4108 = vunpack.c.l.s4 1934713408
        %v4109 = vunpack.c.0.s8 %v4108
        %v4110 = vlaneseq
        %v4111 = vshrl.u32 %v4110, 7
        %v4112 = vsub.s32 %v4109, %v4111
        %v4113 = vrot.slane %v4099, %v4112
        %v4114 = vcombine.low %v4081, %v4097
        %v4115 = vcombine.high %v4081, %v4097
        %v4117 = vunpack.c.l.s4 1934713408
        %v4118 = vunpack.c.0.s8 %v4117
        %v4119 = vlaneseq
        %v4120 = vshrl.u32 %v4119, 7
        %v4121 = vsub.s32 %v4118, %v4120
        %v4122 = vrot.slane %v4114, %v4121
        %v4124 = vunpack.c.l.s4 1934713408
        %v4125 = vunpack.c.0.s8 %v4124
        %v4126 = vlaneseq
        %v4127 = vshrl.u32 %v4126, 7
        %v4128 = vsub.s32 %v4125, %v4127
        %v4129 = vrot.slane %v4115, %v4128
        %v4130 = vcombine.high %v4106, 0.0
        %v4131 = vcombine.high %v4113, 0.0
        %v4132 = vcombine.high %v4122, 0.0
        %v4133 = vcombine.high %v4129, 0.0
        %v4134 = vcombine.low %v3296, %v3430
        %v4135 = vcombine.high %v3296, %v3430
        %v4137 = vunpack.c.l.s4 1983009808
        %v4138 = vunpack.c.0.s8 %v4137
        %v4139 = vlaneseq
        %v4140 = vshrl.u32 %v4139, 7
        %v4141 = vsub.s32 %v4138, %v4140
        %v4142 = vrot.slane %v4134, %v4141
        %v4144 = vunpack.c.l.s4 1983009808
        %v4145 = vunpack.c.0.s8 %v4144
        %v4146 = vlaneseq
        %v4147 = vshrl.u32 %v4146, 7
        %v4148 = vsub.s32 %v4145, %v4147
        %v4149 = vrot.slane %v4135, %v4148
        %v4150 = vcombine.low %v3363, %v3497
        %v4151 = vcombine.high %v3363, %v3497
        %v4153 = vunpack.c.l.s4 1983009808
        %v4154 = vunpack.c.0.s8 %v4153
        %v4155 = vlaneseq
        %v4156 = vshrl.u32 %v4155, 7
        %v4157 = vsub.s32 %v4154, %v4156
        %v4158 = vrot.slane %v4150, %v4157
        %v4160 = vunpack.c.l.s4 1983009808
        %v4161 = vunpack.c.0.s8 %v4160
        %v4162 = vlaneseq
        %v4163 = vshrl.u32 %v4162, 7
        %v4164 = vsub.s32 %v4161, %v4163
        %v4165 = vrot.slane %v4151, %v4164
        %v4166 = vcombine.low %v4142, %v4158
        %v4167 = vcombine.high %v4142, %v4158
        %v4169 = vunpack.c.l.s4 1934713408
        %v4170 = vunpack.c.0.s8 %v4169
        %v4171 = vlaneseq
        %v4172 = vshrl.u32 %v4171, 7
        %v4173 = vsub.s32 %v4170, %v4172
        %v4174 = vrot.slane %v4166, %v4173
        %v4176 = vunpack.c.l.s4 1934713408
        %v4177 = vunpack.c.0.s8 %v4176
        %v4178 = vlaneseq
        %v4179 = vshrl.u32 %v4178, 7
        %v4180 = vsub.s32 %v4177, %v4179
        %v4181 = vrot.slane %v4167, %v4180
        %v4182 = vcombine.low %v4149, %v4165
        %v4183 = vcombine.high %v4149, %v4165
        %v4185 = vunpack.c.l.s4 1934713408
        %v4186 = vunpack.c.0.s8 %v4185
        %v4187 = vlaneseq
        %v4188 = vshrl.u32 %v4187, 7
        %v4189 = vsub.s32 %v4186, %v4188
        %v4190 = vrot.slane %v4182, %v4189
        %v4192 = vunpack.c.l.s4 1934713408
        %v4193 = vunpack.c.0.s8 %v4192
        %v4194 = vlaneseq
        %v4195 = vshrl.u32 %v4194, 7
        %v4196 = vsub.s32 %v4193, %v4195
        %v4197 = vrot.slane %v4183, %v4196
        %v4198 = vcombine.high %v4174, 0.0
        %v4199 = vcombine.high %v4181, 0.0
        %v4200 = vcombine.high %v4190, 0.0
        %v4201 = vcombine.high %v4197, 0.0
        %v4202 = vcombine.low %v3300, %v3434
        %v4203 = vcombine.high %v3300, %v3434
        %v4205 = vunpack.c.l.s4 1983009808
        %v4206 = vunpack.c.0.s8 %v4205
        %v4207 = vlaneseq
        %v4208 = vshrl.u32 %v4207, 7
        %v4209 = vsub.s32 %v4206, %v4208
        %v4210 = vrot.slane %v4202, %v4209
        %v4212 = vunpack.c.l.s4 1983009808
        %v4213 = vunpack.c.0.s8 %v4212
        %v4214 = vlaneseq
        %v4215 = vshrl.u32 %v4214, 7
        %v4216 = vsub.s32 %v4213, %v4215
        %v4217 = vrot.slane %v4203, %v4216
        %v4218 = vcombine.low %v3367, %v3501
        %v4219 = vcombine.high %v3367, %v3501
        %v4221 = vunpack.c.l.s4 1983009808
        %v4222 = vunpack.c.0.s8 %v4221
        %v4223 = vlaneseq
        %v4224 = vshrl.u32 %v4223, 7
        %v4225 = vsub.s32 %v4222, %v4224
        %v4226 = vrot.slane %v4218, %v4225
        %v4228 = vunpack.c.l.s4 1983009808
        %v4229 = vunpack.c.0.s8 %v4228
        %v4230 = vlaneseq
        %v4231 = vshrl.u32 %v4230, 7
        %v4232 = vsub.s32 %v4229, %v4231
        %v4233 = vrot.slane %v4219, %v4232
        %v4234 = vcombine.low %v4210, %v4226
        %v4235 = vcombine.high %v4210, %v4226
        %v4237 = vunpack.c.l.s4 1934713408
        %v4238 = vunpack.c.0.s8 %v4237
        %v4239 = vlaneseq
        %v4240 = vshrl.u32 %v4239, 7
        %v4241 = vsub.s32 %v4238, %v4240
        %v4242 = vrot.slane %v4234, %v4241
        %v4244 = vunpack.c.l.s4 1934713408
        %v4245 = vunpack.c.0.s8 %v4244
        %v4246 = vlaneseq
        %v4247 = vshrl.u32 %v4246, 7
        %v4248 = vsub.s32 %v4245, %v4247
        %v4249 = vrot.slane %v4235, %v4248
        %v4250 = vcombine.low %v4217, %v4233
        %v4251 = vcombine.high %v4217, %v4233
        %v4253 = vunpack.c.l.s4 1934713408
        %v4254 = vunpack.c.0.s8 %v4253
        %v4255 = vlaneseq
        %v4256 = vshrl.u32 %v4255, 7
        %v4257 = vsub.s32 %v4254, %v4256
        %v4258 = vrot.slane %v4250, %v4257
        %v4260 = vunpack.c.l.s4 1934713408
        %v4261 = vunpack.c.0.s8 %v4260
        %v4262 = vlaneseq
        %v4263 = vshrl.u32 %v4262, 7
        %v4264 = vsub.s32 %v4261, %v4263
        %v4265 = vrot.slane %v4251, %v4264
        %v4266 = vcombine.high %v4242, 0.0
        %v4267 = vcombine.high %v4249, 0.0
        %v4268 = vcombine.high %v4258, 0.0
        %v4269 = vcombine.high %v4265, 0.0
        %v4270 = vcombine.low %v3304, %v3438
        %v4271 = vcombine.high %v3304, %v3438
        %v4273 = vunpack.c.l.s4 1983009808
        %v4274 = vunpack.c.0.s8 %v4273
        %v4275 = vlaneseq
        %v4276 = vshrl.u32 %v4275, 7
        %v4277 = vsub.s32 %v4274, %v4276
        %v4278 = vrot.slane %v4270, %v4277
        %v4280 = vunpack.c.l.s4 1983009808
        %v4281 = vunpack.c.0.s8 %v4280
        %v4282 = vlaneseq
        %v4283 = vshrl.u32 %v4282, 7
        %v4284 = vsub.s32 %v4281, %v4283
        %v4285 = vrot.slane %v4271, %v4284
        %v4286 = vcombine.low %v3371, %v3505
        %v4287 = vcombine.high %v3371, %v3505
        %v4289 = vunpack.c.l.s4 1983009808
        %v4290 = vunpack.c.0.s8 %v4289
        %v4291 = vlaneseq
        %v4292 = vshrl.u32 %v4291, 7
        %v4293 = vsub.s32 %v4290, %v4292
        %v4294 = vrot.slane %v4286, %v4293
        %v4296 = vunpack.c.l.s4 1983009808
        %v4297 = vunpack.c.0.s8 %v4296
        %v4298 = vlaneseq
        %v4299 = vshrl.u32 %v4298, 7
        %v4300 = vsub.s32 %v4297, %v4299
        %v4301 = vrot.slane %v4287, %v4300
        %v4302 = vcombine.low %v4278, %v4294
        %v4303 = vcombine.high %v4278, %v4294
        %v4305 = vunpack.c.l.s4 1934713408
        %v4306 = vunpack.c.0.s8 %v4305
        %v4307 = vlaneseq
        %v4308 = vshrl.u32 %v4307, 7
        %v4309 = vsub.s32 %v4306, %v4308
        %v4310 = vrot.slane %v4302, %v4309
        %v4312 = vunpack.c.l.s4 1934713408
        %v4313 = vunpack.c.0.s8 %v4312
        %v4314 = vlaneseq
        %v4315 = vshrl.u32 %v4314, 7
        %v4316 = vsub.s32 %v4313, %v4315
        %v4317 = vrot.slane %v4303, %v4316
        %v4318 = vcombine.low %v4285, %v4301
        %v4319 = vcombine.high %v4285, %v4301
        %v4321 = vunpack.c.l.s4 1934713408
        %v4322 = vunpack.c.0.s8 %v4321
        %v4323 = vlaneseq
        %v4324 = vshrl.u32 %v4323, 7
        %v4325 = vsub.s32 %v4322, %v4324
        %v4326 = vrot.slane %v4318, %v4325
        %v4328 = vunpack.c.l.s4 1934713408
        %v4329 = vunpack.c.0.s8 %v4328
        %v4330 = vlaneseq
        %v4331 = vshrl.u32 %v4330, 7
        %v4332 = vsub.s32 %v4329, %v4331
        %v4333 = vrot.slane %v4319, %v4332
        %v4334 = vcombine.high %v4310, 0.0
        %v4335 = vcombine.high %v4317, 0.0
        %v4336 = vcombine.high %v4326, 0.0
        %v4337 = vcombine.high %v4333, 0.0
        %v4338 = vcombine.low %v3308, %v3442
        %v4339 = vcombine.high %v3308, %v3442
        %v4341 = vunpack.c.l.s4 1983009808
        %v4342 = vunpack.c.0.s8 %v4341
        %v4343 = vlaneseq
        %v4344 = vshrl.u32 %v4343, 7
        %v4345 = vsub.s32 %v4342, %v4344
        %v4346 = vrot.slane %v4338, %v4345
        %v4348 = vunpack.c.l.s4 1983009808
        %v4349 = vunpack.c.0.s8 %v4348
        %v4350 = vlaneseq
        %v4351 = vshrl.u32 %v4350, 7
        %v4352 = vsub.s32 %v4349, %v4351
        %v4353 = vrot.slane %v4339, %v4352
        %v4354 = vcombine.low %v3375, %v3509
        %v4355 = vcombine.high %v3375, %v3509
        %v4357 = vunpack.c.l.s4 1983009808
        %v4358 = vunpack.c.0.s8 %v4357
        %v4359 = vlaneseq
        %v4360 = vshrl.u32 %v4359, 7
        %v4361 = vsub.s32 %v4358, %v4360
        %v4362 = vrot.slane %v4354, %v4361
        %v4364 = vunpack.c.l.s4 1983009808
        %v4365 = vunpack.c.0.s8 %v4364
        %v4366 = vlaneseq
        %v4367 = vshrl.u32 %v4366, 7
        %v4368 = vsub.s32 %v4365, %v4367
        %v4369 = vrot.slane %v4355, %v4368
        %v4370 = vcombine.low %v4346, %v4362
        %v4371 = vcombine.high %v4346, %v4362
        %v4373 = vunpack.c.l.s4 1934713408
        %v4374 = vunpack.c.0.s8 %v4373
        %v4375 = vlaneseq
        %v4376 = vshrl.u32 %v4375, 7
        %v4377 = vsub.s32 %v4374, %v4376
        %v4378 = vrot.slane %v4370, %v4377
        %v4380 = vunpack.c.l.s4 1934713408
        %v4381 = vunpack.c.0.s8 %v4380
        %v4382 = vlaneseq
        %v4383 = vshrl.u32 %v4382, 7
        %v4384 = vsub.s32 %v4381, %v4383
        %v4385 = vrot.slane %v4371, %v4384
        %v4386 = vcombine.low %v4353, %v4369
        %v4387 = vcombine.high %v4353, %v4369
        %v4389 = vunpack.c.l.s4 1934713408
        %v4390 = vunpack.c.0.s8 %v4389
        %v4391 = vlaneseq
        %v4392 = vshrl.u32 %v4391, 7
        %v4393 = vsub.s32 %v4390, %v4392
        %v4394 = vrot.slane %v4386, %v4393
        %v4396 = vunpack.c.l.s4 1934713408
        %v4397 = vunpack.c.0.s8 %v4396
        %v4398 = vlaneseq
        %v4399 = vshrl.u32 %v4398, 7
        %v4400 = vsub.s32 %v4397, %v4399
        %v4401 = vrot.slane %v4387, %v4400
        %v4402 = vcombine.high %v4378, 0.0
        %v4403 = vcombine.high %v4385, 0.0
        %v4404 = vcombine.high %v4394, 0.0
        %v4405 = vcombine.high %v4401, 0.0
        %v4406 = vcombine.low %v3312, %v3446
        %v4407 = vcombine.high %v3312, %v3446
        %v4409 = vunpack.c.l.s4 1983009808
        %v4410 = vunpack.c.0.s8 %v4409
        %v4411 = vlaneseq
        %v4412 = vshrl.u32 %v4411, 7
        %v4413 = vsub.s32 %v4410, %v4412
        %v4414 = vrot.slane %v4406, %v4413
        %v4416 = vunpack.c.l.s4 1983009808
        %v4417 = vunpack.c.0.s8 %v4416
        %v4418 = vlaneseq
        %v4419 = vshrl.u32 %v4418, 7
        %v4420 = vsub.s32 %v4417, %v4419
        %v4421 = vrot.slane %v4407, %v4420
        %v4422 = vcombine.low %v3379, %v3513
        %v4423 = vcombine.high %v3379, %v3513
        %v4425 = vunpack.c.l.s4 1983009808
        %v4426 = vunpack.c.0.s8 %v4425
        %v4427 = vlaneseq
        %v4428 = vshrl.u32 %v4427, 7
        %v4429 = vsub.s32 %v4426, %v4428
        %v4430 = vrot.slane %v4422, %v4429
        %v4432 = vunpack.c.l.s4 1983009808
        %v4433 = vunpack.c.0.s8 %v4432
        %v4434 = vlaneseq
        %v4435 = vshrl.u32 %v4434, 7
        %v4436 = vsub.s32 %v4433, %v4435
        %v4437 = vrot.slane %v4423, %v4436
        %v4438 = vcombine.low %v4414, %v4430
        %v4439 = vcombine.high %v4414, %v4430
        %v4441 = vunpack.c.l.s4 1934713408
        %v4442 = vunpack.c.0.s8 %v4441
        %v4443 = vlaneseq
        %v4444 = vshrl.u32 %v4443, 7
        %v4445 = vsub.s32 %v4442, %v4444
        %v4446 = vrot.slane %v4438, %v4445
        %v4448 = vunpack.c.l.s4 1934713408
        %v4449 = vunpack.c.0.s8 %v4448
        %v4450 = vlaneseq
        %v4451 = vshrl.u32 %v4450, 7
        %v4452 = vsub.s32 %v4449, %v4451
        %v4453 = vrot.slane %v4439, %v4452
        %v4454 = vcombine.low %v4421, %v4437
        %v4455 = vcombine.high %v4421, %v4437
        %v4457 = vunpack.c.l.s4 1934713408
        %v4458 = vunpack.c.0.s8 %v4457
        %v4459 = vlaneseq
        %v4460 = vshrl.u32 %v4459, 7
        %v4461 = vsub.s32 %v4458, %v4460
        %v4462 = vrot.slane %v4454, %v4461
        %v4464 = vunpack.c.l.s4 1934713408
        %v4465 = vunpack.c.0.s8 %v4464
        %v4466 = vlaneseq
        %v4467 = vshrl.u32 %v4466, 7
        %v4468 = vsub.s32 %v4465, %v4467
        %v4469 = vrot.slane %v4455, %v4468
        %v4470 = vcombine.high %v4446, 0.0
        %v4471 = vcombine.high %v4453, 0.0
        %v4472 = vcombine.high %v4462, 0.0
        %v4473 = vcombine.high %v4469, 0.0
        %v4474 = vcombine.low %v3316, %v3450
        %v4475 = vcombine.high %v3316, %v3450
        %v4477 = vunpack.c.l.s4 1983009808
        %v4478 = vunpack.c.0.s8 %v4477
        %v4479 = vlaneseq
        %v4480 = vshrl.u32 %v4479, 7
        %v4481 = vsub.s32 %v4478, %v4480
        %v4482 = vrot.slane %v4474, %v4481
        %v4484 = vunpack.c.l.s4 1983009808
        %v4485 = vunpack.c.0.s8 %v4484
        %v4486 = vlaneseq
        %v4487 = vshrl.u32 %v4486, 7
        %v4488 = vsub.s32 %v4485, %v4487
        %v4489 = vrot.slane %v4475, %v4488
        %v4490 = vcombine.low %v3383, %v3517
        %v4491 = vcombine.high %v3383, %v3517
        %v4493 = vunpack.c.l.s4 1983009808
        %v4494 = vunpack.c.0.s8 %v4493
        %v4495 = vlaneseq
        %v4496 = vshrl.u32 %v4495, 7
        %v4497 = vsub.s32 %v4494, %v4496
        %v4498 = vrot.slane %v4490, %v4497
        %v4500 = vunpack.c.l.s4 1983009808
        %v4501 = vunpack.c.0.s8 %v4500
        %v4502 = vlaneseq
        %v4503 = vshrl.u32 %v4502, 7
        %v4504 = vsub.s32 %v4501, %v4503
        %v4505 = vrot.slane %v4491, %v4504
        %v4506 = vcombine.low %v4482, %v4498
        %v4507 = vcombine.high %v4482, %v4498
        %v4509 = vunpack.c.l.s4 1934713408
        %v4510 = vunpack.c.0.s8 %v4509
        %v4511 = vlaneseq
        %v4512 = vshrl.u32 %v4511, 7
        %v4513 = vsub.s32 %v4510, %v4512
        %v4514 = vrot.slane %v4506, %v4513
        %v4516 = vunpack.c.l.s4 1934713408
        %v4517 = vunpack.c.0.s8 %v4516
        %v4518 = vlaneseq
        %v4519 = vshrl.u32 %v4518, 7
        %v4520 = vsub.s32 %v4517, %v4519
        %v4521 = vrot.slane %v4507, %v4520
        %v4522 = vcombine.low %v4489, %v4505
        %v4523 = vcombine.high %v4489, %v4505
        %v4525 = vunpack.c.l.s4 1934713408
        %v4526 = vunpack.c.0.s8 %v4525
        %v4527 = vlaneseq
        %v4528 = vshrl.u32 %v4527, 7
        %v4529 = vsub.s32 %v4526, %v4528
        %v4530 = vrot.slane %v4522, %v4529
        %v4532 = vunpack.c.l.s4 1934713408
        %v4533 = vunpack.c.0.s8 %v4532
        %v4534 = vlaneseq
        %v4535 = vshrl.u32 %v4534, 7
        %v4536 = vsub.s32 %v4533, %v4535
        %v4537 = vrot.slane %v4523, %v4536
        %v4538 = vcombine.high %v4514, 0.0
        %v4539 = vcombine.high %v4521, 0.0
        %v4540 = vcombine.high %v4530, 0.0
        %v4541 = vcombine.high %v4537, 0.0
        %v4542 = vcombine.low %v3320, %v3454
        %v4543 = vcombine.high %v3320, %v3454
        %v4545 = vunpack.c.l.s4 1983009808
        %v4546 = vunpack.c.0.s8 %v4545
        %v4547 = vlaneseq
        %v4548 = vshrl.u32 %v4547, 7
        %v4549 = vsub.s32 %v4546, %v4548
        %v4550 = vrot.slane %v4542, %v4549
        %v4552 = vunpack.c.l.s4 1983009808
        %v4553 = vunpack.c.0.s8 %v4552
        %v4554 = vlaneseq
        %v4555 = vshrl.u32 %v4554, 7
        %v4556 = vsub.s32 %v4553, %v4555
        %v4557 = vrot.slane %v4543, %v4556
        %v4558 = vcombine.low %v3387, %v3521
        %v4559 = vcombine.high %v3387, %v3521
        %v4561 = vunpack.c.l.s4 1983009808
        %v4562 = vunpack.c.0.s8 %v4561
        %v4563 = vlaneseq
        %v4564 = vshrl.u32 %v4563, 7
        %v4565 = vsub.s32 %v4562, %v4564
        %v4566 = vrot.slane %v4558, %v4565
        %v4568 = vunpack.c.l.s4 1983009808
        %v4569 = vunpack.c.0.s8 %v4568
        %v4570 = vlaneseq
        %v4571 = vshrl.u32 %v4570, 7
        %v4572 = vsub.s32 %v4569, %v4571
        %v4573 = vrot.slane %v4559, %v4572
        %v4574 = vcombine.low %v4550, %v4566
        %v4575 = vcombine.high %v4550, %v4566
        %v4577 = vunpack.c.l.s4 1934713408
        %v4578 = vunpack.c.0.s8 %v4577
        %v4579 = vlaneseq
        %v4580 = vshrl.u32 %v4579, 7
        %v4581 = vsub.s32 %v4578, %v4580
        %v4582 = vrot.slane %v4574, %v4581
        %v4584 = vunpack.c.l.s4 1934713408
        %v4585 = vunpack.c.0.s8 %v4584
        %v4586 = vlaneseq
        %v4587 = vshrl.u32 %v4586, 7
        %v4588 = vsub.s32 %v4585, %v4587
        %v4589 = vrot.slane %v4575, %v4588
        %v4590 = vcombine.low %v4557, %v4573
        %v4591 = vcombine.high %v4557, %v4573
        %v4593 = vunpack.c.l.s4 1934713408
        %v4594 = vunpack.c.0.s8 %v4593
        %v4595 = vlaneseq
        %v4596 = vshrl.u32 %v4595, 7
        %v4597 = vsub.s32 %v4594, %v4596
        %v4598 = vrot.slane %v4590, %v4597
        %v4600 = vunpack.c.l.s4 1934713408
        %v4601 = vunpack.c.0.s8 %v4600
        %v4602 = vlaneseq
        %v4603 = vshrl.u32 %v4602, 7
        %v4604 = vsub.s32 %v4601, %v4603
        %v4605 = vrot.slane %v4591, %v4604
        %v4606 = vcombine.high %v4582, 0.0
        %v4607 = vcombine.high %v4589, 0.0
        %v4608 = vcombine.high %v4598, 0.0
        %v4609 = vcombine.high %v4605, 0.0
        %4611 = vrot.lane.b32.xlu0 %v3586, 2
        %v4612 = vpop.permute.xlu0 %4611
        %4615 = vrot.lane.b32.xlu0 %v3569, 4
        %v4616 = vpop.permute.xlu0 %4615
        %4619 = vrot.lane.b32.xlu0 %v3587, 6
        %v4620 = vpop.permute.xlu0 %4619
        %4623 = vrot.lane.b32.xlu0 %v3578, 8
        %v4624 = vpop.permute.xlu0 %4623
        %4627 = vrot.lane.b32.xlu0 %v3588, 10
        %v4628 = vpop.permute.xlu0 %4627
        %4631 = vrot.lane.b32.xlu0 %v3585, 12
        %v4632 = vpop.permute.xlu0 %4631
        %4635 = vrot.lane.b32.xlu0 %v3589, 14
        %v4636 = vpop.permute.xlu0 %4635
        %4639 = vrot.lane.b32.xlu0 %v3630, 16
        %v4640 = vpop.permute.xlu0 %4639
        %4643 = vrot.lane.b32.xlu0 %v3654, 18
        %v4644 = vpop.permute.xlu0 %4643
        %4647 = vrot.lane.b32.xlu0 %v3637, 20
        %v4648 = vpop.permute.xlu0 %4647
        %4651 = vrot.lane.b32.xlu0 %v3655, 22
        %v4652 = vpop.permute.xlu0 %4651
        %4655 = vrot.lane.b32.xlu0 %v3646, 24
        %v4656 = vpop.permute.xlu0 %4655
        %4659 = vrot.lane.b32.xlu0 %v3656, 26
        %v4660 = vpop.permute.xlu0 %4659
        %4663 = vrot.lane.b32.xlu0 %v3653, 28
        %v4664 = vpop.permute.xlu0 %4663
        %4667 = vrot.lane.b32.xlu0 %v3657, 30
        %v4668 = vpop.permute.xlu0 %4667
        %4671 = vrot.lane.b32.xlu0 %v3698, 32
        %v4672 = vpop.permute.xlu0 %4671
        %4675 = vrot.lane.b32.xlu0 %v3722, 34
        %v4676 = vpop.permute.xlu0 %4675
        %4679 = vrot.lane.b32.xlu0 %v3705, 36
        %v4680 = vpop.permute.xlu0 %4679
        %4683 = vrot.lane.b32.xlu0 %v3723, 38
        %v4684 = vpop.permute.xlu0 %4683
        %4687 = vrot.lane.b32.xlu0 %v3714, 40
        %v4688 = vpop.permute.xlu0 %4687
        %4691 = vrot.lane.b32.xlu0 %v3724, 42
        %v4692 = vpop.permute.xlu0 %4691
        %4695 = vrot.lane.b32.xlu0 %v3721, 44
        %v4696 = vpop.permute.xlu0 %4695
        %4699 = vrot.lane.b32.xlu0 %v3725, 46
        %v4700 = vpop.permute.xlu0 %4699
        %4703 = vrot.lane.b32.xlu0 %v3766, 48
        %v4704 = vpop.permute.xlu0 %4703
        %4707 = vrot.lane.b32.xlu0 %v3790, 50
        %v4708 = vpop.permute.xlu0 %4707
        %4711 = vrot.lane.b32.xlu0 %v3773, 52
        %v4712 = vpop.permute.xlu0 %4711
        %4715 = vrot.lane.b32.xlu0 %v3791, 54
        %v4716 = vpop.permute.xlu0 %4715
        %4719 = vrot.lane.b32.xlu0 %v3782, 56
        %v4720 = vpop.permute.xlu0 %4719
        %4723 = vrot.lane.b32.xlu0 %v3792, 58
        %v4724 = vpop.permute.xlu0 %4723
        %4727 = vrot.lane.b32.xlu0 %v3789, 60
        %v4728 = vpop.permute.xlu0 %4727
        %4731 = vrot.lane.b32.xlu0 %v3793, 62
        %v4732 = vpop.permute.xlu0 %4731
        %4735 = vrot.lane.b32.xlu0 %v3834, 64
        %v4736 = vpop.permute.xlu0 %4735
        %4739 = vrot.lane.b32.xlu0 %v3858, 66
        %v4740 = vpop.permute.xlu0 %4739
        %4743 = vrot.lane.b32.xlu0 %v3841, 68
        %v4744 = vpop.permute.xlu0 %4743
        %4747 = vrot.lane.b32.xlu0 %v3859, 70
        %v4748 = vpop.permute.xlu0 %4747
        %4751 = vrot.lane.b32.xlu0 %v3850, 72
        %v4752 = vpop.permute.xlu0 %4751
        %4755 = vrot.lane.b32.xlu0 %v3860, 74
        %v4756 = vpop.permute.xlu0 %4755
        %4759 = vrot.lane.b32.xlu0 %v3857, 76
        %v4760 = vpop.permute.xlu0 %4759
        %4763 = vrot.lane.b32.xlu0 %v3861, 78
        %v4764 = vpop.permute.xlu0 %4763
        %4767 = vrot.lane.b32.xlu0 %v3902, 80
        %v4768 = vpop.permute.xlu0 %4767
        %4771 = vrot.lane.b32.xlu0 %v3926, 82
        %v4772 = vpop.permute.xlu0 %4771
        %4775 = vrot.lane.b32.xlu0 %v3909, 84
        %v4776 = vpop.permute.xlu0 %4775
        %4779 = vrot.lane.b32.xlu0 %v3927, 86
        %v4780 = vpop.permute.xlu0 %4779
        %4783 = vrot.lane.b32.xlu0 %v3918, 88
        %v4784 = vpop.permute.xlu0 %4783
        %4787 = vrot.lane.b32.xlu0 %v3928, 90
        %v4788 = vpop.permute.xlu0 %4787
        %4791 = vrot.lane.b32.xlu0 %v3925, 92
        %v4792 = vpop.permute.xlu0 %4791
        %4795 = vrot.lane.b32.xlu0 %v3929, 94
        %v4796 = vpop.permute.xlu0 %4795
        %4799 = vrot.lane.b32.xlu0 %v3970, 96
        %v4800 = vpop.permute.xlu0 %4799
        %4803 = vrot.lane.b32.xlu0 %v3994, 98
        %v4804 = vpop.permute.xlu0 %4803
        %4807 = vrot.lane.b32.xlu0 %v3977, 100
        %v4808 = vpop.permute.xlu0 %4807
        %4811 = vrot.lane.b32.xlu0 %v3995, 102
        %v4812 = vpop.permute.xlu0 %4811
        %4815 = vrot.lane.b32.xlu0 %v3986, 104
        %v4816 = vpop.permute.xlu0 %4815
        %4819 = vrot.lane.b32.xlu0 %v3996, 106
        %v4820 = vpop.permute.xlu0 %4819
        %4823 = vrot.lane.b32.xlu0 %v3993, 108
        %v4824 = vpop.permute.xlu0 %4823
        %4827 = vrot.lane.b32.xlu0 %v3997, 110
        %v4828 = vpop.permute.xlu0 %4827
        %4831 = vrot.lane.b32.xlu0 %v4038, 112
        %v4832 = vpop.permute.xlu0 %4831
        %4835 = vrot.lane.b32.xlu0 %v4062, 114
        %v4836 = vpop.permute.xlu0 %4835
        %4839 = vrot.lane.b32.xlu0 %v4045, 116
        %v4840 = vpop.permute.xlu0 %4839
        %4843 = vrot.lane.b32.xlu0 %v4063, 118
        %v4844 = vpop.permute.xlu0 %4843
        %4847 = vrot.lane.b32.xlu0 %v4054, 120
        %v4848 = vpop.permute.xlu0 %4847
        %4851 = vrot.lane.b32.xlu0 %v4064, 122
        %v4852 = vpop.permute.xlu0 %4851
        %4855 = vrot.lane.b32.xlu0 %v4061, 124
        %v4856 = vpop.permute.xlu0 %4855
        %4859 = vrot.lane.b32.xlu0 %v4065, 126
        %v4860 = vpop.permute.xlu0 %4859
        %4863 = vrot.lane.b32.xlu0 %v4130, 2
        %v4864 = vpop.permute.xlu0 %4863
        %4867 = vrot.lane.b32.xlu0 %v4113, 4
        %v4868 = vpop.permute.xlu0 %4867
        %4871 = vrot.lane.b32.xlu0 %v4131, 6
        %v4872 = vpop.permute.xlu0 %4871
        %4875 = vrot.lane.b32.xlu0 %v4122, 8
        %v4876 = vpop.permute.xlu0 %4875
        %4879 = vrot.lane.b32.xlu0 %v4132, 10
        %v4880 = vpop.permute.xlu0 %4879
        %4883 = vrot.lane.b32.xlu0 %v4129, 12
        %v4884 = vpop.permute.xlu0 %4883
        %4887 = vrot.lane.b32.xlu0 %v4133, 14
        %v4888 = vpop.permute.xlu0 %4887
        %4891 = vrot.lane.b32.xlu0 %v4174, 16
        %v4892 = vpop.permute.xlu0 %4891
        %4895 = vrot.lane.b32.xlu0 %v4198, 18
        %v4896 = vpop.permute.xlu0 %4895
        %4899 = vrot.lane.b32.xlu0 %v4181, 20
        %v4900 = vpop.permute.xlu0 %4899
        %4903 = vrot.lane.b32.xlu0 %v4199, 22
        %v4904 = vpop.permute.xlu0 %4903
        %4907 = vrot.lane.b32.xlu0 %v4190, 24
        %v4908 = vpop.permute.xlu0 %4907
        %4911 = vrot.lane.b32.xlu0 %v4200, 26
        %v4912 = vpop.permute.xlu0 %4911
        %4915 = vrot.lane.b32.xlu0 %v4197, 28
        %v4916 = vpop.permute.xlu0 %4915
        %4919 = vrot.lane.b32.xlu0 %v4201, 30
        %v4920 = vpop.permute.xlu0 %4919
        %4923 = vrot.lane.b32.xlu0 %v4242, 32
        %v4924 = vpop.permute.xlu0 %4923
        %4927 = vrot.lane.b32.xlu0 %v4266, 34
        %v4928 = vpop.permute.xlu0 %4927
        %4931 = vrot.lane.b32.xlu0 %v4249, 36
        %v4932 = vpop.permute.xlu0 %4931
        %4935 = vrot.lane.b32.xlu0 %v4267, 38
        %v4936 = vpop.permute.xlu0 %4935
        %4939 = vrot.lane.b32.xlu0 %v4258, 40
        %v4940 = vpop.permute.xlu0 %4939
        %4943 = vrot.lane.b32.xlu0 %v4268, 42
        %v4944 = vpop.permute.xlu0 %4943
        %4947 = vrot.lane.b32.xlu0 %v4265, 44
        %v4948 = vpop.permute.xlu0 %4947
        %4951 = vrot.lane.b32.xlu0 %v4269, 46
        %v4952 = vpop.permute.xlu0 %4951
        %4955 = vrot.lane.b32.xlu0 %v4310, 48
        %v4956 = vpop.permute.xlu0 %4955
        %4959 = vrot.lane.b32.xlu0 %v4334, 50
        %v4960 = vpop.permute.xlu0 %4959
        %4963 = vrot.lane.b32.xlu0 %v4317, 52
        %v4964 = vpop.permute.xlu0 %4963
        %4967 = vrot.lane.b32.xlu0 %v4335, 54
        %v4968 = vpop.permute.xlu0 %4967
        %4971 = vrot.lane.b32.xlu0 %v4326, 56
        %v4972 = vpop.permute.xlu0 %4971
        %4975 = vrot.lane.b32.xlu0 %v4336, 58
        %v4976 = vpop.permute.xlu0 %4975
        %4979 = vrot.lane.b32.xlu0 %v4333, 60
        %v4980 = vpop.permute.xlu0 %4979
        %4983 = vrot.lane.b32.xlu0 %v4337, 62
        %v4984 = vpop.permute.xlu0 %4983
        %4987 = vrot.lane.b32.xlu0 %v4378, 64
        %v4988 = vpop.permute.xlu0 %4987
        %4991 = vrot.lane.b32.xlu0 %v4402, 66
        %v4992 = vpop.permute.xlu0 %4991
        %4995 = vrot.lane.b32.xlu0 %v4385, 68
        %v4996 = vpop.permute.xlu0 %4995
        %4999 = vrot.lane.b32.xlu0 %v4403, 70
        %v5000 = vpop.permute.xlu0 %4999
        %5003 = vrot.lane.b32.xlu0 %v4394, 72
        %v5004 = vpop.permute.xlu0 %5003
        %5007 = vrot.lane.b32.xlu0 %v4404, 74
        %v5008 = vpop.permute.xlu0 %5007
        %5011 = vrot.lane.b32.xlu0 %v4401, 76
        %v5012 = vpop.permute.xlu0 %5011
        %5015 = vrot.lane.b32.xlu0 %v4405, 78
        %v5016 = vpop.permute.xlu0 %5015
        %5019 = vrot.lane.b32.xlu0 %v4446, 80
        %v5020 = vpop.permute.xlu0 %5019
        %5023 = vrot.lane.b32.xlu0 %v4470, 82
        %v5024 = vpop.permute.xlu0 %5023
        %5027 = vrot.lane.b32.xlu0 %v4453, 84
        %v5028 = vpop.permute.xlu0 %5027
        %5031 = vrot.lane.b32.xlu0 %v4471, 86
        %v5032 = vpop.permute.xlu0 %5031
        %5035 = vrot.lane.b32.xlu0 %v4462, 88
        %v5036 = vpop.permute.xlu0 %5035
        %5039 = vrot.lane.b32.xlu0 %v4472, 90
        %v5040 = vpop.permute.xlu0 %5039
        %5043 = vrot.lane.b32.xlu0 %v4469, 92
        %v5044 = vpop.permute.xlu0 %5043
        %5047 = vrot.lane.b32.xlu0 %v4473, 94
        %v5048 = vpop.permute.xlu0 %5047
        %5051 = vrot.lane.b32.xlu0 %v4514, 96
        %v5052 = vpop.permute.xlu0 %5051
        %5055 = vrot.lane.b32.xlu0 %v4538, 98
        %v5056 = vpop.permute.xlu0 %5055
        %5059 = vrot.lane.b32.xlu0 %v4521, 100
        %v5060 = vpop.permute.xlu0 %5059
        %5063 = vrot.lane.b32.xlu0 %v4539, 102
        %v5064 = vpop.permute.xlu0 %5063
        %5067 = vrot.lane.b32.xlu0 %v4530, 104
        %v5068 = vpop.permute.xlu0 %5067
        %5071 = vrot.lane.b32.xlu0 %v4540, 106
        %v5072 = vpop.permute.xlu0 %5071
        %5075 = vrot.lane.b32.xlu0 %v4537, 108
        %v5076 = vpop.permute.xlu0 %5075
        %5079 = vrot.lane.b32.xlu0 %v4541, 110
        %v5080 = vpop.permute.xlu0 %5079
        %5083 = vrot.lane.b32.xlu0 %v4582, 112
        %v5084 = vpop.permute.xlu0 %5083
        %5087 = vrot.lane.b32.xlu0 %v4606, 114
        %v5088 = vpop.permute.xlu0 %5087
        %5091 = vrot.lane.b32.xlu0 %v4589, 116
        %v5092 = vpop.permute.xlu0 %5091
        %5095 = vrot.lane.b32.xlu0 %v4607, 118
        %v5096 = vpop.permute.xlu0 %5095
        %5099 = vrot.lane.b32.xlu0 %v4598, 120
        %v5100 = vpop.permute.xlu0 %5099
        %5103 = vrot.lane.b32.xlu0 %v4608, 122
        %v5104 = vpop.permute.xlu0 %5103
        %5107 = vrot.lane.b32.xlu0 %v4605, 124
        %v5108 = vpop.permute.xlu0 %5107
        %5111 = vrot.lane.b32.xlu0 %v4609, 126
        %v5112 = vpop.permute.xlu0 %5111
        %v5114 = vsel %vm3072, %v3562, %v4612
        %v5115 = vsel %vm3074, %v5114, %v4616
        %v5116 = vsel %vm3076, %v5115, %v4620
        %v5117 = vsel %vm3078, %v5116, %v4624
        %v5118 = vsel %vm3080, %v5117, %v4628
        %v5119 = vsel %vm3082, %v5118, %v4632
        %v5120 = vsel %vm3084, %v5119, %v4636
        %v5121 = vsel %vm435, %v5120, %v4640
        %v5122 = vsel %vm3087, %v5121, %v4644
        %v5123 = vsel %vm3089, %v5122, %v4648
        %v5124 = vsel %vm3091, %v5123, %v4652
        %v5125 = vsel %vm3093, %v5124, %v4656
        %v5126 = vsel %vm3095, %v5125, %v4660
        %v5127 = vsel %vm3097, %v5126, %v4664
        %v5128 = vsel %vm3099, %v5127, %v4668
        %v5129 = vsel %vm437, %v5128, %v4672
        %v5130 = vsel %vm3102, %v5129, %v4676
        %v5131 = vsel %vm3104, %v5130, %v4680
        %v5132 = vsel %vm3106, %v5131, %v4684
        %v5133 = vsel %vm3108, %v5132, %v4688
        %v5134 = vsel %vm3110, %v5133, %v4692
        %v5135 = vsel %vm3112, %v5134, %v4696
        %v5136 = vsel %vm3114, %v5135, %v4700
        %v5137 = vsel %vm439, %v5136, %v4704
        %v5138 = vsel %vm3117, %v5137, %v4708
        %v5139 = vsel %vm3119, %v5138, %v4712
        %v5140 = vsel %vm3121, %v5139, %v4716
        %v5141 = vsel %vm3123, %v5140, %v4720
        %v5142 = vsel %vm3125, %v5141, %v4724
        %v5143 = vsel %vm3127, %v5142, %v4728
        %v5144 = vsel %vm3129, %v5143, %v4732
        %v5145 = vsel %vm441, %v5144, %v4736
        %v5146 = vsel %vm3132, %v5145, %v4740
        %v5147 = vsel %vm3134, %v5146, %v4744
        %v5148 = vsel %vm3136, %v5147, %v4748
        %v5149 = vsel %vm3138, %v5148, %v4752
        %v5150 = vsel %vm3140, %v5149, %v4756
        %v5151 = vsel %vm3142, %v5150, %v4760
        %v5152 = vsel %vm3144, %v5151, %v4764
        %v5153 = vsel %vm443, %v5152, %v4768
        %v5154 = vsel %vm3147, %v5153, %v4772
        %v5155 = vsel %vm3149, %v5154, %v4776
        %v5156 = vsel %vm3151, %v5155, %v4780
        %v5157 = vsel %vm3153, %v5156, %v4784
        %v5158 = vsel %vm3155, %v5157, %v4788
        %v5159 = vsel %vm3157, %v5158, %v4792
        %v5160 = vsel %vm3159, %v5159, %v4796
        %v5161 = vsel %vm445, %v5160, %v4800
        %v5162 = vsel %vm3162, %v5161, %v4804
        %v5163 = vsel %vm3164, %v5162, %v4808
        %v5164 = vsel %vm3166, %v5163, %v4812
        %v5165 = vsel %vm3168, %v5164, %v4816
        %v5166 = vsel %vm3170, %v5165, %v4820
        %v5167 = vsel %vm3172, %v5166, %v4824
        %v5168 = vsel %vm3174, %v5167, %v4828
        %v5169 = vsel %vm447, %v5168, %v4832
        %v5170 = vsel %vm3177, %v5169, %v4836
        %v5171 = vsel %vm3179, %v5170, %v4840
        %v5172 = vsel %vm3181, %v5171, %v4844
        %v5173 = vsel %vm3183, %v5172, %v4848
        %v5174 = vsel %vm3185, %v5173, %v4852
        %v5175 = vsel %vm3187, %v5174, %v4856
        %v5176 = vsel %vm3189, %v5175, %v4860
        %v5177 = vsel %vm3072, %v4106, %v4864
        %v5178 = vsel %vm3074, %v5177, %v4868
        %v5179 = vsel %vm3076, %v5178, %v4872
        %v5180 = vsel %vm3078, %v5179, %v4876
        %v5181 = vsel %vm3080, %v5180, %v4880
        %v5182 = vsel %vm3082, %v5181, %v4884
        %v5183 = vsel %vm3084, %v5182, %v4888
        %v5184 = vsel %vm435, %v5183, %v4892
        %v5185 = vsel %vm3087, %v5184, %v4896
        %v5186 = vsel %vm3089, %v5185, %v4900
        %v5187 = vsel %vm3091, %v5186, %v4904
        %v5188 = vsel %vm3093, %v5187, %v4908
        %v5189 = vsel %vm3095, %v5188, %v4912
        %v5190 = vsel %vm3097, %v5189, %v4916
        %v5191 = vsel %vm3099, %v5190, %v4920
        %v5192 = vsel %vm437, %v5191, %v4924
        %v5193 = vsel %vm3102, %v5192, %v4928
        %v5194 = vsel %vm3104, %v5193, %v4932
        %v5195 = vsel %vm3106, %v5194, %v4936
        %v5196 = vsel %vm3108, %v5195, %v4940
        %v5197 = vsel %vm3110, %v5196, %v4944
        %v5198 = vsel %vm3112, %v5197, %v4948
        %v5199 = vsel %vm3114, %v5198, %v4952
        %v5200 = vsel %vm439, %v5199, %v4956
        %v5201 = vsel %vm3117, %v5200, %v4960
        %v5202 = vsel %vm3119, %v5201, %v4964
        %v5203 = vsel %vm3121, %v5202, %v4968
        %v5204 = vsel %vm3123, %v5203, %v4972
        %v5205 = vsel %vm3125, %v5204, %v4976
        %v5206 = vsel %vm3127, %v5205, %v4980
        %v5207 = vsel %vm3129, %v5206, %v4984
        %v5208 = vsel %vm441, %v5207, %v4988
        %v5209 = vsel %vm3132, %v5208, %v4992
        %v5210 = vsel %vm3134, %v5209, %v4996
        %v5211 = vsel %vm3136, %v5210, %v5000
        %v5212 = vsel %vm3138, %v5211, %v5004
        %v5213 = vsel %vm3140, %v5212, %v5008
        %v5214 = vsel %vm3142, %v5213, %v5012
        %v5215 = vsel %vm3144, %v5214, %v5016
        %v5216 = vsel %vm443, %v5215, %v5020
        %v5217 = vsel %vm3147, %v5216, %v5024
        %v5218 = vsel %vm3149, %v5217, %v5028
        %v5219 = vsel %vm3151, %v5218, %v5032
        %v5220 = vsel %vm3153, %v5219, %v5036
        %v5221 = vsel %vm3155, %v5220, %v5040
        %v5222 = vsel %vm3157, %v5221, %v5044
        %v5223 = vsel %vm3159, %v5222, %v5048
        %v5224 = vsel %vm445, %v5223, %v5052
        %v5225 = vsel %vm3162, %v5224, %v5056
        %v5226 = vsel %vm3164, %v5225, %v5060
        %v5227 = vsel %vm3166, %v5226, %v5064
        %v5228 = vsel %vm3168, %v5227, %v5068
        %v5229 = vsel %vm3170, %v5228, %v5072
        %v5230 = vsel %vm3172, %v5229, %v5076
        %v5231 = vsel %vm3174, %v5230, %v5080
        %v5232 = vsel %vm447, %v5231, %v5084
        %v5233 = vsel %vm3177, %v5232, %v5088
        %v5234 = vsel %vm3179, %v5233, %v5092
        %v5235 = vsel %vm3181, %v5234, %v5096
        %v5236 = vsel %vm3183, %v5235, %v5100
        %v5237 = vsel %vm3185, %v5236, %v5104
        %v5238 = vsel %vm3187, %v5237, %v5108
        %v5239 = vsel %vm3189, %v5238, %v5112
        %v5240 = vsel %vm333, 1, 0
        %v5241 = vsel %vm334, 1, 0
        %vm5242 = vcmp.eq.s32.totalorder %v5240, 1
        %vm5243 = vcmp.eq.s32.totalorder %v5241, 1
        %v5244 = vsel %vm5242, %v3190, %v5176
        %v5245 = vsel %vm5243, %v3253, %v5239
        %5247 = vrot.lane.b32.xlu0 %v5244, 96
        %v5248 = vpop.permute.xlu0 %5247
        %5250 = vrot.lane.b32.xlu0 %v5244, 64
        %v5251 = vpop.permute.xlu0 %5250
        %5253 = vrot.lane.b32.xlu0 %v5244, 32
        %v5254 = vpop.permute.xlu0 %5253
        %5257 = vrot.lane.b32.xlu0 %v5245, 96
        %v5258 = vpop.permute.xlu0 %5257
        %5260 = vrot.lane.b32.xlu0 %v5245, 64
        %v5261 = vpop.permute.xlu0 %5260
        %5263 = vrot.lane.b32.xlu0 %v5245, 32
        %v5264 = vpop.permute.xlu0 %5263
        %v5266 = vcombine.low %v5244, %v5251
        %v5268 = vunpack.c.l.s4 1983009808
        %v5269 = vunpack.c.0.s8 %v5268
        %v5270 = vlaneseq
        %v5271 = vshrl.u32 %v5270, 7
        %v5272 = vsub.s32 %v5269, %v5271
        %v5273 = vrot.slane %v5266, %v5272
        %v5274 = vcombine.low %v5248, %v5254
        %v5276 = vunpack.c.l.s4 1983009808
        %v5277 = vunpack.c.0.s8 %v5276
        %v5278 = vlaneseq
        %v5279 = vshrl.u32 %v5278, 7
        %v5280 = vsub.s32 %v5277, %v5279
        %v5281 = vrot.slane %v5274, %v5280
        %v5282 = vcombine.low %v5245, %v5261
        %v5284 = vunpack.c.l.s4 1983009808
        %v5285 = vunpack.c.0.s8 %v5284
        %v5286 = vlaneseq
        %v5287 = vshrl.u32 %v5286, 7
        %v5288 = vsub.s32 %v5285, %v5287
        %v5289 = vrot.slane %v5282, %v5288
        %v5290 = vcombine.low %v5258, %v5264
        %v5292 = vunpack.c.l.s4 1983009808
        %v5293 = vunpack.c.0.s8 %v5292
        %v5294 = vlaneseq
        %v5295 = vshrl.u32 %v5294, 7
        %v5296 = vsub.s32 %v5293, %v5295
        %v5297 = vrot.slane %v5290, %v5296
        %v5298 = vcombine.low %v5273, %v5281
        %v5299 = vcombine.high %v5273, %v5281
        %v5301 = vunpack.c.l.s4 1934713408
        %v5302 = vunpack.c.0.s8 %v5301
        %v5303 = vlaneseq
        %v5304 = vshrl.u32 %v5303, 7
        %v5305 = vsub.s32 %v5302, %v5304
        %v5306 = vrot.slane %v5298, %v5305
        %v5308 = vunpack.c.l.s4 1934713408
        %v5309 = vunpack.c.0.s8 %v5308
        %v5310 = vlaneseq
        %v5311 = vshrl.u32 %v5310, 7
        %v5312 = vsub.s32 %v5309, %v5311
        %v5313 = vrot.slane %v5299, %v5312
        %v5314 = vcombine.low %v5289, %v5297
        %v5315 = vcombine.high %v5289, %v5297
        %v5317 = vunpack.c.l.s4 1934713408
        %v5318 = vunpack.c.0.s8 %v5317
        %v5319 = vlaneseq
        %v5320 = vshrl.u32 %v5319, 7
        %v5321 = vsub.s32 %v5318, %v5320
        %v5322 = vrot.slane %v5314, %v5321
        %v5324 = vunpack.c.l.s4 1934713408
        %v5325 = vunpack.c.0.s8 %v5324
        %v5326 = vlaneseq
        %v5327 = vshrl.u32 %v5326, 7
        %v5328 = vsub.s32 %v5325, %v5327
        %v5329 = vrot.slane %v5315, %v5328
        %v5330 = vcombine.low %v5306, %v5322
        %v5331 = vcombine.high %v5306, %v5322
        %v5332 = vcombine.low %v5313, %v5329
        %v5333 = vcombine.high %v5313, %v5329
        %5334 = vst.msk [vmem:[%s173] sm:$0xff] %vm437, %v5330
        %5335 = vst.msk [vmem:[%s173 + $0x8] sm:$0xff] %vm437, %v5331
        %5336 = vst.msk [vmem:[%s173 + $0x10] sm:$0xff] %vm437, %v5332
        %5337 = vst.msk [vmem:[%s173 + $0x18] sm:$0xff] %vm437, %v5333
        %v5338 = vld [vmem:[#allocation2 + $0x1] sm:$0xff]
        %v5339 = vld [vmem:[#allocation2 + $0x11] sm:$0xff]
        %v5340 = vld [vmem:[#allocation2 + $0x21] sm:$0xff]
        %v5341 = vld [vmem:[#allocation2 + $0x31] sm:$0xff]
        %v5342 = vcombine.low %v5338, %v5340
        %v5343 = vcombine.high %v5338, %v5340
        %v5345 = vunpack.c.l.s4 1983009808
        %v5346 = vunpack.c.0.s8 %v5345
        %v5347 = vlaneseq
        %v5348 = vshrl.u32 %v5347, 7
        %v5349 = vsub.s32 %v5346, %v5348
        %v5350 = vrot.slane %v5342, %v5349
        %v5352 = vunpack.c.l.s4 1983009808
        %v5353 = vunpack.c.0.s8 %v5352
        %v5354 = vlaneseq
        %v5355 = vshrl.u32 %v5354, 7
        %v5356 = vsub.s32 %v5353, %v5355
        %v5357 = vrot.slane %v5343, %v5356
        %v5358 = vcombine.low %v5339, %v5341
        %v5359 = vcombine.high %v5339, %v5341
        %v5361 = vunpack.c.l.s4 1983009808
        %v5362 = vunpack.c.0.s8 %v5361
        %v5363 = vlaneseq
        %v5364 = vshrl.u32 %v5363, 7
        %v5365 = vsub.s32 %v5362, %v5364
        %v5366 = vrot.slane %v5358, %v5365
        %v5368 = vunpack.c.l.s4 1983009808
        %v5369 = vunpack.c.0.s8 %v5368
        %v5370 = vlaneseq
        %v5371 = vshrl.u32 %v5370, 7
        %v5372 = vsub.s32 %v5369, %v5371
        %v5373 = vrot.slane %v5359, %v5372
        %v5374 = vcombine.low %v5350, %v5366
        %v5375 = vcombine.high %v5350, %v5366
        %v5377 = vunpack.c.l.s4 1934713408
        %v5378 = vunpack.c.0.s8 %v5377
        %v5379 = vlaneseq
        %v5380 = vshrl.u32 %v5379, 7
        %v5381 = vsub.s32 %v5378, %v5380
        %v5382 = vrot.slane %v5374, %v5381
        %v5384 = vunpack.c.l.s4 1934713408
        %v5385 = vunpack.c.0.s8 %v5384
        %v5386 = vlaneseq
        %v5387 = vshrl.u32 %v5386, 7
        %v5388 = vsub.s32 %v5385, %v5387
        %v5389 = vrot.slane %v5375, %v5388
        %v5390 = vcombine.low %v5357, %v5373
        %v5391 = vcombine.high %v5357, %v5373
        %v5393 = vunpack.c.l.s4 1934713408
        %v5394 = vunpack.c.0.s8 %v5393
        %v5395 = vlaneseq
        %v5396 = vshrl.u32 %v5395, 7
        %v5397 = vsub.s32 %v5394, %v5396
        %v5398 = vrot.slane %v5390, %v5397
        %v5400 = vunpack.c.l.s4 1934713408
        %v5401 = vunpack.c.0.s8 %v5400
        %v5402 = vlaneseq
        %v5403 = vshrl.u32 %v5402, 7
        %v5404 = vsub.s32 %v5401, %v5403
        %v5405 = vrot.slane %v5391, %v5404
        %v5406 = vcombine.high %v5382, 0.0
        %v5407 = vcombine.high %v5389, 0.0
        %v5408 = vcombine.high %v5398, 0.0
        %v5409 = vcombine.high %v5405, 0.0
        %5411 = vrot.lane.b32.xlu0 %v5406, 16
        %v5412 = vpop.permute.xlu0 %5411
        %5415 = vrot.lane.b32.xlu0 %v5389, 32
        %v5416 = vpop.permute.xlu0 %5415
        %5419 = vrot.lane.b32.xlu0 %v5407, 48
        %v5420 = vpop.permute.xlu0 %5419
        %5423 = vrot.lane.b32.xlu0 %v5398, 64
        %v5424 = vpop.permute.xlu0 %5423
        %5427 = vrot.lane.b32.xlu0 %v5408, 80
        %v5428 = vpop.permute.xlu0 %5427
        %5431 = vrot.lane.b32.xlu0 %v5405, 96
        %v5432 = vpop.permute.xlu0 %5431
        %5435 = vrot.lane.b32.xlu0 %v5409, 112
        %v5436 = vpop.permute.xlu0 %5435
        %v5438 = vsel %vm435, %v5382, %v5412
        %v5439 = vsel %vm437, %v5438, %v5416
        %v5440 = vsel %vm439, %v5439, %v5420
        %v5441 = vsel %vm441, %v5440, %v5424
        %v5442 = vsel %vm443, %v5441, %v5428
        %v5443 = vsel %vm445, %v5442, %v5432
        %v5444 = vsel %vm447, %v5443, %v5436
        %5449 = vrot.lane.b32.xlu0 %v5338, 127
        %v5450 = vpop.permute.xlu0 %5449
        %5451 = vrot.lane.b32.xlu0 %v5339, 127
        %v5452 = vpop.permute.xlu0 %5451
        %5453 = vrot.lane.b32.xlu0 %v5340, 127
        %v5454 = vpop.permute.xlu0 %5453
        %5455 = vrot.lane.b32.xlu0 %v5341, 127
        %v5456 = vpop.permute.xlu0 %5455
        %v5461 = vcombine.low %v5450, %v5454
        %v5462 = vcombine.high %v5450, %v5454
        %v5464 = vunpack.c.l.s4 1983009808
        %v5465 = vunpack.c.0.s8 %v5464
        %v5466 = vlaneseq
        %v5467 = vshrl.u32 %v5466, 7
        %v5468 = vsub.s32 %v5465, %v5467
        %v5469 = vrot.slane %v5461, %v5468
        %v5471 = vunpack.c.l.s4 1983009808
        %v5472 = vunpack.c.0.s8 %v5471
        %v5473 = vlaneseq
        %v5474 = vshrl.u32 %v5473, 7
        %v5475 = vsub.s32 %v5472, %v5474
        %v5476 = vrot.slane %v5462, %v5475
        %v5477 = vcombine.low %v5452, %v5456
        %v5478 = vcombine.high %v5452, %v5456
        %v5480 = vunpack.c.l.s4 1983009808
        %v5481 = vunpack.c.0.s8 %v5480
        %v5482 = vlaneseq
        %v5483 = vshrl.u32 %v5482, 7
        %v5484 = vsub.s32 %v5481, %v5483
        %v5485 = vrot.slane %v5477, %v5484
        %v5487 = vunpack.c.l.s4 1983009808
        %v5488 = vunpack.c.0.s8 %v5487
        %v5489 = vlaneseq
        %v5490 = vshrl.u32 %v5489, 7
        %v5491 = vsub.s32 %v5488, %v5490
        %v5492 = vrot.slane %v5478, %v5491
        %v5493 = vcombine.low %v5469, %v5485
        %v5494 = vcombine.high %v5469, %v5485
        %v5496 = vunpack.c.l.s4 1934713408
        %v5497 = vunpack.c.0.s8 %v5496
        %v5498 = vlaneseq
        %v5499 = vshrl.u32 %v5498, 7
        %v5500 = vsub.s32 %v5497, %v5499
        %v5501 = vrot.slane %v5493, %v5500
        %v5503 = vunpack.c.l.s4 1934713408
        %v5504 = vunpack.c.0.s8 %v5503
        %v5505 = vlaneseq
        %v5506 = vshrl.u32 %v5505, 7
        %v5507 = vsub.s32 %v5504, %v5506
        %v5508 = vrot.slane %v5494, %v5507
        %v5509 = vcombine.low %v5476, %v5492
        %v5510 = vcombine.high %v5476, %v5492
        %v5512 = vunpack.c.l.s4 1934713408
        %v5513 = vunpack.c.0.s8 %v5512
        %v5514 = vlaneseq
        %v5515 = vshrl.u32 %v5514, 7
        %v5516 = vsub.s32 %v5513, %v5515
        %v5517 = vrot.slane %v5509, %v5516
        %v5519 = vunpack.c.l.s4 1934713408
        %v5520 = vunpack.c.0.s8 %v5519
        %v5521 = vlaneseq
        %v5522 = vshrl.u32 %v5521, 7
        %v5523 = vsub.s32 %v5520, %v5522
        %v5524 = vrot.slane %v5510, %v5523
        %v5525 = vcombine.high %v5501, 0.0
        %v5526 = vcombine.high %v5508, 0.0
        %v5527 = vcombine.high %v5517, 0.0
        %v5528 = vcombine.high %v5524, 0.0
        %5530 = vrot.lane.b32.xlu0 %v5525, 16
        %v5531 = vpop.permute.xlu0 %5530
        %5534 = vrot.lane.b32.xlu0 %v5508, 32
        %v5535 = vpop.permute.xlu0 %5534
        %5538 = vrot.lane.b32.xlu0 %v5526, 48
        %v5539 = vpop.permute.xlu0 %5538
        %5542 = vrot.lane.b32.xlu0 %v5517, 64
        %v5543 = vpop.permute.xlu0 %5542
        %5546 = vrot.lane.b32.xlu0 %v5527, 80
        %v5547 = vpop.permute.xlu0 %5546
        %5550 = vrot.lane.b32.xlu0 %v5524, 96
        %v5551 = vpop.permute.xlu0 %5550
        %5554 = vrot.lane.b32.xlu0 %v5528, 112
        %v5555 = vpop.permute.xlu0 %5554
        %v5557 = vsel %vm435, %v5501, %v5531
        %v5558 = vsel %vm437, %v5557, %v5535
        %v5559 = vsel %vm439, %v5558, %v5539
        %v5560 = vsel %vm441, %v5559, %v5543
        %v5561 = vsel %vm443, %v5560, %v5547
        %v5562 = vsel %vm445, %v5561, %v5551
        %v5563 = vsel %vm447, %v5562, %v5555
        %v5564 = vld [vmem:[#allocation2 + $0x2] sm:$0xff]
        %v5565 = vld [vmem:[#allocation2 + $0x12] sm:$0xff]
        %v5566 = vld [vmem:[#allocation2 + $0x22] sm:$0xff]
        %v5567 = vld [vmem:[#allocation2 + $0x32] sm:$0xff]
        %v5568 = vcombine.low %v5564, %v5566
        %v5569 = vcombine.high %v5564, %v5566
        %v5571 = vunpack.c.l.s4 1983009808
        %v5572 = vunpack.c.0.s8 %v5571
        %v5573 = vlaneseq
        %v5574 = vshrl.u32 %v5573, 7
        %v5575 = vsub.s32 %v5572, %v5574
        %v5576 = vrot.slane %v5568, %v5575
        %v5578 = vunpack.c.l.s4 1983009808
        %v5579 = vunpack.c.0.s8 %v5578
        %v5580 = vlaneseq
        %v5581 = vshrl.u32 %v5580, 7
        %v5582 = vsub.s32 %v5579, %v5581
        %v5583 = vrot.slane %v5569, %v5582
        %v5584 = vcombine.low %v5565, %v5567
        %v5585 = vcombine.high %v5565, %v5567
        %v5587 = vunpack.c.l.s4 1983009808
        %v5588 = vunpack.c.0.s8 %v5587
        %v5589 = vlaneseq
        %v5590 = vshrl.u32 %v5589, 7
        %v5591 = vsub.s32 %v5588, %v5590
        %v5592 = vrot.slane %v5584, %v5591
        %v5594 = vunpack.c.l.s4 1983009808
        %v5595 = vunpack.c.0.s8 %v5594
        %v5596 = vlaneseq
        %v5597 = vshrl.u32 %v5596, 7
        %v5598 = vsub.s32 %v5595, %v5597
        %v5599 = vrot.slane %v5585, %v5598
        %v5600 = vcombine.low %v5576, %v5592
        %v5601 = vcombine.high %v5576, %v5592
        %v5603 = vunpack.c.l.s4 1934713408
        %v5604 = vunpack.c.0.s8 %v5603
        %v5605 = vlaneseq
        %v5606 = vshrl.u32 %v5605, 7
        %v5607 = vsub.s32 %v5604, %v5606
        %v5608 = vrot.slane %v5600, %v5607
        %v5610 = vunpack.c.l.s4 1934713408
        %v5611 = vunpack.c.0.s8 %v5610
        %v5612 = vlaneseq
        %v5613 = vshrl.u32 %v5612, 7
        %v5614 = vsub.s32 %v5611, %v5613
        %v5615 = vrot.slane %v5601, %v5614
        %v5616 = vcombine.low %v5583, %v5599
        %v5617 = vcombine.high %v5583, %v5599
        %v5619 = vunpack.c.l.s4 1934713408
        %v5620 = vunpack.c.0.s8 %v5619
        %v5621 = vlaneseq
        %v5622 = vshrl.u32 %v5621, 7
        %v5623 = vsub.s32 %v5620, %v5622
        %v5624 = vrot.slane %v5616, %v5623
        %v5626 = vunpack.c.l.s4 1934713408
        %v5627 = vunpack.c.0.s8 %v5626
        %v5628 = vlaneseq
        %v5629 = vshrl.u32 %v5628, 7
        %v5630 = vsub.s32 %v5627, %v5629
        %v5631 = vrot.slane %v5617, %v5630
        %v5632 = vcombine.high %v5608, 0.0
        %v5633 = vcombine.high %v5615, 0.0
        %v5634 = vcombine.high %v5624, 0.0
        %v5635 = vcombine.high %v5631, 0.0
        %5637 = vrot.lane.b32.xlu0 %v5632, 16
        %v5638 = vpop.permute.xlu0 %5637
        %5641 = vrot.lane.b32.xlu0 %v5615, 32
        %v5642 = vpop.permute.xlu0 %5641
        %5645 = vrot.lane.b32.xlu0 %v5633, 48
        %v5646 = vpop.permute.xlu0 %5645
        %5649 = vrot.lane.b32.xlu0 %v5624, 64
        %v5650 = vpop.permute.xlu0 %5649
        %5653 = vrot.lane.b32.xlu0 %v5634, 80
        %v5654 = vpop.permute.xlu0 %5653
        %5657 = vrot.lane.b32.xlu0 %v5631, 96
        %v5658 = vpop.permute.xlu0 %5657
        %5661 = vrot.lane.b32.xlu0 %v5635, 112
        %v5662 = vpop.permute.xlu0 %5661
        %v5664 = vsel %vm435, %v5608, %v5638
        %v5665 = vsel %vm437, %v5664, %v5642
        %v5666 = vsel %vm439, %v5665, %v5646
        %v5667 = vsel %vm441, %v5666, %v5650
        %v5668 = vsel %vm443, %v5667, %v5654
        %v5669 = vsel %vm445, %v5668, %v5658
        %v5670 = vsel %vm447, %v5669, %v5662
        %5675 = vrot.lane.b32.xlu0 %v5564, 127
        %v5676 = vpop.permute.xlu0 %5675
        %5677 = vrot.lane.b32.xlu0 %v5565, 127
        %v5678 = vpop.permute.xlu0 %5677
        %5679 = vrot.lane.b32.xlu0 %v5566, 127
        %v5680 = vpop.permute.xlu0 %5679
        %5681 = vrot.lane.b32.xlu0 %v5567, 127
        %v5682 = vpop.permute.xlu0 %5681
        %v5687 = vcombine.low %v5676, %v5680
        %v5688 = vcombine.high %v5676, %v5680
        %v5690 = vunpack.c.l.s4 1983009808
        %v5691 = vunpack.c.0.s8 %v5690
        %v5692 = vlaneseq
        %v5693 = vshrl.u32 %v5692, 7
        %v5694 = vsub.s32 %v5691, %v5693
        %v5695 = vrot.slane %v5687, %v5694
        %v5697 = vunpack.c.l.s4 1983009808
        %v5698 = vunpack.c.0.s8 %v5697
        %v5699 = vlaneseq
        %v5700 = vshrl.u32 %v5699, 7
        %v5701 = vsub.s32 %v5698, %v5700
        %v5702 = vrot.slane %v5688, %v5701
        %v5703 = vcombine.low %v5678, %v5682
        %v5704 = vcombine.high %v5678, %v5682
        %v5706 = vunpack.c.l.s4 1983009808
        %v5707 = vunpack.c.0.s8 %v5706
        %v5708 = vlaneseq
        %v5709 = vshrl.u32 %v5708, 7
        %v5710 = vsub.s32 %v5707, %v5709
        %v5711 = vrot.slane %v5703, %v5710
        %v5713 = vunpack.c.l.s4 1983009808
        %v5714 = vunpack.c.0.s8 %v5713
        %v5715 = vlaneseq
        %v5716 = vshrl.u32 %v5715, 7
        %v5717 = vsub.s32 %v5714, %v5716
        %v5718 = vrot.slane %v5704, %v5717
        %v5719 = vcombine.low %v5695, %v5711
        %v5720 = vcombine.high %v5695, %v5711
        %v5722 = vunpack.c.l.s4 1934713408
        %v5723 = vunpack.c.0.s8 %v5722
        %v5724 = vlaneseq
        %v5725 = vshrl.u32 %v5724, 7
        %v5726 = vsub.s32 %v5723, %v5725
        %v5727 = vrot.slane %v5719, %v5726
        %v5729 = vunpack.c.l.s4 1934713408
        %v5730 = vunpack.c.0.s8 %v5729
        %v5731 = vlaneseq
        %v5732 = vshrl.u32 %v5731, 7
        %v5733 = vsub.s32 %v5730, %v5732
        %v5734 = vrot.slane %v5720, %v5733
        %v5735 = vcombine.low %v5702, %v5718
        %v5736 = vcombine.high %v5702, %v5718
        %v5738 = vunpack.c.l.s4 1934713408
        %v5739 = vunpack.c.0.s8 %v5738
        %v5740 = vlaneseq
        %v5741 = vshrl.u32 %v5740, 7
        %v5742 = vsub.s32 %v5739, %v5741
        %v5743 = vrot.slane %v5735, %v5742
        %v5745 = vunpack.c.l.s4 1934713408
        %v5746 = vunpack.c.0.s8 %v5745
        %v5747 = vlaneseq
        %v5748 = vshrl.u32 %v5747, 7
        %v5749 = vsub.s32 %v5746, %v5748
        %v5750 = vrot.slane %v5736, %v5749
        %v5751 = vcombine.high %v5727, 0.0
        %v5752 = vcombine.high %v5734, 0.0
        %v5753 = vcombine.high %v5743, 0.0
        %v5754 = vcombine.high %v5750, 0.0
        %5756 = vrot.lane.b32.xlu0 %v5751, 16
        %v5757 = vpop.permute.xlu0 %5756
        %5760 = vrot.lane.b32.xlu0 %v5734, 32
        %v5761 = vpop.permute.xlu0 %5760
        %5764 = vrot.lane.b32.xlu0 %v5752, 48
        %v5765 = vpop.permute.xlu0 %5764
        %5768 = vrot.lane.b32.xlu0 %v5743, 64
        %v5769 = vpop.permute.xlu0 %5768
        %5772 = vrot.lane.b32.xlu0 %v5753, 80
        %v5773 = vpop.permute.xlu0 %5772
        %5776 = vrot.lane.b32.xlu0 %v5750, 96
        %v5777 = vpop.permute.xlu0 %5776
        %5780 = vrot.lane.b32.xlu0 %v5754, 112
        %v5781 = vpop.permute.xlu0 %5780
        %v5783 = vsel %vm435, %v5727, %v5757
        %v5784 = vsel %vm437, %v5783, %v5761
        %v5785 = vsel %vm439, %v5784, %v5765
        %v5786 = vsel %vm441, %v5785, %v5769
        %v5787 = vsel %vm443, %v5786, %v5773
        %v5788 = vsel %vm445, %v5787, %v5777
        %v5789 = vsel %vm447, %v5788, %v5781
        %v5791 = vrot.slane %v5563, 4
        %v5794 = vrot.slane %v5789, 4
        %v5796 = vsel %vm800, %v5444, %v5791
        %v5797 = vsel %vm800, %v5670, %v5794
        %s5798 = scalar_lea.vmem %s1, 8
        %v5799 = vld [vmem:[%s5798] sm:$0xf]
        %v5800 = vld [vmem:[%s2] sm:$0xf]
        %5802 = vset.pattern.permute.xlu0 0
        %5803 = vperm.xlu0 %5802, %v5800
        %v5804 = vpop.permute.xlu0 %5803
        %v5807 = vsel %vm435, %v5799, 0
        %5809 = vmatprep.subr.mxu0 0.0
        %5810 = vmatpush1.msra.mxu0 %v5796
        %5811 = vmatprep.subr.mxu0 0.0
        %5812 = vmatpush1.msra.mxu0 %v5797
        %5813 = vmatprep.subr.mxu0 0.0
        %5814 = vmatpush1.msra.mxu0 0.0
        %5815 = vmatprep.subr.mxu0 0.0
        %5816 = vmatpush1.msra.mxu0 0.0
        %5817 = vmatprep.subr.mxu0 0.0
        %5818 = vmatpush1.msra.mxu0 0.0
        %5819 = vmatprep.subr.mxu0 0.0
        %5820 = vmatpush1.msra.mxu0 0.0
        %5821 = vmatprep.subr.mxu0 0.0
        %5822 = vmatpush1.msra.mxu0 0.0
        %5823 = vmatprep.subr.mxu0 0.0
        %5824 = vmatpush1.msra.mxu0 0.0
        %5825 = vmatprep.subr.mxu0 0.0
        %5826 = vmatpush1.msra.mxu0 0.0
        %5827 = vmatprep.subr.mxu0 0.0
        %5828 = vmatpush1.msra.mxu0 0.0
        %5829 = vmatprep.subr.mxu0 0.0
        %5830 = vmatpush1.msra.mxu0 0.0
        %5831 = vmatprep.subr.mxu0 0.0
        %5832 = vmatpush1.msra.mxu0 0.0
        %5833 = vmatprep.subr.mxu0 0.0
        %5834 = vmatpush1.msra.mxu0 0.0
        %5835 = vmatprep.subr.mxu0 0.0
        %5836 = vmatpush1.msra.mxu0 0.0
        %5837 = vmatprep.subr.mxu0 0.0
        %5838 = vmatpush1.msra.mxu0 0.0
        %5839 = vmatprep.subr.mxu0 0.0
        %5840 = vmatpush1.msra.mxu0 0.0
        %5841 = vmatprep.subr.mxu0 0.0
        %5842 = vmatpush1.msra.mxu0 0.0
        %5843 = vmatprep.subr.mxu0 0.0
        %5844 = vmatpush1.msra.mxu0 0.0
        %5845 = vmatprep.subr.mxu0 0.0
        %5846 = vmatpush1.msra.mxu0 0.0
        %5847 = vmatprep.subr.mxu0 0.0
        %5848 = vmatpush1.msra.mxu0 0.0
        %5849 = vmatprep.subr.mxu0 0.0
        %5850 = vmatpush1.msra.mxu0 0.0
        %5851 = vmatprep.subr.mxu0 0.0
        %5852 = vmatpush1.msra.mxu0 0.0
        %5853 = vmatprep.subr.mxu0 0.0
        %5854 = vmatpush1.msra.mxu0 0.0
        %5855 = vmatprep.subr.mxu0 0.0
        %5856 = vmatpush1.msra.mxu0 0.0
        %5857 = vmatprep.subr.mxu0 0.0
        %5858 = vmatpush1.msra.mxu0 0.0
        %5859 = vmatprep.subr.mxu0 0.0
        %5860 = vmatpush1.msra.mxu0 0.0
        %5861 = vmatprep.subr.mxu0 0.0
        %5862 = vmatpush1.msra.mxu0 0.0
        %5863 = vmatprep.subr.mxu0 0.0
        %5864 = vmatpush1.msra.mxu0 0.0
        %5865 = vmatprep.subr.mxu0 0.0
        %5866 = vmatpush1.msra.mxu0 0.0
        %5867 = vmatprep.subr.mxu0 0.0
        %5868 = vmatpush1.msra.mxu0 0.0
        %5869 = vmatprep.subr.mxu0 0.0
        %5870 = vmatpush1.msra.mxu0 0.0
        %5871 = vmatprep.subr.mxu0 0.0
        %5872 = vmatpush1.msra.mxu0 0.0
        %5873 = vmatprep.mubr.f32.mxu0 0.0
        %5874 = vmatmul.mubr.f32.gmra.mrb[0].mxu0 %v5807
        %v5875 = vpop.f32.mrb[0].mxu0
        %v5876 = vadd.f32 %v5804, %v5875
        %v5877 = vpop.f32.mrb[0].mxu0
        %5878 = vdwg.mxu0
        %v5879 = vld [vmem:[#allocation2 + $0x1] sm:$0xff]
        %v5880 = vld [vmem:[#allocation2 + $0x11] sm:$0xff]
        %v5881 = vld [vmem:[#allocation2 + $0x21] sm:$0xff]
        %v5882 = vld [vmem:[#allocation2 + $0x31] sm:$0xff]
        %5887 = vrot.lane.b32.xlu0 %v5879, 126
        %v5888 = vpop.permute.xlu0 %5887
        %5889 = vrot.lane.b32.xlu0 %v5880, 126
        %v5890 = vpop.permute.xlu0 %5889
        %5891 = vrot.lane.b32.xlu0 %v5881, 126
        %v5892 = vpop.permute.xlu0 %5891
        %5893 = vrot.lane.b32.xlu0 %v5882, 126
        %v5894 = vpop.permute.xlu0 %5893
        %v5899 = vcombine.low %v5888, %v5892
        %v5900 = vcombine.high %v5888, %v5892
        %v5902 = vunpack.c.l.s4 1983009808
        %v5903 = vunpack.c.0.s8 %v5902
        %v5904 = vlaneseq
        %v5905 = vshrl.u32 %v5904, 7
        %v5906 = vsub.s32 %v5903, %v5905
        %v5907 = vrot.slane %v5899, %v5906
        %v5909 = vunpack.c.l.s4 1983009808
        %v5910 = vunpack.c.0.s8 %v5909
        %v5911 = vlaneseq
        %v5912 = vshrl.u32 %v5911, 7
        %v5913 = vsub.s32 %v5910, %v5912
        %v5914 = vrot.slane %v5900, %v5913
        %v5915 = vcombine.low %v5890, %v5894
        %v5916 = vcombine.high %v5890, %v5894
        %v5918 = vunpack.c.l.s4 1983009808
        %v5919 = vunpack.c.0.s8 %v5918
        %v5920 = vlaneseq
        %v5921 = vshrl.u32 %v5920, 7
        %v5922 = vsub.s32 %v5919, %v5921
        %v5923 = vrot.slane %v5915, %v5922
        %v5925 = vunpack.c.l.s4 1983009808
        %v5926 = vunpack.c.0.s8 %v5925
        %v5927 = vlaneseq
        %v5928 = vshrl.u32 %v5927, 7
        %v5929 = vsub.s32 %v5926, %v5928
        %v5930 = vrot.slane %v5916, %v5929
        %v5931 = vcombine.low %v5907, %v5923
        %v5932 = vcombine.high %v5907, %v5923
        %v5934 = vunpack.c.l.s4 1934713408
        %v5935 = vunpack.c.0.s8 %v5934
        %v5936 = vlaneseq
        %v5937 = vshrl.u32 %v5936, 7
        %v5938 = vsub.s32 %v5935, %v5937
        %v5939 = vrot.slane %v5931, %v5938
        %v5941 = vunpack.c.l.s4 1934713408
        %v5942 = vunpack.c.0.s8 %v5941
        %v5943 = vlaneseq
        %v5944 = vshrl.u32 %v5943, 7
        %v5945 = vsub.s32 %v5942, %v5944
        %v5946 = vrot.slane %v5932, %v5945
        %v5947 = vcombine.low %v5914, %v5930
        %v5948 = vcombine.high %v5914, %v5930
        %v5950 = vunpack.c.l.s4 1934713408
        %v5951 = vunpack.c.0.s8 %v5950
        %v5952 = vlaneseq
        %v5953 = vshrl.u32 %v5952, 7
        %v5954 = vsub.s32 %v5951, %v5953
        %v5955 = vrot.slane %v5947, %v5954
        %v5957 = vunpack.c.l.s4 1934713408
        %v5958 = vunpack.c.0.s8 %v5957
        %v5959 = vlaneseq
        %v5960 = vshrl.u32 %v5959, 7
        %v5961 = vsub.s32 %v5958, %v5960
        %v5962 = vrot.slane %v5948, %v5961
        %v5963 = vcombine.high %v5939, 0.0
        %v5964 = vcombine.high %v5946, 0.0
        %v5965 = vcombine.high %v5955, 0.0
        %v5966 = vcombine.high %v5962, 0.0
        %5968 = vrot.lane.b32.xlu0 %v5963, 16
        %v5969 = vpop.permute.xlu0 %5968
        %5972 = vrot.lane.b32.xlu0 %v5946, 32
        %v5973 = vpop.permute.xlu0 %5972
        %5976 = vrot.lane.b32.xlu0 %v5964, 48
        %v5977 = vpop.permute.xlu0 %5976
        %5980 = vrot.lane.b32.xlu0 %v5955, 64
        %v5981 = vpop.permute.xlu0 %5980
        %5984 = vrot.lane.b32.xlu0 %v5965, 80
        %v5985 = vpop.permute.xlu0 %5984
        %5988 = vrot.lane.b32.xlu0 %v5962, 96
        %v5989 = vpop.permute.xlu0 %5988
        %5992 = vrot.lane.b32.xlu0 %v5966, 112
        %v5993 = vpop.permute.xlu0 %5992
        %v5995 = vsel %vm435, %v5939, %v5969
        %v5996 = vsel %vm437, %v5995, %v5973
        %v5997 = vsel %vm439, %v5996, %v5977
        %v5998 = vsel %vm441, %v5997, %v5981
        %v5999 = vsel %vm443, %v5998, %v5985
        %v6000 = vsel %vm445, %v5999, %v5989
        %v6001 = vsel %vm447, %v6000, %v5993
        %v6002 = vld [vmem:[#allocation2 + $0x2] sm:$0xff]
        %v6003 = vld [vmem:[#allocation2 + $0x12] sm:$0xff]
        %v6004 = vld [vmem:[#allocation2 + $0x22] sm:$0xff]
        %v6005 = vld [vmem:[#allocation2 + $0x32] sm:$0xff]
        %6010 = vrot.lane.b32.xlu0 %v6002, 126
        %v6011 = vpop.permute.xlu0 %6010
        %6012 = vrot.lane.b32.xlu0 %v6003, 126
        %v6013 = vpop.permute.xlu0 %6012
        %6014 = vrot.lane.b32.xlu0 %v6004, 126
        %v6015 = vpop.permute.xlu0 %6014
        %6016 = vrot.lane.b32.xlu0 %v6005, 126
        %v6017 = vpop.permute.xlu0 %6016
        %v6022 = vcombine.low %v6011, %v6015
        %v6023 = vcombine.high %v6011, %v6015
        %v6025 = vunpack.c.l.s4 1983009808
        %v6026 = vunpack.c.0.s8 %v6025
        %v6027 = vlaneseq
        %v6028 = vshrl.u32 %v6027, 7
        %v6029 = vsub.s32 %v6026, %v6028
        %v6030 = vrot.slane %v6022, %v6029
        %v6032 = vunpack.c.l.s4 1983009808
        %v6033 = vunpack.c.0.s8 %v6032
        %v6034 = vlaneseq
        %v6035 = vshrl.u32 %v6034, 7
        %v6036 = vsub.s32 %v6033, %v6035
        %v6037 = vrot.slane %v6023, %v6036
        %v6038 = vcombine.low %v6013, %v6017
        %v6039 = vcombine.high %v6013, %v6017
        %v6041 = vunpack.c.l.s4 1983009808
        %v6042 = vunpack.c.0.s8 %v6041
        %v6043 = vlaneseq
        %v6044 = vshrl.u32 %v6043, 7
        %v6045 = vsub.s32 %v6042, %v6044
        %v6046 = vrot.slane %v6038, %v6045
        %v6048 = vunpack.c.l.s4 1983009808
        %v6049 = vunpack.c.0.s8 %v6048
        %v6050 = vlaneseq
        %v6051 = vshrl.u32 %v6050, 7
        %v6052 = vsub.s32 %v6049, %v6051
        %v6053 = vrot.slane %v6039, %v6052
        %v6054 = vcombine.low %v6030, %v6046
        %v6055 = vcombine.high %v6030, %v6046
        %v6057 = vunpack.c.l.s4 1934713408
        %v6058 = vunpack.c.0.s8 %v6057
        %v6059 = vlaneseq
        %v6060 = vshrl.u32 %v6059, 7
        %v6061 = vsub.s32 %v6058, %v6060
        %v6062 = vrot.slane %v6054, %v6061
        %v6064 = vunpack.c.l.s4 1934713408
        %v6065 = vunpack.c.0.s8 %v6064
        %v6066 = vlaneseq
        %v6067 = vshrl.u32 %v6066, 7
        %v6068 = vsub.s32 %v6065, %v6067
        %v6069 = vrot.slane %v6055, %v6068
        %v6070 = vcombine.low %v6037, %v6053
        %v6071 = vcombine.high %v6037, %v6053
        %v6073 = vunpack.c.l.s4 1934713408
        %v6074 = vunpack.c.0.s8 %v6073
        %v6075 = vlaneseq
        %v6076 = vshrl.u32 %v6075, 7
        %v6077 = vsub.s32 %v6074, %v6076
        %v6078 = vrot.slane %v6070, %v6077
        %v6080 = vunpack.c.l.s4 1934713408
        %v6081 = vunpack.c.0.s8 %v6080
        %v6082 = vlaneseq
        %v6083 = vshrl.u32 %v6082, 7
        %v6084 = vsub.s32 %v6081, %v6083
        %v6085 = vrot.slane %v6071, %v6084
        %v6086 = vcombine.high %v6062, 0.0
        %v6087 = vcombine.high %v6069, 0.0
        %v6088 = vcombine.high %v6078, 0.0
        %v6089 = vcombine.high %v6085, 0.0
        %6091 = vrot.lane.b32.xlu0 %v6086, 16
        %v6092 = vpop.permute.xlu0 %6091
        %6095 = vrot.lane.b32.xlu0 %v6069, 32
        %v6096 = vpop.permute.xlu0 %6095
        %6099 = vrot.lane.b32.xlu0 %v6087, 48
        %v6100 = vpop.permute.xlu0 %6099
        %6103 = vrot.lane.b32.xlu0 %v6078, 64
        %v6104 = vpop.permute.xlu0 %6103
        %6107 = vrot.lane.b32.xlu0 %v6088, 80
        %v6108 = vpop.permute.xlu0 %6107
        %6111 = vrot.lane.b32.xlu0 %v6085, 96
        %v6112 = vpop.permute.xlu0 %6111
        %6115 = vrot.lane.b32.xlu0 %v6089, 112
        %v6116 = vpop.permute.xlu0 %6115
        %v6118 = vsel %vm435, %v6062, %v6092
        %v6119 = vsel %vm437, %v6118, %v6096
        %v6120 = vsel %vm439, %v6119, %v6100
        %v6121 = vsel %vm441, %v6120, %v6104
        %v6122 = vsel %vm443, %v6121, %v6108
        %v6123 = vsel %vm445, %v6122, %v6112
        %v6124 = vsel %vm447, %v6123, %v6116
        %v6126 = vrot.slane %v6001, 4
        %v6129 = vrot.slane %v6124, 4
        %v6131 = vsel %vm800, %v5563, %v6126
        %v6132 = vsel %vm800, %v5789, %v6129
        %s6133 = scalar_lea.vmem %s1, 12
        %v6134 = vld [vmem:[%s6133] sm:$0xf]
        %v6136 = vsel %vm435, %v6134, 0
        %6138 = vmatprep.subr.mxu0 0.0
        %6139 = vmatpush1.msra.mxu0 %v6131
        %6140 = vmatprep.subr.mxu0 0.0
        %6141 = vmatpush1.msra.mxu0 %v6132
        %6142 = vmatprep.subr.mxu0 0.0
        %6143 = vmatpush1.msra.mxu0 0.0
        %6144 = vmatprep.subr.mxu0 0.0
        %6145 = vmatpush1.msra.mxu0 0.0
        %6146 = vmatprep.subr.mxu0 0.0
        %6147 = vmatpush1.msra.mxu0 0.0
        %6148 = vmatprep.subr.mxu0 0.0
        %6149 = vmatpush1.msra.mxu0 0.0
        %6150 = vmatprep.subr.mxu0 0.0
        %6151 = vmatpush1.msra.mxu0 0.0
        %6152 = vmatprep.subr.mxu0 0.0
        %6153 = vmatpush1.msra.mxu0 0.0
        %6154 = vmatprep.subr.mxu0 0.0
        %6155 = vmatpush1.msra.mxu0 0.0
        %6156 = vmatprep.subr.mxu0 0.0
        %6157 = vmatpush1.msra.mxu0 0.0
        %6158 = vmatprep.subr.mxu0 0.0
        %6159 = vmatpush1.msra.mxu0 0.0
        %6160 = vmatprep.subr.mxu0 0.0
        %6161 = vmatpush1.msra.mxu0 0.0
        %6162 = vmatprep.subr.mxu0 0.0
        %6163 = vmatpush1.msra.mxu0 0.0
        %6164 = vmatprep.subr.mxu0 0.0
        %6165 = vmatpush1.msra.mxu0 0.0
        %6166 = vmatprep.subr.mxu0 0.0
        %6167 = vmatpush1.msra.mxu0 0.0
        %6168 = vmatprep.subr.mxu0 0.0
        %6169 = vmatpush1.msra.mxu0 0.0
        %6170 = vmatprep.subr.mxu0 0.0
        %6171 = vmatpush1.msra.mxu0 0.0
        %6172 = vmatprep.subr.mxu0 0.0
        %6173 = vmatpush1.msra.mxu0 0.0
        %6174 = vmatprep.subr.mxu0 0.0
        %6175 = vmatpush1.msra.mxu0 0.0
        %6176 = vmatprep.subr.mxu0 0.0
        %6177 = vmatpush1.msra.mxu0 0.0
        %6178 = vmatprep.subr.mxu0 0.0
        %6179 = vmatpush1.msra.mxu0 0.0
        %6180 = vmatprep.subr.mxu0 0.0
        %6181 = vmatpush1.msra.mxu0 0.0
        %6182 = vmatprep.subr.mxu0 0.0
        %6183 = vmatpush1.msra.mxu0 0.0
        %6184 = vmatprep.subr.mxu0 0.0
        %6185 = vmatpush1.msra.mxu0 0.0
        %6186 = vmatprep.subr.mxu0 0.0
        %6187 = vmatpush1.msra.mxu0 0.0
        %6188 = vmatprep.subr.mxu0 0.0
        %6189 = vmatpush1.msra.mxu0 0.0
        %6190 = vmatprep.subr.mxu0 0.0
        %6191 = vmatpush1.msra.mxu0 0.0
        %6192 = vmatprep.subr.mxu0 0.0
        %6193 = vmatpush1.msra.mxu0 0.0
        %6194 = vmatprep.subr.mxu0 0.0
        %6195 = vmatpush1.msra.mxu0 0.0
        %6196 = vmatprep.subr.mxu0 0.0
        %6197 = vmatpush1.msra.mxu0 0.0
        %6198 = vmatprep.subr.mxu0 0.0
        %6199 = vmatpush1.msra.mxu0 0.0
        %6200 = vmatprep.subr.mxu0 0.0
        %6201 = vmatpush1.msra.mxu0 0.0
        %6202 = vmatprep.mubr.f32.mxu0 0.0
        %6203 = vmatmul.mubr.f32.gmra.mrb[0].mxu0 %v6136
        %v6204 = vpop.f32.mrb[0].mxu0
        %v6205 = vadd.f32 %v5804, %v6204
        %v6206 = vpop.f32.mrb[0].mxu0
        %6207 = vdwg.mxu0
        %v6208 = vlaneseq
        %v6209 = vshrl.u32 %v6208, 7
        %v6210 = vsub.s32 0, %v6209
        %v6211 = vrot.slane %v5876, %v6210
        %6213 = vbcast.lane.b32.xlu0 %v6211, 256
        %v6214 = vpop.permute.xlu0 %6213
        %s6216 = sor.u32 256, 8
        %6217 = vbcast.lane.b32.xlu0 %v6211, %s6216
        %v6218 = vpop.permute.xlu0 %6217
        %s6220 = sor.u32 256, 16
        %6221 = vbcast.lane.b32.xlu0 %v6211, %s6220
        %v6222 = vpop.permute.xlu0 %6221
        %s6224 = sor.u32 256, 24
        %6225 = vbcast.lane.b32.xlu0 %v6211, %s6224
        %v6226 = vpop.permute.xlu0 %6225
        %s6228 = sor.u32 256, 32
        %6229 = vbcast.lane.b32.xlu0 %v6211, %s6228
        %v6230 = vpop.permute.xlu0 %6229
        %s6232 = sor.u32 256, 40
        %6233 = vbcast.lane.b32.xlu0 %v6211, %s6232
        %v6234 = vpop.permute.xlu0 %6233
        %s6236 = sor.u32 256, 48
        %6237 = vbcast.lane.b32.xlu0 %v6211, %s6236
        %v6238 = vpop.permute.xlu0 %6237
        %s6240 = sor.u32 256, 56
        %6241 = vbcast.lane.b32.xlu0 %v6211, %s6240
        %v6242 = vpop.permute.xlu0 %6241
        %s6244 = sor.u32 256, 64
        %6245 = vbcast.lane.b32.xlu0 %v6211, %s6244
        %v6246 = vpop.permute.xlu0 %6245
        %s6248 = sor.u32 256, 72
        %6249 = vbcast.lane.b32.xlu0 %v6211, %s6248
        %v6250 = vpop.permute.xlu0 %6249
        %s6252 = sor.u32 256, 80
        %6253 = vbcast.lane.b32.xlu0 %v6211, %s6252
        %v6254 = vpop.permute.xlu0 %6253
        %s6256 = sor.u32 256, 88
        %6257 = vbcast.lane.b32.xlu0 %v6211, %s6256
        %v6258 = vpop.permute.xlu0 %6257
        %s6260 = sor.u32 256, 96
        %6261 = vbcast.lane.b32.xlu0 %v6211, %s6260
        %v6262 = vpop.permute.xlu0 %6261
        %s6264 = sor.u32 256, 104
        %6265 = vbcast.lane.b32.xlu0 %v6211, %s6264
        %v6266 = vpop.permute.xlu0 %6265
        %s6268 = sor.u32 256, 112
        %6269 = vbcast.lane.b32.xlu0 %v6211, %s6268
        %v6270 = vpop.permute.xlu0 %6269
        %s6272 = sor.u32 256, 120
        %6273 = vbcast.lane.b32.xlu0 %v6211, %s6272
        %v6274 = vpop.permute.xlu0 %6273
        %v6275 = vlaneseq
        %v6276 = vshrl.u32 %v6275, 7
        %v6277 = vsub.s32 1, %v6276
        %v6278 = vrot.slane %v5876, %v6277
        %6280 = vbcast.lane.b32.xlu0 %v6278, 256
        %v6281 = vpop.permute.xlu0 %6280
        %s6283 = sor.u32 256, 8
        %6284 = vbcast.lane.b32.xlu0 %v6278, %s6283
        %v6285 = vpop.permute.xlu0 %6284
        %s6287 = sor.u32 256, 16
        %6288 = vbcast.lane.b32.xlu0 %v6278, %s6287
        %v6289 = vpop.permute.xlu0 %6288
        %s6291 = sor.u32 256, 24
        %6292 = vbcast.lane.b32.xlu0 %v6278, %s6291
        %v6293 = vpop.permute.xlu0 %6292
        %s6295 = sor.u32 256, 32
        %6296 = vbcast.lane.b32.xlu0 %v6278, %s6295
        %v6297 = vpop.permute.xlu0 %6296
        %s6299 = sor.u32 256, 40
        %6300 = vbcast.lane.b32.xlu0 %v6278, %s6299
        %v6301 = vpop.permute.xlu0 %6300
        %s6303 = sor.u32 256, 48
        %6304 = vbcast.lane.b32.xlu0 %v6278, %s6303
        %v6305 = vpop.permute.xlu0 %6304
        %s6307 = sor.u32 256, 56
        %6308 = vbcast.lane.b32.xlu0 %v6278, %s6307
        %v6309 = vpop.permute.xlu0 %6308
        %s6311 = sor.u32 256, 64
        %6312 = vbcast.lane.b32.xlu0 %v6278, %s6311
        %v6313 = vpop.permute.xlu0 %6312
        %s6315 = sor.u32 256, 72
        %6316 = vbcast.lane.b32.xlu0 %v6278, %s6315
        %v6317 = vpop.permute.xlu0 %6316
        %s6319 = sor.u32 256, 80
        %6320 = vbcast.lane.b32.xlu0 %v6278, %s6319
        %v6321 = vpop.permute.xlu0 %6320
        %s6323 = sor.u32 256, 88
        %6324 = vbcast.lane.b32.xlu0 %v6278, %s6323
        %v6325 = vpop.permute.xlu0 %6324
        %s6327 = sor.u32 256, 96
        %6328 = vbcast.lane.b32.xlu0 %v6278, %s6327
        %v6329 = vpop.permute.xlu0 %6328
        %s6331 = sor.u32 256, 104
        %6332 = vbcast.lane.b32.xlu0 %v6278, %s6331
        %v6333 = vpop.permute.xlu0 %6332
        %s6335 = sor.u32 256, 112
        %6336 = vbcast.lane.b32.xlu0 %v6278, %s6335
        %v6337 = vpop.permute.xlu0 %6336
        %s6339 = sor.u32 256, 120
        %6340 = vbcast.lane.b32.xlu0 %v6278, %s6339
        %v6341 = vpop.permute.xlu0 %6340
        %v6342 = vlaneseq
        %v6343 = vshrl.u32 %v6342, 7
        %v6344 = vsub.s32 2, %v6343
        %v6345 = vrot.slane %v5876, %v6344
        %6347 = vbcast.lane.b32.xlu0 %v6345, 256
        %v6348 = vpop.permute.xlu0 %6347
        %s6350 = sor.u32 256, 8
        %6351 = vbcast.lane.b32.xlu0 %v6345, %s6350
        %v6352 = vpop.permute.xlu0 %6351
        %s6354 = sor.u32 256, 16
        %6355 = vbcast.lane.b32.xlu0 %v6345, %s6354
        %v6356 = vpop.permute.xlu0 %6355
        %s6358 = sor.u32 256, 24
        %6359 = vbcast.lane.b32.xlu0 %v6345, %s6358
        %v6360 = vpop.permute.xlu0 %6359
        %s6362 = sor.u32 256, 32
        %6363 = vbcast.lane.b32.xlu0 %v6345, %s6362
        %v6364 = vpop.permute.xlu0 %6363
        %s6366 = sor.u32 256, 40
        %6367 = vbcast.lane.b32.xlu0 %v6345, %s6366
        %v6368 = vpop.permute.xlu0 %6367
        %s6370 = sor.u32 256, 48
        %6371 = vbcast.lane.b32.xlu0 %v6345, %s6370
        %v6372 = vpop.permute.xlu0 %6371
        %s6374 = sor.u32 256, 56
        %6375 = vbcast.lane.b32.xlu0 %v6345, %s6374
        %v6376 = vpop.permute.xlu0 %6375
        %s6378 = sor.u32 256, 64
        %6379 = vbcast.lane.b32.xlu0 %v6345, %s6378
        %v6380 = vpop.permute.xlu0 %6379
        %s6382 = sor.u32 256, 72
        %6383 = vbcast.lane.b32.xlu0 %v6345, %s6382
        %v6384 = vpop.permute.xlu0 %6383
        %s6386 = sor.u32 256, 80
        %6387 = vbcast.lane.b32.xlu0 %v6345, %s6386
        %v6388 = vpop.permute.xlu0 %6387
        %s6390 = sor.u32 256, 88
        %6391 = vbcast.lane.b32.xlu0 %v6345, %s6390
        %v6392 = vpop.permute.xlu0 %6391
        %s6394 = sor.u32 256, 96
        %6395 = vbcast.lane.b32.xlu0 %v6345, %s6394
        %v6396 = vpop.permute.xlu0 %6395
        %s6398 = sor.u32 256, 104
        %6399 = vbcast.lane.b32.xlu0 %v6345, %s6398
        %v6400 = vpop.permute.xlu0 %6399
        %s6402 = sor.u32 256, 112
        %6403 = vbcast.lane.b32.xlu0 %v6345, %s6402
        %v6404 = vpop.permute.xlu0 %6403
        %s6406 = sor.u32 256, 120
        %6407 = vbcast.lane.b32.xlu0 %v6345, %s6406
        %v6408 = vpop.permute.xlu0 %6407
        %v6409 = vlaneseq
        %v6410 = vshrl.u32 %v6409, 7
        %v6411 = vsub.s32 3, %v6410
        %v6412 = vrot.slane %v5876, %v6411
        %6414 = vbcast.lane.b32.xlu0 %v6412, 256
        %v6415 = vpop.permute.xlu0 %6414
        %s6417 = sor.u32 256, 8
        %6418 = vbcast.lane.b32.xlu0 %v6412, %s6417
        %v6419 = vpop.permute.xlu0 %6418
        %s6421 = sor.u32 256, 16
        %6422 = vbcast.lane.b32.xlu0 %v6412, %s6421
        %v6423 = vpop.permute.xlu0 %6422
        %s6425 = sor.u32 256, 24
        %6426 = vbcast.lane.b32.xlu0 %v6412, %s6425
        %v6427 = vpop.permute.xlu0 %6426
        %s6429 = sor.u32 256, 32
        %6430 = vbcast.lane.b32.xlu0 %v6412, %s6429
        %v6431 = vpop.permute.xlu0 %6430
        %s6433 = sor.u32 256, 40
        %6434 = vbcast.lane.b32.xlu0 %v6412, %s6433
        %v6435 = vpop.permute.xlu0 %6434
        %s6437 = sor.u32 256, 48
        %6438 = vbcast.lane.b32.xlu0 %v6412, %s6437
        %v6439 = vpop.permute.xlu0 %6438
        %s6441 = sor.u32 256, 56
        %6442 = vbcast.lane.b32.xlu0 %v6412, %s6441
        %v6443 = vpop.permute.xlu0 %6442
        %s6445 = sor.u32 256, 64
        %6446 = vbcast.lane.b32.xlu0 %v6412, %s6445
        %v6447 = vpop.permute.xlu0 %6446
        %s6449 = sor.u32 256, 72
        %6450 = vbcast.lane.b32.xlu0 %v6412, %s6449
        %v6451 = vpop.permute.xlu0 %6450
        %s6453 = sor.u32 256, 80
        %6454 = vbcast.lane.b32.xlu0 %v6412, %s6453
        %v6455 = vpop.permute.xlu0 %6454
        %s6457 = sor.u32 256, 88
        %6458 = vbcast.lane.b32.xlu0 %v6412, %s6457
        %v6459 = vpop.permute.xlu0 %6458
        %s6461 = sor.u32 256, 96
        %6462 = vbcast.lane.b32.xlu0 %v6412, %s6461
        %v6463 = vpop.permute.xlu0 %6462
        %s6465 = sor.u32 256, 104
        %6466 = vbcast.lane.b32.xlu0 %v6412, %s6465
        %v6467 = vpop.permute.xlu0 %6466
        %s6469 = sor.u32 256, 112
        %6470 = vbcast.lane.b32.xlu0 %v6412, %s6469
        %v6471 = vpop.permute.xlu0 %6470
        %s6473 = sor.u32 256, 120
        %6474 = vbcast.lane.b32.xlu0 %v6412, %s6473
        %v6475 = vpop.permute.xlu0 %6474
        %v6476 = vcombine.low %v6214, %v6348
        %v6477 = vcombine.high %v6214, %v6348
        %v6479 = vunpack.c.l.s4 1983009808
        %v6480 = vunpack.c.0.s8 %v6479
        %v6481 = vlaneseq
        %v6482 = vshrl.u32 %v6481, 7
        %v6483 = vsub.s32 %v6480, %v6482
        %v6484 = vrot.slane %v6476, %v6483
        %v6486 = vunpack.c.l.s4 1983009808
        %v6487 = vunpack.c.0.s8 %v6486
        %v6488 = vlaneseq
        %v6489 = vshrl.u32 %v6488, 7
        %v6490 = vsub.s32 %v6487, %v6489
        %v6491 = vrot.slane %v6477, %v6490
        %v6492 = vcombine.low %v6281, %v6415
        %v6493 = vcombine.high %v6281, %v6415
        %v6495 = vunpack.c.l.s4 1983009808
        %v6496 = vunpack.c.0.s8 %v6495
        %v6497 = vlaneseq
        %v6498 = vshrl.u32 %v6497, 7
        %v6499 = vsub.s32 %v6496, %v6498
        %v6500 = vrot.slane %v6492, %v6499
        %v6502 = vunpack.c.l.s4 1983009808
        %v6503 = vunpack.c.0.s8 %v6502
        %v6504 = vlaneseq
        %v6505 = vshrl.u32 %v6504, 7
        %v6506 = vsub.s32 %v6503, %v6505
        %v6507 = vrot.slane %v6493, %v6506
        %v6508 = vcombine.low %v6484, %v6500
        %v6509 = vcombine.high %v6484, %v6500
        %v6511 = vunpack.c.l.s4 1934713408
        %v6512 = vunpack.c.0.s8 %v6511
        %v6513 = vlaneseq
        %v6514 = vshrl.u32 %v6513, 7
        %v6515 = vsub.s32 %v6512, %v6514
        %v6516 = vrot.slane %v6508, %v6515
        %v6518 = vunpack.c.l.s4 1934713408
        %v6519 = vunpack.c.0.s8 %v6518
        %v6520 = vlaneseq
        %v6521 = vshrl.u32 %v6520, 7
        %v6522 = vsub.s32 %v6519, %v6521
        %v6523 = vrot.slane %v6509, %v6522
        %v6524 = vcombine.low %v6491, %v6507
        %v6525 = vcombine.high %v6491, %v6507
        %v6527 = vunpack.c.l.s4 1934713408
        %v6528 = vunpack.c.0.s8 %v6527
        %v6529 = vlaneseq
        %v6530 = vshrl.u32 %v6529, 7
        %v6531 = vsub.s32 %v6528, %v6530
        %v6532 = vrot.slane %v6524, %v6531
        %v6534 = vunpack.c.l.s4 1934713408
        %v6535 = vunpack.c.0.s8 %v6534
        %v6536 = vlaneseq
        %v6537 = vshrl.u32 %v6536, 7
        %v6538 = vsub.s32 %v6535, %v6537
        %v6539 = vrot.slane %v6525, %v6538
        %v6540 = vcombine.high %v6516, 0.0
        %v6541 = vcombine.high %v6523, 0.0
        %v6542 = vcombine.high %v6532, 0.0
        %v6543 = vcombine.high %v6539, 0.0
        %v6544 = vcombine.low %v6218, %v6352
        %v6545 = vcombine.high %v6218, %v6352
        %v6547 = vunpack.c.l.s4 1983009808
        %v6548 = vunpack.c.0.s8 %v6547
        %v6549 = vlaneseq
        %v6550 = vshrl.u32 %v6549, 7
        %v6551 = vsub.s32 %v6548, %v6550
        %v6552 = vrot.slane %v6544, %v6551
        %v6554 = vunpack.c.l.s4 1983009808
        %v6555 = vunpack.c.0.s8 %v6554
        %v6556 = vlaneseq
        %v6557 = vshrl.u32 %v6556, 7
        %v6558 = vsub.s32 %v6555, %v6557
        %v6559 = vrot.slane %v6545, %v6558
        %v6560 = vcombine.low %v6285, %v6419
        %v6561 = vcombine.high %v6285, %v6419
        %v6563 = vunpack.c.l.s4 1983009808
        %v6564 = vunpack.c.0.s8 %v6563
        %v6565 = vlaneseq
        %v6566 = vshrl.u32 %v6565, 7
        %v6567 = vsub.s32 %v6564, %v6566
        %v6568 = vrot.slane %v6560, %v6567
        %v6570 = vunpack.c.l.s4 1983009808
        %v6571 = vunpack.c.0.s8 %v6570
        %v6572 = vlaneseq
        %v6573 = vshrl.u32 %v6572, 7
        %v6574 = vsub.s32 %v6571, %v6573
        %v6575 = vrot.slane %v6561, %v6574
        %v6576 = vcombine.low %v6552, %v6568
        %v6577 = vcombine.high %v6552, %v6568
        %v6579 = vunpack.c.l.s4 1934713408
        %v6580 = vunpack.c.0.s8 %v6579
        %v6581 = vlaneseq
        %v6582 = vshrl.u32 %v6581, 7
        %v6583 = vsub.s32 %v6580, %v6582
        %v6584 = vrot.slane %v6576, %v6583
        %v6586 = vunpack.c.l.s4 1934713408
        %v6587 = vunpack.c.0.s8 %v6586
        %v6588 = vlaneseq
        %v6589 = vshrl.u32 %v6588, 7
        %v6590 = vsub.s32 %v6587, %v6589
        %v6591 = vrot.slane %v6577, %v6590
        %v6592 = vcombine.low %v6559, %v6575
        %v6593 = vcombine.high %v6559, %v6575
        %v6595 = vunpack.c.l.s4 1934713408
        %v6596 = vunpack.c.0.s8 %v6595
        %v6597 = vlaneseq
        %v6598 = vshrl.u32 %v6597, 7
        %v6599 = vsub.s32 %v6596, %v6598
        %v6600 = vrot.slane %v6592, %v6599
        %v6602 = vunpack.c.l.s4 1934713408
        %v6603 = vunpack.c.0.s8 %v6602
        %v6604 = vlaneseq
        %v6605 = vshrl.u32 %v6604, 7
        %v6606 = vsub.s32 %v6603, %v6605
        %v6607 = vrot.slane %v6593, %v6606
        %v6608 = vcombine.high %v6584, 0.0
        %v6609 = vcombine.high %v6591, 0.0
        %v6610 = vcombine.high %v6600, 0.0
        %v6611 = vcombine.high %v6607, 0.0
        %v6612 = vcombine.low %v6222, %v6356
        %v6613 = vcombine.high %v6222, %v6356
        %v6615 = vunpack.c.l.s4 1983009808
        %v6616 = vunpack.c.0.s8 %v6615
        %v6617 = vlaneseq
        %v6618 = vshrl.u32 %v6617, 7
        %v6619 = vsub.s32 %v6616, %v6618
        %v6620 = vrot.slane %v6612, %v6619
        %v6622 = vunpack.c.l.s4 1983009808
        %v6623 = vunpack.c.0.s8 %v6622
        %v6624 = vlaneseq
        %v6625 = vshrl.u32 %v6624, 7
        %v6626 = vsub.s32 %v6623, %v6625
        %v6627 = vrot.slane %v6613, %v6626
        %v6628 = vcombine.low %v6289, %v6423
        %v6629 = vcombine.high %v6289, %v6423
        %v6631 = vunpack.c.l.s4 1983009808
        %v6632 = vunpack.c.0.s8 %v6631
        %v6633 = vlaneseq
        %v6634 = vshrl.u32 %v6633, 7
        %v6635 = vsub.s32 %v6632, %v6634
        %v6636 = vrot.slane %v6628, %v6635
        %v6638 = vunpack.c.l.s4 1983009808
        %v6639 = vunpack.c.0.s8 %v6638
        %v6640 = vlaneseq
        %v6641 = vshrl.u32 %v6640, 7
        %v6642 = vsub.s32 %v6639, %v6641
        %v6643 = vrot.slane %v6629, %v6642
        %v6644 = vcombine.low %v6620, %v6636
        %v6645 = vcombine.high %v6620, %v6636
        %v6647 = vunpack.c.l.s4 1934713408
        %v6648 = vunpack.c.0.s8 %v6647
        %v6649 = vlaneseq
        %v6650 = vshrl.u32 %v6649, 7
        %v6651 = vsub.s32 %v6648, %v6650
        %v6652 = vrot.slane %v6644, %v6651
        %v6654 = vunpack.c.l.s4 1934713408
        %v6655 = vunpack.c.0.s8 %v6654
        %v6656 = vlaneseq
        %v6657 = vshrl.u32 %v6656, 7
        %v6658 = vsub.s32 %v6655, %v6657
        %v6659 = vrot.slane %v6645, %v6658
        %v6660 = vcombine.low %v6627, %v6643
        %v6661 = vcombine.high %v6627, %v6643
        %v6663 = vunpack.c.l.s4 1934713408
        %v6664 = vunpack.c.0.s8 %v6663
        %v6665 = vlaneseq
        %v6666 = vshrl.u32 %v6665, 7
        %v6667 = vsub.s32 %v6664, %v6666
        %v6668 = vrot.slane %v6660, %v6667
        %v6670 = vunpack.c.l.s4 1934713408
        %v6671 = vunpack.c.0.s8 %v6670
        %v6672 = vlaneseq
        %v6673 = vshrl.u32 %v6672, 7
        %v6674 = vsub.s32 %v6671, %v6673
        %v6675 = vrot.slane %v6661, %v6674
        %v6676 = vcombine.high %v6652, 0.0
        %v6677 = vcombine.high %v6659, 0.0
        %v6678 = vcombine.high %v6668, 0.0
        %v6679 = vcombine.high %v6675, 0.0
        %v6680 = vcombine.low %v6226, %v6360
        %v6681 = vcombine.high %v6226, %v6360
        %v6683 = vunpack.c.l.s4 1983009808
        %v6684 = vunpack.c.0.s8 %v6683
        %v6685 = vlaneseq
        %v6686 = vshrl.u32 %v6685, 7
        %v6687 = vsub.s32 %v6684, %v6686
        %v6688 = vrot.slane %v6680, %v6687
        %v6690 = vunpack.c.l.s4 1983009808
        %v6691 = vunpack.c.0.s8 %v6690
        %v6692 = vlaneseq
        %v6693 = vshrl.u32 %v6692, 7
        %v6694 = vsub.s32 %v6691, %v6693
        %v6695 = vrot.slane %v6681, %v6694
        %v6696 = vcombine.low %v6293, %v6427
        %v6697 = vcombine.high %v6293, %v6427
        %v6699 = vunpack.c.l.s4 1983009808
        %v6700 = vunpack.c.0.s8 %v6699
        %v6701 = vlaneseq
        %v6702 = vshrl.u32 %v6701, 7
        %v6703 = vsub.s32 %v6700, %v6702
        %v6704 = vrot.slane %v6696, %v6703
        %v6706 = vunpack.c.l.s4 1983009808
        %v6707 = vunpack.c.0.s8 %v6706
        %v6708 = vlaneseq
        %v6709 = vshrl.u32 %v6708, 7
        %v6710 = vsub.s32 %v6707, %v6709
        %v6711 = vrot.slane %v6697, %v6710
        %v6712 = vcombine.low %v6688, %v6704
        %v6713 = vcombine.high %v6688, %v6704
        %v6715 = vunpack.c.l.s4 1934713408
        %v6716 = vunpack.c.0.s8 %v6715
        %v6717 = vlaneseq
        %v6718 = vshrl.u32 %v6717, 7
        %v6719 = vsub.s32 %v6716, %v6718
        %v6720 = vrot.slane %v6712, %v6719
        %v6722 = vunpack.c.l.s4 1934713408
        %v6723 = vunpack.c.0.s8 %v6722
        %v6724 = vlaneseq
        %v6725 = vshrl.u32 %v6724, 7
        %v6726 = vsub.s32 %v6723, %v6725
        %v6727 = vrot.slane %v6713, %v6726
        %v6728 = vcombine.low %v6695, %v6711
        %v6729 = vcombine.high %v6695, %v6711
        %v6731 = vunpack.c.l.s4 1934713408
        %v6732 = vunpack.c.0.s8 %v6731
        %v6733 = vlaneseq
        %v6734 = vshrl.u32 %v6733, 7
        %v6735 = vsub.s32 %v6732, %v6734
        %v6736 = vrot.slane %v6728, %v6735
        %v6738 = vunpack.c.l.s4 1934713408
        %v6739 = vunpack.c.0.s8 %v6738
        %v6740 = vlaneseq
        %v6741 = vshrl.u32 %v6740, 7
        %v6742 = vsub.s32 %v6739, %v6741
        %v6743 = vrot.slane %v6729, %v6742
        %v6744 = vcombine.high %v6720, 0.0
        %v6745 = vcombine.high %v6727, 0.0
        %v6746 = vcombine.high %v6736, 0.0
        %v6747 = vcombine.high %v6743, 0.0
        %v6748 = vcombine.low %v6230, %v6364
        %v6749 = vcombine.high %v6230, %v6364
        %v6751 = vunpack.c.l.s4 1983009808
        %v6752 = vunpack.c.0.s8 %v6751
        %v6753 = vlaneseq
        %v6754 = vshrl.u32 %v6753, 7
        %v6755 = vsub.s32 %v6752, %v6754
        %v6756 = vrot.slane %v6748, %v6755
        %v6758 = vunpack.c.l.s4 1983009808
        %v6759 = vunpack.c.0.s8 %v6758
        %v6760 = vlaneseq
        %v6761 = vshrl.u32 %v6760, 7
        %v6762 = vsub.s32 %v6759, %v6761
        %v6763 = vrot.slane %v6749, %v6762
        %v6764 = vcombine.low %v6297, %v6431
        %v6765 = vcombine.high %v6297, %v6431
        %v6767 = vunpack.c.l.s4 1983009808
        %v6768 = vunpack.c.0.s8 %v6767
        %v6769 = vlaneseq
        %v6770 = vshrl.u32 %v6769, 7
        %v6771 = vsub.s32 %v6768, %v6770
        %v6772 = vrot.slane %v6764, %v6771
        %v6774 = vunpack.c.l.s4 1983009808
        %v6775 = vunpack.c.0.s8 %v6774
        %v6776 = vlaneseq
        %v6777 = vshrl.u32 %v6776, 7
        %v6778 = vsub.s32 %v6775, %v6777
        %v6779 = vrot.slane %v6765, %v6778
        %v6780 = vcombine.low %v6756, %v6772
        %v6781 = vcombine.high %v6756, %v6772
        %v6783 = vunpack.c.l.s4 1934713408
        %v6784 = vunpack.c.0.s8 %v6783
        %v6785 = vlaneseq
        %v6786 = vshrl.u32 %v6785, 7
        %v6787 = vsub.s32 %v6784, %v6786
        %v6788 = vrot.slane %v6780, %v6787
        %v6790 = vunpack.c.l.s4 1934713408
        %v6791 = vunpack.c.0.s8 %v6790
        %v6792 = vlaneseq
        %v6793 = vshrl.u32 %v6792, 7
        %v6794 = vsub.s32 %v6791, %v6793
        %v6795 = vrot.slane %v6781, %v6794
        %v6796 = vcombine.low %v6763, %v6779
        %v6797 = vcombine.high %v6763, %v6779
        %v6799 = vunpack.c.l.s4 1934713408
        %v6800 = vunpack.c.0.s8 %v6799
        %v6801 = vlaneseq
        %v6802 = vshrl.u32 %v6801, 7
        %v6803 = vsub.s32 %v6800, %v6802
        %v6804 = vrot.slane %v6796, %v6803
        %v6806 = vunpack.c.l.s4 1934713408
        %v6807 = vunpack.c.0.s8 %v6806
        %v6808 = vlaneseq
        %v6809 = vshrl.u32 %v6808, 7
        %v6810 = vsub.s32 %v6807, %v6809
        %v6811 = vrot.slane %v6797, %v6810
        %v6812 = vcombine.high %v6788, 0.0
        %v6813 = vcombine.high %v6795, 0.0
        %v6814 = vcombine.high %v6804, 0.0
        %v6815 = vcombine.high %v6811, 0.0
        %v6816 = vcombine.low %v6234, %v6368
        %v6817 = vcombine.high %v6234, %v6368
        %v6819 = vunpack.c.l.s4 1983009808
        %v6820 = vunpack.c.0.s8 %v6819
        %v6821 = vlaneseq
        %v6822 = vshrl.u32 %v6821, 7
        %v6823 = vsub.s32 %v6820, %v6822
        %v6824 = vrot.slane %v6816, %v6823
        %v6826 = vunpack.c.l.s4 1983009808
        %v6827 = vunpack.c.0.s8 %v6826
        %v6828 = vlaneseq
        %v6829 = vshrl.u32 %v6828, 7
        %v6830 = vsub.s32 %v6827, %v6829
        %v6831 = vrot.slane %v6817, %v6830
        %v6832 = vcombine.low %v6301, %v6435
        %v6833 = vcombine.high %v6301, %v6435
        %v6835 = vunpack.c.l.s4 1983009808
        %v6836 = vunpack.c.0.s8 %v6835
        %v6837 = vlaneseq
        %v6838 = vshrl.u32 %v6837, 7
        %v6839 = vsub.s32 %v6836, %v6838
        %v6840 = vrot.slane %v6832, %v6839
        %v6842 = vunpack.c.l.s4 1983009808
        %v6843 = vunpack.c.0.s8 %v6842
        %v6844 = vlaneseq
        %v6845 = vshrl.u32 %v6844, 7
        %v6846 = vsub.s32 %v6843, %v6845
        %v6847 = vrot.slane %v6833, %v6846
        %v6848 = vcombine.low %v6824, %v6840
        %v6849 = vcombine.high %v6824, %v6840
        %v6851 = vunpack.c.l.s4 1934713408
        %v6852 = vunpack.c.0.s8 %v6851
        %v6853 = vlaneseq
        %v6854 = vshrl.u32 %v6853, 7
        %v6855 = vsub.s32 %v6852, %v6854
        %v6856 = vrot.slane %v6848, %v6855
        %v6858 = vunpack.c.l.s4 1934713408
        %v6859 = vunpack.c.0.s8 %v6858
        %v6860 = vlaneseq
        %v6861 = vshrl.u32 %v6860, 7
        %v6862 = vsub.s32 %v6859, %v6861
        %v6863 = vrot.slane %v6849, %v6862
        %v6864 = vcombine.low %v6831, %v6847
        %v6865 = vcombine.high %v6831, %v6847
        %v6867 = vunpack.c.l.s4 1934713408
        %v6868 = vunpack.c.0.s8 %v6867
        %v6869 = vlaneseq
        %v6870 = vshrl.u32 %v6869, 7
        %v6871 = vsub.s32 %v6868, %v6870
        %v6872 = vrot.slane %v6864, %v6871
        %v6874 = vunpack.c.l.s4 1934713408
        %v6875 = vunpack.c.0.s8 %v6874
        %v6876 = vlaneseq
        %v6877 = vshrl.u32 %v6876, 7
        %v6878 = vsub.s32 %v6875, %v6877
        %v6879 = vrot.slane %v6865, %v6878
        %v6880 = vcombine.high %v6856, 0.0
        %v6881 = vcombine.high %v6863, 0.0
        %v6882 = vcombine.high %v6872, 0.0
        %v6883 = vcombine.high %v6879, 0.0
        %v6884 = vcombine.low %v6238, %v6372
        %v6885 = vcombine.high %v6238, %v6372
        %v6887 = vunpack.c.l.s4 1983009808
        %v6888 = vunpack.c.0.s8 %v6887
        %v6889 = vlaneseq
        %v6890 = vshrl.u32 %v6889, 7
        %v6891 = vsub.s32 %v6888, %v6890
        %v6892 = vrot.slane %v6884, %v6891
        %v6894 = vunpack.c.l.s4 1983009808
        %v6895 = vunpack.c.0.s8 %v6894
        %v6896 = vlaneseq
        %v6897 = vshrl.u32 %v6896, 7
        %v6898 = vsub.s32 %v6895, %v6897
        %v6899 = vrot.slane %v6885, %v6898
        %v6900 = vcombine.low %v6305, %v6439
        %v6901 = vcombine.high %v6305, %v6439
        %v6903 = vunpack.c.l.s4 1983009808
        %v6904 = vunpack.c.0.s8 %v6903
        %v6905 = vlaneseq
        %v6906 = vshrl.u32 %v6905, 7
        %v6907 = vsub.s32 %v6904, %v6906
        %v6908 = vrot.slane %v6900, %v6907
        %v6910 = vunpack.c.l.s4 1983009808
        %v6911 = vunpack.c.0.s8 %v6910
        %v6912 = vlaneseq
        %v6913 = vshrl.u32 %v6912, 7
        %v6914 = vsub.s32 %v6911, %v6913
        %v6915 = vrot.slane %v6901, %v6914
        %v6916 = vcombine.low %v6892, %v6908
        %v6917 = vcombine.high %v6892, %v6908
        %v6919 = vunpack.c.l.s4 1934713408
        %v6920 = vunpack.c.0.s8 %v6919
        %v6921 = vlaneseq
        %v6922 = vshrl.u32 %v6921, 7
        %v6923 = vsub.s32 %v6920, %v6922
        %v6924 = vrot.slane %v6916, %v6923
        %v6926 = vunpack.c.l.s4 1934713408
        %v6927 = vunpack.c.0.s8 %v6926
        %v6928 = vlaneseq
        %v6929 = vshrl.u32 %v6928, 7
        %v6930 = vsub.s32 %v6927, %v6929
        %v6931 = vrot.slane %v6917, %v6930
        %v6932 = vcombine.low %v6899, %v6915
        %v6933 = vcombine.high %v6899, %v6915
        %v6935 = vunpack.c.l.s4 1934713408
        %v6936 = vunpack.c.0.s8 %v6935
        %v6937 = vlaneseq
        %v6938 = vshrl.u32 %v6937, 7
        %v6939 = vsub.s32 %v6936, %v6938
        %v6940 = vrot.slane %v6932, %v6939
        %v6942 = vunpack.c.l.s4 1934713408
        %v6943 = vunpack.c.0.s8 %v6942
        %v6944 = vlaneseq
        %v6945 = vshrl.u32 %v6944, 7
        %v6946 = vsub.s32 %v6943, %v6945
        %v6947 = vrot.slane %v6933, %v6946
        %v6948 = vcombine.high %v6924, 0.0
        %v6949 = vcombine.high %v6931, 0.0
        %v6950 = vcombine.high %v6940, 0.0
        %v6951 = vcombine.high %v6947, 0.0
        %v6952 = vcombine.low %v6242, %v6376
        %v6953 = vcombine.high %v6242, %v6376
        %v6955 = vunpack.c.l.s4 1983009808
        %v6956 = vunpack.c.0.s8 %v6955
        %v6957 = vlaneseq
        %v6958 = vshrl.u32 %v6957, 7
        %v6959 = vsub.s32 %v6956, %v6958
        %v6960 = vrot.slane %v6952, %v6959
        %v6962 = vunpack.c.l.s4 1983009808
        %v6963 = vunpack.c.0.s8 %v6962
        %v6964 = vlaneseq
        %v6965 = vshrl.u32 %v6964, 7
        %v6966 = vsub.s32 %v6963, %v6965
        %v6967 = vrot.slane %v6953, %v6966
        %v6968 = vcombine.low %v6309, %v6443
        %v6969 = vcombine.high %v6309, %v6443
        %v6971 = vunpack.c.l.s4 1983009808
        %v6972 = vunpack.c.0.s8 %v6971
        %v6973 = vlaneseq
        %v6974 = vshrl.u32 %v6973, 7
        %v6975 = vsub.s32 %v6972, %v6974
        %v6976 = vrot.slane %v6968, %v6975
        %v6978 = vunpack.c.l.s4 1983009808
        %v6979 = vunpack.c.0.s8 %v6978
        %v6980 = vlaneseq
        %v6981 = vshrl.u32 %v6980, 7
        %v6982 = vsub.s32 %v6979, %v6981
        %v6983 = vrot.slane %v6969, %v6982
        %v6984 = vcombine.low %v6960, %v6976
        %v6985 = vcombine.high %v6960, %v6976
        %v6987 = vunpack.c.l.s4 1934713408
        %v6988 = vunpack.c.0.s8 %v6987
        %v6989 = vlaneseq
        %v6990 = vshrl.u32 %v6989, 7
        %v6991 = vsub.s32 %v6988, %v6990
        %v6992 = vrot.slane %v6984, %v6991
        %v6994 = vunpack.c.l.s4 1934713408
        %v6995 = vunpack.c.0.s8 %v6994
        %v6996 = vlaneseq
        %v6997 = vshrl.u32 %v6996, 7
        %v6998 = vsub.s32 %v6995, %v6997
        %v6999 = vrot.slane %v6985, %v6998
        %v7000 = vcombine.low %v6967, %v6983
        %v7001 = vcombine.high %v6967, %v6983
        %v7003 = vunpack.c.l.s4 1934713408
        %v7004 = vunpack.c.0.s8 %v7003
        %v7005 = vlaneseq
        %v7006 = vshrl.u32 %v7005, 7
        %v7007 = vsub.s32 %v7004, %v7006
        %v7008 = vrot.slane %v7000, %v7007
        %v7010 = vunpack.c.l.s4 1934713408
        %v7011 = vunpack.c.0.s8 %v7010
        %v7012 = vlaneseq
        %v7013 = vshrl.u32 %v7012, 7
        %v7014 = vsub.s32 %v7011, %v7013
        %v7015 = vrot.slane %v7001, %v7014
        %v7016 = vcombine.high %v6992, 0.0
        %v7017 = vcombine.high %v6999, 0.0
        %v7018 = vcombine.high %v7008, 0.0
        %v7019 = vcombine.high %v7015, 0.0
        %v7020 = vcombine.low %v6246, %v6380
        %v7021 = vcombine.high %v6246, %v6380
        %v7023 = vunpack.c.l.s4 1983009808
        %v7024 = vunpack.c.0.s8 %v7023
        %v7025 = vlaneseq
        %v7026 = vshrl.u32 %v7025, 7
        %v7027 = vsub.s32 %v7024, %v7026
        %v7028 = vrot.slane %v7020, %v7027
        %v7030 = vunpack.c.l.s4 1983009808
        %v7031 = vunpack.c.0.s8 %v7030
        %v7032 = vlaneseq
        %v7033 = vshrl.u32 %v7032, 7
        %v7034 = vsub.s32 %v7031, %v7033
        %v7035 = vrot.slane %v7021, %v7034
        %v7036 = vcombine.low %v6313, %v6447
        %v7037 = vcombine.high %v6313, %v6447
        %v7039 = vunpack.c.l.s4 1983009808
        %v7040 = vunpack.c.0.s8 %v7039
        %v7041 = vlaneseq
        %v7042 = vshrl.u32 %v7041, 7
        %v7043 = vsub.s32 %v7040, %v7042
        %v7044 = vrot.slane %v7036, %v7043
        %v7046 = vunpack.c.l.s4 1983009808
        %v7047 = vunpack.c.0.s8 %v7046
        %v7048 = vlaneseq
        %v7049 = vshrl.u32 %v7048, 7
        %v7050 = vsub.s32 %v7047, %v7049
        %v7051 = vrot.slane %v7037, %v7050
        %v7052 = vcombine.low %v7028, %v7044
        %v7053 = vcombine.high %v7028, %v7044
        %v7055 = vunpack.c.l.s4 1934713408
        %v7056 = vunpack.c.0.s8 %v7055
        %v7057 = vlaneseq
        %v7058 = vshrl.u32 %v7057, 7
        %v7059 = vsub.s32 %v7056, %v7058
        %v7060 = vrot.slane %v7052, %v7059
        %v7062 = vunpack.c.l.s4 1934713408
        %v7063 = vunpack.c.0.s8 %v7062
        %v7064 = vlaneseq
        %v7065 = vshrl.u32 %v7064, 7
        %v7066 = vsub.s32 %v7063, %v7065
        %v7067 = vrot.slane %v7053, %v7066
        %v7068 = vcombine.low %v7035, %v7051
        %v7069 = vcombine.high %v7035, %v7051
        %v7071 = vunpack.c.l.s4 1934713408
        %v7072 = vunpack.c.0.s8 %v7071
        %v7073 = vlaneseq
        %v7074 = vshrl.u32 %v7073, 7
        %v7075 = vsub.s32 %v7072, %v7074
        %v7076 = vrot.slane %v7068, %v7075
        %v7078 = vunpack.c.l.s4 1934713408
        %v7079 = vunpack.c.0.s8 %v7078
        %v7080 = vlaneseq
        %v7081 = vshrl.u32 %v7080, 7
        %v7082 = vsub.s32 %v7079, %v7081
        %v7083 = vrot.slane %v7069, %v7082
        %v7084 = vcombine.high %v7060, 0.0
        %v7085 = vcombine.high %v7067, 0.0
        %v7086 = vcombine.high %v7076, 0.0
        %v7087 = vcombine.high %v7083, 0.0
        %v7088 = vcombine.low %v6250, %v6384
        %v7089 = vcombine.high %v6250, %v6384
        %v7091 = vunpack.c.l.s4 1983009808
        %v7092 = vunpack.c.0.s8 %v7091
        %v7093 = vlaneseq
        %v7094 = vshrl.u32 %v7093, 7
        %v7095 = vsub.s32 %v7092, %v7094
        %v7096 = vrot.slane %v7088, %v7095
        %v7098 = vunpack.c.l.s4 1983009808
        %v7099 = vunpack.c.0.s8 %v7098
        %v7100 = vlaneseq
        %v7101 = vshrl.u32 %v7100, 7
        %v7102 = vsub.s32 %v7099, %v7101
        %v7103 = vrot.slane %v7089, %v7102
        %v7104 = vcombine.low %v6317, %v6451
        %v7105 = vcombine.high %v6317, %v6451
        %v7107 = vunpack.c.l.s4 1983009808
        %v7108 = vunpack.c.0.s8 %v7107
        %v7109 = vlaneseq
        %v7110 = vshrl.u32 %v7109, 7
        %v7111 = vsub.s32 %v7108, %v7110
        %v7112 = vrot.slane %v7104, %v7111
        %v7114 = vunpack.c.l.s4 1983009808
        %v7115 = vunpack.c.0.s8 %v7114
        %v7116 = vlaneseq
        %v7117 = vshrl.u32 %v7116, 7
        %v7118 = vsub.s32 %v7115, %v7117
        %v7119 = vrot.slane %v7105, %v7118
        %v7120 = vcombine.low %v7096, %v7112
        %v7121 = vcombine.high %v7096, %v7112
        %v7123 = vunpack.c.l.s4 1934713408
        %v7124 = vunpack.c.0.s8 %v7123
        %v7125 = vlaneseq
        %v7126 = vshrl.u32 %v7125, 7
        %v7127 = vsub.s32 %v7124, %v7126
        %v7128 = vrot.slane %v7120, %v7127
        %v7130 = vunpack.c.l.s4 1934713408
        %v7131 = vunpack.c.0.s8 %v7130
        %v7132 = vlaneseq
        %v7133 = vshrl.u32 %v7132, 7
        %v7134 = vsub.s32 %v7131, %v7133
        %v7135 = vrot.slane %v7121, %v7134
        %v7136 = vcombine.low %v7103, %v7119
        %v7137 = vcombine.high %v7103, %v7119
        %v7139 = vunpack.c.l.s4 1934713408
        %v7140 = vunpack.c.0.s8 %v7139
        %v7141 = vlaneseq
        %v7142 = vshrl.u32 %v7141, 7
        %v7143 = vsub.s32 %v7140, %v7142
        %v7144 = vrot.slane %v7136, %v7143
        %v7146 = vunpack.c.l.s4 1934713408
        %v7147 = vunpack.c.0.s8 %v7146
        %v7148 = vlaneseq
        %v7149 = vshrl.u32 %v7148, 7
        %v7150 = vsub.s32 %v7147, %v7149
        %v7151 = vrot.slane %v7137, %v7150
        %v7152 = vcombine.high %v7128, 0.0
        %v7153 = vcombine.high %v7135, 0.0
        %v7154 = vcombine.high %v7144, 0.0
        %v7155 = vcombine.high %v7151, 0.0
        %v7156 = vcombine.low %v6254, %v6388
        %v7157 = vcombine.high %v6254, %v6388
        %v7159 = vunpack.c.l.s4 1983009808
        %v7160 = vunpack.c.0.s8 %v7159
        %v7161 = vlaneseq
        %v7162 = vshrl.u32 %v7161, 7
        %v7163 = vsub.s32 %v7160, %v7162
        %v7164 = vrot.slane %v7156, %v7163
        %v7166 = vunpack.c.l.s4 1983009808
        %v7167 = vunpack.c.0.s8 %v7166
        %v7168 = vlaneseq
        %v7169 = vshrl.u32 %v7168, 7
        %v7170 = vsub.s32 %v7167, %v7169
        %v7171 = vrot.slane %v7157, %v7170
        %v7172 = vcombine.low %v6321, %v6455
        %v7173 = vcombine.high %v6321, %v6455
        %v7175 = vunpack.c.l.s4 1983009808
        %v7176 = vunpack.c.0.s8 %v7175
        %v7177 = vlaneseq
        %v7178 = vshrl.u32 %v7177, 7
        %v7179 = vsub.s32 %v7176, %v7178
        %v7180 = vrot.slane %v7172, %v7179
        %v7182 = vunpack.c.l.s4 1983009808
        %v7183 = vunpack.c.0.s8 %v7182
        %v7184 = vlaneseq
        %v7185 = vshrl.u32 %v7184, 7
        %v7186 = vsub.s32 %v7183, %v7185
        %v7187 = vrot.slane %v7173, %v7186
        %v7188 = vcombine.low %v7164, %v7180
        %v7189 = vcombine.high %v7164, %v7180
        %v7191 = vunpack.c.l.s4 1934713408
        %v7192 = vunpack.c.0.s8 %v7191
        %v7193 = vlaneseq
        %v7194 = vshrl.u32 %v7193, 7
        %v7195 = vsub.s32 %v7192, %v7194
        %v7196 = vrot.slane %v7188, %v7195
        %v7198 = vunpack.c.l.s4 1934713408
        %v7199 = vunpack.c.0.s8 %v7198
        %v7200 = vlaneseq
        %v7201 = vshrl.u32 %v7200, 7
        %v7202 = vsub.s32 %v7199, %v7201
        %v7203 = vrot.slane %v7189, %v7202
        %v7204 = vcombine.low %v7171, %v7187
        %v7205 = vcombine.high %v7171, %v7187
        %v7207 = vunpack.c.l.s4 1934713408
        %v7208 = vunpack.c.0.s8 %v7207
        %v7209 = vlaneseq
        %v7210 = vshrl.u32 %v7209, 7
        %v7211 = vsub.s32 %v7208, %v7210
        %v7212 = vrot.slane %v7204, %v7211
        %v7214 = vunpack.c.l.s4 1934713408
        %v7215 = vunpack.c.0.s8 %v7214
        %v7216 = vlaneseq
        %v7217 = vshrl.u32 %v7216, 7
        %v7218 = vsub.s32 %v7215, %v7217
        %v7219 = vrot.slane %v7205, %v7218
        %v7220 = vcombine.high %v7196, 0.0
        %v7221 = vcombine.high %v7203, 0.0
        %v7222 = vcombine.high %v7212, 0.0
        %v7223 = vcombine.high %v7219, 0.0
        %v7224 = vcombine.low %v6258, %v6392
        %v7225 = vcombine.high %v6258, %v6392
        %v7227 = vunpack.c.l.s4 1983009808
        %v7228 = vunpack.c.0.s8 %v7227
        %v7229 = vlaneseq
        %v7230 = vshrl.u32 %v7229, 7
        %v7231 = vsub.s32 %v7228, %v7230
        %v7232 = vrot.slane %v7224, %v7231
        %v7234 = vunpack.c.l.s4 1983009808
        %v7235 = vunpack.c.0.s8 %v7234
        %v7236 = vlaneseq
        %v7237 = vshrl.u32 %v7236, 7
        %v7238 = vsub.s32 %v7235, %v7237
        %v7239 = vrot.slane %v7225, %v7238
        %v7240 = vcombine.low %v6325, %v6459
        %v7241 = vcombine.high %v6325, %v6459
        %v7243 = vunpack.c.l.s4 1983009808
        %v7244 = vunpack.c.0.s8 %v7243
        %v7245 = vlaneseq
        %v7246 = vshrl.u32 %v7245, 7
        %v7247 = vsub.s32 %v7244, %v7246
        %v7248 = vrot.slane %v7240, %v7247
        %v7250 = vunpack.c.l.s4 1983009808
        %v7251 = vunpack.c.0.s8 %v7250
        %v7252 = vlaneseq
        %v7253 = vshrl.u32 %v7252, 7
        %v7254 = vsub.s32 %v7251, %v7253
        %v7255 = vrot.slane %v7241, %v7254
        %v7256 = vcombine.low %v7232, %v7248
        %v7257 = vcombine.high %v7232, %v7248
        %v7259 = vunpack.c.l.s4 1934713408
        %v7260 = vunpack.c.0.s8 %v7259
        %v7261 = vlaneseq
        %v7262 = vshrl.u32 %v7261, 7
        %v7263 = vsub.s32 %v7260, %v7262
        %v7264 = vrot.slane %v7256, %v7263
        %v7266 = vunpack.c.l.s4 1934713408
        %v7267 = vunpack.c.0.s8 %v7266
        %v7268 = vlaneseq
        %v7269 = vshrl.u32 %v7268, 7
        %v7270 = vsub.s32 %v7267, %v7269
        %v7271 = vrot.slane %v7257, %v7270
        %v7272 = vcombine.low %v7239, %v7255
        %v7273 = vcombine.high %v7239, %v7255
        %v7275 = vunpack.c.l.s4 1934713408
        %v7276 = vunpack.c.0.s8 %v7275
        %v7277 = vlaneseq
        %v7278 = vshrl.u32 %v7277, 7
        %v7279 = vsub.s32 %v7276, %v7278
        %v7280 = vrot.slane %v7272, %v7279
        %v7282 = vunpack.c.l.s4 1934713408
        %v7283 = vunpack.c.0.s8 %v7282
        %v7284 = vlaneseq
        %v7285 = vshrl.u32 %v7284, 7
        %v7286 = vsub.s32 %v7283, %v7285
        %v7287 = vrot.slane %v7273, %v7286
        %v7288 = vcombine.high %v7264, 0.0
        %v7289 = vcombine.high %v7271, 0.0
        %v7290 = vcombine.high %v7280, 0.0
        %v7291 = vcombine.high %v7287, 0.0
        %v7292 = vcombine.low %v6262, %v6396
        %v7293 = vcombine.high %v6262, %v6396
        %v7295 = vunpack.c.l.s4 1983009808
        %v7296 = vunpack.c.0.s8 %v7295
        %v7297 = vlaneseq
        %v7298 = vshrl.u32 %v7297, 7
        %v7299 = vsub.s32 %v7296, %v7298
        %v7300 = vrot.slane %v7292, %v7299
        %v7302 = vunpack.c.l.s4 1983009808
        %v7303 = vunpack.c.0.s8 %v7302
        %v7304 = vlaneseq
        %v7305 = vshrl.u32 %v7304, 7
        %v7306 = vsub.s32 %v7303, %v7305
        %v7307 = vrot.slane %v7293, %v7306
        %v7308 = vcombine.low %v6329, %v6463
        %v7309 = vcombine.high %v6329, %v6463
        %v7311 = vunpack.c.l.s4 1983009808
        %v7312 = vunpack.c.0.s8 %v7311
        %v7313 = vlaneseq
        %v7314 = vshrl.u32 %v7313, 7
        %v7315 = vsub.s32 %v7312, %v7314
        %v7316 = vrot.slane %v7308, %v7315
        %v7318 = vunpack.c.l.s4 1983009808
        %v7319 = vunpack.c.0.s8 %v7318
        %v7320 = vlaneseq
        %v7321 = vshrl.u32 %v7320, 7
        %v7322 = vsub.s32 %v7319, %v7321
        %v7323 = vrot.slane %v7309, %v7322
        %v7324 = vcombine.low %v7300, %v7316
        %v7325 = vcombine.high %v7300, %v7316
        %v7327 = vunpack.c.l.s4 1934713408
        %v7328 = vunpack.c.0.s8 %v7327
        %v7329 = vlaneseq
        %v7330 = vshrl.u32 %v7329, 7
        %v7331 = vsub.s32 %v7328, %v7330
        %v7332 = vrot.slane %v7324, %v7331
        %v7334 = vunpack.c.l.s4 1934713408
        %v7335 = vunpack.c.0.s8 %v7334
        %v7336 = vlaneseq
        %v7337 = vshrl.u32 %v7336, 7
        %v7338 = vsub.s32 %v7335, %v7337
        %v7339 = vrot.slane %v7325, %v7338
        %v7340 = vcombine.low %v7307, %v7323
        %v7341 = vcombine.high %v7307, %v7323
        %v7343 = vunpack.c.l.s4 1934713408
        %v7344 = vunpack.c.0.s8 %v7343
        %v7345 = vlaneseq
        %v7346 = vshrl.u32 %v7345, 7
        %v7347 = vsub.s32 %v7344, %v7346
        %v7348 = vrot.slane %v7340, %v7347
        %v7350 = vunpack.c.l.s4 1934713408
        %v7351 = vunpack.c.0.s8 %v7350
        %v7352 = vlaneseq
        %v7353 = vshrl.u32 %v7352, 7
        %v7354 = vsub.s32 %v7351, %v7353
        %v7355 = vrot.slane %v7341, %v7354
        %v7356 = vcombine.high %v7332, 0.0
        %v7357 = vcombine.high %v7339, 0.0
        %v7358 = vcombine.high %v7348, 0.0
        %v7359 = vcombine.high %v7355, 0.0
        %v7360 = vcombine.low %v6266, %v6400
        %v7361 = vcombine.high %v6266, %v6400
        %v7363 = vunpack.c.l.s4 1983009808
        %v7364 = vunpack.c.0.s8 %v7363
        %v7365 = vlaneseq
        %v7366 = vshrl.u32 %v7365, 7
        %v7367 = vsub.s32 %v7364, %v7366
        %v7368 = vrot.slane %v7360, %v7367
        %v7370 = vunpack.c.l.s4 1983009808
        %v7371 = vunpack.c.0.s8 %v7370
        %v7372 = vlaneseq
        %v7373 = vshrl.u32 %v7372, 7
        %v7374 = vsub.s32 %v7371, %v7373
        %v7375 = vrot.slane %v7361, %v7374
        %v7376 = vcombine.low %v6333, %v6467
        %v7377 = vcombine.high %v6333, %v6467
        %v7379 = vunpack.c.l.s4 1983009808
        %v7380 = vunpack.c.0.s8 %v7379
        %v7381 = vlaneseq
        %v7382 = vshrl.u32 %v7381, 7
        %v7383 = vsub.s32 %v7380, %v7382
        %v7384 = vrot.slane %v7376, %v7383
        %v7386 = vunpack.c.l.s4 1983009808
        %v7387 = vunpack.c.0.s8 %v7386
        %v7388 = vlaneseq
        %v7389 = vshrl.u32 %v7388, 7
        %v7390 = vsub.s32 %v7387, %v7389
        %v7391 = vrot.slane %v7377, %v7390
        %v7392 = vcombine.low %v7368, %v7384
        %v7393 = vcombine.high %v7368, %v7384
        %v7395 = vunpack.c.l.s4 1934713408
        %v7396 = vunpack.c.0.s8 %v7395
        %v7397 = vlaneseq
        %v7398 = vshrl.u32 %v7397, 7
        %v7399 = vsub.s32 %v7396, %v7398
        %v7400 = vrot.slane %v7392, %v7399
        %v7402 = vunpack.c.l.s4 1934713408
        %v7403 = vunpack.c.0.s8 %v7402
        %v7404 = vlaneseq
        %v7405 = vshrl.u32 %v7404, 7
        %v7406 = vsub.s32 %v7403, %v7405
        %v7407 = vrot.slane %v7393, %v7406
        %v7408 = vcombine.low %v7375, %v7391
        %v7409 = vcombine.high %v7375, %v7391
        %v7411 = vunpack.c.l.s4 1934713408
        %v7412 = vunpack.c.0.s8 %v7411
        %v7413 = vlaneseq
        %v7414 = vshrl.u32 %v7413, 7
        %v7415 = vsub.s32 %v7412, %v7414
        %v7416 = vrot.slane %v7408, %v7415
        %v7418 = vunpack.c.l.s4 1934713408
        %v7419 = vunpack.c.0.s8 %v7418
        %v7420 = vlaneseq
        %v7421 = vshrl.u32 %v7420, 7
        %v7422 = vsub.s32 %v7419, %v7421
        %v7423 = vrot.slane %v7409, %v7422
        %v7424 = vcombine.high %v7400, 0.0
        %v7425 = vcombine.high %v7407, 0.0
        %v7426 = vcombine.high %v7416, 0.0
        %v7427 = vcombine.high %v7423, 0.0
        %v7428 = vcombine.low %v6270, %v6404
        %v7429 = vcombine.high %v6270, %v6404
        %v7431 = vunpack.c.l.s4 1983009808
        %v7432 = vunpack.c.0.s8 %v7431
        %v7433 = vlaneseq
        %v7434 = vshrl.u32 %v7433, 7
        %v7435 = vsub.s32 %v7432, %v7434
        %v7436 = vrot.slane %v7428, %v7435
        %v7438 = vunpack.c.l.s4 1983009808
        %v7439 = vunpack.c.0.s8 %v7438
        %v7440 = vlaneseq
        %v7441 = vshrl.u32 %v7440, 7
        %v7442 = vsub.s32 %v7439, %v7441
        %v7443 = vrot.slane %v7429, %v7442
        %v7444 = vcombine.low %v6337, %v6471
        %v7445 = vcombine.high %v6337, %v6471
        %v7447 = vunpack.c.l.s4 1983009808
        %v7448 = vunpack.c.0.s8 %v7447
        %v7449 = vlaneseq
        %v7450 = vshrl.u32 %v7449, 7
        %v7451 = vsub.s32 %v7448, %v7450
        %v7452 = vrot.slane %v7444, %v7451
        %v7454 = vunpack.c.l.s4 1983009808
        %v7455 = vunpack.c.0.s8 %v7454
        %v7456 = vlaneseq
        %v7457 = vshrl.u32 %v7456, 7
        %v7458 = vsub.s32 %v7455, %v7457
        %v7459 = vrot.slane %v7445, %v7458
        %v7460 = vcombine.low %v7436, %v7452
        %v7461 = vcombine.high %v7436, %v7452
        %v7463 = vunpack.c.l.s4 1934713408
        %v7464 = vunpack.c.0.s8 %v7463
        %v7465 = vlaneseq
        %v7466 = vshrl.u32 %v7465, 7
        %v7467 = vsub.s32 %v7464, %v7466
        %v7468 = vrot.slane %v7460, %v7467
        %v7470 = vunpack.c.l.s4 1934713408
        %v7471 = vunpack.c.0.s8 %v7470
        %v7472 = vlaneseq
        %v7473 = vshrl.u32 %v7472, 7
        %v7474 = vsub.s32 %v7471, %v7473
        %v7475 = vrot.slane %v7461, %v7474
        %v7476 = vcombine.low %v7443, %v7459
        %v7477 = vcombine.high %v7443, %v7459
        %v7479 = vunpack.c.l.s4 1934713408
        %v7480 = vunpack.c.0.s8 %v7479
        %v7481 = vlaneseq
        %v7482 = vshrl.u32 %v7481, 7
        %v7483 = vsub.s32 %v7480, %v7482
        %v7484 = vrot.slane %v7476, %v7483
        %v7486 = vunpack.c.l.s4 1934713408
        %v7487 = vunpack.c.0.s8 %v7486
        %v7488 = vlaneseq
        %v7489 = vshrl.u32 %v7488, 7
        %v7490 = vsub.s32 %v7487, %v7489
        %v7491 = vrot.slane %v7477, %v7490
        %v7492 = vcombine.high %v7468, 0.0
        %v7493 = vcombine.high %v7475, 0.0
        %v7494 = vcombine.high %v7484, 0.0
        %v7495 = vcombine.high %v7491, 0.0
        %v7496 = vcombine.low %v6274, %v6408
        %v7497 = vcombine.high %v6274, %v6408
        %v7499 = vunpack.c.l.s4 1983009808
        %v7500 = vunpack.c.0.s8 %v7499
        %v7501 = vlaneseq
        %v7502 = vshrl.u32 %v7501, 7
        %v7503 = vsub.s32 %v7500, %v7502
        %v7504 = vrot.slane %v7496, %v7503
        %v7506 = vunpack.c.l.s4 1983009808
        %v7507 = vunpack.c.0.s8 %v7506
        %v7508 = vlaneseq
        %v7509 = vshrl.u32 %v7508, 7
        %v7510 = vsub.s32 %v7507, %v7509
        %v7511 = vrot.slane %v7497, %v7510
        %v7512 = vcombine.low %v6341, %v6475
        %v7513 = vcombine.high %v6341, %v6475
        %v7515 = vunpack.c.l.s4 1983009808
        %v7516 = vunpack.c.0.s8 %v7515
        %v7517 = vlaneseq
        %v7518 = vshrl.u32 %v7517, 7
        %v7519 = vsub.s32 %v7516, %v7518
        %v7520 = vrot.slane %v7512, %v7519
        %v7522 = vunpack.c.l.s4 1983009808
        %v7523 = vunpack.c.0.s8 %v7522
        %v7524 = vlaneseq
        %v7525 = vshrl.u32 %v7524, 7
        %v7526 = vsub.s32 %v7523, %v7525
        %v7527 = vrot.slane %v7513, %v7526
        %v7528 = vcombine.low %v7504, %v7520
        %v7529 = vcombine.high %v7504, %v7520
        %v7531 = vunpack.c.l.s4 1934713408
        %v7532 = vunpack.c.0.s8 %v7531
        %v7533 = vlaneseq
        %v7534 = vshrl.u32 %v7533, 7
        %v7535 = vsub.s32 %v7532, %v7534
        %v7536 = vrot.slane %v7528, %v7535
        %v7538 = vunpack.c.l.s4 1934713408
        %v7539 = vunpack.c.0.s8 %v7538
        %v7540 = vlaneseq
        %v7541 = vshrl.u32 %v7540, 7
        %v7542 = vsub.s32 %v7539, %v7541
        %v7543 = vrot.slane %v7529, %v7542
        %v7544 = vcombine.low %v7511, %v7527
        %v7545 = vcombine.high %v7511, %v7527
        %v7547 = vunpack.c.l.s4 1934713408
        %v7548 = vunpack.c.0.s8 %v7547
        %v7549 = vlaneseq
        %v7550 = vshrl.u32 %v7549, 7
        %v7551 = vsub.s32 %v7548, %v7550
        %v7552 = vrot.slane %v7544, %v7551
        %v7554 = vunpack.c.l.s4 1934713408
        %v7555 = vunpack.c.0.s8 %v7554
        %v7556 = vlaneseq
        %v7557 = vshrl.u32 %v7556, 7
        %v7558 = vsub.s32 %v7555, %v7557
        %v7559 = vrot.slane %v7545, %v7558
        %v7560 = vcombine.high %v7536, 0.0
        %v7561 = vcombine.high %v7543, 0.0
        %v7562 = vcombine.high %v7552, 0.0
        %v7563 = vcombine.high %v7559, 0.0
        %7565 = vrot.lane.b32.xlu0 %v6540, 2
        %v7566 = vpop.permute.xlu0 %7565
        %7569 = vrot.lane.b32.xlu0 %v6523, 4
        %v7570 = vpop.permute.xlu0 %7569
        %7573 = vrot.lane.b32.xlu0 %v6541, 6
        %v7574 = vpop.permute.xlu0 %7573
        %7577 = vrot.lane.b32.xlu0 %v6532, 8
        %v7578 = vpop.permute.xlu0 %7577
        %7581 = vrot.lane.b32.xlu0 %v6542, 10
        %v7582 = vpop.permute.xlu0 %7581
        %7585 = vrot.lane.b32.xlu0 %v6539, 12
        %v7586 = vpop.permute.xlu0 %7585
        %7589 = vrot.lane.b32.xlu0 %v6543, 14
        %v7590 = vpop.permute.xlu0 %7589
        %7593 = vrot.lane.b32.xlu0 %v6584, 16
        %v7594 = vpop.permute.xlu0 %7593
        %7597 = vrot.lane.b32.xlu0 %v6608, 18
        %v7598 = vpop.permute.xlu0 %7597
        %7601 = vrot.lane.b32.xlu0 %v6591, 20
        %v7602 = vpop.permute.xlu0 %7601
        %7605 = vrot.lane.b32.xlu0 %v6609, 22
        %v7606 = vpop.permute.xlu0 %7605
        %7609 = vrot.lane.b32.xlu0 %v6600, 24
        %v7610 = vpop.permute.xlu0 %7609
        %7613 = vrot.lane.b32.xlu0 %v6610, 26
        %v7614 = vpop.permute.xlu0 %7613
        %7617 = vrot.lane.b32.xlu0 %v6607, 28
        %v7618 = vpop.permute.xlu0 %7617
        %7621 = vrot.lane.b32.xlu0 %v6611, 30
        %v7622 = vpop.permute.xlu0 %7621
        %7625 = vrot.lane.b32.xlu0 %v6652, 32
        %v7626 = vpop.permute.xlu0 %7625
        %7629 = vrot.lane.b32.xlu0 %v6676, 34
        %v7630 = vpop.permute.xlu0 %7629
        %7633 = vrot.lane.b32.xlu0 %v6659, 36
        %v7634 = vpop.permute.xlu0 %7633
        %7637 = vrot.lane.b32.xlu0 %v6677, 38
        %v7638 = vpop.permute.xlu0 %7637
        %7641 = vrot.lane.b32.xlu0 %v6668, 40
        %v7642 = vpop.permute.xlu0 %7641
        %7645 = vrot.lane.b32.xlu0 %v6678, 42
        %v7646 = vpop.permute.xlu0 %7645
        %7649 = vrot.lane.b32.xlu0 %v6675, 44
        %v7650 = vpop.permute.xlu0 %7649
        %7653 = vrot.lane.b32.xlu0 %v6679, 46
        %v7654 = vpop.permute.xlu0 %7653
        %7657 = vrot.lane.b32.xlu0 %v6720, 48
        %v7658 = vpop.permute.xlu0 %7657
        %7661 = vrot.lane.b32.xlu0 %v6744, 50
        %v7662 = vpop.permute.xlu0 %7661
        %7665 = vrot.lane.b32.xlu0 %v6727, 52
        %v7666 = vpop.permute.xlu0 %7665
        %7669 = vrot.lane.b32.xlu0 %v6745, 54
        %v7670 = vpop.permute.xlu0 %7669
        %7673 = vrot.lane.b32.xlu0 %v6736, 56
        %v7674 = vpop.permute.xlu0 %7673
        %7677 = vrot.lane.b32.xlu0 %v6746, 58
        %v7678 = vpop.permute.xlu0 %7677
        %7681 = vrot.lane.b32.xlu0 %v6743, 60
        %v7682 = vpop.permute.xlu0 %7681
        %7685 = vrot.lane.b32.xlu0 %v6747, 62
        %v7686 = vpop.permute.xlu0 %7685
        %7689 = vrot.lane.b32.xlu0 %v6788, 64
        %v7690 = vpop.permute.xlu0 %7689
        %7693 = vrot.lane.b32.xlu0 %v6812, 66
        %v7694 = vpop.permute.xlu0 %7693
        %7697 = vrot.lane.b32.xlu0 %v6795, 68
        %v7698 = vpop.permute.xlu0 %7697
        %7701 = vrot.lane.b32.xlu0 %v6813, 70
        %v7702 = vpop.permute.xlu0 %7701
        %7705 = vrot.lane.b32.xlu0 %v6804, 72
        %v7706 = vpop.permute.xlu0 %7705
        %7709 = vrot.lane.b32.xlu0 %v6814, 74
        %v7710 = vpop.permute.xlu0 %7709
        %7713 = vrot.lane.b32.xlu0 %v6811, 76
        %v7714 = vpop.permute.xlu0 %7713
        %7717 = vrot.lane.b32.xlu0 %v6815, 78
        %v7718 = vpop.permute.xlu0 %7717
        %7721 = vrot.lane.b32.xlu0 %v6856, 80
        %v7722 = vpop.permute.xlu0 %7721
        %7725 = vrot.lane.b32.xlu0 %v6880, 82
        %v7726 = vpop.permute.xlu0 %7725
        %7729 = vrot.lane.b32.xlu0 %v6863, 84
        %v7730 = vpop.permute.xlu0 %7729
        %7733 = vrot.lane.b32.xlu0 %v6881, 86
        %v7734 = vpop.permute.xlu0 %7733
        %7737 = vrot.lane.b32.xlu0 %v6872, 88
        %v7738 = vpop.permute.xlu0 %7737
        %7741 = vrot.lane.b32.xlu0 %v6882, 90
        %v7742 = vpop.permute.xlu0 %7741
        %7745 = vrot.lane.b32.xlu0 %v6879, 92
        %v7746 = vpop.permute.xlu0 %7745
        %7749 = vrot.lane.b32.xlu0 %v6883, 94
        %v7750 = vpop.permute.xlu0 %7749
        %7753 = vrot.lane.b32.xlu0 %v6924, 96
        %v7754 = vpop.permute.xlu0 %7753
        %7757 = vrot.lane.b32.xlu0 %v6948, 98
        %v7758 = vpop.permute.xlu0 %7757
        %7761 = vrot.lane.b32.xlu0 %v6931, 100
        %v7762 = vpop.permute.xlu0 %7761
        %7765 = vrot.lane.b32.xlu0 %v6949, 102
        %v7766 = vpop.permute.xlu0 %7765
        %7769 = vrot.lane.b32.xlu0 %v6940, 104
        %v7770 = vpop.permute.xlu0 %7769
        %7773 = vrot.lane.b32.xlu0 %v6950, 106
        %v7774 = vpop.permute.xlu0 %7773
        %7777 = vrot.lane.b32.xlu0 %v6947, 108
        %v7778 = vpop.permute.xlu0 %7777
        %7781 = vrot.lane.b32.xlu0 %v6951, 110
        %v7782 = vpop.permute.xlu0 %7781
        %7785 = vrot.lane.b32.xlu0 %v6992, 112
        %v7786 = vpop.permute.xlu0 %7785
        %7789 = vrot.lane.b32.xlu0 %v7016, 114
        %v7790 = vpop.permute.xlu0 %7789
        %7793 = vrot.lane.b32.xlu0 %v6999, 116
        %v7794 = vpop.permute.xlu0 %7793
        %7797 = vrot.lane.b32.xlu0 %v7017, 118
        %v7798 = vpop.permute.xlu0 %7797
        %7801 = vrot.lane.b32.xlu0 %v7008, 120
        %v7802 = vpop.permute.xlu0 %7801
        %7805 = vrot.lane.b32.xlu0 %v7018, 122
        %v7806 = vpop.permute.xlu0 %7805
        %7809 = vrot.lane.b32.xlu0 %v7015, 124
        %v7810 = vpop.permute.xlu0 %7809
        %7813 = vrot.lane.b32.xlu0 %v7019, 126
        %v7814 = vpop.permute.xlu0 %7813
        %7817 = vrot.lane.b32.xlu0 %v7084, 2
        %v7818 = vpop.permute.xlu0 %7817
        %7821 = vrot.lane.b32.xlu0 %v7067, 4
        %v7822 = vpop.permute.xlu0 %7821
        %7825 = vrot.lane.b32.xlu0 %v7085, 6
        %v7826 = vpop.permute.xlu0 %7825
        %7829 = vrot.lane.b32.xlu0 %v7076, 8
        %v7830 = vpop.permute.xlu0 %7829
        %7833 = vrot.lane.b32.xlu0 %v7086, 10
        %v7834 = vpop.permute.xlu0 %7833
        %7837 = vrot.lane.b32.xlu0 %v7083, 12
        %v7838 = vpop.permute.xlu0 %7837
        %7841 = vrot.lane.b32.xlu0 %v7087, 14
        %v7842 = vpop.permute.xlu0 %7841
        %7845 = vrot.lane.b32.xlu0 %v7128, 16
        %v7846 = vpop.permute.xlu0 %7845
        %7849 = vrot.lane.b32.xlu0 %v7152, 18
        %v7850 = vpop.permute.xlu0 %7849
        %7853 = vrot.lane.b32.xlu0 %v7135, 20
        %v7854 = vpop.permute.xlu0 %7853
        %7857 = vrot.lane.b32.xlu0 %v7153, 22
        %v7858 = vpop.permute.xlu0 %7857
        %7861 = vrot.lane.b32.xlu0 %v7144, 24
        %v7862 = vpop.permute.xlu0 %7861
        %7865 = vrot.lane.b32.xlu0 %v7154, 26
        %v7866 = vpop.permute.xlu0 %7865
        %7869 = vrot.lane.b32.xlu0 %v7151, 28
        %v7870 = vpop.permute.xlu0 %7869
        %7873 = vrot.lane.b32.xlu0 %v7155, 30
        %v7874 = vpop.permute.xlu0 %7873
        %7877 = vrot.lane.b32.xlu0 %v7196, 32
        %v7878 = vpop.permute.xlu0 %7877
        %7881 = vrot.lane.b32.xlu0 %v7220, 34
        %v7882 = vpop.permute.xlu0 %7881
        %7885 = vrot.lane.b32.xlu0 %v7203, 36
        %v7886 = vpop.permute.xlu0 %7885
        %7889 = vrot.lane.b32.xlu0 %v7221, 38
        %v7890 = vpop.permute.xlu0 %7889
        %7893 = vrot.lane.b32.xlu0 %v7212, 40
        %v7894 = vpop.permute.xlu0 %7893
        %7897 = vrot.lane.b32.xlu0 %v7222, 42
        %v7898 = vpop.permute.xlu0 %7897
        %7901 = vrot.lane.b32.xlu0 %v7219, 44
        %v7902 = vpop.permute.xlu0 %7901
        %7905 = vrot.lane.b32.xlu0 %v7223, 46
        %v7906 = vpop.permute.xlu0 %7905
        %7909 = vrot.lane.b32.xlu0 %v7264, 48
        %v7910 = vpop.permute.xlu0 %7909
        %7913 = vrot.lane.b32.xlu0 %v7288, 50
        %v7914 = vpop.permute.xlu0 %7913
        %7917 = vrot.lane.b32.xlu0 %v7271, 52
        %v7918 = vpop.permute.xlu0 %7917
        %7921 = vrot.lane.b32.xlu0 %v7289, 54
        %v7922 = vpop.permute.xlu0 %7921
        %7925 = vrot.lane.b32.xlu0 %v7280, 56
        %v7926 = vpop.permute.xlu0 %7925
        %7929 = vrot.lane.b32.xlu0 %v7290, 58
        %v7930 = vpop.permute.xlu0 %7929
        %7933 = vrot.lane.b32.xlu0 %v7287, 60
        %v7934 = vpop.permute.xlu0 %7933
        %7937 = vrot.lane.b32.xlu0 %v7291, 62
        %v7938 = vpop.permute.xlu0 %7937
        %7941 = vrot.lane.b32.xlu0 %v7332, 64
        %v7942 = vpop.permute.xlu0 %7941
        %7945 = vrot.lane.b32.xlu0 %v7356, 66
        %v7946 = vpop.permute.xlu0 %7945
        %7949 = vrot.lane.b32.xlu0 %v7339, 68
        %v7950 = vpop.permute.xlu0 %7949
        %7953 = vrot.lane.b32.xlu0 %v7357, 70
        %v7954 = vpop.permute.xlu0 %7953
        %7957 = vrot.lane.b32.xlu0 %v7348, 72
        %v7958 = vpop.permute.xlu0 %7957
        %7961 = vrot.lane.b32.xlu0 %v7358, 74
        %v7962 = vpop.permute.xlu0 %7961
        %7965 = vrot.lane.b32.xlu0 %v7355, 76
        %v7966 = vpop.permute.xlu0 %7965
        %7969 = vrot.lane.b32.xlu0 %v7359, 78
        %v7970 = vpop.permute.xlu0 %7969
        %7973 = vrot.lane.b32.xlu0 %v7400, 80
        %v7974 = vpop.permute.xlu0 %7973
        %7977 = vrot.lane.b32.xlu0 %v7424, 82
        %v7978 = vpop.permute.xlu0 %7977
        %7981 = vrot.lane.b32.xlu0 %v7407, 84
        %v7982 = vpop.permute.xlu0 %7981
        %7985 = vrot.lane.b32.xlu0 %v7425, 86
        %v7986 = vpop.permute.xlu0 %7985
        %7989 = vrot.lane.b32.xlu0 %v7416, 88
        %v7990 = vpop.permute.xlu0 %7989
        %7993 = vrot.lane.b32.xlu0 %v7426, 90
        %v7994 = vpop.permute.xlu0 %7993
        %7997 = vrot.lane.b32.xlu0 %v7423, 92
        %v7998 = vpop.permute.xlu0 %7997
        %8001 = vrot.lane.b32.xlu0 %v7427, 94
        %v8002 = vpop.permute.xlu0 %8001
        %8005 = vrot.lane.b32.xlu0 %v7468, 96
        %v8006 = vpop.permute.xlu0 %8005
        %8009 = vrot.lane.b32.xlu0 %v7492, 98
        %v8010 = vpop.permute.xlu0 %8009
        %8013 = vrot.lane.b32.xlu0 %v7475, 100
        %v8014 = vpop.permute.xlu0 %8013
        %8017 = vrot.lane.b32.xlu0 %v7493, 102
        %v8018 = vpop.permute.xlu0 %8017
        %8021 = vrot.lane.b32.xlu0 %v7484, 104
        %v8022 = vpop.permute.xlu0 %8021
        %8025 = vrot.lane.b32.xlu0 %v7494, 106
        %v8026 = vpop.permute.xlu0 %8025
        %8029 = vrot.lane.b32.xlu0 %v7491, 108
        %v8030 = vpop.permute.xlu0 %8029
        %8033 = vrot.lane.b32.xlu0 %v7495, 110
        %v8034 = vpop.permute.xlu0 %8033
        %8037 = vrot.lane.b32.xlu0 %v7536, 112
        %v8038 = vpop.permute.xlu0 %8037
        %8041 = vrot.lane.b32.xlu0 %v7560, 114
        %v8042 = vpop.permute.xlu0 %8041
        %8045 = vrot.lane.b32.xlu0 %v7543, 116
        %v8046 = vpop.permute.xlu0 %8045
        %8049 = vrot.lane.b32.xlu0 %v7561, 118
        %v8050 = vpop.permute.xlu0 %8049
        %8053 = vrot.lane.b32.xlu0 %v7552, 120
        %v8054 = vpop.permute.xlu0 %8053
        %8057 = vrot.lane.b32.xlu0 %v7562, 122
        %v8058 = vpop.permute.xlu0 %8057
        %8061 = vrot.lane.b32.xlu0 %v7559, 124
        %v8062 = vpop.permute.xlu0 %8061
        %8065 = vrot.lane.b32.xlu0 %v7563, 126
        %v8066 = vpop.permute.xlu0 %8065
        %v8068 = vsel %vm3072, %v6516, %v7566
        %v8069 = vsel %vm3074, %v8068, %v7570
        %v8070 = vsel %vm3076, %v8069, %v7574
        %v8071 = vsel %vm3078, %v8070, %v7578
        %v8072 = vsel %vm3080, %v8071, %v7582
        %v8073 = vsel %vm3082, %v8072, %v7586
        %v8074 = vsel %vm3084, %v8073, %v7590
        %v8075 = vsel %vm435, %v8074, %v7594
        %v8076 = vsel %vm3087, %v8075, %v7598
        %v8077 = vsel %vm3089, %v8076, %v7602
        %v8078 = vsel %vm3091, %v8077, %v7606
        %v8079 = vsel %vm3093, %v8078, %v7610
        %v8080 = vsel %vm3095, %v8079, %v7614
        %v8081 = vsel %vm3097, %v8080, %v7618
        %v8082 = vsel %vm3099, %v8081, %v7622
        %v8083 = vsel %vm437, %v8082, %v7626
        %v8084 = vsel %vm3102, %v8083, %v7630
        %v8085 = vsel %vm3104, %v8084, %v7634
        %v8086 = vsel %vm3106, %v8085, %v7638
        %v8087 = vsel %vm3108, %v8086, %v7642
        %v8088 = vsel %vm3110, %v8087, %v7646
        %v8089 = vsel %vm3112, %v8088, %v7650
        %v8090 = vsel %vm3114, %v8089, %v7654
        %v8091 = vsel %vm439, %v8090, %v7658
        %v8092 = vsel %vm3117, %v8091, %v7662
        %v8093 = vsel %vm3119, %v8092, %v7666
        %v8094 = vsel %vm3121, %v8093, %v7670
        %v8095 = vsel %vm3123, %v8094, %v7674
        %v8096 = vsel %vm3125, %v8095, %v7678
        %v8097 = vsel %vm3127, %v8096, %v7682
        %v8098 = vsel %vm3129, %v8097, %v7686
        %v8099 = vsel %vm441, %v8098, %v7690
        %v8100 = vsel %vm3132, %v8099, %v7694
        %v8101 = vsel %vm3134, %v8100, %v7698
        %v8102 = vsel %vm3136, %v8101, %v7702
        %v8103 = vsel %vm3138, %v8102, %v7706
        %v8104 = vsel %vm3140, %v8103, %v7710
        %v8105 = vsel %vm3142, %v8104, %v7714
        %v8106 = vsel %vm3144, %v8105, %v7718
        %v8107 = vsel %vm443, %v8106, %v7722
        %v8108 = vsel %vm3147, %v8107, %v7726
        %v8109 = vsel %vm3149, %v8108, %v7730
        %v8110 = vsel %vm3151, %v8109, %v7734
        %v8111 = vsel %vm3153, %v8110, %v7738
        %v8112 = vsel %vm3155, %v8111, %v7742
        %v8113 = vsel %vm3157, %v8112, %v7746
        %v8114 = vsel %vm3159, %v8113, %v7750
        %v8115 = vsel %vm445, %v8114, %v7754
        %v8116 = vsel %vm3162, %v8115, %v7758
        %v8117 = vsel %vm3164, %v8116, %v7762
        %v8118 = vsel %vm3166, %v8117, %v7766
        %v8119 = vsel %vm3168, %v8118, %v7770
        %v8120 = vsel %vm3170, %v8119, %v7774
        %v8121 = vsel %vm3172, %v8120, %v7778
        %v8122 = vsel %vm3174, %v8121, %v7782
        %v8123 = vsel %vm447, %v8122, %v7786
        %v8124 = vsel %vm3177, %v8123, %v7790
        %v8125 = vsel %vm3179, %v8124, %v7794
        %v8126 = vsel %vm3181, %v8125, %v7798
        %v8127 = vsel %vm3183, %v8126, %v7802
        %v8128 = vsel %vm3185, %v8127, %v7806
        %v8129 = vsel %vm3187, %v8128, %v7810
        %v8130 = vsel %vm3189, %v8129, %v7814
        %v8131 = vsel %vm3072, %v7060, %v7818
        %v8132 = vsel %vm3074, %v8131, %v7822
        %v8133 = vsel %vm3076, %v8132, %v7826
        %v8134 = vsel %vm3078, %v8133, %v7830
        %v8135 = vsel %vm3080, %v8134, %v7834
        %v8136 = vsel %vm3082, %v8135, %v7838
        %v8137 = vsel %vm3084, %v8136, %v7842
        %v8138 = vsel %vm435, %v8137, %v7846
        %v8139 = vsel %vm3087, %v8138, %v7850
        %v8140 = vsel %vm3089, %v8139, %v7854
        %v8141 = vsel %vm3091, %v8140, %v7858
        %v8142 = vsel %vm3093, %v8141, %v7862
        %v8143 = vsel %vm3095, %v8142, %v7866
        %v8144 = vsel %vm3097, %v8143, %v7870
        %v8145 = vsel %vm3099, %v8144, %v7874
        %v8146 = vsel %vm437, %v8145, %v7878
        %v8147 = vsel %vm3102, %v8146, %v7882
        %v8148 = vsel %vm3104, %v8147, %v7886
        %v8149 = vsel %vm3106, %v8148, %v7890
        %v8150 = vsel %vm3108, %v8149, %v7894
        %v8151 = vsel %vm3110, %v8150, %v7898
        %v8152 = vsel %vm3112, %v8151, %v7902
        %v8153 = vsel %vm3114, %v8152, %v7906
        %v8154 = vsel %vm439, %v8153, %v7910
        %v8155 = vsel %vm3117, %v8154, %v7914
        %v8156 = vsel %vm3119, %v8155, %v7918
        %v8157 = vsel %vm3121, %v8156, %v7922
        %v8158 = vsel %vm3123, %v8157, %v7926
        %v8159 = vsel %vm3125, %v8158, %v7930
        %v8160 = vsel %vm3127, %v8159, %v7934
        %v8161 = vsel %vm3129, %v8160, %v7938
        %v8162 = vsel %vm441, %v8161, %v7942
        %v8163 = vsel %vm3132, %v8162, %v7946
        %v8164 = vsel %vm3134, %v8163, %v7950
        %v8165 = vsel %vm3136, %v8164, %v7954
        %v8166 = vsel %vm3138, %v8165, %v7958
        %v8167 = vsel %vm3140, %v8166, %v7962
        %v8168 = vsel %vm3142, %v8167, %v7966
        %v8169 = vsel %vm3144, %v8168, %v7970
        %v8170 = vsel %vm443, %v8169, %v7974
        %v8171 = vsel %vm3147, %v8170, %v7978
        %v8172 = vsel %vm3149, %v8171, %v7982
        %v8173 = vsel %vm3151, %v8172, %v7986
        %v8174 = vsel %vm3153, %v8173, %v7990
        %v8175 = vsel %vm3155, %v8174, %v7994
        %v8176 = vsel %vm3157, %v8175, %v7998
        %v8177 = vsel %vm3159, %v8176, %v8002
        %v8178 = vsel %vm445, %v8177, %v8006
        %v8179 = vsel %vm3162, %v8178, %v8010
        %v8180 = vsel %vm3164, %v8179, %v8014
        %v8181 = vsel %vm3166, %v8180, %v8018
        %v8182 = vsel %vm3168, %v8181, %v8022
        %v8183 = vsel %vm3170, %v8182, %v8026
        %v8184 = vsel %vm3172, %v8183, %v8030
        %v8185 = vsel %vm3174, %v8184, %v8034
        %v8186 = vsel %vm447, %v8185, %v8038
        %v8187 = vsel %vm3177, %v8186, %v8042
        %v8188 = vsel %vm3179, %v8187, %v8046
        %v8189 = vsel %vm3181, %v8188, %v8050
        %v8190 = vsel %vm3183, %v8189, %v8054
        %v8191 = vsel %vm3185, %v8190, %v8058
        %v8192 = vsel %vm3187, %v8191, %v8062
        %v8193 = vsel %vm3189, %v8192, %v8066
        %v8194 = vlaneseq
        %v8195 = vshrl.u32 %v8194, 7
        %v8196 = vsub.s32 0, %v8195
        %v8197 = vrot.slane %v6205, %v8196
        %8199 = vbcast.lane.b32.xlu0 %v8197, 256
        %v8200 = vpop.permute.xlu0 %8199
        %s8202 = sor.u32 256, 8
        %8203 = vbcast.lane.b32.xlu0 %v8197, %s8202
        %v8204 = vpop.permute.xlu0 %8203
        %s8206 = sor.u32 256, 16
        %8207 = vbcast.lane.b32.xlu0 %v8197, %s8206
        %v8208 = vpop.permute.xlu0 %8207
        %s8210 = sor.u32 256, 24
        %8211 = vbcast.lane.b32.xlu0 %v8197, %s8210
        %v8212 = vpop.permute.xlu0 %8211
        %s8214 = sor.u32 256, 32
        %8215 = vbcast.lane.b32.xlu0 %v8197, %s8214
        %v8216 = vpop.permute.xlu0 %8215
        %s8218 = sor.u32 256, 40
        %8219 = vbcast.lane.b32.xlu0 %v8197, %s8218
        %v8220 = vpop.permute.xlu0 %8219
        %s8222 = sor.u32 256, 48
        %8223 = vbcast.lane.b32.xlu0 %v8197, %s8222
        %v8224 = vpop.permute.xlu0 %8223
        %s8226 = sor.u32 256, 56
        %8227 = vbcast.lane.b32.xlu0 %v8197, %s8226
        %v8228 = vpop.permute.xlu0 %8227
        %s8230 = sor.u32 256, 64
        %8231 = vbcast.lane.b32.xlu0 %v8197, %s8230
        %v8232 = vpop.permute.xlu0 %8231
        %s8234 = sor.u32 256, 72
        %8235 = vbcast.lane.b32.xlu0 %v8197, %s8234
        %v8236 = vpop.permute.xlu0 %8235
        %s8238 = sor.u32 256, 80
        %8239 = vbcast.lane.b32.xlu0 %v8197, %s8238
        %v8240 = vpop.permute.xlu0 %8239
        %s8242 = sor.u32 256, 88
        %8243 = vbcast.lane.b32.xlu0 %v8197, %s8242
        %v8244 = vpop.permute.xlu0 %8243
        %s8246 = sor.u32 256, 96
        %8247 = vbcast.lane.b32.xlu0 %v8197, %s8246
        %v8248 = vpop.permute.xlu0 %8247
        %s8250 = sor.u32 256, 104
        %8251 = vbcast.lane.b32.xlu0 %v8197, %s8250
        %v8252 = vpop.permute.xlu0 %8251
        %s8254 = sor.u32 256, 112
        %8255 = vbcast.lane.b32.xlu0 %v8197, %s8254
        %v8256 = vpop.permute.xlu0 %8255
        %s8258 = sor.u32 256, 120
        %8259 = vbcast.lane.b32.xlu0 %v8197, %s8258
        %v8260 = vpop.permute.xlu0 %8259
        %v8261 = vlaneseq
        %v8262 = vshrl.u32 %v8261, 7
        %v8263 = vsub.s32 1, %v8262
        %v8264 = vrot.slane %v6205, %v8263
        %8266 = vbcast.lane.b32.xlu0 %v8264, 256
        %v8267 = vpop.permute.xlu0 %8266
        %s8269 = sor.u32 256, 8
        %8270 = vbcast.lane.b32.xlu0 %v8264, %s8269
        %v8271 = vpop.permute.xlu0 %8270
        %s8273 = sor.u32 256, 16
        %8274 = vbcast.lane.b32.xlu0 %v8264, %s8273
        %v8275 = vpop.permute.xlu0 %8274
        %s8277 = sor.u32 256, 24
        %8278 = vbcast.lane.b32.xlu0 %v8264, %s8277
        %v8279 = vpop.permute.xlu0 %8278
        %s8281 = sor.u32 256, 32
        %8282 = vbcast.lane.b32.xlu0 %v8264, %s8281
        %v8283 = vpop.permute.xlu0 %8282
        %s8285 = sor.u32 256, 40
        %8286 = vbcast.lane.b32.xlu0 %v8264, %s8285
        %v8287 = vpop.permute.xlu0 %8286
        %s8289 = sor.u32 256, 48
        %8290 = vbcast.lane.b32.xlu0 %v8264, %s8289
        %v8291 = vpop.permute.xlu0 %8290
        %s8293 = sor.u32 256, 56
        %8294 = vbcast.lane.b32.xlu0 %v8264, %s8293
        %v8295 = vpop.permute.xlu0 %8294
        %s8297 = sor.u32 256, 64
        %8298 = vbcast.lane.b32.xlu0 %v8264, %s8297
        %v8299 = vpop.permute.xlu0 %8298
        %s8301 = sor.u32 256, 72
        %8302 = vbcast.lane.b32.xlu0 %v8264, %s8301
        %v8303 = vpop.permute.xlu0 %8302
        %s8305 = sor.u32 256, 80
        %8306 = vbcast.lane.b32.xlu0 %v8264, %s8305
        %v8307 = vpop.permute.xlu0 %8306
        %s8309 = sor.u32 256, 88
        %8310 = vbcast.lane.b32.xlu0 %v8264, %s8309
        %v8311 = vpop.permute.xlu0 %8310
        %s8313 = sor.u32 256, 96
        %8314 = vbcast.lane.b32.xlu0 %v8264, %s8313
        %v8315 = vpop.permute.xlu0 %8314
        %s8317 = sor.u32 256, 104
        %8318 = vbcast.lane.b32.xlu0 %v8264, %s8317
        %v8319 = vpop.permute.xlu0 %8318
        %s8321 = sor.u32 256, 112
        %8322 = vbcast.lane.b32.xlu0 %v8264, %s8321
        %v8323 = vpop.permute.xlu0 %8322
        %s8325 = sor.u32 256, 120
        %8326 = vbcast.lane.b32.xlu0 %v8264, %s8325
        %v8327 = vpop.permute.xlu0 %8326
        %v8328 = vlaneseq
        %v8329 = vshrl.u32 %v8328, 7
        %v8330 = vsub.s32 2, %v8329
        %v8331 = vrot.slane %v6205, %v8330
        %8333 = vbcast.lane.b32.xlu0 %v8331, 256
        %v8334 = vpop.permute.xlu0 %8333
        %s8336 = sor.u32 256, 8
        %8337 = vbcast.lane.b32.xlu0 %v8331, %s8336
        %v8338 = vpop.permute.xlu0 %8337
        %s8340 = sor.u32 256, 16
        %8341 = vbcast.lane.b32.xlu0 %v8331, %s8340
        %v8342 = vpop.permute.xlu0 %8341
        %s8344 = sor.u32 256, 24
        %8345 = vbcast.lane.b32.xlu0 %v8331, %s8344
        %v8346 = vpop.permute.xlu0 %8345
        %s8348 = sor.u32 256, 32
        %8349 = vbcast.lane.b32.xlu0 %v8331, %s8348
        %v8350 = vpop.permute.xlu0 %8349
        %s8352 = sor.u32 256, 40
        %8353 = vbcast.lane.b32.xlu0 %v8331, %s8352
        %v8354 = vpop.permute.xlu0 %8353
        %s8356 = sor.u32 256, 48
        %8357 = vbcast.lane.b32.xlu0 %v8331, %s8356
        %v8358 = vpop.permute.xlu0 %8357
        %s8360 = sor.u32 256, 56
        %8361 = vbcast.lane.b32.xlu0 %v8331, %s8360
        %v8362 = vpop.permute.xlu0 %8361
        %s8364 = sor.u32 256, 64
        %8365 = vbcast.lane.b32.xlu0 %v8331, %s8364
        %v8366 = vpop.permute.xlu0 %8365
        %s8368 = sor.u32 256, 72
        %8369 = vbcast.lane.b32.xlu0 %v8331, %s8368
        %v8370 = vpop.permute.xlu0 %8369
        %s8372 = sor.u32 256, 80
        %8373 = vbcast.lane.b32.xlu0 %v8331, %s8372
        %v8374 = vpop.permute.xlu0 %8373
        %s8376 = sor.u32 256, 88
        %8377 = vbcast.lane.b32.xlu0 %v8331, %s8376
        %v8378 = vpop.permute.xlu0 %8377
        %s8380 = sor.u32 256, 96
        %8381 = vbcast.lane.b32.xlu0 %v8331, %s8380
        %v8382 = vpop.permute.xlu0 %8381
        %s8384 = sor.u32 256, 104
        %8385 = vbcast.lane.b32.xlu0 %v8331, %s8384
        %v8386 = vpop.permute.xlu0 %8385
        %s8388 = sor.u32 256, 112
        %8389 = vbcast.lane.b32.xlu0 %v8331, %s8388
        %v8390 = vpop.permute.xlu0 %8389
        %s8392 = sor.u32 256, 120
        %8393 = vbcast.lane.b32.xlu0 %v8331, %s8392
        %v8394 = vpop.permute.xlu0 %8393
        %v8395 = vlaneseq
        %v8396 = vshrl.u32 %v8395, 7
        %v8397 = vsub.s32 3, %v8396
        %v8398 = vrot.slane %v6205, %v8397
        %8400 = vbcast.lane.b32.xlu0 %v8398, 256
        %v8401 = vpop.permute.xlu0 %8400
        %s8403 = sor.u32 256, 8
        %8404 = vbcast.lane.b32.xlu0 %v8398, %s8403
        %v8405 = vpop.permute.xlu0 %8404
        %s8407 = sor.u32 256, 16
        %8408 = vbcast.lane.b32.xlu0 %v8398, %s8407
        %v8409 = vpop.permute.xlu0 %8408
        %s8411 = sor.u32 256, 24
        %8412 = vbcast.lane.b32.xlu0 %v8398, %s8411
        %v8413 = vpop.permute.xlu0 %8412
        %s8415 = sor.u32 256, 32
        %8416 = vbcast.lane.b32.xlu0 %v8398, %s8415
        %v8417 = vpop.permute.xlu0 %8416
        %s8419 = sor.u32 256, 40
        %8420 = vbcast.lane.b32.xlu0 %v8398, %s8419
        %v8421 = vpop.permute.xlu0 %8420
        %s8423 = sor.u32 256, 48
        %8424 = vbcast.lane.b32.xlu0 %v8398, %s8423
        %v8425 = vpop.permute.xlu0 %8424
        %s8427 = sor.u32 256, 56
        %8428 = vbcast.lane.b32.xlu0 %v8398, %s8427
        %v8429 = vpop.permute.xlu0 %8428
        %s8431 = sor.u32 256, 64
        %8432 = vbcast.lane.b32.xlu0 %v8398, %s8431
        %v8433 = vpop.permute.xlu0 %8432
        %s8435 = sor.u32 256, 72
        %8436 = vbcast.lane.b32.xlu0 %v8398, %s8435
        %v8437 = vpop.permute.xlu0 %8436
        %s8439 = sor.u32 256, 80
        %8440 = vbcast.lane.b32.xlu0 %v8398, %s8439
        %v8441 = vpop.permute.xlu0 %8440
        %s8443 = sor.u32 256, 88
        %8444 = vbcast.lane.b32.xlu0 %v8398, %s8443
        %v8445 = vpop.permute.xlu0 %8444
        %s8447 = sor.u32 256, 96
        %8448 = vbcast.lane.b32.xlu0 %v8398, %s8447
        %v8449 = vpop.permute.xlu0 %8448
        %s8451 = sor.u32 256, 104
        %8452 = vbcast.lane.b32.xlu0 %v8398, %s8451
        %v8453 = vpop.permute.xlu0 %8452
        %s8455 = sor.u32 256, 112
        %8456 = vbcast.lane.b32.xlu0 %v8398, %s8455
        %v8457 = vpop.permute.xlu0 %8456
        %s8459 = sor.u32 256, 120
        %8460 = vbcast.lane.b32.xlu0 %v8398, %s8459
        %v8461 = vpop.permute.xlu0 %8460
        %v8462 = vcombine.low %v8200, %v8334
        %v8463 = vcombine.high %v8200, %v8334
        %v8465 = vunpack.c.l.s4 1983009808
        %v8466 = vunpack.c.0.s8 %v8465
        %v8467 = vlaneseq
        %v8468 = vshrl.u32 %v8467, 7
        %v8469 = vsub.s32 %v8466, %v8468
        %v8470 = vrot.slane %v8462, %v8469
        %v8472 = vunpack.c.l.s4 1983009808
        %v8473 = vunpack.c.0.s8 %v8472
        %v8474 = vlaneseq
        %v8475 = vshrl.u32 %v8474, 7
        %v8476 = vsub.s32 %v8473, %v8475
        %v8477 = vrot.slane %v8463, %v8476
        %v8478 = vcombine.low %v8267, %v8401
        %v8479 = vcombine.high %v8267, %v8401
        %v8481 = vunpack.c.l.s4 1983009808
        %v8482 = vunpack.c.0.s8 %v8481
        %v8483 = vlaneseq
        %v8484 = vshrl.u32 %v8483, 7
        %v8485 = vsub.s32 %v8482, %v8484
        %v8486 = vrot.slane %v8478, %v8485
        %v8488 = vunpack.c.l.s4 1983009808
        %v8489 = vunpack.c.0.s8 %v8488
        %v8490 = vlaneseq
        %v8491 = vshrl.u32 %v8490, 7
        %v8492 = vsub.s32 %v8489, %v8491
        %v8493 = vrot.slane %v8479, %v8492
        %v8494 = vcombine.low %v8470, %v8486
        %v8495 = vcombine.high %v8470, %v8486
        %v8497 = vunpack.c.l.s4 1934713408
        %v8498 = vunpack.c.0.s8 %v8497
        %v8499 = vlaneseq
        %v8500 = vshrl.u32 %v8499, 7
        %v8501 = vsub.s32 %v8498, %v8500
        %v8502 = vrot.slane %v8494, %v8501
        %v8504 = vunpack.c.l.s4 1934713408
        %v8505 = vunpack.c.0.s8 %v8504
        %v8506 = vlaneseq
        %v8507 = vshrl.u32 %v8506, 7
        %v8508 = vsub.s32 %v8505, %v8507
        %v8509 = vrot.slane %v8495, %v8508
        %v8510 = vcombine.low %v8477, %v8493
        %v8511 = vcombine.high %v8477, %v8493
        %v8513 = vunpack.c.l.s4 1934713408
        %v8514 = vunpack.c.0.s8 %v8513
        %v8515 = vlaneseq
        %v8516 = vshrl.u32 %v8515, 7
        %v8517 = vsub.s32 %v8514, %v8516
        %v8518 = vrot.slane %v8510, %v8517
        %v8520 = vunpack.c.l.s4 1934713408
        %v8521 = vunpack.c.0.s8 %v8520
        %v8522 = vlaneseq
        %v8523 = vshrl.u32 %v8522, 7
        %v8524 = vsub.s32 %v8521, %v8523
        %v8525 = vrot.slane %v8511, %v8524
        %v8526 = vcombine.high %v8502, 0.0
        %v8527 = vcombine.high %v8509, 0.0
        %v8528 = vcombine.high %v8518, 0.0
        %v8529 = vcombine.high %v8525, 0.0
        %v8530 = vcombine.low %v8204, %v8338
        %v8531 = vcombine.high %v8204, %v8338
        %v8533 = vunpack.c.l.s4 1983009808
        %v8534 = vunpack.c.0.s8 %v8533
        %v8535 = vlaneseq
        %v8536 = vshrl.u32 %v8535, 7
        %v8537 = vsub.s32 %v8534, %v8536
        %v8538 = vrot.slane %v8530, %v8537
        %v8540 = vunpack.c.l.s4 1983009808
        %v8541 = vunpack.c.0.s8 %v8540
        %v8542 = vlaneseq
        %v8543 = vshrl.u32 %v8542, 7
        %v8544 = vsub.s32 %v8541, %v8543
        %v8545 = vrot.slane %v8531, %v8544
        %v8546 = vcombine.low %v8271, %v8405
        %v8547 = vcombine.high %v8271, %v8405
        %v8549 = vunpack.c.l.s4 1983009808
        %v8550 = vunpack.c.0.s8 %v8549
        %v8551 = vlaneseq
        %v8552 = vshrl.u32 %v8551, 7
        %v8553 = vsub.s32 %v8550, %v8552
        %v8554 = vrot.slane %v8546, %v8553
        %v8556 = vunpack.c.l.s4 1983009808
        %v8557 = vunpack.c.0.s8 %v8556
        %v8558 = vlaneseq
        %v8559 = vshrl.u32 %v8558, 7
        %v8560 = vsub.s32 %v8557, %v8559
        %v8561 = vrot.slane %v8547, %v8560
        %v8562 = vcombine.low %v8538, %v8554
        %v8563 = vcombine.high %v8538, %v8554
        %v8565 = vunpack.c.l.s4 1934713408
        %v8566 = vunpack.c.0.s8 %v8565
        %v8567 = vlaneseq
        %v8568 = vshrl.u32 %v8567, 7
        %v8569 = vsub.s32 %v8566, %v8568
        %v8570 = vrot.slane %v8562, %v8569
        %v8572 = vunpack.c.l.s4 1934713408
        %v8573 = vunpack.c.0.s8 %v8572
        %v8574 = vlaneseq
        %v8575 = vshrl.u32 %v8574, 7
        %v8576 = vsub.s32 %v8573, %v8575
        %v8577 = vrot.slane %v8563, %v8576
        %v8578 = vcombine.low %v8545, %v8561
        %v8579 = vcombine.high %v8545, %v8561
        %v8581 = vunpack.c.l.s4 1934713408
        %v8582 = vunpack.c.0.s8 %v8581
        %v8583 = vlaneseq
        %v8584 = vshrl.u32 %v8583, 7
        %v8585 = vsub.s32 %v8582, %v8584
        %v8586 = vrot.slane %v8578, %v8585
        %v8588 = vunpack.c.l.s4 1934713408
        %v8589 = vunpack.c.0.s8 %v8588
        %v8590 = vlaneseq
        %v8591 = vshrl.u32 %v8590, 7
        %v8592 = vsub.s32 %v8589, %v8591
        %v8593 = vrot.slane %v8579, %v8592
        %v8594 = vcombine.high %v8570, 0.0
        %v8595 = vcombine.high %v8577, 0.0
        %v8596 = vcombine.high %v8586, 0.0
        %v8597 = vcombine.high %v8593, 0.0
        %v8598 = vcombine.low %v8208, %v8342
        %v8599 = vcombine.high %v8208, %v8342
        %v8601 = vunpack.c.l.s4 1983009808
        %v8602 = vunpack.c.0.s8 %v8601
        %v8603 = vlaneseq
        %v8604 = vshrl.u32 %v8603, 7
        %v8605 = vsub.s32 %v8602, %v8604
        %v8606 = vrot.slane %v8598, %v8605
        %v8608 = vunpack.c.l.s4 1983009808
        %v8609 = vunpack.c.0.s8 %v8608
        %v8610 = vlaneseq
        %v8611 = vshrl.u32 %v8610, 7
        %v8612 = vsub.s32 %v8609, %v8611
        %v8613 = vrot.slane %v8599, %v8612
        %v8614 = vcombine.low %v8275, %v8409
        %v8615 = vcombine.high %v8275, %v8409
        %v8617 = vunpack.c.l.s4 1983009808
        %v8618 = vunpack.c.0.s8 %v8617
        %v8619 = vlaneseq
        %v8620 = vshrl.u32 %v8619, 7
        %v8621 = vsub.s32 %v8618, %v8620
        %v8622 = vrot.slane %v8614, %v8621
        %v8624 = vunpack.c.l.s4 1983009808
        %v8625 = vunpack.c.0.s8 %v8624
        %v8626 = vlaneseq
        %v8627 = vshrl.u32 %v8626, 7
        %v8628 = vsub.s32 %v8625, %v8627
        %v8629 = vrot.slane %v8615, %v8628
        %v8630 = vcombine.low %v8606, %v8622
        %v8631 = vcombine.high %v8606, %v8622
        %v8633 = vunpack.c.l.s4 1934713408
        %v8634 = vunpack.c.0.s8 %v8633
        %v8635 = vlaneseq
        %v8636 = vshrl.u32 %v8635, 7
        %v8637 = vsub.s32 %v8634, %v8636
        %v8638 = vrot.slane %v8630, %v8637
        %v8640 = vunpack.c.l.s4 1934713408
        %v8641 = vunpack.c.0.s8 %v8640
        %v8642 = vlaneseq
        %v8643 = vshrl.u32 %v8642, 7
        %v8644 = vsub.s32 %v8641, %v8643
        %v8645 = vrot.slane %v8631, %v8644
        %v8646 = vcombine.low %v8613, %v8629
        %v8647 = vcombine.high %v8613, %v8629
        %v8649 = vunpack.c.l.s4 1934713408
        %v8650 = vunpack.c.0.s8 %v8649
        %v8651 = vlaneseq
        %v8652 = vshrl.u32 %v8651, 7
        %v8653 = vsub.s32 %v8650, %v8652
        %v8654 = vrot.slane %v8646, %v8653
        %v8656 = vunpack.c.l.s4 1934713408
        %v8657 = vunpack.c.0.s8 %v8656
        %v8658 = vlaneseq
        %v8659 = vshrl.u32 %v8658, 7
        %v8660 = vsub.s32 %v8657, %v8659
        %v8661 = vrot.slane %v8647, %v8660
        %v8662 = vcombine.high %v8638, 0.0
        %v8663 = vcombine.high %v8645, 0.0
        %v8664 = vcombine.high %v8654, 0.0
        %v8665 = vcombine.high %v8661, 0.0
        %v8666 = vcombine.low %v8212, %v8346
        %v8667 = vcombine.high %v8212, %v8346
        %v8669 = vunpack.c.l.s4 1983009808
        %v8670 = vunpack.c.0.s8 %v8669
        %v8671 = vlaneseq
        %v8672 = vshrl.u32 %v8671, 7
        %v8673 = vsub.s32 %v8670, %v8672
        %v8674 = vrot.slane %v8666, %v8673
        %v8676 = vunpack.c.l.s4 1983009808
        %v8677 = vunpack.c.0.s8 %v8676
        %v8678 = vlaneseq
        %v8679 = vshrl.u32 %v8678, 7
        %v8680 = vsub.s32 %v8677, %v8679
        %v8681 = vrot.slane %v8667, %v8680
        %v8682 = vcombine.low %v8279, %v8413
        %v8683 = vcombine.high %v8279, %v8413
        %v8685 = vunpack.c.l.s4 1983009808
        %v8686 = vunpack.c.0.s8 %v8685
        %v8687 = vlaneseq
        %v8688 = vshrl.u32 %v8687, 7
        %v8689 = vsub.s32 %v8686, %v8688
        %v8690 = vrot.slane %v8682, %v8689
        %v8692 = vunpack.c.l.s4 1983009808
        %v8693 = vunpack.c.0.s8 %v8692
        %v8694 = vlaneseq
        %v8695 = vshrl.u32 %v8694, 7
        %v8696 = vsub.s32 %v8693, %v8695
        %v8697 = vrot.slane %v8683, %v8696
        %v8698 = vcombine.low %v8674, %v8690
        %v8699 = vcombine.high %v8674, %v8690
        %v8701 = vunpack.c.l.s4 1934713408
        %v8702 = vunpack.c.0.s8 %v8701
        %v8703 = vlaneseq
        %v8704 = vshrl.u32 %v8703, 7
        %v8705 = vsub.s32 %v8702, %v8704
        %v8706 = vrot.slane %v8698, %v8705
        %v8708 = vunpack.c.l.s4 1934713408
        %v8709 = vunpack.c.0.s8 %v8708
        %v8710 = vlaneseq
        %v8711 = vshrl.u32 %v8710, 7
        %v8712 = vsub.s32 %v8709, %v8711
        %v8713 = vrot.slane %v8699, %v8712
        %v8714 = vcombine.low %v8681, %v8697
        %v8715 = vcombine.high %v8681, %v8697
        %v8717 = vunpack.c.l.s4 1934713408
        %v8718 = vunpack.c.0.s8 %v8717
        %v8719 = vlaneseq
        %v8720 = vshrl.u32 %v8719, 7
        %v8721 = vsub.s32 %v8718, %v8720
        %v8722 = vrot.slane %v8714, %v8721
        %v8724 = vunpack.c.l.s4 1934713408
        %v8725 = vunpack.c.0.s8 %v8724
        %v8726 = vlaneseq
        %v8727 = vshrl.u32 %v8726, 7
        %v8728 = vsub.s32 %v8725, %v8727
        %v8729 = vrot.slane %v8715, %v8728
        %v8730 = vcombine.high %v8706, 0.0
        %v8731 = vcombine.high %v8713, 0.0
        %v8732 = vcombine.high %v8722, 0.0
        %v8733 = vcombine.high %v8729, 0.0
        %v8734 = vcombine.low %v8216, %v8350
        %v8735 = vcombine.high %v8216, %v8350
        %v8737 = vunpack.c.l.s4 1983009808
        %v8738 = vunpack.c.0.s8 %v8737
        %v8739 = vlaneseq
        %v8740 = vshrl.u32 %v8739, 7
        %v8741 = vsub.s32 %v8738, %v8740
        %v8742 = vrot.slane %v8734, %v8741
        %v8744 = vunpack.c.l.s4 1983009808
        %v8745 = vunpack.c.0.s8 %v8744
        %v8746 = vlaneseq
        %v8747 = vshrl.u32 %v8746, 7
        %v8748 = vsub.s32 %v8745, %v8747
        %v8749 = vrot.slane %v8735, %v8748
        %v8750 = vcombine.low %v8283, %v8417
        %v8751 = vcombine.high %v8283, %v8417
        %v8753 = vunpack.c.l.s4 1983009808
        %v8754 = vunpack.c.0.s8 %v8753
        %v8755 = vlaneseq
        %v8756 = vshrl.u32 %v8755, 7
        %v8757 = vsub.s32 %v8754, %v8756
        %v8758 = vrot.slane %v8750, %v8757
        %v8760 = vunpack.c.l.s4 1983009808
        %v8761 = vunpack.c.0.s8 %v8760
        %v8762 = vlaneseq
        %v8763 = vshrl.u32 %v8762, 7
        %v8764 = vsub.s32 %v8761, %v8763
        %v8765 = vrot.slane %v8751, %v8764
        %v8766 = vcombine.low %v8742, %v8758
        %v8767 = vcombine.high %v8742, %v8758
        %v8769 = vunpack.c.l.s4 1934713408
        %v8770 = vunpack.c.0.s8 %v8769
        %v8771 = vlaneseq
        %v8772 = vshrl.u32 %v8771, 7
        %v8773 = vsub.s32 %v8770, %v8772
        %v8774 = vrot.slane %v8766, %v8773
        %v8776 = vunpack.c.l.s4 1934713408
        %v8777 = vunpack.c.0.s8 %v8776
        %v8778 = vlaneseq
        %v8779 = vshrl.u32 %v8778, 7
        %v8780 = vsub.s32 %v8777, %v8779
        %v8781 = vrot.slane %v8767, %v8780
        %v8782 = vcombine.low %v8749, %v8765
        %v8783 = vcombine.high %v8749, %v8765
        %v8785 = vunpack.c.l.s4 1934713408
        %v8786 = vunpack.c.0.s8 %v8785
        %v8787 = vlaneseq
        %v8788 = vshrl.u32 %v8787, 7
        %v8789 = vsub.s32 %v8786, %v8788
        %v8790 = vrot.slane %v8782, %v8789
        %v8792 = vunpack.c.l.s4 1934713408
        %v8793 = vunpack.c.0.s8 %v8792
        %v8794 = vlaneseq
        %v8795 = vshrl.u32 %v8794, 7
        %v8796 = vsub.s32 %v8793, %v8795
        %v8797 = vrot.slane %v8783, %v8796
        %v8798 = vcombine.high %v8774, 0.0
        %v8799 = vcombine.high %v8781, 0.0
        %v8800 = vcombine.high %v8790, 0.0
        %v8801 = vcombine.high %v8797, 0.0
        %v8802 = vcombine.low %v8220, %v8354
        %v8803 = vcombine.high %v8220, %v8354
        %v8805 = vunpack.c.l.s4 1983009808
        %v8806 = vunpack.c.0.s8 %v8805
        %v8807 = vlaneseq
        %v8808 = vshrl.u32 %v8807, 7
        %v8809 = vsub.s32 %v8806, %v8808
        %v8810 = vrot.slane %v8802, %v8809
        %v8812 = vunpack.c.l.s4 1983009808
        %v8813 = vunpack.c.0.s8 %v8812
        %v8814 = vlaneseq
        %v8815 = vshrl.u32 %v8814, 7
        %v8816 = vsub.s32 %v8813, %v8815
        %v8817 = vrot.slane %v8803, %v8816
        %v8818 = vcombine.low %v8287, %v8421
        %v8819 = vcombine.high %v8287, %v8421
        %v8821 = vunpack.c.l.s4 1983009808
        %v8822 = vunpack.c.0.s8 %v8821
        %v8823 = vlaneseq
        %v8824 = vshrl.u32 %v8823, 7
        %v8825 = vsub.s32 %v8822, %v8824
        %v8826 = vrot.slane %v8818, %v8825
        %v8828 = vunpack.c.l.s4 1983009808
        %v8829 = vunpack.c.0.s8 %v8828
        %v8830 = vlaneseq
        %v8831 = vshrl.u32 %v8830, 7
        %v8832 = vsub.s32 %v8829, %v8831
        %v8833 = vrot.slane %v8819, %v8832
        %v8834 = vcombine.low %v8810, %v8826
        %v8835 = vcombine.high %v8810, %v8826
        %v8837 = vunpack.c.l.s4 1934713408
        %v8838 = vunpack.c.0.s8 %v8837
        %v8839 = vlaneseq
        %v8840 = vshrl.u32 %v8839, 7
        %v8841 = vsub.s32 %v8838, %v8840
        %v8842 = vrot.slane %v8834, %v8841
        %v8844 = vunpack.c.l.s4 1934713408
        %v8845 = vunpack.c.0.s8 %v8844
        %v8846 = vlaneseq
        %v8847 = vshrl.u32 %v8846, 7
        %v8848 = vsub.s32 %v8845, %v8847
        %v8849 = vrot.slane %v8835, %v8848
        %v8850 = vcombine.low %v8817, %v8833
        %v8851 = vcombine.high %v8817, %v8833
        %v8853 = vunpack.c.l.s4 1934713408
        %v8854 = vunpack.c.0.s8 %v8853
        %v8855 = vlaneseq
        %v8856 = vshrl.u32 %v8855, 7
        %v8857 = vsub.s32 %v8854, %v8856
        %v8858 = vrot.slane %v8850, %v8857
        %v8860 = vunpack.c.l.s4 1934713408
        %v8861 = vunpack.c.0.s8 %v8860
        %v8862 = vlaneseq
        %v8863 = vshrl.u32 %v8862, 7
        %v8864 = vsub.s32 %v8861, %v8863
        %v8865 = vrot.slane %v8851, %v8864
        %v8866 = vcombine.high %v8842, 0.0
        %v8867 = vcombine.high %v8849, 0.0
        %v8868 = vcombine.high %v8858, 0.0
        %v8869 = vcombine.high %v8865, 0.0
        %v8870 = vcombine.low %v8224, %v8358
        %v8871 = vcombine.high %v8224, %v8358
        %v8873 = vunpack.c.l.s4 1983009808
        %v8874 = vunpack.c.0.s8 %v8873
        %v8875 = vlaneseq
        %v8876 = vshrl.u32 %v8875, 7
        %v8877 = vsub.s32 %v8874, %v8876
        %v8878 = vrot.slane %v8870, %v8877
        %v8880 = vunpack.c.l.s4 1983009808
        %v8881 = vunpack.c.0.s8 %v8880
        %v8882 = vlaneseq
        %v8883 = vshrl.u32 %v8882, 7
        %v8884 = vsub.s32 %v8881, %v8883
        %v8885 = vrot.slane %v8871, %v8884
        %v8886 = vcombine.low %v8291, %v8425
        %v8887 = vcombine.high %v8291, %v8425
        %v8889 = vunpack.c.l.s4 1983009808
        %v8890 = vunpack.c.0.s8 %v8889
        %v8891 = vlaneseq
        %v8892 = vshrl.u32 %v8891, 7
        %v8893 = vsub.s32 %v8890, %v8892
        %v8894 = vrot.slane %v8886, %v8893
        %v8896 = vunpack.c.l.s4 1983009808
        %v8897 = vunpack.c.0.s8 %v8896
        %v8898 = vlaneseq
        %v8899 = vshrl.u32 %v8898, 7
        %v8900 = vsub.s32 %v8897, %v8899
        %v8901 = vrot.slane %v8887, %v8900
        %v8902 = vcombine.low %v8878, %v8894
        %v8903 = vcombine.high %v8878, %v8894
        %v8905 = vunpack.c.l.s4 1934713408
        %v8906 = vunpack.c.0.s8 %v8905
        %v8907 = vlaneseq
        %v8908 = vshrl.u32 %v8907, 7
        %v8909 = vsub.s32 %v8906, %v8908
        %v8910 = vrot.slane %v8902, %v8909
        %v8912 = vunpack.c.l.s4 1934713408
        %v8913 = vunpack.c.0.s8 %v8912
        %v8914 = vlaneseq
        %v8915 = vshrl.u32 %v8914, 7
        %v8916 = vsub.s32 %v8913, %v8915
        %v8917 = vrot.slane %v8903, %v8916
        %v8918 = vcombine.low %v8885, %v8901
        %v8919 = vcombine.high %v8885, %v8901
        %v8921 = vunpack.c.l.s4 1934713408
        %v8922 = vunpack.c.0.s8 %v8921
        %v8923 = vlaneseq
        %v8924 = vshrl.u32 %v8923, 7
        %v8925 = vsub.s32 %v8922, %v8924
        %v8926 = vrot.slane %v8918, %v8925
        %v8928 = vunpack.c.l.s4 1934713408
        %v8929 = vunpack.c.0.s8 %v8928
        %v8930 = vlaneseq
        %v8931 = vshrl.u32 %v8930, 7
        %v8932 = vsub.s32 %v8929, %v8931
        %v8933 = vrot.slane %v8919, %v8932
        %v8934 = vcombine.high %v8910, 0.0
        %v8935 = vcombine.high %v8917, 0.0
        %v8936 = vcombine.high %v8926, 0.0
        %v8937 = vcombine.high %v8933, 0.0
        %v8938 = vcombine.low %v8228, %v8362
        %v8939 = vcombine.high %v8228, %v8362
        %v8941 = vunpack.c.l.s4 1983009808
        %v8942 = vunpack.c.0.s8 %v8941
        %v8943 = vlaneseq
        %v8944 = vshrl.u32 %v8943, 7
        %v8945 = vsub.s32 %v8942, %v8944
        %v8946 = vrot.slane %v8938, %v8945
        %v8948 = vunpack.c.l.s4 1983009808
        %v8949 = vunpack.c.0.s8 %v8948
        %v8950 = vlaneseq
        %v8951 = vshrl.u32 %v8950, 7
        %v8952 = vsub.s32 %v8949, %v8951
        %v8953 = vrot.slane %v8939, %v8952
        %v8954 = vcombine.low %v8295, %v8429
        %v8955 = vcombine.high %v8295, %v8429
        %v8957 = vunpack.c.l.s4 1983009808
        %v8958 = vunpack.c.0.s8 %v8957
        %v8959 = vlaneseq
        %v8960 = vshrl.u32 %v8959, 7
        %v8961 = vsub.s32 %v8958, %v8960
        %v8962 = vrot.slane %v8954, %v8961
        %v8964 = vunpack.c.l.s4 1983009808
        %v8965 = vunpack.c.0.s8 %v8964
        %v8966 = vlaneseq
        %v8967 = vshrl.u32 %v8966, 7
        %v8968 = vsub.s32 %v8965, %v8967
        %v8969 = vrot.slane %v8955, %v8968
        %v8970 = vcombine.low %v8946, %v8962
        %v8971 = vcombine.high %v8946, %v8962
        %v8973 = vunpack.c.l.s4 1934713408
        %v8974 = vunpack.c.0.s8 %v8973
        %v8975 = vlaneseq
        %v8976 = vshrl.u32 %v8975, 7
        %v8977 = vsub.s32 %v8974, %v8976
        %v8978 = vrot.slane %v8970, %v8977
        %v8980 = vunpack.c.l.s4 1934713408
        %v8981 = vunpack.c.0.s8 %v8980
        %v8982 = vlaneseq
        %v8983 = vshrl.u32 %v8982, 7
        %v8984 = vsub.s32 %v8981, %v8983
        %v8985 = vrot.slane %v8971, %v8984
        %v8986 = vcombine.low %v8953, %v8969
        %v8987 = vcombine.high %v8953, %v8969
        %v8989 = vunpack.c.l.s4 1934713408
        %v8990 = vunpack.c.0.s8 %v8989
        %v8991 = vlaneseq
        %v8992 = vshrl.u32 %v8991, 7
        %v8993 = vsub.s32 %v8990, %v8992
        %v8994 = vrot.slane %v8986, %v8993
        %v8996 = vunpack.c.l.s4 1934713408
        %v8997 = vunpack.c.0.s8 %v8996
        %v8998 = vlaneseq
        %v8999 = vshrl.u32 %v8998, 7
        %v9000 = vsub.s32 %v8997, %v8999
        %v9001 = vrot.slane %v8987, %v9000
        %v9002 = vcombine.high %v8978, 0.0
        %v9003 = vcombine.high %v8985, 0.0
        %v9004 = vcombine.high %v8994, 0.0
        %v9005 = vcombine.high %v9001, 0.0
        %v9006 = vcombine.low %v8232, %v8366
        %v9007 = vcombine.high %v8232, %v8366
        %v9009 = vunpack.c.l.s4 1983009808
        %v9010 = vunpack.c.0.s8 %v9009
        %v9011 = vlaneseq
        %v9012 = vshrl.u32 %v9011, 7
        %v9013 = vsub.s32 %v9010, %v9012
        %v9014 = vrot.slane %v9006, %v9013
        %v9016 = vunpack.c.l.s4 1983009808
        %v9017 = vunpack.c.0.s8 %v9016
        %v9018 = vlaneseq
        %v9019 = vshrl.u32 %v9018, 7
        %v9020 = vsub.s32 %v9017, %v9019
        %v9021 = vrot.slane %v9007, %v9020
        %v9022 = vcombine.low %v8299, %v8433
        %v9023 = vcombine.high %v8299, %v8433
        %v9025 = vunpack.c.l.s4 1983009808
        %v9026 = vunpack.c.0.s8 %v9025
        %v9027 = vlaneseq
        %v9028 = vshrl.u32 %v9027, 7
        %v9029 = vsub.s32 %v9026, %v9028
        %v9030 = vrot.slane %v9022, %v9029
        %v9032 = vunpack.c.l.s4 1983009808
        %v9033 = vunpack.c.0.s8 %v9032
        %v9034 = vlaneseq
        %v9035 = vshrl.u32 %v9034, 7
        %v9036 = vsub.s32 %v9033, %v9035
        %v9037 = vrot.slane %v9023, %v9036
        %v9038 = vcombine.low %v9014, %v9030
        %v9039 = vcombine.high %v9014, %v9030
        %v9041 = vunpack.c.l.s4 1934713408
        %v9042 = vunpack.c.0.s8 %v9041
        %v9043 = vlaneseq
        %v9044 = vshrl.u32 %v9043, 7
        %v9045 = vsub.s32 %v9042, %v9044
        %v9046 = vrot.slane %v9038, %v9045
        %v9048 = vunpack.c.l.s4 1934713408
        %v9049 = vunpack.c.0.s8 %v9048
        %v9050 = vlaneseq
        %v9051 = vshrl.u32 %v9050, 7
        %v9052 = vsub.s32 %v9049, %v9051
        %v9053 = vrot.slane %v9039, %v9052
        %v9054 = vcombine.low %v9021, %v9037
        %v9055 = vcombine.high %v9021, %v9037
        %v9057 = vunpack.c.l.s4 1934713408
        %v9058 = vunpack.c.0.s8 %v9057
        %v9059 = vlaneseq
        %v9060 = vshrl.u32 %v9059, 7
        %v9061 = vsub.s32 %v9058, %v9060
        %v9062 = vrot.slane %v9054, %v9061
        %v9064 = vunpack.c.l.s4 1934713408
        %v9065 = vunpack.c.0.s8 %v9064
        %v9066 = vlaneseq
        %v9067 = vshrl.u32 %v9066, 7
        %v9068 = vsub.s32 %v9065, %v9067
        %v9069 = vrot.slane %v9055, %v9068
        %v9070 = vcombine.high %v9046, 0.0
        %v9071 = vcombine.high %v9053, 0.0
        %v9072 = vcombine.high %v9062, 0.0
        %v9073 = vcombine.high %v9069, 0.0
        %v9074 = vcombine.low %v8236, %v8370
        %v9075 = vcombine.high %v8236, %v8370
        %v9077 = vunpack.c.l.s4 1983009808
        %v9078 = vunpack.c.0.s8 %v9077
        %v9079 = vlaneseq
        %v9080 = vshrl.u32 %v9079, 7
        %v9081 = vsub.s32 %v9078, %v9080
        %v9082 = vrot.slane %v9074, %v9081
        %v9084 = vunpack.c.l.s4 1983009808
        %v9085 = vunpack.c.0.s8 %v9084
        %v9086 = vlaneseq
        %v9087 = vshrl.u32 %v9086, 7
        %v9088 = vsub.s32 %v9085, %v9087
        %v9089 = vrot.slane %v9075, %v9088
        %v9090 = vcombine.low %v8303, %v8437
        %v9091 = vcombine.high %v8303, %v8437
        %v9093 = vunpack.c.l.s4 1983009808
        %v9094 = vunpack.c.0.s8 %v9093
        %v9095 = vlaneseq
        %v9096 = vshrl.u32 %v9095, 7
        %v9097 = vsub.s32 %v9094, %v9096
        %v9098 = vrot.slane %v9090, %v9097
        %v9100 = vunpack.c.l.s4 1983009808
        %v9101 = vunpack.c.0.s8 %v9100
        %v9102 = vlaneseq
        %v9103 = vshrl.u32 %v9102, 7
        %v9104 = vsub.s32 %v9101, %v9103
        %v9105 = vrot.slane %v9091, %v9104
        %v9106 = vcombine.low %v9082, %v9098
        %v9107 = vcombine.high %v9082, %v9098
        %v9109 = vunpack.c.l.s4 1934713408
        %v9110 = vunpack.c.0.s8 %v9109
        %v9111 = vlaneseq
        %v9112 = vshrl.u32 %v9111, 7
        %v9113 = vsub.s32 %v9110, %v9112
        %v9114 = vrot.slane %v9106, %v9113
        %v9116 = vunpack.c.l.s4 1934713408
        %v9117 = vunpack.c.0.s8 %v9116
        %v9118 = vlaneseq
        %v9119 = vshrl.u32 %v9118, 7
        %v9120 = vsub.s32 %v9117, %v9119
        %v9121 = vrot.slane %v9107, %v9120
        %v9122 = vcombine.low %v9089, %v9105
        %v9123 = vcombine.high %v9089, %v9105
        %v9125 = vunpack.c.l.s4 1934713408
        %v9126 = vunpack.c.0.s8 %v9125
        %v9127 = vlaneseq
        %v9128 = vshrl.u32 %v9127, 7
        %v9129 = vsub.s32 %v9126, %v9128
        %v9130 = vrot.slane %v9122, %v9129
        %v9132 = vunpack.c.l.s4 1934713408
        %v9133 = vunpack.c.0.s8 %v9132
        %v9134 = vlaneseq
        %v9135 = vshrl.u32 %v9134, 7
        %v9136 = vsub.s32 %v9133, %v9135
        %v9137 = vrot.slane %v9123, %v9136
        %v9138 = vcombine.high %v9114, 0.0
        %v9139 = vcombine.high %v9121, 0.0
        %v9140 = vcombine.high %v9130, 0.0
        %v9141 = vcombine.high %v9137, 0.0
        %v9142 = vcombine.low %v8240, %v8374
        %v9143 = vcombine.high %v8240, %v8374
        %v9145 = vunpack.c.l.s4 1983009808
        %v9146 = vunpack.c.0.s8 %v9145
        %v9147 = vlaneseq
        %v9148 = vshrl.u32 %v9147, 7
        %v9149 = vsub.s32 %v9146, %v9148
        %v9150 = vrot.slane %v9142, %v9149
        %v9152 = vunpack.c.l.s4 1983009808
        %v9153 = vunpack.c.0.s8 %v9152
        %v9154 = vlaneseq
        %v9155 = vshrl.u32 %v9154, 7
        %v9156 = vsub.s32 %v9153, %v9155
        %v9157 = vrot.slane %v9143, %v9156
        %v9158 = vcombine.low %v8307, %v8441
        %v9159 = vcombine.high %v8307, %v8441
        %v9161 = vunpack.c.l.s4 1983009808
        %v9162 = vunpack.c.0.s8 %v9161
        %v9163 = vlaneseq
        %v9164 = vshrl.u32 %v9163, 7
        %v9165 = vsub.s32 %v9162, %v9164
        %v9166 = vrot.slane %v9158, %v9165
        %v9168 = vunpack.c.l.s4 1983009808
        %v9169 = vunpack.c.0.s8 %v9168
        %v9170 = vlaneseq
        %v9171 = vshrl.u32 %v9170, 7
        %v9172 = vsub.s32 %v9169, %v9171
        %v9173 = vrot.slane %v9159, %v9172
        %v9174 = vcombine.low %v9150, %v9166
        %v9175 = vcombine.high %v9150, %v9166
        %v9177 = vunpack.c.l.s4 1934713408
        %v9178 = vunpack.c.0.s8 %v9177
        %v9179 = vlaneseq
        %v9180 = vshrl.u32 %v9179, 7
        %v9181 = vsub.s32 %v9178, %v9180
        %v9182 = vrot.slane %v9174, %v9181
        %v9184 = vunpack.c.l.s4 1934713408
        %v9185 = vunpack.c.0.s8 %v9184
        %v9186 = vlaneseq
        %v9187 = vshrl.u32 %v9186, 7
        %v9188 = vsub.s32 %v9185, %v9187
        %v9189 = vrot.slane %v9175, %v9188
        %v9190 = vcombine.low %v9157, %v9173
        %v9191 = vcombine.high %v9157, %v9173
        %v9193 = vunpack.c.l.s4 1934713408
        %v9194 = vunpack.c.0.s8 %v9193
        %v9195 = vlaneseq
        %v9196 = vshrl.u32 %v9195, 7
        %v9197 = vsub.s32 %v9194, %v9196
        %v9198 = vrot.slane %v9190, %v9197
        %v9200 = vunpack.c.l.s4 1934713408
        %v9201 = vunpack.c.0.s8 %v9200
        %v9202 = vlaneseq
        %v9203 = vshrl.u32 %v9202, 7
        %v9204 = vsub.s32 %v9201, %v9203
        %v9205 = vrot.slane %v9191, %v9204
        %v9206 = vcombine.high %v9182, 0.0
        %v9207 = vcombine.high %v9189, 0.0
        %v9208 = vcombine.high %v9198, 0.0
        %v9209 = vcombine.high %v9205, 0.0
        %v9210 = vcombine.low %v8244, %v8378
        %v9211 = vcombine.high %v8244, %v8378
        %v9213 = vunpack.c.l.s4 1983009808
        %v9214 = vunpack.c.0.s8 %v9213
        %v9215 = vlaneseq
        %v9216 = vshrl.u32 %v9215, 7
        %v9217 = vsub.s32 %v9214, %v9216
        %v9218 = vrot.slane %v9210, %v9217
        %v9220 = vunpack.c.l.s4 1983009808
        %v9221 = vunpack.c.0.s8 %v9220
        %v9222 = vlaneseq
        %v9223 = vshrl.u32 %v9222, 7
        %v9224 = vsub.s32 %v9221, %v9223
        %v9225 = vrot.slane %v9211, %v9224
        %v9226 = vcombine.low %v8311, %v8445
        %v9227 = vcombine.high %v8311, %v8445
        %v9229 = vunpack.c.l.s4 1983009808
        %v9230 = vunpack.c.0.s8 %v9229
        %v9231 = vlaneseq
        %v9232 = vshrl.u32 %v9231, 7
        %v9233 = vsub.s32 %v9230, %v9232
        %v9234 = vrot.slane %v9226, %v9233
        %v9236 = vunpack.c.l.s4 1983009808
        %v9237 = vunpack.c.0.s8 %v9236
        %v9238 = vlaneseq
        %v9239 = vshrl.u32 %v9238, 7
        %v9240 = vsub.s32 %v9237, %v9239
        %v9241 = vrot.slane %v9227, %v9240
        %v9242 = vcombine.low %v9218, %v9234
        %v9243 = vcombine.high %v9218, %v9234
        %v9245 = vunpack.c.l.s4 1934713408
        %v9246 = vunpack.c.0.s8 %v9245
        %v9247 = vlaneseq
        %v9248 = vshrl.u32 %v9247, 7
        %v9249 = vsub.s32 %v9246, %v9248
        %v9250 = vrot.slane %v9242, %v9249
        %v9252 = vunpack.c.l.s4 1934713408
        %v9253 = vunpack.c.0.s8 %v9252
        %v9254 = vlaneseq
        %v9255 = vshrl.u32 %v9254, 7
        %v9256 = vsub.s32 %v9253, %v9255
        %v9257 = vrot.slane %v9243, %v9256
        %v9258 = vcombine.low %v9225, %v9241
        %v9259 = vcombine.high %v9225, %v9241
        %v9261 = vunpack.c.l.s4 1934713408
        %v9262 = vunpack.c.0.s8 %v9261
        %v9263 = vlaneseq
        %v9264 = vshrl.u32 %v9263, 7
        %v9265 = vsub.s32 %v9262, %v9264
        %v9266 = vrot.slane %v9258, %v9265
        %v9268 = vunpack.c.l.s4 1934713408
        %v9269 = vunpack.c.0.s8 %v9268
        %v9270 = vlaneseq
        %v9271 = vshrl.u32 %v9270, 7
        %v9272 = vsub.s32 %v9269, %v9271
        %v9273 = vrot.slane %v9259, %v9272
        %v9274 = vcombine.high %v9250, 0.0
        %v9275 = vcombine.high %v9257, 0.0
        %v9276 = vcombine.high %v9266, 0.0
        %v9277 = vcombine.high %v9273, 0.0
        %v9278 = vcombine.low %v8248, %v8382
        %v9279 = vcombine.high %v8248, %v8382
        %v9281 = vunpack.c.l.s4 1983009808
        %v9282 = vunpack.c.0.s8 %v9281
        %v9283 = vlaneseq
        %v9284 = vshrl.u32 %v9283, 7
        %v9285 = vsub.s32 %v9282, %v9284
        %v9286 = vrot.slane %v9278, %v9285
        %v9288 = vunpack.c.l.s4 1983009808
        %v9289 = vunpack.c.0.s8 %v9288
        %v9290 = vlaneseq
        %v9291 = vshrl.u32 %v9290, 7
        %v9292 = vsub.s32 %v9289, %v9291
        %v9293 = vrot.slane %v9279, %v9292
        %v9294 = vcombine.low %v8315, %v8449
        %v9295 = vcombine.high %v8315, %v8449
        %v9297 = vunpack.c.l.s4 1983009808
        %v9298 = vunpack.c.0.s8 %v9297
        %v9299 = vlaneseq
        %v9300 = vshrl.u32 %v9299, 7
        %v9301 = vsub.s32 %v9298, %v9300
        %v9302 = vrot.slane %v9294, %v9301
        %v9304 = vunpack.c.l.s4 1983009808
        %v9305 = vunpack.c.0.s8 %v9304
        %v9306 = vlaneseq
        %v9307 = vshrl.u32 %v9306, 7
        %v9308 = vsub.s32 %v9305, %v9307
        %v9309 = vrot.slane %v9295, %v9308
        %v9310 = vcombine.low %v9286, %v9302
        %v9311 = vcombine.high %v9286, %v9302
        %v9313 = vunpack.c.l.s4 1934713408
        %v9314 = vunpack.c.0.s8 %v9313
        %v9315 = vlaneseq
        %v9316 = vshrl.u32 %v9315, 7
        %v9317 = vsub.s32 %v9314, %v9316
        %v9318 = vrot.slane %v9310, %v9317
        %v9320 = vunpack.c.l.s4 1934713408
        %v9321 = vunpack.c.0.s8 %v9320
        %v9322 = vlaneseq
        %v9323 = vshrl.u32 %v9322, 7
        %v9324 = vsub.s32 %v9321, %v9323
        %v9325 = vrot.slane %v9311, %v9324
        %v9326 = vcombine.low %v9293, %v9309
        %v9327 = vcombine.high %v9293, %v9309
        %v9329 = vunpack.c.l.s4 1934713408
        %v9330 = vunpack.c.0.s8 %v9329
        %v9331 = vlaneseq
        %v9332 = vshrl.u32 %v9331, 7
        %v9333 = vsub.s32 %v9330, %v9332
        %v9334 = vrot.slane %v9326, %v9333
        %v9336 = vunpack.c.l.s4 1934713408
        %v9337 = vunpack.c.0.s8 %v9336
        %v9338 = vlaneseq
        %v9339 = vshrl.u32 %v9338, 7
        %v9340 = vsub.s32 %v9337, %v9339
        %v9341 = vrot.slane %v9327, %v9340
        %v9342 = vcombine.high %v9318, 0.0
        %v9343 = vcombine.high %v9325, 0.0
        %v9344 = vcombine.high %v9334, 0.0
        %v9345 = vcombine.high %v9341, 0.0
        %v9346 = vcombine.low %v8252, %v8386
        %v9347 = vcombine.high %v8252, %v8386
        %v9349 = vunpack.c.l.s4 1983009808
        %v9350 = vunpack.c.0.s8 %v9349
        %v9351 = vlaneseq
        %v9352 = vshrl.u32 %v9351, 7
        %v9353 = vsub.s32 %v9350, %v9352
        %v9354 = vrot.slane %v9346, %v9353
        %v9356 = vunpack.c.l.s4 1983009808
        %v9357 = vunpack.c.0.s8 %v9356
        %v9358 = vlaneseq
        %v9359 = vshrl.u32 %v9358, 7
        %v9360 = vsub.s32 %v9357, %v9359
        %v9361 = vrot.slane %v9347, %v9360
        %v9362 = vcombine.low %v8319, %v8453
        %v9363 = vcombine.high %v8319, %v8453
        %v9365 = vunpack.c.l.s4 1983009808
        %v9366 = vunpack.c.0.s8 %v9365
        %v9367 = vlaneseq
        %v9368 = vshrl.u32 %v9367, 7
        %v9369 = vsub.s32 %v9366, %v9368
        %v9370 = vrot.slane %v9362, %v9369
        %v9372 = vunpack.c.l.s4 1983009808
        %v9373 = vunpack.c.0.s8 %v9372
        %v9374 = vlaneseq
        %v9375 = vshrl.u32 %v9374, 7
        %v9376 = vsub.s32 %v9373, %v9375
        %v9377 = vrot.slane %v9363, %v9376
        %v9378 = vcombine.low %v9354, %v9370
        %v9379 = vcombine.high %v9354, %v9370
        %v9381 = vunpack.c.l.s4 1934713408
        %v9382 = vunpack.c.0.s8 %v9381
        %v9383 = vlaneseq
        %v9384 = vshrl.u32 %v9383, 7
        %v9385 = vsub.s32 %v9382, %v9384
        %v9386 = vrot.slane %v9378, %v9385
        %v9388 = vunpack.c.l.s4 1934713408
        %v9389 = vunpack.c.0.s8 %v9388
        %v9390 = vlaneseq
        %v9391 = vshrl.u32 %v9390, 7
        %v9392 = vsub.s32 %v9389, %v9391
        %v9393 = vrot.slane %v9379, %v9392
        %v9394 = vcombine.low %v9361, %v9377
        %v9395 = vcombine.high %v9361, %v9377
        %v9397 = vunpack.c.l.s4 1934713408
        %v9398 = vunpack.c.0.s8 %v9397
        %v9399 = vlaneseq
        %v9400 = vshrl.u32 %v9399, 7
        %v9401 = vsub.s32 %v9398, %v9400
        %v9402 = vrot.slane %v9394, %v9401
        %v9404 = vunpack.c.l.s4 1934713408
        %v9405 = vunpack.c.0.s8 %v9404
        %v9406 = vlaneseq
        %v9407 = vshrl.u32 %v9406, 7
        %v9408 = vsub.s32 %v9405, %v9407
        %v9409 = vrot.slane %v9395, %v9408
        %v9410 = vcombine.high %v9386, 0.0
        %v9411 = vcombine.high %v9393, 0.0
        %v9412 = vcombine.high %v9402, 0.0
        %v9413 = vcombine.high %v9409, 0.0
        %v9414 = vcombine.low %v8256, %v8390
        %v9415 = vcombine.high %v8256, %v8390
        %v9417 = vunpack.c.l.s4 1983009808
        %v9418 = vunpack.c.0.s8 %v9417
        %v9419 = vlaneseq
        %v9420 = vshrl.u32 %v9419, 7
        %v9421 = vsub.s32 %v9418, %v9420
        %v9422 = vrot.slane %v9414, %v9421
        %v9424 = vunpack.c.l.s4 1983009808
        %v9425 = vunpack.c.0.s8 %v9424
        %v9426 = vlaneseq
        %v9427 = vshrl.u32 %v9426, 7
        %v9428 = vsub.s32 %v9425, %v9427
        %v9429 = vrot.slane %v9415, %v9428
        %v9430 = vcombine.low %v8323, %v8457
        %v9431 = vcombine.high %v8323, %v8457
        %v9433 = vunpack.c.l.s4 1983009808
        %v9434 = vunpack.c.0.s8 %v9433
        %v9435 = vlaneseq
        %v9436 = vshrl.u32 %v9435, 7
        %v9437 = vsub.s32 %v9434, %v9436
        %v9438 = vrot.slane %v9430, %v9437
        %v9440 = vunpack.c.l.s4 1983009808
        %v9441 = vunpack.c.0.s8 %v9440
        %v9442 = vlaneseq
        %v9443 = vshrl.u32 %v9442, 7
        %v9444 = vsub.s32 %v9441, %v9443
        %v9445 = vrot.slane %v9431, %v9444
        %v9446 = vcombine.low %v9422, %v9438
        %v9447 = vcombine.high %v9422, %v9438
        %v9449 = vunpack.c.l.s4 1934713408
        %v9450 = vunpack.c.0.s8 %v9449
        %v9451 = vlaneseq
        %v9452 = vshrl.u32 %v9451, 7
        %v9453 = vsub.s32 %v9450, %v9452
        %v9454 = vrot.slane %v9446, %v9453
        %v9456 = vunpack.c.l.s4 1934713408
        %v9457 = vunpack.c.0.s8 %v9456
        %v9458 = vlaneseq
        %v9459 = vshrl.u32 %v9458, 7
        %v9460 = vsub.s32 %v9457, %v9459
        %v9461 = vrot.slane %v9447, %v9460
        %v9462 = vcombine.low %v9429, %v9445
        %v9463 = vcombine.high %v9429, %v9445
        %v9465 = vunpack.c.l.s4 1934713408
        %v9466 = vunpack.c.0.s8 %v9465
        %v9467 = vlaneseq
        %v9468 = vshrl.u32 %v9467, 7
        %v9469 = vsub.s32 %v9466, %v9468
        %v9470 = vrot.slane %v9462, %v9469
        %v9472 = vunpack.c.l.s4 1934713408
        %v9473 = vunpack.c.0.s8 %v9472
        %v9474 = vlaneseq
        %v9475 = vshrl.u32 %v9474, 7
        %v9476 = vsub.s32 %v9473, %v9475
        %v9477 = vrot.slane %v9463, %v9476
        %v9478 = vcombine.high %v9454, 0.0
        %v9479 = vcombine.high %v9461, 0.0
        %v9480 = vcombine.high %v9470, 0.0
        %v9481 = vcombine.high %v9477, 0.0
        %v9482 = vcombine.low %v8260, %v8394
        %v9483 = vcombine.high %v8260, %v8394
        %v9485 = vunpack.c.l.s4 1983009808
        %v9486 = vunpack.c.0.s8 %v9485
        %v9487 = vlaneseq
        %v9488 = vshrl.u32 %v9487, 7
        %v9489 = vsub.s32 %v9486, %v9488
        %v9490 = vrot.slane %v9482, %v9489
        %v9492 = vunpack.c.l.s4 1983009808
        %v9493 = vunpack.c.0.s8 %v9492
        %v9494 = vlaneseq
        %v9495 = vshrl.u32 %v9494, 7
        %v9496 = vsub.s32 %v9493, %v9495
        %v9497 = vrot.slane %v9483, %v9496
        %v9498 = vcombine.low %v8327, %v8461
        %v9499 = vcombine.high %v8327, %v8461
        %v9501 = vunpack.c.l.s4 1983009808
        %v9502 = vunpack.c.0.s8 %v9501
        %v9503 = vlaneseq
        %v9504 = vshrl.u32 %v9503, 7
        %v9505 = vsub.s32 %v9502, %v9504
        %v9506 = vrot.slane %v9498, %v9505
        %v9508 = vunpack.c.l.s4 1983009808
        %v9509 = vunpack.c.0.s8 %v9508
        %v9510 = vlaneseq
        %v9511 = vshrl.u32 %v9510, 7
        %v9512 = vsub.s32 %v9509, %v9511
        %v9513 = vrot.slane %v9499, %v9512
        %v9514 = vcombine.low %v9490, %v9506
        %v9515 = vcombine.high %v9490, %v9506
        %v9517 = vunpack.c.l.s4 1934713408
        %v9518 = vunpack.c.0.s8 %v9517
        %v9519 = vlaneseq
        %v9520 = vshrl.u32 %v9519, 7
        %v9521 = vsub.s32 %v9518, %v9520
        %v9522 = vrot.slane %v9514, %v9521
        %v9524 = vunpack.c.l.s4 1934713408
        %v9525 = vunpack.c.0.s8 %v9524
        %v9526 = vlaneseq
        %v9527 = vshrl.u32 %v9526, 7
        %v9528 = vsub.s32 %v9525, %v9527
        %v9529 = vrot.slane %v9515, %v9528
        %v9530 = vcombine.low %v9497, %v9513
        %v9531 = vcombine.high %v9497, %v9513
        %v9533 = vunpack.c.l.s4 1934713408
        %v9534 = vunpack.c.0.s8 %v9533
        %v9535 = vlaneseq
        %v9536 = vshrl.u32 %v9535, 7
        %v9537 = vsub.s32 %v9534, %v9536
        %v9538 = vrot.slane %v9530, %v9537
        %v9540 = vunpack.c.l.s4 1934713408
        %v9541 = vunpack.c.0.s8 %v9540
        %v9542 = vlaneseq
        %v9543 = vshrl.u32 %v9542, 7
        %v9544 = vsub.s32 %v9541, %v9543
        %v9545 = vrot.slane %v9531, %v9544
        %v9546 = vcombine.high %v9522, 0.0
        %v9547 = vcombine.high %v9529, 0.0
        %v9548 = vcombine.high %v9538, 0.0
        %v9549 = vcombine.high %v9545, 0.0
        %9551 = vrot.lane.b32.xlu0 %v8526, 2
        %v9552 = vpop.permute.xlu0 %9551
        %9555 = vrot.lane.b32.xlu0 %v8509, 4
        %v9556 = vpop.permute.xlu0 %9555
        %9559 = vrot.lane.b32.xlu0 %v8527, 6
        %v9560 = vpop.permute.xlu0 %9559
        %9563 = vrot.lane.b32.xlu0 %v8518, 8
        %v9564 = vpop.permute.xlu0 %9563
        %9567 = vrot.lane.b32.xlu0 %v8528, 10
        %v9568 = vpop.permute.xlu0 %9567
        %9571 = vrot.lane.b32.xlu0 %v8525, 12
        %v9572 = vpop.permute.xlu0 %9571
        %9575 = vrot.lane.b32.xlu0 %v8529, 14
        %v9576 = vpop.permute.xlu0 %9575
        %9579 = vrot.lane.b32.xlu0 %v8570, 16
        %v9580 = vpop.permute.xlu0 %9579
        %9583 = vrot.lane.b32.xlu0 %v8594, 18
        %v9584 = vpop.permute.xlu0 %9583
        %9587 = vrot.lane.b32.xlu0 %v8577, 20
        %v9588 = vpop.permute.xlu0 %9587
        %9591 = vrot.lane.b32.xlu0 %v8595, 22
        %v9592 = vpop.permute.xlu0 %9591
        %9595 = vrot.lane.b32.xlu0 %v8586, 24
        %v9596 = vpop.permute.xlu0 %9595
        %9599 = vrot.lane.b32.xlu0 %v8596, 26
        %v9600 = vpop.permute.xlu0 %9599
        %9603 = vrot.lane.b32.xlu0 %v8593, 28
        %v9604 = vpop.permute.xlu0 %9603
        %9607 = vrot.lane.b32.xlu0 %v8597, 30
        %v9608 = vpop.permute.xlu0 %9607
        %9611 = vrot.lane.b32.xlu0 %v8638, 32
        %v9612 = vpop.permute.xlu0 %9611
        %9615 = vrot.lane.b32.xlu0 %v8662, 34
        %v9616 = vpop.permute.xlu0 %9615
        %9619 = vrot.lane.b32.xlu0 %v8645, 36
        %v9620 = vpop.permute.xlu0 %9619
        %9623 = vrot.lane.b32.xlu0 %v8663, 38
        %v9624 = vpop.permute.xlu0 %9623
        %9627 = vrot.lane.b32.xlu0 %v8654, 40
        %v9628 = vpop.permute.xlu0 %9627
        %9631 = vrot.lane.b32.xlu0 %v8664, 42
        %v9632 = vpop.permute.xlu0 %9631
        %9635 = vrot.lane.b32.xlu0 %v8661, 44
        %v9636 = vpop.permute.xlu0 %9635
        %9639 = vrot.lane.b32.xlu0 %v8665, 46
        %v9640 = vpop.permute.xlu0 %9639
        %9643 = vrot.lane.b32.xlu0 %v8706, 48
        %v9644 = vpop.permute.xlu0 %9643
        %9647 = vrot.lane.b32.xlu0 %v8730, 50
        %v9648 = vpop.permute.xlu0 %9647
        %9651 = vrot.lane.b32.xlu0 %v8713, 52
        %v9652 = vpop.permute.xlu0 %9651
        %9655 = vrot.lane.b32.xlu0 %v8731, 54
        %v9656 = vpop.permute.xlu0 %9655
        %9659 = vrot.lane.b32.xlu0 %v8722, 56
        %v9660 = vpop.permute.xlu0 %9659
        %9663 = vrot.lane.b32.xlu0 %v8732, 58
        %v9664 = vpop.permute.xlu0 %9663
        %9667 = vrot.lane.b32.xlu0 %v8729, 60
        %v9668 = vpop.permute.xlu0 %9667
        %9671 = vrot.lane.b32.xlu0 %v8733, 62
        %v9672 = vpop.permute.xlu0 %9671
        %9675 = vrot.lane.b32.xlu0 %v8774, 64
        %v9676 = vpop.permute.xlu0 %9675
        %9679 = vrot.lane.b32.xlu0 %v8798, 66
        %v9680 = vpop.permute.xlu0 %9679
        %9683 = vrot.lane.b32.xlu0 %v8781, 68
        %v9684 = vpop.permute.xlu0 %9683
        %9687 = vrot.lane.b32.xlu0 %v8799, 70
        %v9688 = vpop.permute.xlu0 %9687
        %9691 = vrot.lane.b32.xlu0 %v8790, 72
        %v9692 = vpop.permute.xlu0 %9691
        %9695 = vrot.lane.b32.xlu0 %v8800, 74
        %v9696 = vpop.permute.xlu0 %9695
        %9699 = vrot.lane.b32.xlu0 %v8797, 76
        %v9700 = vpop.permute.xlu0 %9699
        %9703 = vrot.lane.b32.xlu0 %v8801, 78
        %v9704 = vpop.permute.xlu0 %9703
        %9707 = vrot.lane.b32.xlu0 %v8842, 80
        %v9708 = vpop.permute.xlu0 %9707
        %9711 = vrot.lane.b32.xlu0 %v8866, 82
        %v9712 = vpop.permute.xlu0 %9711
        %9715 = vrot.lane.b32.xlu0 %v8849, 84
        %v9716 = vpop.permute.xlu0 %9715
        %9719 = vrot.lane.b32.xlu0 %v8867, 86
        %v9720 = vpop.permute.xlu0 %9719
        %9723 = vrot.lane.b32.xlu0 %v8858, 88
        %v9724 = vpop.permute.xlu0 %9723
        %9727 = vrot.lane.b32.xlu0 %v8868, 90
        %v9728 = vpop.permute.xlu0 %9727
        %9731 = vrot.lane.b32.xlu0 %v8865, 92
        %v9732 = vpop.permute.xlu0 %9731
        %9735 = vrot.lane.b32.xlu0 %v8869, 94
        %v9736 = vpop.permute.xlu0 %9735
        %9739 = vrot.lane.b32.xlu0 %v8910, 96
        %v9740 = vpop.permute.xlu0 %9739
        %9743 = vrot.lane.b32.xlu0 %v8934, 98
        %v9744 = vpop.permute.xlu0 %9743
        %9747 = vrot.lane.b32.xlu0 %v8917, 100
        %v9748 = vpop.permute.xlu0 %9747
        %9751 = vrot.lane.b32.xlu0 %v8935, 102
        %v9752 = vpop.permute.xlu0 %9751
        %9755 = vrot.lane.b32.xlu0 %v8926, 104
        %v9756 = vpop.permute.xlu0 %9755
        %9759 = vrot.lane.b32.xlu0 %v8936, 106
        %v9760 = vpop.permute.xlu0 %9759
        %9763 = vrot.lane.b32.xlu0 %v8933, 108
        %v9764 = vpop.permute.xlu0 %9763
        %9767 = vrot.lane.b32.xlu0 %v8937, 110
        %v9768 = vpop.permute.xlu0 %9767
        %9771 = vrot.lane.b32.xlu0 %v8978, 112
        %v9772 = vpop.permute.xlu0 %9771
        %9775 = vrot.lane.b32.xlu0 %v9002, 114
        %v9776 = vpop.permute.xlu0 %9775
        %9779 = vrot.lane.b32.xlu0 %v8985, 116
        %v9780 = vpop.permute.xlu0 %9779
        %9783 = vrot.lane.b32.xlu0 %v9003, 118
        %v9784 = vpop.permute.xlu0 %9783
        %9787 = vrot.lane.b32.xlu0 %v8994, 120
        %v9788 = vpop.permute.xlu0 %9787
        %9791 = vrot.lane.b32.xlu0 %v9004, 122
        %v9792 = vpop.permute.xlu0 %9791
        %9795 = vrot.lane.b32.xlu0 %v9001, 124
        %v9796 = vpop.permute.xlu0 %9795
        %9799 = vrot.lane.b32.xlu0 %v9005, 126
        %v9800 = vpop.permute.xlu0 %9799
        %9803 = vrot.lane.b32.xlu0 %v9070, 2
        %v9804 = vpop.permute.xlu0 %9803
        %9807 = vrot.lane.b32.xlu0 %v9053, 4
        %v9808 = vpop.permute.xlu0 %9807
        %9811 = vrot.lane.b32.xlu0 %v9071, 6
        %v9812 = vpop.permute.xlu0 %9811
        %9815 = vrot.lane.b32.xlu0 %v9062, 8
        %v9816 = vpop.permute.xlu0 %9815
        %9819 = vrot.lane.b32.xlu0 %v9072, 10
        %v9820 = vpop.permute.xlu0 %9819
        %9823 = vrot.lane.b32.xlu0 %v9069, 12
        %v9824 = vpop.permute.xlu0 %9823
        %9827 = vrot.lane.b32.xlu0 %v9073, 14
        %v9828 = vpop.permute.xlu0 %9827
        %9831 = vrot.lane.b32.xlu0 %v9114, 16
        %v9832 = vpop.permute.xlu0 %9831
        %9835 = vrot.lane.b32.xlu0 %v9138, 18
        %v9836 = vpop.permute.xlu0 %9835
        %9839 = vrot.lane.b32.xlu0 %v9121, 20
        %v9840 = vpop.permute.xlu0 %9839
        %9843 = vrot.lane.b32.xlu0 %v9139, 22
        %v9844 = vpop.permute.xlu0 %9843
        %9847 = vrot.lane.b32.xlu0 %v9130, 24
        %v9848 = vpop.permute.xlu0 %9847
        %9851 = vrot.lane.b32.xlu0 %v9140, 26
        %v9852 = vpop.permute.xlu0 %9851
        %9855 = vrot.lane.b32.xlu0 %v9137, 28
        %v9856 = vpop.permute.xlu0 %9855
        %9859 = vrot.lane.b32.xlu0 %v9141, 30
        %v9860 = vpop.permute.xlu0 %9859
        %9863 = vrot.lane.b32.xlu0 %v9182, 32
        %v9864 = vpop.permute.xlu0 %9863
        %9867 = vrot.lane.b32.xlu0 %v9206, 34
        %v9868 = vpop.permute.xlu0 %9867
        %9871 = vrot.lane.b32.xlu0 %v9189, 36
        %v9872 = vpop.permute.xlu0 %9871
        %9875 = vrot.lane.b32.xlu0 %v9207, 38
        %v9876 = vpop.permute.xlu0 %9875
        %9879 = vrot.lane.b32.xlu0 %v9198, 40
        %v9880 = vpop.permute.xlu0 %9879
        %9883 = vrot.lane.b32.xlu0 %v9208, 42
        %v9884 = vpop.permute.xlu0 %9883
        %9887 = vrot.lane.b32.xlu0 %v9205, 44
        %v9888 = vpop.permute.xlu0 %9887
        %9891 = vrot.lane.b32.xlu0 %v9209, 46
        %v9892 = vpop.permute.xlu0 %9891
        %9895 = vrot.lane.b32.xlu0 %v9250, 48
        %v9896 = vpop.permute.xlu0 %9895
        %9899 = vrot.lane.b32.xlu0 %v9274, 50
        %v9900 = vpop.permute.xlu0 %9899
        %9903 = vrot.lane.b32.xlu0 %v9257, 52
        %v9904 = vpop.permute.xlu0 %9903
        %9907 = vrot.lane.b32.xlu0 %v9275, 54
        %v9908 = vpop.permute.xlu0 %9907
        %9911 = vrot.lane.b32.xlu0 %v9266, 56
        %v9912 = vpop.permute.xlu0 %9911
        %9915 = vrot.lane.b32.xlu0 %v9276, 58
        %v9916 = vpop.permute.xlu0 %9915
        %9919 = vrot.lane.b32.xlu0 %v9273, 60
        %v9920 = vpop.permute.xlu0 %9919
        %9923 = vrot.lane.b32.xlu0 %v9277, 62
        %v9924 = vpop.permute.xlu0 %9923
        %9927 = vrot.lane.b32.xlu0 %v9318, 64
        %v9928 = vpop.permute.xlu0 %9927
        %9931 = vrot.lane.b32.xlu0 %v9342, 66
        %v9932 = vpop.permute.xlu0 %9931
        %9935 = vrot.lane.b32.xlu0 %v9325, 68
        %v9936 = vpop.permute.xlu0 %9935
        %9939 = vrot.lane.b32.xlu0 %v9343, 70
        %v9940 = vpop.permute.xlu0 %9939
        %9943 = vrot.lane.b32.xlu0 %v9334, 72
        %v9944 = vpop.permute.xlu0 %9943
        %9947 = vrot.lane.b32.xlu0 %v9344, 74
        %v9948 = vpop.permute.xlu0 %9947
        %9951 = vrot.lane.b32.xlu0 %v9341, 76
        %v9952 = vpop.permute.xlu0 %9951
        %9955 = vrot.lane.b32.xlu0 %v9345, 78
        %v9956 = vpop.permute.xlu0 %9955
        %9959 = vrot.lane.b32.xlu0 %v9386, 80
        %v9960 = vpop.permute.xlu0 %9959
        %9963 = vrot.lane.b32.xlu0 %v9410, 82
        %v9964 = vpop.permute.xlu0 %9963
        %9967 = vrot.lane.b32.xlu0 %v9393, 84
        %v9968 = vpop.permute.xlu0 %9967
        %9971 = vrot.lane.b32.xlu0 %v9411, 86
        %v9972 = vpop.permute.xlu0 %9971
        %9975 = vrot.lane.b32.xlu0 %v9402, 88
        %v9976 = vpop.permute.xlu0 %9975
        %9979 = vrot.lane.b32.xlu0 %v9412, 90
        %v9980 = vpop.permute.xlu0 %9979
        %9983 = vrot.lane.b32.xlu0 %v9409, 92
        %v9984 = vpop.permute.xlu0 %9983
        %9987 = vrot.lane.b32.xlu0 %v9413, 94
        %v9988 = vpop.permute.xlu0 %9987
        %9991 = vrot.lane.b32.xlu0 %v9454, 96
        %v9992 = vpop.permute.xlu0 %9991
        %9995 = vrot.lane.b32.xlu0 %v9478, 98
        %v9996 = vpop.permute.xlu0 %9995
        %9999 = vrot.lane.b32.xlu0 %v9461, 100
        %v10000 = vpop.permute.xlu0 %9999
        %10003 = vrot.lane.b32.xlu0 %v9479, 102
        %v10004 = vpop.permute.xlu0 %10003
        %10007 = vrot.lane.b32.xlu0 %v9470, 104
        %v10008 = vpop.permute.xlu0 %10007
        %10011 = vrot.lane.b32.xlu0 %v9480, 106
        %v10012 = vpop.permute.xlu0 %10011
        %10015 = vrot.lane.b32.xlu0 %v9477, 108
        %v10016 = vpop.permute.xlu0 %10015
        %10019 = vrot.lane.b32.xlu0 %v9481, 110
        %v10020 = vpop.permute.xlu0 %10019
        %10023 = vrot.lane.b32.xlu0 %v9522, 112
        %v10024 = vpop.permute.xlu0 %10023
        %10027 = vrot.lane.b32.xlu0 %v9546, 114
        %v10028 = vpop.permute.xlu0 %10027
        %10031 = vrot.lane.b32.xlu0 %v9529, 116
        %v10032 = vpop.permute.xlu0 %10031
        %10035 = vrot.lane.b32.xlu0 %v9547, 118
        %v10036 = vpop.permute.xlu0 %10035
        %10039 = vrot.lane.b32.xlu0 %v9538, 120
        %v10040 = vpop.permute.xlu0 %10039
        %10043 = vrot.lane.b32.xlu0 %v9548, 122
        %v10044 = vpop.permute.xlu0 %10043
        %10047 = vrot.lane.b32.xlu0 %v9545, 124
        %v10048 = vpop.permute.xlu0 %10047
        %10051 = vrot.lane.b32.xlu0 %v9549, 126
        %v10052 = vpop.permute.xlu0 %10051
        %v10054 = vsel %vm3072, %v8502, %v9552
        %v10055 = vsel %vm3074, %v10054, %v9556
        %v10056 = vsel %vm3076, %v10055, %v9560
        %v10057 = vsel %vm3078, %v10056, %v9564
        %v10058 = vsel %vm3080, %v10057, %v9568
        %v10059 = vsel %vm3082, %v10058, %v9572
        %v10060 = vsel %vm3084, %v10059, %v9576
        %v10061 = vsel %vm435, %v10060, %v9580
        %v10062 = vsel %vm3087, %v10061, %v9584
        %v10063 = vsel %vm3089, %v10062, %v9588
        %v10064 = vsel %vm3091, %v10063, %v9592
        %v10065 = vsel %vm3093, %v10064, %v9596
        %v10066 = vsel %vm3095, %v10065, %v9600
        %v10067 = vsel %vm3097, %v10066, %v9604
        %v10068 = vsel %vm3099, %v10067, %v9608
        %v10069 = vsel %vm437, %v10068, %v9612
        %v10070 = vsel %vm3102, %v10069, %v9616
        %v10071 = vsel %vm3104, %v10070, %v9620
        %v10072 = vsel %vm3106, %v10071, %v9624
        %v10073 = vsel %vm3108, %v10072, %v9628
        %v10074 = vsel %vm3110, %v10073, %v9632
        %v10075 = vsel %vm3112, %v10074, %v9636
        %v10076 = vsel %vm3114, %v10075, %v9640
        %v10077 = vsel %vm439, %v10076, %v9644
        %v10078 = vsel %vm3117, %v10077, %v9648
        %v10079 = vsel %vm3119, %v10078, %v9652
        %v10080 = vsel %vm3121, %v10079, %v9656
        %v10081 = vsel %vm3123, %v10080, %v9660
        %v10082 = vsel %vm3125, %v10081, %v9664
        %v10083 = vsel %vm3127, %v10082, %v9668
        %v10084 = vsel %vm3129, %v10083, %v9672
        %v10085 = vsel %vm441, %v10084, %v9676
        %v10086 = vsel %vm3132, %v10085, %v9680
        %v10087 = vsel %vm3134, %v10086, %v9684
        %v10088 = vsel %vm3136, %v10087, %v9688
        %v10089 = vsel %vm3138, %v10088, %v9692
        %v10090 = vsel %vm3140, %v10089, %v9696
        %v10091 = vsel %vm3142, %v10090, %v9700
        %v10092 = vsel %vm3144, %v10091, %v9704
        %v10093 = vsel %vm443, %v10092, %v9708
        %v10094 = vsel %vm3147, %v10093, %v9712
        %v10095 = vsel %vm3149, %v10094, %v9716
        %v10096 = vsel %vm3151, %v10095, %v9720
        %v10097 = vsel %vm3153, %v10096, %v9724
        %v10098 = vsel %vm3155, %v10097, %v9728
        %v10099 = vsel %vm3157, %v10098, %v9732
        %v10100 = vsel %vm3159, %v10099, %v9736
        %v10101 = vsel %vm445, %v10100, %v9740
        %v10102 = vsel %vm3162, %v10101, %v9744
        %v10103 = vsel %vm3164, %v10102, %v9748
        %v10104 = vsel %vm3166, %v10103, %v9752
        %v10105 = vsel %vm3168, %v10104, %v9756
        %v10106 = vsel %vm3170, %v10105, %v9760
        %v10107 = vsel %vm3172, %v10106, %v9764
        %v10108 = vsel %vm3174, %v10107, %v9768
        %v10109 = vsel %vm447, %v10108, %v9772
        %v10110 = vsel %vm3177, %v10109, %v9776
        %v10111 = vsel %vm3179, %v10110, %v9780
        %v10112 = vsel %vm3181, %v10111, %v9784
        %v10113 = vsel %vm3183, %v10112, %v9788
        %v10114 = vsel %vm3185, %v10113, %v9792
        %v10115 = vsel %vm3187, %v10114, %v9796
        %v10116 = vsel %vm3189, %v10115, %v9800
        %v10117 = vsel %vm3072, %v9046, %v9804
        %v10118 = vsel %vm3074, %v10117, %v9808
        %v10119 = vsel %vm3076, %v10118, %v9812
        %v10120 = vsel %vm3078, %v10119, %v9816
        %v10121 = vsel %vm3080, %v10120, %v9820
        %v10122 = vsel %vm3082, %v10121, %v9824
        %v10123 = vsel %vm3084, %v10122, %v9828
        %v10124 = vsel %vm435, %v10123, %v9832
        %v10125 = vsel %vm3087, %v10124, %v9836
        %v10126 = vsel %vm3089, %v10125, %v9840
        %v10127 = vsel %vm3091, %v10126, %v9844
        %v10128 = vsel %vm3093, %v10127, %v9848
        %v10129 = vsel %vm3095, %v10128, %v9852
        %v10130 = vsel %vm3097, %v10129, %v9856
        %v10131 = vsel %vm3099, %v10130, %v9860
        %v10132 = vsel %vm437, %v10131, %v9864
        %v10133 = vsel %vm3102, %v10132, %v9868
        %v10134 = vsel %vm3104, %v10133, %v9872
        %v10135 = vsel %vm3106, %v10134, %v9876
        %v10136 = vsel %vm3108, %v10135, %v9880
        %v10137 = vsel %vm3110, %v10136, %v9884
        %v10138 = vsel %vm3112, %v10137, %v9888
        %v10139 = vsel %vm3114, %v10138, %v9892
        %v10140 = vsel %vm439, %v10139, %v9896
        %v10141 = vsel %vm3117, %v10140, %v9900
        %v10142 = vsel %vm3119, %v10141, %v9904
        %v10143 = vsel %vm3121, %v10142, %v9908
        %v10144 = vsel %vm3123, %v10143, %v9912
        %v10145 = vsel %vm3125, %v10144, %v9916
        %v10146 = vsel %vm3127, %v10145, %v9920
        %v10147 = vsel %vm3129, %v10146, %v9924
        %v10148 = vsel %vm441, %v10147, %v9928
        %v10149 = vsel %vm3132, %v10148, %v9932
        %v10150 = vsel %vm3134, %v10149, %v9936
        %v10151 = vsel %vm3136, %v10150, %v9940
        %v10152 = vsel %vm3138, %v10151, %v9944
        %v10153 = vsel %vm3140, %v10152, %v9948
        %v10154 = vsel %vm3142, %v10153, %v9952
        %v10155 = vsel %vm3144, %v10154, %v9956
        %v10156 = vsel %vm443, %v10155, %v9960
        %v10157 = vsel %vm3147, %v10156, %v9964
        %v10158 = vsel %vm3149, %v10157, %v9968
        %v10159 = vsel %vm3151, %v10158, %v9972
        %v10160 = vsel %vm3153, %v10159, %v9976
        %v10161 = vsel %vm3155, %v10160, %v9980
        %v10162 = vsel %vm3157, %v10161, %v9984
        %v10163 = vsel %vm3159, %v10162, %v9988
        %v10164 = vsel %vm445, %v10163, %v9992
        %v10165 = vsel %vm3162, %v10164, %v9996
        %v10166 = vsel %vm3164, %v10165, %v10000
        %v10167 = vsel %vm3166, %v10166, %v10004
        %v10168 = vsel %vm3168, %v10167, %v10008
        %v10169 = vsel %vm3170, %v10168, %v10012
        %v10170 = vsel %vm3172, %v10169, %v10016
        %v10171 = vsel %vm3174, %v10170, %v10020
        %v10172 = vsel %vm447, %v10171, %v10024
        %v10173 = vsel %vm3177, %v10172, %v10028
        %v10174 = vsel %vm3179, %v10173, %v10032
        %v10175 = vsel %vm3181, %v10174, %v10036
        %v10176 = vsel %vm3183, %v10175, %v10040
        %v10177 = vsel %vm3185, %v10176, %v10044
        %v10178 = vsel %vm3187, %v10177, %v10048
        %v10179 = vsel %vm3189, %v10178, %v10052
        %v10180 = vsel %vm5242, %v8130, %v10116
        %v10181 = vsel %vm5243, %v8193, %v10179
        %10183 = vrot.lane.b32.xlu0 %v10180, 96
        %v10184 = vpop.permute.xlu0 %10183
        %10186 = vrot.lane.b32.xlu0 %v10180, 64
        %v10187 = vpop.permute.xlu0 %10186
        %10189 = vrot.lane.b32.xlu0 %v10180, 32
        %v10190 = vpop.permute.xlu0 %10189
        %10193 = vrot.lane.b32.xlu0 %v10181, 96
        %v10194 = vpop.permute.xlu0 %10193
        %10196 = vrot.lane.b32.xlu0 %v10181, 64
        %v10197 = vpop.permute.xlu0 %10196
        %10199 = vrot.lane.b32.xlu0 %v10181, 32
        %v10200 = vpop.permute.xlu0 %10199
        %v10202 = vcombine.low %v10180, %v10187
        %v10204 = vunpack.c.l.s4 1983009808
        %v10205 = vunpack.c.0.s8 %v10204
        %v10206 = vlaneseq
        %v10207 = vshrl.u32 %v10206, 7
        %v10208 = vsub.s32 %v10205, %v10207
        %v10209 = vrot.slane %v10202, %v10208
        %v10210 = vcombine.low %v10184, %v10190
        %v10212 = vunpack.c.l.s4 1983009808
        %v10213 = vunpack.c.0.s8 %v10212
        %v10214 = vlaneseq
        %v10215 = vshrl.u32 %v10214, 7
        %v10216 = vsub.s32 %v10213, %v10215
        %v10217 = vrot.slane %v10210, %v10216
        %v10218 = vcombine.low %v10181, %v10197
        %v10220 = vunpack.c.l.s4 1983009808
        %v10221 = vunpack.c.0.s8 %v10220
        %v10222 = vlaneseq
        %v10223 = vshrl.u32 %v10222, 7
        %v10224 = vsub.s32 %v10221, %v10223
        %v10225 = vrot.slane %v10218, %v10224
        %v10226 = vcombine.low %v10194, %v10200
        %v10228 = vunpack.c.l.s4 1983009808
        %v10229 = vunpack.c.0.s8 %v10228
        %v10230 = vlaneseq
        %v10231 = vshrl.u32 %v10230, 7
        %v10232 = vsub.s32 %v10229, %v10231
        %v10233 = vrot.slane %v10226, %v10232
        %v10234 = vcombine.low %v10209, %v10217
        %v10235 = vcombine.high %v10209, %v10217
        %v10237 = vunpack.c.l.s4 1934713408
        %v10238 = vunpack.c.0.s8 %v10237
        %v10239 = vlaneseq
        %v10240 = vshrl.u32 %v10239, 7
        %v10241 = vsub.s32 %v10238, %v10240
        %v10242 = vrot.slane %v10234, %v10241
        %v10244 = vunpack.c.l.s4 1934713408
        %v10245 = vunpack.c.0.s8 %v10244
        %v10246 = vlaneseq
        %v10247 = vshrl.u32 %v10246, 7
        %v10248 = vsub.s32 %v10245, %v10247
        %v10249 = vrot.slane %v10235, %v10248
        %v10250 = vcombine.low %v10225, %v10233
        %v10251 = vcombine.high %v10225, %v10233
        %v10253 = vunpack.c.l.s4 1934713408
        %v10254 = vunpack.c.0.s8 %v10253
        %v10255 = vlaneseq
        %v10256 = vshrl.u32 %v10255, 7
        %v10257 = vsub.s32 %v10254, %v10256
        %v10258 = vrot.slane %v10250, %v10257
        %v10260 = vunpack.c.l.s4 1934713408
        %v10261 = vunpack.c.0.s8 %v10260
        %v10262 = vlaneseq
        %v10263 = vshrl.u32 %v10262, 7
        %v10264 = vsub.s32 %v10261, %v10263
        %v10265 = vrot.slane %v10251, %v10264
        %v10266 = vcombine.low %v10242, %v10258
        %v10267 = vcombine.high %v10242, %v10258
        %v10268 = vcombine.low %v10249, %v10265
        %v10269 = vcombine.high %v10249, %v10265
        %10274 = vrot.lane.b32.xlu0 %v10266, 32
        %v10275 = vpop.permute.xlu0 %10274
        %10276 = vrot.lane.b32.xlu0 %v10267, 32
        %v10277 = vpop.permute.xlu0 %10276
        %10278 = vrot.lane.b32.xlu0 %v10268, 32
        %v10279 = vpop.permute.xlu0 %10278
        %10280 = vrot.lane.b32.xlu0 %v10269, 32
        %v10281 = vpop.permute.xlu0 %10280
        %vm10286 = vcmask 523520
        %10287 = vst.msk [vmem:[%s173] sm:$0xff] %vm10286, %v10275
        %10288 = vst.msk [vmem:[%s173 + $0x8] sm:$0xff] %vm10286, %v10277
        %10289 = vst.msk [vmem:[%s173 + $0x10] sm:$0xff] %vm10286, %v10279
        %10290 = vst.msk [vmem:[%s173 + $0x18] sm:$0xff] %vm10286, %v10281
        %s10291 = sand.u32 %s104, 1
        %s10292 = sand.u32 %s104, 1
        %s10293 = smul.addr %s10292, 32
        %s10294 = scalar_lea.vmem [#allocation3], %s10293
        // Predicated region
        $region49: #{pare_upsample2d.1} parent=31 // pred_check
          %p10295 = pneg %p114
        $region50: #{pare_upsample2d.1} parent=31 // pred_check_branch
          %10297 = sbr.rel (%p10295) target = $region52
        $region51: #{pare_upsample2d.1} parent=31 // pred_region
          %s10298 = smul.addr %s18, 8
          %s10299 = sadd.s32 %s19, %s10298
          %s10300 = smul.addr %s10299, 8
          %s10301 = scalar_lea.vmem %s3, %s10300
          // Predicated region
          $region53: #{pare_upsample2d.1} parent=51 // pred_check
            _
          $region54: #{pare_upsample2d.1} parent=51 // pred_check_branch
            %10303 = sbr.rel (0) target = $region56
          $region55: #{pare_upsample2d.1} parent=51 // pred_region
            // Predicated region
            $region57: #{pare_upsample2d.1} parent=55 // pred_check
              _
            $region58: #{pare_upsample2d.1} parent=55 // pred_check_branch
              %10305 = sbr.rel (0) target = $region60
            $region59: #{pare_upsample2d.1} parent=55 // pred_region
              // Predicated region
              $region72: #{pare_upsample2d.1} parent=59 // pred_check
                _
              $region73: #{pare_upsample2d.1} parent=59 // pred_check_branch
                %10326 = sbr.rel (0) target = $region75
              $region74: #{pare_upsample2d.1} parent=59 // pred_region
                loop: start=0, step=1, limit=1
                $region76: #{pare_upsample2d.1} parent=74 // loop_pre_header
                  _
                $region77: #{pare_upsample2d.1} parent=74 // loop_header
                  %s10328 = sphi 0, %s10332
                  %p10329 = scmp.ge.s32.totalorder %s10328, 1
                  %s10333 = sphi %s10294, %s10294
                  %s10334 = sphi %s10301, %s10301
                $region78: #{pare_upsample2d.1} parent=74 // loop_header_branch
                  %10331 = sbr.rel (%p10329) target = $region82
                $region79: #{pare_upsample2d.1} parent=74 // loop_body
                  %v10335 = vld [vmem:[%s10333] sm:$0xff]
                  %10336 = vst [vmem:[%s10334] sm:$0xff] %v10335
                  %v10337 = vld [vmem:[%s10333 + $0x8] sm:$0xff]
                  %10338 = vst [vmem:[%s10334 + $0x10] sm:$0xff] %v10337
                  %v10339 = vld [vmem:[%s10333 + $0x10] sm:$0xff]
                  %10340 = vst [vmem:[%s10334 + $0x20] sm:$0xff] %v10339
                  %v10341 = vld [vmem:[%s10333 + $0x18] sm:$0xff]
                  %10342 = vst [vmem:[%s10334 + $0x30] sm:$0xff] %v10341
                $region80: #{pare_upsample2d.1} parent=74 // loop_footer
                  %s10332 = sadd.s32 1, %s10328
                $region81: #{pare_upsample2d.1} parent=74 // loop_footer_branch
                  %10327 = sbr.rel target = $region77
                $region82: #{pare_upsample2d.1} parent=74 // loop_exit
                  _
              $region75: #{pare_upsample2d.1} parent=59 // pred_fallthru
                _
              // Predicated region
              $region83: #{pare_upsample2d.1} parent=59 // pred_check
                _
              $region84: #{pare_upsample2d.1} parent=59 // pred_check_branch
                %10344 = sbr.rel target = $region86
              $region85: #{pare_upsample2d.1} parent=59 // pred_region
                _
              $region86: #{pare_upsample2d.1} parent=59 // pred_fallthru
                _
            $region60: #{pare_upsample2d.1} parent=55 // pred_fallthru
              _
            // Predicated region
            $region61: #{pare_upsample2d.1} parent=55 // pred_check
              _
            $region62: #{pare_upsample2d.1} parent=55 // pred_check_branch
              %10307 = sbr.rel target = $region64
            $region63: #{pare_upsample2d.1} parent=55 // pred_region
              loop: start=0, step=1, limit=1
              $region65: #{pare_upsample2d.1} parent=63 // loop_pre_header
                _
              $region66: #{pare_upsample2d.1} parent=63 // loop_header
                %s10310 = sphi 0, %s10314
                %p10311 = scmp.ge.s32.totalorder %s10310, 1
                %s10315 = sphi %s10294, %s10294
                %s10316 = sphi %s10301, %s10301
              $region67: #{pare_upsample2d.1} parent=63 // loop_header_branch
                %10313 = sbr.rel (%p10311) target = $region71
              $region68: #{pare_upsample2d.1} parent=63 // loop_body
                %v10317 = vld [vmem:[%s10315] sm:$0xff]
                %10318 = vst [vmem:[%s10316] sm:$0xff] %v10317
                %v10319 = vld [vmem:[%s10315 + $0x8] sm:$0xff]
                %10320 = vst [vmem:[%s10316 + $0x10] sm:$0xff] %v10319
                %v10321 = vld [vmem:[%s10315 + $0x10] sm:$0xff]
                %10322 = vst [vmem:[%s10316 + $0x20] sm:$0xff] %v10321
                %v10323 = vld [vmem:[%s10315 + $0x18] sm:$0xff]
                %10324 = vst [vmem:[%s10316 + $0x30] sm:$0xff] %v10323
              $region69: #{pare_upsample2d.1} parent=63 // loop_footer
                %s10314 = sadd.s32 1, %s10310
              $region70: #{pare_upsample2d.1} parent=63 // loop_footer_branch
                %10309 = sbr.rel target = $region66
              $region71: #{pare_upsample2d.1} parent=63 // loop_exit
                _
            $region64: #{pare_upsample2d.1} parent=55 // pred_fallthru
              _
          $region56: #{pare_upsample2d.1} parent=51 // pred_fallthru
            _
          %10345 = vnop
        $region52: #{pare_upsample2d.1} parent=31 // pred_fallthru
          _
      $region32: #{pare_upsample2d.1} parent=5 // pred_fallthru
        _
      %p10346 = scmp.le.s32.totalorder 2, %s9
      // Predicated region
      $region87: #{pare_upsample2d.1} parent=5 // pred_check
        %p10347 = pneg %p10346
      $region88: #{pare_upsample2d.1} parent=5 // pred_check_branch
        %10349 = sbr.rel (%p10347) target = $region90
      $region89: #{pare_upsample2d.1} parent=5 // pred_region
        %s10350 = ssub.s32 %s9, 2
        // Predicated region
        $region91: #{pare_upsample2d.1} parent=89 // pred_check
          %p10351 = pneg %p120
        $region92: #{pare_upsample2d.1} parent=89 // pred_check_branch
          %10353 = sbr.rel (%p10351) target = $region94
        $region93: #{pare_upsample2d.1} parent=89 // pred_region
          %s10354 = sand.u32 %s105, 1
          %s10355 = sand.u32 %s105, 1
          %s10356 = smul.addr %s10355, 32
          %s10357 = scalar_lea.vmem [#allocation3], %s10356
        $region94: #{pare_upsample2d.1} parent=89 // pred_fallthru
          _
      $region90: #{pare_upsample2d.1} parent=5 // pred_fallthru
        _
    $region6: #{pare_upsample2d.1} parent=1 // loop_footer
      %s13 = sadd.s32 1, %s9
    $region7: #{pare_upsample2d.1} parent=1 // loop_footer_branch
      %8 = sbr.rel target = $region3
    $region8: #{pare_upsample2d.1} parent=1 // loop_exit
      _

</llo_original>
